<compile_context>
chip_gen: v7x
topology: tpu7x:2x2x1
jax: 0.10.0
libtpu: 0.0.40
codegen_flags: <defaults>
</compile_context>

<pallas_src>
import math
import numpy as np
import jax
import jax.numpy as jnp
from jax.experimental import pallas as pl
from jax.experimental.pallas import tpu as pltpu

# ---------------- small DiT config (matches module structure, small sizes) ----------------
INPUT_SIZE = 16
PATCH = 2
IN_CH = 4
HIDDEN = 64
DEPTH = 2
HEADS = 4
MLP_RATIO = 4.0
LEARN_SIGMA = True
OUT_CH = IN_CH * 2 if LEARN_SIGMA else IN_CH
FREQ_DIM = 256                       # TimestepEmbedder frequency_embedding_size
HEAD_DIM = HIDDEN // HEADS
GRID_HW = INPUT_SIZE // PATCH
NUM_PATCHES = GRID_HW * GRID_HW      # T = 64
MLP_HID = int(HIDDEN * MLP_RATIO)
LN_EPS = 1e-6
CPP = IN_CH * PATCH * PATCH          # flattened patch dim = 16
N_OUT = PATCH * PATCH * OUT_CH       # final linear true width = 32
OUT_PAD = 128                        # final linear padded to 128 lanes (dense stores)
NBATCH = 2                           # batch folded into rows inside the kernel
NMOD = 6 * DEPTH + 2                 # per-block adaLN vectors + final-layer shift/scale
BF16 = jnp.bfloat16


# ---------------- activations (shared by kernel and reference) ----------------
def _silu(x):
    return x * jax.nn.sigmoid(x)


def _gelu_tanh(x):
    return 0.5 * x * (1.0 + jnp.tanh(np.sqrt(2.0 / np.pi) * (x + 0.044715 * x * x * x)))


# ======================= fused Pallas kernel =======================
def _dit_fused_kernel(xp_ref, posb_ref, mods_ref, onesbd_ref,
                      pw_ref,
                      wq_ref, bq_ref, wk_ref, bk_ref, wv_ref, bv_ref,
                      projw_ref, projb_ref,
                      fc1w_ref, fc1b_ref, fc2w_ref, fc2b_ref,
                      flw_ref, flb_ref,
                      o_ref,
                      kbd_ref, vbd_ref):
    T, D, H, d = NUM_PATCHES, HIDDEN, HEADS, HEAD_DIM

    def mm(a_bf, w_bf):
        # bf16 MXU operands, f32 accumulation
        return jnp.dot(a_bf, w_bf, preferred_element_type=jnp.float32)

    def ln(z):
        mu = jnp.mean(z, axis=-1, keepdims=True)
        var = jnp.mean(jnp.square(z - mu), axis=-1, keepdims=True)
        return (z - mu) * jax.lax.rsqrt(var + LN_EPS)

    def rows(parts):   # list of NBATCH (T, D) blocks -> (NBATCH*T, D)
        return jnp.concatenate(parts, axis=0)

    # zero the block-diagonal scratch ONCE; off-diagonal blocks stay zero across layers
    kbd_ref[...] = jnp.zeros_like(kbd_ref)
    vbd_ref[...] = jnp.zeros_like(vbd_ref)

    ones_bd = onesbd_ref[...]                                  # (H*T, D) bf16 block-diag ones
    mods = [mods_ref[b] for b in range(NBATCH)]                # each (NMOD, D) f32

    # ---- PatchEmbed (conv k=s=p as matmul) + (pos embed + patch bias); x resident in VMEM ----
    x = mm(xp_ref[...].astype(BF16), pw_ref[...]) + posb_ref[...]          # (B*T, D) f32

    for l in range(DEPTH):
        base = 6 * l

        # ---------------- attention ----------------
        zn = ln(x)
        h1 = rows([zn[b * T:(b + 1) * T] * (1.0 + mods[b][base + 1:base + 2])
                   + mods[b][base + 0:base + 1] for b in range(NBATCH)])
        h1b = h1.astype(BF16)
        # separate q/k/v matmuls: no mid-vreg slicing of a fused qkv tensor.
        q = mm(h1b, wq_ref[l]) + bq_ref[l]          # (B*T, D); 1/sqrt(d) folded into Wq/bq
        k = mm(h1b, wk_ref[l]) + bk_ref[l]
        v = mm(h1b, wv_ref[l]) + bv_ref[l]

        # stage block-diagonal K^T / V in bf16 scratch (only the diagonal sub-blocks written)
        for b in range(NBATCH):
            kT = k[b * T:(b + 1) * T].T                              # (D, T) f32
            vb = v[b * T:(b + 1) * T]                                # (T, D) f32
            for h in range(H):
                kbd_ref[b, h * d:(h + 1) * d, h * T:(h + 1) * T] = \
                    kT[h * d:(h + 1) * d, :].astype(BF16)
                vbd_ref[b, h * T:(h + 1) * T, h * d:(h + 1) * d] = \
                    vb[:, h * d:(h + 1) * d].astype(BF16)

        att = []
        for b in range(NBATCH):
            qb = q[b * T:(b + 1) * T].astype(BF16)                   # (T, D)
            s = mm(qb, kbd_ref[b])                                   # (T, H*T) f32, already scaled
            # single global row max is a valid softmax stabilizer for every head block
            e = jnp.exp(s - jnp.max(s, axis=-1, keepdims=True))      # f32, EUP
            eb = e.astype(BF16)
            num = mm(eb, vbd_ref[b])                                 # (T, D) per-head P@V
            den = mm(eb, ones_bd)                                    # (T, D) per-head sums
            att.append(num * pl.reciprocal(den, approx=True))
        a = rows(att)                                                # (B*T, D)

        a = mm(a.astype(BF16), projw_ref[l]) + projb_ref[l]
        x = x + rows([a[b * T:(b + 1) * T] * mods[b][base + 2:base + 3]
                      for b in range(NBATCH)])

        # ---------------- MLP ----------------
        zn = ln(x)
        h2 = rows([zn[b * T:(b + 1) * T] * (1.0 + mods[b][base + 4:base + 5])
                   + mods[b][base + 3:base + 4] for b in range(NBATCH)])
        m = _gelu_tanh(mm(h2.astype(BF16), fc1w_ref[l]) + fc1b_ref[l])      # (B*T, MLP_HID) f32
        m = mm(m.astype(BF16), fc2w_ref[l]) + fc2b_ref[l]                   # (B*T, D)
        x = x + rows([m[b * T:(b + 1) * T] * mods[b][base + 5:base + 6]
                      for b in range(NBATCH)])

    # ---- FinalLayer (columns zero-padded to 128 lanes -> unmasked dense stores) ----
    fo = 6 * DEPTH
    zn = ln(x)
    xf = rows([zn[b * T:(b + 1) * T] * (1.0 + mods[b][fo + 1:fo + 2])
               + mods[b][fo + 0:fo + 1] for b in range(NBATCH)])
    o_ref[...] = mm(xf.astype(BF16), flw_ref[...]) + flb_ref[...]           # (B*T, OUT_PAD)


def _ones_block_diag():
    # (H*T, D) bf16: block (h*T:(h+1)*T, h*d:(h+1)*d) = 1, else 0 (exact in bf16)
    row_h = np.arange(HEADS * NUM_PATCHES)[:, None] // NUM_PATCHES
    col_h = np.arange(HIDDEN)[None, :] // HEAD_DIM
    return jnp.asarray((row_h == col_h).astype(np.float32)).astype(BF16)


# ======================= fixed (non-learned) embeddings =======================
def get_1d_sincos(embed_dim, pos):
    omega = np.arange(embed_dim // 2, dtype=np.float64) / (embed_dim / 2.0)
    omega = 1.0 / 10000 ** omega
    out = np.einsum("m,d->md", pos.reshape(-1), omega)
    return np.concatenate([np.sin(out), np.cos(out)], axis=1)


def get_2d_sincos_pos_embed(embed_dim, grid_size):
    grid_h = np.arange(grid_size, dtype=np.float64)
    grid_w = np.arange(grid_size, dtype=np.float64)
    grid = np.meshgrid(grid_w, grid_h)
    grid = np.stack(grid, axis=0).reshape([2, 1, grid_size, grid_size])
    emb_h = get_1d_sincos(embed_dim // 2, grid[0])
    emb_w = get_1d_sincos(embed_dim // 2, grid[1])
    return np.concatenate([emb_h, emb_w], axis=1).astype(np.float32)


def timestep_embedding(t, dim, max_period=10000):
    half = dim // 2
    freqs = jnp.exp(-math.log(max_period) * jnp.arange(half, dtype=jnp.float32) / half)
    args = t.astype(jnp.float32)[:, None] * freqs[None, :]
    return jnp.concatenate([jnp.cos(args), jnp.sin(args)], axis=-1)


# ======================= parameter init (deterministic, in-script) =======================
def init_params(key):
    keys = iter(jax.random.split(key, 16 + 16 * DEPTH))

    def dense(shape, std):
        return jax.random.normal(next(keys), shape, jnp.float32) * std

    params = dict(
        patch_w=dense((CPP, HIDDEN), 0.1),
        patch_b=dense((HIDDEN,), 0.02),
        t_w1=dense((FREQ_DIM, HIDDEN), 0.02), t_b1=jnp.zeros((HIDDEN,), jnp.float32),
        t_w2=dense((HIDDEN, HIDDEN), 0.02), t_b2=jnp.zeros((HIDDEN,), jnp.float32),
        pos_embed=jnp.asarray(get_2d_sincos_pos_embed(HIDDEN, GRID_HW))[None],
        f_adaln_w=dense((HIDDEN, 2 * HIDDEN), 0.02), f_adaln_b=dense((2 * HIDDEN,), 0.02),
        f_lin_w=dense((HIDDEN, N_OUT), 0.05),
        f_lin_b=jnp.zeros((N_OUT,), jnp.float32),
    )
    blocks = []
    for _ in range(DEPTH):
        blocks.append(dict(
            adaln_w=dense((HIDDEN, 6 * HIDDEN), 0.02), adaln_b=dense((6 * HIDDEN,), 0.02),
            qkv_w=dense((HIDDEN, 3 * HIDDEN), 0.05), qkv_b=jnp.zeros((3 * HIDDEN,), jnp.float32),
            proj_w=dense((HIDDEN, HIDDEN), 0.05), proj_b=jnp.zeros((HIDDEN,), jnp.float32),
            fc1_w=dense((HIDDEN, MLP_HID), 0.05), fc1_b=jnp.zeros((MLP_HID,), jnp.float32),
            fc2_w=dense((MLP_HID, HIDDEN), 0.05), fc2_b=jnp.zeros((HIDDEN,), jnp.float32),
        ))
    params["blocks"] = blocks
    return params


# ======================= Pallas forward =======================
def dit_forward_pallas(params, x, t, y=None):
    N, C, Himg, Wimg = x.shape
    p = PATCH
    gh, gw = Himg // p, Wimg // p
    T, D = gh * gw, HIDDEN
    assert T == NUM_PATCHES and C == IN_CH and N == NBATCH
    R = N * T                                                    # batch folded into rows

    # ---- patchify (pure layout, XLA) ----
    xp = x.reshape(N, C, gh, p, gw, p).transpose(0, 2, 4, 1, 3, 5).reshape(R, CPP)

    # ---- conditioning path: tiny matmuls kept in plain XLA; ONE stacked adaLN matmul ----
    tf = timestep_embedding(t, FREQ_DIM)
    te = _silu(tf @ params["t_w1"] + params["t_b1"]) @ params["t_w2"] + params["t_b2"]
    c = te if y is None else te + y
    cs = _silu(c)
    w_ada = jnp.concatenate([blk["adaln_w"] for blk in params["blocks"]]
                            + [params["f_adaln_w"]], axis=1)    # (D, (6*DEPTH+2)*D)
    b_ada = jnp.concatenate([blk["adaln_b"] for blk in params["blocks"]]
                            + [params["f_adaln_b"]], axis=0)
    mods = (cs @ w_ada + b_ada).reshape(N, NMOD, D)              # (B, 14, D) f32

    # ---- stack / cast weights for the fused kernel (bf16 MXU operands, f32 biases) ----
    bf = lambda a: a.astype(BF16)
    st = lambda name: jnp.stack([blk[name] for blk in params["blocks"]])
    inv_sqrt_d = 1.0 / math.sqrt(HEAD_DIM)                       # folded into Wq/bq (exact: 0.25)
    qkv_w, qkv_b = st("qkv_w"), st("qkv_b")                      # (DEPTH, D, 3D), (DEPTH, 3D)
    wq = bf(qkv_w[:, :, :D] * inv_sqrt_d)
    wk = bf(qkv_w[:, :, D:2 * D])
    wv = bf(qkv_w[:, :, 2 * D:])
    bq = (qkv_b[:, :D] * inv_sqrt_d).reshape(DEPTH, 1, D)
    bk = qkv_b[:, D:2 * D].reshape(DEPTH, 1, D)
    bv = qkv_b[:, 2 * D:].reshape(DEPTH, 1, D)
    projw, projb = bf(st("proj_w")), st("proj_b").reshape(DEPTH, 1, D)
    fc1w, fc1b = bf(st("fc1_w")), st("fc1_b").reshape(DEPTH, 1, MLP_HID)
    fc2w, fc2b = bf(st("fc2_w")), st("fc2_b").reshape(DEPTH, 1, D)
    patch_w = bf(params["patch_w"])
    posb = jnp.tile(params["pos_embed"].reshape(T, D), (N, 1)) + params["patch_b"][None, :]
    flw = bf(jnp.zeros((D, OUT_PAD), jnp.float32).at[:, :N_OUT].set(params["f_lin_w"]))
    flb = jnp.zeros((1, OUT_PAD), jnp.float32).at[0, :N_OUT].set(params["f_lin_b"])
    ones_bd = _ones_block_diag()

    args = [xp, posb, mods, ones_bd, patch_w,
            wq, bq, wk, bk, wv, bv, projw, projb,
            fc1w, fc1b, fc2w, fc2b, flw, flb]

    full = lambda shape: pl.BlockSpec(shape, lambda i, s=shape: (0,) * len(s))

    flops = (DEPTH * (3 * 2 * R * D * D                            # q/k/v
                      + N * (2 * T * D * HEADS * T)                # scores
                      + N * (2 * 2 * T * HEADS * T * D)            # P@V + denominators
                      + 2 * R * D * D                              # proj
                      + 2 * 2 * R * D * MLP_HID)                   # fc1 + fc2
             + 2 * R * CPP * D + 2 * R * D * OUT_PAD)
    transcendentals = DEPTH * (N * T * HEADS * T + R * MLP_HID)
    bytes_accessed = sum(int(np.prod(a.shape)) * a.dtype.itemsize for a in args) \
        + R * OUT_PAD * 4

    out = pl.pallas_call(
        _dit_fused_kernel,
        out_shape=jax.ShapeDtypeStruct((R, OUT_PAD), jnp.float32),
        grid=(1,),
        in_specs=[full(a.shape) for a in args],
        out_specs=full((R, OUT_PAD)),
        scratch_shapes=[
            pltpu.VMEM((NBATCH, D, HEADS * T), BF16),              # block-diag K^T staging
            pltpu.VMEM((NBATCH, HEADS * T, D), BF16),              # block-diag V   staging
        ],
        compiler_params=pltpu.CompilerParams(
            dimension_semantics=("arbitrary",),
        ),
        cost_estimate=pl.CostEstimate(flops=flops,
                                      transcendentals=transcendentals,
                                      bytes_accessed=bytes_accessed),
    )(*args)

    # ---- strip lane padding + unpatchify (pure layout, XLA) ----
    xf = out.reshape(N, T, OUT_PAD)[:, :, :N_OUT].reshape(N, gh, gw, p, p, OUT_CH)
    xf = jnp.einsum("nhwpqc->nchpwq", xf)
    return xf.reshape(N, OUT_CH, gh * p, gw * p)


# ======================= pure-JAX f32 reference =======================
def dit_forward_ref(params, x, t, y=None):
    N, C, Himg, Wimg = x.shape
    p = PATCH
    gh, gw = Himg // p, Wimg // p
    T, D = gh * gw, HIDDEN

    xp = x.reshape(N, C, gh, p, gw, p).transpose(0, 2, 4, 1, 3, 5).reshape(N, T, CPP)
    xseq = (xp @ params["patch_w"] + params["patch_b"]) + params["pos_embed"]

    tf = timestep_embedding(t, FREQ_DIM)
    te = _silu(tf @ params["t_w1"] + params["t_b1"]) @ params["t_w2"] + params["t_b2"]
    c = te if y is None else te + y

    def ln(z):
        mu = z.mean(-1, keepdims=True)
        var = jnp.square(z - mu).mean(-1, keepdims=True)
        return (z - mu) / jnp.sqrt(var + LN_EPS)

    for blk in params["blocks"]:
        mod = _silu(c) @ blk["adaln_w"] + blk["adaln_b"]
        sh_msa, sc_msa, g_msa, sh_mlp, sc_mlp, g_mlp = jnp.split(mod, 6, axis=1)

        h = ln(xseq) * (1 + sc_msa[:, None, :]) + sh_msa[:, None, :]
        qkv = (h @ blk["qkv_w"] + blk["qkv_b"]).reshape(N, T, 3, HEADS, HEAD_DIM)
        q = qkv[:, :, 0].transpose(0, 2, 1, 3)
        k = qkv[:, :, 1].transpose(0, 2, 1, 3)
        v = qkv[:, :, 2].transpose(0, 2, 1, 3)
        s = jnp.einsum("bhqd,bhkd->bhqk", q, k) / math.sqrt(HEAD_DIM)
        pr = jax.nn.softmax(s, axis=-1)
        a = jnp.einsum("bhqk,bhkd->bhqd", pr, v).transpose(0, 2, 1, 3).reshape(N, T, D)
        a = a @ blk["proj_w"] + blk["proj_b"]
        xseq = xseq + g_msa[:, None, :] * a

        h = ln(xseq) * (1 + sc_mlp[:, None, :]) + sh_mlp[:, None, :]
        m = _gelu_tanh(h @ blk["fc1_w"] + blk["fc1_b"]) @ blk["fc2_w"] + blk["fc2_b"]
        xseq = xseq + g_mlp[:, None, :] * m

    fmod = _silu(c) @ params["f_adaln_w"] + params["f_adaln_b"]
    sh, sc = jnp.split(fmod, 2, axis=1)
    xf = ln(xseq) * (1 + sc[:, None, :]) + sh[:, None, :]
    xf = xf @ params["f_lin_w"] + params["f_lin_b"]
    xf = xf.reshape(N, gh, gw, p, p, OUT_CH)
    xf = jnp.einsum("nhwpqc->nchpwq", xf)
    return xf.reshape(N, OUT_CH, gh * p, gw * p)


# ======================= main =======================
if __name__ == "__main__":
    key = jax.random.PRNGKey(0)
    kp, kx, kt, ky = jax.random.split(key, 4)
    params = init_params(kp)

    B = NBATCH
    x = jax.random.normal(kx, (B, IN_CH, INPUT_SIZE, INPUT_SIZE), jnp.float32)
    t = jax.random.uniform(kt, (B,), jnp.float32, 0.0, 1000.0)
    y = jax.random.normal(ky, (B, HIDDEN), jnp.float32) * 0.1

    out = jax.block_until_ready(jax.jit(dit_forward_pallas)(params, x, t, y))
    ref = jax.block_until_ready(jax.jit(dit_forward_ref)(params, x, t, y))

    assert out.shape == (B, OUT_CH, INPUT_SIZE, INPUT_SIZE), out.shape
    assert bool(jnp.all(jnp.isfinite(out)))
    rel_err = float(jnp.max(jnp.abs(out - ref)) / (jnp.max(jnp.abs(ref)) + 1e-8))
    assert rel_err < 1e-2, f"pallas vs reference mismatch: {rel_err}"
    print("KERNEL_OK")
</pallas_src>

<mosaic_0001>
module attributes {stable_mosaic.version = 11 : i64} {
  func.func @_dit_fused_kernel(%arg0: i32, %arg1: memref<128x16xf32, #tpu.memory_space<vmem>>, %arg2: memref<128x64xf32, #tpu.memory_space<vmem>>, %arg3: memref<2x14x64xf32, #tpu.memory_space<vmem>>, %arg4: memref<256x64xbf16, #tpu.memory_space<vmem>>, %arg5: memref<16x64xbf16, #tpu.memory_space<vmem>>, %arg6: memref<2x64x64xbf16, #tpu.memory_space<vmem>>, %arg7: memref<2x1x64xf32, #tpu.memory_space<vmem>>, %arg8: memref<2x64x64xbf16, #tpu.memory_space<vmem>>, %arg9: memref<2x1x64xf32, #tpu.memory_space<vmem>>, %arg10: memref<2x64x64xbf16, #tpu.memory_space<vmem>>, %arg11: memref<2x1x64xf32, #tpu.memory_space<vmem>>, %arg12: memref<2x64x64xbf16, #tpu.memory_space<vmem>>, %arg13: memref<2x1x64xf32, #tpu.memory_space<vmem>>, %arg14: memref<2x64x256xbf16, #tpu.memory_space<vmem>>, %arg15: memref<2x1x256xf32, #tpu.memory_space<vmem>>, %arg16: memref<2x256x64xbf16, #tpu.memory_space<vmem>>, %arg17: memref<2x1x64xf32, #tpu.memory_space<vmem>>, %arg18: memref<64x128xbf16, #tpu.memory_space<vmem>>, %arg19: memref<1x128xf32, #tpu.memory_space<vmem>>, %arg20: memref<128x128xf32, #tpu.memory_space<vmem>>, %arg21: memref<2x64x256xbf16, #tpu.memory_space<vmem>>, %arg22: memref<2x256x64xbf16, #tpu.memory_space<vmem>>) attributes {dimension_semantics = [#tpu.dimension_semantics<arbitrary>], iteration_bounds = array<i64: 1>, scalar_prefetch = 0 : i64, scratch_operands = 2 : i64, tpu.core_type = #tpu.core_type<tc>, window_params = [{pipeline_mode = #tpu.pipeline_mode<synchronous>, transform_indices = @transform_0, window_bounds = array<i64: 128, 16>}, {pipeline_mode = #tpu.pipeline_mode<synchronous>, transform_indices = @transform_1, window_bounds = array<i64: 128, 64>}, {pipeline_mode = #tpu.pipeline_mode<synchronous>, transform_indices = @transform_2, window_bounds = array<i64: 2, 14, 64>}, {pipeline_mode = #tpu.pipeline_mode<synchronous>, transform_indices = @transform_3, window_bounds = array<i64: 256, 64>}, {pipeline_mode = #tpu.pipeline_mode<synchronous>, transform_indices = @transform_4, window_bounds = array<i64: 16, 64>}, {pipeline_mode = #tpu.pipeline_mode<synchronous>, transform_indices = @transform_5, window_bounds = array<i64: 2, 64, 64>}, {pipeline_mode = #tpu.pipeline_mode<synchronous>, transform_indices = @transform_6, window_bounds = array<i64: 2, 1, 64>}, {pipeline_mode = #tpu.pipeline_mode<synchronous>, transform_indices = @transform_7, window_bounds = array<i64: 2, 64, 64>}, {pipeline_mode = #tpu.pipeline_mode<synchronous>, transform_indices = @transform_8, window_bounds = array<i64: 2, 1, 64>}, {pipeline_mode = #tpu.pipeline_mode<synchronous>, transform_indices = @transform_9, window_bounds = array<i64: 2, 64, 64>}, {pipeline_mode = #tpu.pipeline_mode<synchronous>, transform_indices = @transform_10, window_bounds = array<i64: 2, 1, 64>}, {pipeline_mode = #tpu.pipeline_mode<synchronous>, transform_indices = @transform_11, window_bounds = array<i64: 2, 64, 64>}, {pipeline_mode = #tpu.pipeline_mode<synchronous>, transform_indices = @transform_12, window_bounds = array<i64: 2, 1, 64>}, {pipeline_mode = #tpu.pipeline_mode<synchronous>, transform_indices = @transform_13, window_bounds = array<i64: 2, 64, 256>}, {pipeline_mode = #tpu.pipeline_mode<synchronous>, transform_indices = @transform_14, window_bounds = array<i64: 2, 1, 256>}, {pipeline_mode = #tpu.pipeline_mode<synchronous>, transform_indices = @transform_15, window_bounds = array<i64: 2, 256, 64>}, {pipeline_mode = #tpu.pipeline_mode<synchronous>, transform_indices = @transform_16, window_bounds = array<i64: 2, 1, 64>}, {pipeline_mode = #tpu.pipeline_mode<synchronous>, transform_indices = @transform_17, window_bounds = array<i64: 64, 128>}, {pipeline_mode = #tpu.pipeline_mode<synchronous>, transform_indices = @transform_18, window_bounds = array<i64: 1, 128>}, {pipeline_mode = #tpu.pipeline_mode<synchronous>, transform_indices = @transform_19, window_bounds = array<i64: 128, 128>}]} {
    %cst = arith.constant 0.000000e+00 : bf16
    %0 = vector.broadcast %cst : bf16 to vector<2x64x256xbf16>
    %c0 = arith.constant 0 : index
    %c0_0 = arith.constant 0 : index
    %c0_1 = arith.constant 0 : index
    %1 = vector.load %arg21[%c0, %c0_0, %c0_1] : memref<2x64x256xbf16, #tpu.memory_space<vmem>>, vector<2x64x256xbf16>
    tpu.vector_store %arg21[%c0, %c0_0, %c0_1], %0 {strides = array<i32>} : memref<2x64x256xbf16, #tpu.memory_space<vmem>>, vector<2x64x256xbf16>,
    %cst_2 = arith.constant 0.000000e+00 : bf16
    %2 = vector.broadcast %cst_2 : bf16 to vector<2x256x64xbf16>
    %c0_3 = arith.constant 0 : index
    %c0_4 = arith.constant 0 : index
    %c0_5 = arith.constant 0 : index
    %3 = vector.load %arg22[%c0_3, %c0_4, %c0_5] : memref<2x256x64xbf16, #tpu.memory_space<vmem>>, vector<2x256x64xbf16>
    tpu.vector_store %arg22[%c0_3, %c0_4, %c0_5], %2 {strides = array<i32>} : memref<2x256x64xbf16, #tpu.memory_space<vmem>>, vector<2x256x64xbf16>,
    %c0_6 = arith.constant 0 : index
    %c0_7 = arith.constant 0 : index
    %4 = vector.load %arg4[%c0_6, %c0_7] : memref<256x64xbf16, #tpu.memory_space<vmem>>, vector<256x64xbf16>
    %c0_8 = arith.constant 0 : index
    %c0_9 = arith.constant 0 : index
    %c0_10 = arith.constant 0 : index
    %5 = vector.load %arg3[%c0_8, %c0_9, %c0_10] : memref<2x14x64xf32, #tpu.memory_space<vmem>>, vector<1x14x64xf32>
    %6 = vector.shape_cast %5 : vector<1x14x64xf32> to vector<14x64xf32>
    %c1 = arith.constant 1 : index
    %c0_11 = arith.constant 0 : index
    %c0_12 = arith.constant 0 : index
    %7 = vector.load %arg3[%c1, %c0_11, %c0_12] : memref<2x14x64xf32, #tpu.memory_space<vmem>>, vector<1x14x64xf32>
    %8 = vector.shape_cast %7 : vector<1x14x64xf32> to vector<14x64xf32>
    %c0_13 = arith.constant 0 : index
    %c0_14 = arith.constant 0 : index
    %9 = vector.load %arg1[%c0_13, %c0_14] : memref<128x16xf32, #tpu.memory_space<vmem>>, vector<128x16xf32>
    %10 = arith.truncf %9 : vector<128x16xf32> to vector<128x16xbf16>
    %c0_15 = arith.constant 0 : index
    %c0_16 = arith.constant 0 : index
    %11 = vector.load %arg5[%c0_15, %c0_16] : memref<16x64xbf16, #tpu.memory_space<vmem>>, vector<16x64xbf16>
    %cst_17 = arith.constant dense<0.000000e+00> : vector<128x64xf32>
    %12 = tpu.matmul %10, %11, %cst_17 {dimension_numbers = #tpu.dot_dimension_numbers<[1], [0], [0], [1], [0, 0, 1, 1], [], []>} : vector<128x16xbf16>, vector<16x64xbf16>, vector<128x64xf32> -> vector<128x64xf32>
    %c0_18 = arith.constant 0 : index
    %c0_19 = arith.constant 0 : index
    %13 = vector.load %arg2[%c0_18, %c0_19] : memref<128x64xf32, #tpu.memory_space<vmem>>, vector<128x64xf32>
    %14 = arith.addf %12, %13 : vector<128x64xf32>
    %cst_20 = arith.constant dense<0.000000e+00> : vector<128xf32>
    %15 = vector.multi_reduction <add>, %14, %cst_20 [1] : vector<128x64xf32> to vector<128xf32>
    %16 = vector.shape_cast %15 : vector<128xf32> to vector<128x1xf32>
    %cst_21 = arith.constant 6.400000e+01 : f32
    %17 = vector.broadcast %cst_21 : f32 to vector<128x1xf32>
    %18 = arith.divf %16, %17 : vector<128x1xf32>
    %19 = vector.broadcast %18 : vector<128x1xf32> to vector<128x64xf32>
    %20 = arith.subf %14, %19 : vector<128x64xf32>
    %21 = arith.mulf %20, %20 : vector<128x64xf32>
    %cst_22 = arith.constant dense<0.000000e+00> : vector<128xf32>
    %22 = vector.multi_reduction <add>, %21, %cst_22 [1] : vector<128x64xf32> to vector<128xf32>
    %23 = vector.shape_cast %22 : vector<128xf32> to vector<128x1xf32>
    %cst_23 = arith.constant 6.400000e+01 : f32
    %24 = vector.broadcast %cst_23 : f32 to vector<128x1xf32>
    %25 = arith.divf %23, %24 : vector<128x1xf32>
    %26 = vector.broadcast %18 : vector<128x1xf32> to vector<128x64xf32>
    %27 = arith.subf %14, %26 : vector<128x64xf32>
    %cst_24 = arith.constant 9.99999997E-7 : f32
    %28 = vector.broadcast %cst_24 : f32 to vector<128x1xf32>
    %29 = arith.addf %25, %28 : vector<128x1xf32>
    %30 = math.rsqrt %29 : vector<128x1xf32>
    %31 = vector.broadcast %30 : vector<128x1xf32> to vector<128x64xf32>
    %32 = arith.mulf %27, %31 : vector<128x64xf32>
    %33 = vector.extract_strided_slice %32 {offsets = [0, 0], sizes = [64, 64], strides = [1, 1]} : vector<128x64xf32> to vector<64x64xf32>
    %34 = vector.extract_strided_slice %6 {offsets = [1, 0], sizes = [1, 64], strides = [1, 1]} : vector<14x64xf32> to vector<1x64xf32>
    %cst_25 = arith.constant 1.000000e+00 : f32
    %35 = vector.broadcast %cst_25 : f32 to vector<1x64xf32>
    %36 = arith.addf %35, %34 : vector<1x64xf32>
    %37 = vector.broadcast %36 : vector<1x64xf32> to vector<64x64xf32>
    %38 = arith.mulf %33, %37 : vector<64x64xf32>
    %39 = vector.extract_strided_slice %6 {offsets = [0, 0], sizes = [1, 64], strides = [1, 1]} : vector<14x64xf32> to vector<1x64xf32>
    %40 = vector.broadcast %39 : vector<1x64xf32> to vector<64x64xf32>
    %41 = arith.addf %38, %40 : vector<64x64xf32>
    %42 = vector.extract_strided_slice %32 {offsets = [64, 0], sizes = [64, 64], strides = [1, 1]} : vector<128x64xf32> to vector<64x64xf32>
    %43 = vector.extract_strided_slice %8 {offsets = [1, 0], sizes = [1, 64], strides = [1, 1]} : vector<14x64xf32> to vector<1x64xf32>
    %cst_26 = arith.constant 1.000000e+00 : f32
    %44 = vector.broadcast %cst_26 : f32 to vector<1x64xf32>
    %45 = arith.addf %44, %43 : vector<1x64xf32>
    %46 = vector.broadcast %45 : vector<1x64xf32> to vector<64x64xf32>
    %47 = arith.mulf %42, %46 : vector<64x64xf32>
    %48 = vector.extract_strided_slice %8 {offsets = [0, 0], sizes = [1, 64], strides = [1, 1]} : vector<14x64xf32> to vector<1x64xf32>
    %49 = vector.broadcast %48 : vector<1x64xf32> to vector<64x64xf32>
    %50 = arith.addf %47, %49 : vector<64x64xf32>
    %51 = tpu.concatenate %41, %50 in 0 : vector<64x64xf32>, vector<64x64xf32> -> vector<128x64xf32>
    %52 = arith.truncf %51 : vector<128x64xf32> to vector<128x64xbf16>
    %c0_27 = arith.constant 0 : index
    %c0_28 = arith.constant 0 : index
    %c0_29 = arith.constant 0 : index
    %53 = vector.load %arg6[%c0_27, %c0_28, %c0_29] : memref<2x64x64xbf16, #tpu.memory_space<vmem>>, vector<1x64x64xbf16>
    %54 = vector.shape_cast %53 : vector<1x64x64xbf16> to vector<64x64xbf16>
    %cst_30 = arith.constant dense<0.000000e+00> : vector<128x64xf32>
    %55 = tpu.matmul %52, %54, %cst_30 {dimension_numbers = #tpu.dot_dimension_numbers<[1], [0], [0], [1], [0, 0, 1, 1], [], []>} : vector<128x64xbf16>, vector<64x64xbf16>, vector<128x64xf32> -> vector<128x64xf32>
    %c0_31 = arith.constant 0 : index
    %c0_32 = arith.constant 0 : index
    %c0_33 = arith.constant 0 : index
    %56 = vector.load %arg7[%c0_31, %c0_32, %c0_33] : memref<2x1x64xf32, #tpu.memory_space<vmem>>, vector<1x1x64xf32>
    %57 = vector.shape_cast %56 : vector<1x1x64xf32> to vector<1x64xf32>
    %58 = vector.broadcast %57 : vector<1x64xf32> to vector<128x64xf32>
    %59 = arith.addf %55, %58 : vector<128x64xf32>
    %c0_34 = arith.constant 0 : index
    %c0_35 = arith.constant 0 : index
    %c0_36 = arith.constant 0 : index
    %60 = vector.load %arg8[%c0_34, %c0_35, %c0_36] : memref<2x64x64xbf16, #tpu.memory_space<vmem>>, vector<1x64x64xbf16>
    %61 = vector.shape_cast %60 : vector<1x64x64xbf16> to vector<64x64xbf16>
    %cst_37 = arith.constant dense<0.000000e+00> : vector<128x64xf32>
    %62 = tpu.matmul %52, %61, %cst_37 {dimension_numbers = #tpu.dot_dimension_numbers<[1], [0], [0], [1], [0, 0, 1, 1], [], []>} : vector<128x64xbf16>, vector<64x64xbf16>, vector<128x64xf32> -> vector<128x64xf32>
    %c0_38 = arith.constant 0 : index
    %c0_39 = arith.constant 0 : index
    %c0_40 = arith.constant 0 : index
    %63 = vector.load %arg9[%c0_38, %c0_39, %c0_40] : memref<2x1x64xf32, #tpu.memory_space<vmem>>, vector<1x1x64xf32>
    %64 = vector.shape_cast %63 : vector<1x1x64xf32> to vector<1x64xf32>
    %65 = vector.broadcast %64 : vector<1x64xf32> to vector<128x64xf32>
    %66 = arith.addf %62, %65 : vector<128x64xf32>
    %c0_41 = arith.constant 0 : index
    %c0_42 = arith.constant 0 : index
    %c0_43 = arith.constant 0 : index
    %67 = vector.load %arg10[%c0_41, %c0_42, %c0_43] : memref<2x64x64xbf16, #tpu.memory_space<vmem>>, vector<1x64x64xbf16>
    %68 = vector.shape_cast %67 : vector<1x64x64xbf16> to vector<64x64xbf16>
    %cst_44 = arith.constant dense<0.000000e+00> : vector<128x64xf32>
    %69 = tpu.matmul %52, %68, %cst_44 {dimension_numbers = #tpu.dot_dimension_numbers<[1], [0], [0], [1], [0, 0, 1, 1], [], []>} : vector<128x64xbf16>, vector<64x64xbf16>, vector<128x64xf32> -> vector<128x64xf32>
    %c0_45 = arith.constant 0 : index
    %c0_46 = arith.constant 0 : index
    %c0_47 = arith.constant 0 : index
    %70 = vector.load %arg11[%c0_45, %c0_46, %c0_47] : memref<2x1x64xf32, #tpu.memory_space<vmem>>, vector<1x1x64xf32>
    %71 = vector.shape_cast %70 : vector<1x1x64xf32> to vector<1x64xf32>
    %72 = vector.broadcast %71 : vector<1x64xf32> to vector<128x64xf32>
    %73 = arith.addf %69, %72 : vector<128x64xf32>
    %74 = vector.extract_strided_slice %66 {offsets = [0, 0], sizes = [64, 64], strides = [1, 1]} : vector<128x64xf32> to vector<64x64xf32>
    %75 = tpu.transpose %74, [1, 0] : vector<64x64xf32> -> vector<64x64xf32>
    %76 = vector.extract_strided_slice %73 {offsets = [0, 0], sizes = [64, 64], strides = [1, 1]} : vector<128x64xf32> to vector<64x64xf32>
    %77 = vector.extract_strided_slice %75 {offsets = [0, 0], sizes = [16, 64], strides = [1, 1]} : vector<64x64xf32> to vector<16x64xf32>
    %78 = arith.truncf %77 : vector<16x64xf32> to vector<16x64xbf16>
    %c0_48 = arith.constant 0 : index
    %c0_49 = arith.constant 0 : index
    %c0_50 = arith.constant 0 : index
    %79 = vector.load %arg21[%c0_48, %c0_49, %c0_50] : memref<2x64x256xbf16, #tpu.memory_space<vmem>>, vector<1x16x64xbf16>
    %80 = vector.shape_cast %79 : vector<1x16x64xbf16> to vector<16x64xbf16>
    %81 = vector.shape_cast %78 : vector<16x64xbf16> to vector<1x16x64xbf16>
    tpu.vector_store %arg21[%c0_48, %c0_49, %c0_50], %81 {strides = array<i32>} : memref<2x64x256xbf16, #tpu.memory_space<vmem>>, vector<1x16x64xbf16>,
    %82 = vector.extract_strided_slice %76 {offsets = [0, 0], sizes = [64, 16], strides = [1, 1]} : vector<64x64xf32> to vector<64x16xf32>
    %83 = arith.truncf %82 : vector<64x16xf32> to vector<64x16xbf16>
    %c0_51 = arith.constant 0 : index
    %c0_52 = arith.constant 0 : index
    %c0_53 = arith.constant 0 : index
    %84 = vector.load %arg22[%c0_51, %c0_52, %c0_53] : memref<2x256x64xbf16, #tpu.memory_space<vmem>>, vector<1x64x16xbf16>
    %85 = vector.shape_cast %84 : vector<1x64x16xbf16> to vector<64x16xbf16>
    %86 = vector.shape_cast %83 : vector<64x16xbf16> to vector<1x64x16xbf16>
    tpu.vector_store %arg22[%c0_51, %c0_52, %c0_53], %86 {strides = array<i32>} : memref<2x256x64xbf16, #tpu.memory_space<vmem>>, vector<1x64x16xbf16>,
    %87 = vector.extract_strided_slice %75 {offsets = [16, 0], sizes = [16, 64], strides = [1, 1]} : vector<64x64xf32> to vector<16x64xf32>
    %88 = arith.truncf %87 : vector<16x64xf32> to vector<16x64xbf16>
    %c0_54 = arith.constant 0 : index
    %c16 = arith.constant 16 : index
    %c64 = arith.constant 64 : index
    %89 = vector.load %arg21[%c0_54, %c16, %c64] : memref<2x64x256xbf16, #tpu.memory_space<vmem>>, vector<1x16x64xbf16>
    %90 = vector.shape_cast %89 : vector<1x16x64xbf16> to vector<16x64xbf16>
    %91 = vector.shape_cast %88 : vector<16x64xbf16> to vector<1x16x64xbf16>
    tpu.vector_store %arg21[%c0_54, %c16, %c64], %91 {strides = array<i32>} : memref<2x64x256xbf16, #tpu.memory_space<vmem>>, vector<1x16x64xbf16>,
    %92 = vector.extract_strided_slice %76 {offsets = [0, 16], sizes = [64, 16], strides = [1, 1]} : vector<64x64xf32> to vector<64x16xf32>
    %93 = arith.truncf %92 : vector<64x16xf32> to vector<64x16xbf16>
    %c0_55 = arith.constant 0 : index
    %c64_56 = arith.constant 64 : index
    %c16_57 = arith.constant 16 : index
    %94 = vector.load %arg22[%c0_55, %c64_56, %c16_57] : memref<2x256x64xbf16, #tpu.memory_space<vmem>>, vector<1x64x16xbf16>
    %95 = vector.shape_cast %94 : vector<1x64x16xbf16> to vector<64x16xbf16>
    %96 = vector.shape_cast %93 : vector<64x16xbf16> to vector<1x64x16xbf16>
    tpu.vector_store %arg22[%c0_55, %c64_56, %c16_57], %96 {strides = array<i32>} : memref<2x256x64xbf16, #tpu.memory_space<vmem>>, vector<1x64x16xbf16>,
    %97 = vector.extract_strided_slice %75 {offsets = [32, 0], sizes = [16, 64], strides = [1, 1]} : vector<64x64xf32> to vector<16x64xf32>
    %98 = arith.truncf %97 : vector<16x64xf32> to vector<16x64xbf16>
    %c0_58 = arith.constant 0 : index
    %c32 = arith.constant 32 : index
    %c128 = arith.constant 128 : index
    %99 = vector.load %arg21[%c0_58, %c32, %c128] : memref<2x64x256xbf16, #tpu.memory_space<vmem>>, vector<1x16x64xbf16>
    %100 = vector.shape_cast %99 : vector<1x16x64xbf16> to vector<16x64xbf16>
    %101 = vector.shape_cast %98 : vector<16x64xbf16> to vector<1x16x64xbf16>
    tpu.vector_store %arg21[%c0_58, %c32, %c128], %101 {strides = array<i32>} : memref<2x64x256xbf16, #tpu.memory_space<vmem>>, vector<1x16x64xbf16>,
    %102 = vector.extract_strided_slice %76 {offsets = [0, 32], sizes = [64, 16], strides = [1, 1]} : vector<64x64xf32> to vector<64x16xf32>
    %103 = arith.truncf %102 : vector<64x16xf32> to vector<64x16xbf16>
    %c0_59 = arith.constant 0 : index
    %c128_60 = arith.constant 128 : index
    %c32_61 = arith.constant 32 : index
    %104 = vector.load %arg22[%c0_59, %c128_60, %c32_61] : memref<2x256x64xbf16, #tpu.memory_space<vmem>>, vector<1x64x16xbf16>
    %105 = vector.shape_cast %104 : vector<1x64x16xbf16> to vector<64x16xbf16>
    %106 = vector.shape_cast %103 : vector<64x16xbf16> to vector<1x64x16xbf16>
    tpu.vector_store %arg22[%c0_59, %c128_60, %c32_61], %106 {strides = array<i32>} : memref<2x256x64xbf16, #tpu.memory_space<vmem>>, vector<1x64x16xbf16>,
    %107 = vector.extract_strided_slice %75 {offsets = [48, 0], sizes = [16, 64], strides = [1, 1]} : vector<64x64xf32> to vector<16x64xf32>
    %108 = arith.truncf %107 : vector<16x64xf32> to vector<16x64xbf16>
    %c0_62 = arith.constant 0 : index
    %c48 = arith.constant 48 : index
    %c192 = arith.constant 192 : index
    %109 = vector.load %arg21[%c0_62, %c48, %c192] : memref<2x64x256xbf16, #tpu.memory_space<vmem>>, vector<1x16x64xbf16>
    %110 = vector.shape_cast %109 : vector<1x16x64xbf16> to vector<16x64xbf16>
    %111 = vector.shape_cast %108 : vector<16x64xbf16> to vector<1x16x64xbf16>
    tpu.vector_store %arg21[%c0_62, %c48, %c192], %111 {strides = array<i32>} : memref<2x64x256xbf16, #tpu.memory_space<vmem>>, vector<1x16x64xbf16>,
    %112 = vector.extract_strided_slice %76 {offsets = [0, 48], sizes = [64, 16], strides = [1, 1]} : vector<64x64xf32> to vector<64x16xf32>
    %113 = arith.truncf %112 : vector<64x16xf32> to vector<64x16xbf16>
    %c0_63 = arith.constant 0 : index
    %c192_64 = arith.constant 192 : index
    %c48_65 = arith.constant 48 : index
    %114 = vector.load %arg22[%c0_63, %c192_64, %c48_65] : memref<2x256x64xbf16, #tpu.memory_space<vmem>>, vector<1x64x16xbf16>
    %115 = vector.shape_cast %114 : vector<1x64x16xbf16> to vector<64x16xbf16>
    %116 = vector.shape_cast %113 : vector<64x16xbf16> to vector<1x64x16xbf16>
    tpu.vector_store %arg22[%c0_63, %c192_64, %c48_65], %116 {strides = array<i32>} : memref<2x256x64xbf16, #tpu.memory_space<vmem>>, vector<1x64x16xbf16>,
    %117 = vector.extract_strided_slice %66 {offsets = [64, 0], sizes = [64, 64], strides = [1, 1]} : vector<128x64xf32> to vector<64x64xf32>
    %118 = tpu.transpose %117, [1, 0] : vector<64x64xf32> -> vector<64x64xf32>
    %119 = vector.extract_strided_slice %73 {offsets = [64, 0], sizes = [64, 64], strides = [1, 1]} : vector<128x64xf32> to vector<64x64xf32>
    %120 = vector.extract_strided_slice %118 {offsets = [0, 0], sizes = [16, 64], strides = [1, 1]} : vector<64x64xf32> to vector<16x64xf32>
    %121 = arith.truncf %120 : vector<16x64xf32> to vector<16x64xbf16>
    %c1_66 = arith.constant 1 : index
    %c0_67 = arith.constant 0 : index
    %c0_68 = arith.constant 0 : index
    %122 = vector.load %arg21[%c1_66, %c0_67, %c0_68] : memref<2x64x256xbf16, #tpu.memory_space<vmem>>, vector<1x16x64xbf16>
    %123 = vector.shape_cast %122 : vector<1x16x64xbf16> to vector<16x64xbf16>
    %124 = vector.shape_cast %121 : vector<16x64xbf16> to vector<1x16x64xbf16>
    tpu.vector_store %arg21[%c1_66, %c0_67, %c0_68], %124 {strides = array<i32>} : memref<2x64x256xbf16, #tpu.memory_space<vmem>>, vector<1x16x64xbf16>,
    %125 = vector.extract_strided_slice %119 {offsets = [0, 0], sizes = [64, 16], strides = [1, 1]} : vector<64x64xf32> to vector<64x16xf32>
    %126 = arith.truncf %125 : vector<64x16xf32> to vector<64x16xbf16>
    %c1_69 = arith.constant 1 : index
    %c0_70 = arith.constant 0 : index
    %c0_71 = arith.constant 0 : index
    %127 = vector.load %arg22[%c1_69, %c0_70, %c0_71] : memref<2x256x64xbf16, #tpu.memory_space<vmem>>, vector<1x64x16xbf16>
    %128 = vector.shape_cast %127 : vector<1x64x16xbf16> to vector<64x16xbf16>
    %129 = vector.shape_cast %126 : vector<64x16xbf16> to vector<1x64x16xbf16>
    tpu.vector_store %arg22[%c1_69, %c0_70, %c0_71], %129 {strides = array<i32>} : memref<2x256x64xbf16, #tpu.memory_space<vmem>>, vector<1x64x16xbf16>,
    %130 = vector.extract_strided_slice %118 {offsets = [16, 0], sizes = [16, 64], strides = [1, 1]} : vector<64x64xf32> to vector<16x64xf32>
    %131 = arith.truncf %130 : vector<16x64xf32> to vector<16x64xbf16>
    %c1_72 = arith.constant 1 : index
    %c16_73 = arith.constant 16 : index
    %c64_74 = arith.constant 64 : index
    %132 = vector.load %arg21[%c1_72, %c16_73, %c64_74] : memref<2x64x256xbf16, #tpu.memory_space<vmem>>, vector<1x16x64xbf16>
    %133 = vector.shape_cast %132 : vector<1x16x64xbf16> to vector<16x64xbf16>
    %134 = vector.shape_cast %131 : vector<16x64xbf16> to vector<1x16x64xbf16>
    tpu.vector_store %arg21[%c1_72, %c16_73, %c64_74], %134 {strides = array<i32>} : memref<2x64x256xbf16, #tpu.memory_space<vmem>>, vector<1x16x64xbf16>,
    %135 = vector.extract_strided_slice %119 {offsets = [0, 16], sizes = [64, 16], strides = [1, 1]} : vector<64x64xf32> to vector<64x16xf32>
    %136 = arith.truncf %135 : vector<64x16xf32> to vector<64x16xbf16>
    %c1_75 = arith.constant 1 : index
    %c64_76 = arith.constant 64 : index
    %c16_77 = arith.constant 16 : index
    %137 = vector.load %arg22[%c1_75, %c64_76, %c16_77] : memref<2x256x64xbf16, #tpu.memory_space<vmem>>, vector<1x64x16xbf16>
    %138 = vector.shape_cast %137 : vector<1x64x16xbf16> to vector<64x16xbf16>
    %139 = vector.shape_cast %136 : vector<64x16xbf16> to vector<1x64x16xbf16>
    tpu.vector_store %arg22[%c1_75, %c64_76, %c16_77], %139 {strides = array<i32>} : memref<2x256x64xbf16, #tpu.memory_space<vmem>>, vector<1x64x16xbf16>,
    %140 = vector.extract_strided_slice %118 {offsets = [32, 0], sizes = [16, 64], strides = [1, 1]} : vector<64x64xf32> to vector<16x64xf32>
    %141 = arith.truncf %140 : vector<16x64xf32> to vector<16x64xbf16>
    %c1_78 = arith.constant 1 : index
    %c32_79 = arith.constant 32 : index
    %c128_80 = arith.constant 128 : index
    %142 = vector.load %arg21[%c1_78, %c32_79, %c128_80] : memref<2x64x256xbf16, #tpu.memory_space<vmem>>, vector<1x16x64xbf16>
    %143 = vector.shape_cast %142 : vector<1x16x64xbf16> to vector<16x64xbf16>
    %144 = vector.shape_cast %141 : vector<16x64xbf16> to vector<1x16x64xbf16>
    tpu.vector_store %arg21[%c1_78, %c32_79, %c128_80], %144 {strides = array<i32>} : memref<2x64x256xbf16, #tpu.memory_space<vmem>>, vector<1x16x64xbf16>,
    %145 = vector.extract_strided_slice %119 {offsets = [0, 32], sizes = [64, 16], strides = [1, 1]} : vector<64x64xf32> to vector<64x16xf32>
    %146 = arith.truncf %145 : vector<64x16xf32> to vector<64x16xbf16>
    %c1_81 = arith.constant 1 : index
    %c128_82 = arith.constant 128 : index
    %c32_83 = arith.constant 32 : index
    %147 = vector.load %arg22[%c1_81, %c128_82, %c32_83] : memref<2x256x64xbf16, #tpu.memory_space<vmem>>, vector<1x64x16xbf16>
    %148 = vector.shape_cast %147 : vector<1x64x16xbf16> to vector<64x16xbf16>
    %149 = vector.shape_cast %146 : vector<64x16xbf16> to vector<1x64x16xbf16>
    tpu.vector_store %arg22[%c1_81, %c128_82, %c32_83], %149 {strides = array<i32>} : memref<2x256x64xbf16, #tpu.memory_space<vmem>>, vector<1x64x16xbf16>,
    %150 = vector.extract_strided_slice %118 {offsets = [48, 0], sizes = [16, 64], strides = [1, 1]} : vector<64x64xf32> to vector<16x64xf32>
    %151 = arith.truncf %150 : vector<16x64xf32> to vector<16x64xbf16>
    %c1_84 = arith.constant 1 : index
    %c48_85 = arith.constant 48 : index
    %c192_86 = arith.constant 192 : index
    %152 = vector.load %arg21[%c1_84, %c48_85, %c192_86] : memref<2x64x256xbf16, #tpu.memory_space<vmem>>, vector<1x16x64xbf16>
    %153 = vector.shape_cast %152 : vector<1x16x64xbf16> to vector<16x64xbf16>
    %154 = vector.shape_cast %151 : vector<16x64xbf16> to vector<1x16x64xbf16>
    tpu.vector_store %arg21[%c1_84, %c48_85, %c192_86], %154 {strides = array<i32>} : memref<2x64x256xbf16, #tpu.memory_space<vmem>>, vector<1x16x64xbf16>,
    %155 = vector.extract_strided_slice %119 {offsets = [0, 48], sizes = [64, 16], strides = [1, 1]} : vector<64x64xf32> to vector<64x16xf32>
    %156 = arith.truncf %155 : vector<64x16xf32> to vector<64x16xbf16>
    %c1_87 = arith.constant 1 : index
    %c192_88 = arith.constant 192 : index
    %c48_89 = arith.constant 48 : index
    %157 = vector.load %arg22[%c1_87, %c192_88, %c48_89] : memref<2x256x64xbf16, #tpu.memory_space<vmem>>, vector<1x64x16xbf16>
    %158 = vector.shape_cast %157 : vector<1x64x16xbf16> to vector<64x16xbf16>
    %159 = vector.shape_cast %156 : vector<64x16xbf16> to vector<1x64x16xbf16>
    tpu.vector_store %arg22[%c1_87, %c192_88, %c48_89], %159 {strides = array<i32>} : memref<2x256x64xbf16, #tpu.memory_space<vmem>>, vector<1x64x16xbf16>,
    %160 = vector.extract_strided_slice %59 {offsets = [0, 0], sizes = [64, 64], strides = [1, 1]} : vector<128x64xf32> to vector<64x64xf32>
    %161 = arith.truncf %160 : vector<64x64xf32> to vector<64x64xbf16>
    %c0_90 = arith.constant 0 : index
    %c0_91 = arith.constant 0 : index
    %c0_92 = arith.constant 0 : index
    %162 = vector.load %arg21[%c0_90, %c0_91, %c0_92] : memref<2x64x256xbf16, #tpu.memory_space<vmem>>, vector<1x64x256xbf16>
    %163 = vector.shape_cast %162 : vector<1x64x256xbf16> to vector<64x256xbf16>
    %cst_93 = arith.constant dense<0.000000e+00> : vector<64x256xf32>
    %164 = tpu.matmul %161, %163, %cst_93 {dimension_numbers = #tpu.dot_dimension_numbers<[1], [0], [0], [1], [0, 0, 1, 1], [], []>} : vector<64x64xbf16>, vector<64x256xbf16>, vector<64x256xf32> -> vector<64x256xf32>
    %cst_94 = arith.constant dense<0xFF800000> : vector<64xf32>
    %165 = vector.multi_reduction <maximumf>, %164, %cst_94 [1] : vector<64x256xf32> to vector<64xf32>
    %166 = vector.shape_cast %165 : vector<64xf32> to vector<64x1xf32>
    %167 = vector.broadcast %166 : vector<64x1xf32> to vector<64x256xf32>
    %168 = arith.subf %164, %167 : vector<64x256xf32>
    %169 = math.exp %168 : vector<64x256xf32>
    %170 = arith.truncf %169 : vector<64x256xf32> to vector<64x256xbf16>
    %c0_95 = arith.constant 0 : index
    %c0_96 = arith.constant 0 : index
    %c0_97 = arith.constant 0 : index
    %171 = vector.load %arg22[%c0_95, %c0_96, %c0_97] : memref<2x256x64xbf16, #tpu.memory_space<vmem>>, vector<1x256x64xbf16>
    %172 = vector.shape_cast %171 : vector<1x256x64xbf16> to vector<256x64xbf16>
    %cst_98 = arith.constant dense<0.000000e+00> : vector<64x64xf32>
    %173 = tpu.matmul %170, %172, %cst_98 {dimension_numbers = #tpu.dot_dimension_numbers<[1], [0], [0], [1], [0, 0, 1, 1], [], []>} : vector<64x256xbf16>, vector<256x64xbf16>, vector<64x64xf32> -> vector<64x64xf32>
    %cst_99 = arith.constant dense<0.000000e+00> : vector<64x64xf32>
    %174 = tpu.matmul %170, %4, %cst_99 {dimension_numbers = #tpu.dot_dimension_numbers<[1], [0], [0], [1], [0, 0, 1, 1], [], []>} : vector<64x256xbf16>, vector<256x64xbf16>, vector<64x64xf32> -> vector<64x64xf32>
    %175 = tpu.reciprocal %174 {approx = true} : vector<64x64xf32> -> vector<64x64xf32>
    %176 = arith.mulf %173, %175 : vector<64x64xf32>
    %177 = vector.extract_strided_slice %59 {offsets = [64, 0], sizes = [64, 64], strides = [1, 1]} : vector<128x64xf32> to vector<64x64xf32>
    %178 = arith.truncf %177 : vector<64x64xf32> to vector<64x64xbf16>
    %c1_100 = arith.constant 1 : index
    %c0_101 = arith.constant 0 : index
    %c0_102 = arith.constant 0 : index
    %179 = vector.load %arg21[%c1_100, %c0_101, %c0_102] : memref<2x64x256xbf16, #tpu.memory_space<vmem>>, vector<1x64x256xbf16>
    %180 = vector.shape_cast %179 : vector<1x64x256xbf16> to vector<64x256xbf16>
    %cst_103 = arith.constant dense<0.000000e+00> : vector<64x256xf32>
    %181 = tpu.matmul %178, %180, %cst_103 {dimension_numbers = #tpu.dot_dimension_numbers<[1], [0], [0], [1], [0, 0, 1, 1], [], []>} : vector<64x64xbf16>, vector<64x256xbf16>, vector<64x256xf32> -> vector<64x256xf32>
    %cst_104 = arith.constant dense<0xFF800000> : vector<64xf32>
    %182 = vector.multi_reduction <maximumf>, %181, %cst_104 [1] : vector<64x256xf32> to vector<64xf32>
    %183 = vector.shape_cast %182 : vector<64xf32> to vector<64x1xf32>
    %184 = vector.broadcast %183 : vector<64x1xf32> to vector<64x256xf32>
    %185 = arith.subf %181, %184 : vector<64x256xf32>
    %186 = math.exp %185 : vector<64x256xf32>
    %187 = arith.truncf %186 : vector<64x256xf32> to vector<64x256xbf16>
    %c1_105 = arith.constant 1 : index
    %c0_106 = arith.constant 0 : index
    %c0_107 = arith.constant 0 : index
    %188 = vector.load %arg22[%c1_105, %c0_106, %c0_107] : memref<2x256x64xbf16, #tpu.memory_space<vmem>>, vector<1x256x64xbf16>
    %189 = vector.shape_cast %188 : vector<1x256x64xbf16> to vector<256x64xbf16>
    %cst_108 = arith.constant dense<0.000000e+00> : vector<64x64xf32>
    %190 = tpu.matmul %187, %189, %cst_108 {dimension_numbers = #tpu.dot_dimension_numbers<[1], [0], [0], [1], [0, 0, 1, 1], [], []>} : vector<64x256xbf16>, vector<256x64xbf16>, vector<64x64xf32> -> vector<64x64xf32>
    %cst_109 = arith.constant dense<0.000000e+00> : vector<64x64xf32>
    %191 = tpu.matmul %187, %4, %cst_109 {dimension_numbers = #tpu.dot_dimension_numbers<[1], [0], [0], [1], [0, 0, 1, 1], [], []>} : vector<64x256xbf16>, vector<256x64xbf16>, vector<64x64xf32> -> vector<64x64xf32>
    %192 = tpu.reciprocal %191 {approx = true} : vector<64x64xf32> -> vector<64x64xf32>
    %193 = arith.mulf %190, %192 : vector<64x64xf32>
    %194 = tpu.concatenate %176, %193 in 0 : vector<64x64xf32>, vector<64x64xf32> -> vector<128x64xf32>
    %195 = arith.truncf %194 : vector<128x64xf32> to vector<128x64xbf16>
    %c0_110 = arith.constant 0 : index
    %c0_111 = arith.constant 0 : index
    %c0_112 = arith.constant 0 : index
    %196 = vector.load %arg12[%c0_110, %c0_111, %c0_112] : memref<2x64x64xbf16, #tpu.memory_space<vmem>>, vector<1x64x64xbf16>
    %197 = vector.shape_cast %196 : vector<1x64x64xbf16> to vector<64x64xbf16>
    %cst_113 = arith.constant dense<0.000000e+00> : vector<128x64xf32>
    %198 = tpu.matmul %195, %197, %cst_113 {dimension_numbers = #tpu.dot_dimension_numbers<[1], [0], [0], [1], [0, 0, 1, 1], [], []>} : vector<128x64xbf16>, vector<64x64xbf16>, vector<128x64xf32> -> vector<128x64xf32>
    %c0_114 = arith.constant 0 : index
    %c0_115 = arith.constant 0 : index
    %c0_116 = arith.constant 0 : index
    %199 = vector.load %arg13[%c0_114, %c0_115, %c0_116] : memref<2x1x64xf32, #tpu.memory_space<vmem>>, vector<1x1x64xf32>
    %200 = vector.shape_cast %199 : vector<1x1x64xf32> to vector<1x64xf32>
    %201 = vector.broadcast %200 : vector<1x64xf32> to vector<128x64xf32>
    %202 = arith.addf %198, %201 : vector<128x64xf32>
    %203 = vector.extract_strided_slice %202 {offsets = [0, 0], sizes = [64, 64], strides = [1, 1]} : vector<128x64xf32> to vector<64x64xf32>
    %204 = vector.extract_strided_slice %6 {offsets = [2, 0], sizes = [1, 64], strides = [1, 1]} : vector<14x64xf32> to vector<1x64xf32>
    %205 = vector.broadcast %204 : vector<1x64xf32> to vector<64x64xf32>
    %206 = arith.mulf %203, %205 : vector<64x64xf32>
    %207 = vector.extract_strided_slice %202 {offsets = [64, 0], sizes = [64, 64], strides = [1, 1]} : vector<128x64xf32> to vector<64x64xf32>
    %208 = vector.extract_strided_slice %8 {offsets = [2, 0], sizes = [1, 64], strides = [1, 1]} : vector<14x64xf32> to vector<1x64xf32>
    %209 = vector.broadcast %208 : vector<1x64xf32> to vector<64x64xf32>
    %210 = arith.mulf %207, %209 : vector<64x64xf32>
    %211 = tpu.concatenate %206, %210 in 0 : vector<64x64xf32>, vector<64x64xf32> -> vector<128x64xf32>
    %212 = arith.addf %14, %211 : vector<128x64xf32>
    %cst_117 = arith.constant dense<0.000000e+00> : vector<128xf32>
    %213 = vector.multi_reduction <add>, %212, %cst_117 [1] : vector<128x64xf32> to vector<128xf32>
    %214 = vector.shape_cast %213 : vector<128xf32> to vector<128x1xf32>
    %cst_118 = arith.constant 6.400000e+01 : f32
    %215 = vector.broadcast %cst_118 : f32 to vector<128x1xf32>
    %216 = arith.divf %214, %215 : vector<128x1xf32>
    %217 = vector.broadcast %216 : vector<128x1xf32> to vector<128x64xf32>
    %218 = arith.subf %212, %217 : vector<128x64xf32>
    %219 = arith.mulf %218, %218 : vector<128x64xf32>
    %cst_119 = arith.constant dense<0.000000e+00> : vector<128xf32>
    %220 = vector.multi_reduction <add>, %219, %cst_119 [1] : vector<128x64xf32> to vector<128xf32>
    %221 = vector.shape_cast %220 : vector<128xf32> to vector<128x1xf32>
    %cst_120 = arith.constant 6.400000e+01 : f32
    %222 = vector.broadcast %cst_120 : f32 to vector<128x1xf32>
    %223 = arith.divf %221, %222 : vector<128x1xf32>
    %224 = vector.broadcast %216 : vector<128x1xf32> to vector<128x64xf32>
    %225 = arith.subf %212, %224 : vector<128x64xf32>
    %cst_121 = arith.constant 9.99999997E-7 : f32
    %226 = vector.broadcast %cst_121 : f32 to vector<128x1xf32>
    %227 = arith.addf %223, %226 : vector<128x1xf32>
    %228 = math.rsqrt %227 : vector<128x1xf32>
    %229 = vector.broadcast %228 : vector<128x1xf32> to vector<128x64xf32>
    %230 = arith.mulf %225, %229 : vector<128x64xf32>
    %231 = vector.extract_strided_slice %230 {offsets = [0, 0], sizes = [64, 64], strides = [1, 1]} : vector<128x64xf32> to vector<64x64xf32>
    %232 = vector.extract_strided_slice %6 {offsets = [4, 0], sizes = [1, 64], strides = [1, 1]} : vector<14x64xf32> to vector<1x64xf32>
    %cst_122 = arith.constant 1.000000e+00 : f32
    %233 = vector.broadcast %cst_122 : f32 to vector<1x64xf32>
    %234 = arith.addf %233, %232 : vector<1x64xf32>
    %235 = vector.broadcast %234 : vector<1x64xf32> to vector<64x64xf32>
    %236 = arith.mulf %231, %235 : vector<64x64xf32>
    %237 = vector.extract_strided_slice %6 {offsets = [3, 0], sizes = [1, 64], strides = [1, 1]} : vector<14x64xf32> to vector<1x64xf32>
    %238 = vector.broadcast %237 : vector<1x64xf32> to vector<64x64xf32>
    %239 = arith.addf %236, %238 : vector<64x64xf32>
    %240 = vector.extract_strided_slice %230 {offsets = [64, 0], sizes = [64, 64], strides = [1, 1]} : vector<128x64xf32> to vector<64x64xf32>
    %241 = vector.extract_strided_slice %8 {offsets = [4, 0], sizes = [1, 64], strides = [1, 1]} : vector<14x64xf32> to vector<1x64xf32>
    %cst_123 = arith.constant 1.000000e+00 : f32
    %242 = vector.broadcast %cst_123 : f32 to vector<1x64xf32>
    %243 = arith.addf %242, %241 : vector<1x64xf32>
    %244 = vector.broadcast %243 : vector<1x64xf32> to vector<64x64xf32>
    %245 = arith.mulf %240, %244 : vector<64x64xf32>
    %246 = vector.extract_strided_slice %8 {offsets = [3, 0], sizes = [1, 64], strides = [1, 1]} : vector<14x64xf32> to vector<1x64xf32>
    %247 = vector.broadcast %246 : vector<1x64xf32> to vector<64x64xf32>
    %248 = arith.addf %245, %247 : vector<64x64xf32>
    %249 = tpu.concatenate %239, %248 in 0 : vector<64x64xf32>, vector<64x64xf32> -> vector<128x64xf32>
    %250 = arith.truncf %249 : vector<128x64xf32> to vector<128x64xbf16>
    %c0_124 = arith.constant 0 : index
    %c0_125 = arith.constant 0 : index
    %c0_126 = arith.constant 0 : index
    %251 = vector.load %arg14[%c0_124, %c0_125, %c0_126] : memref<2x64x256xbf16, #tpu.memory_space<vmem>>, vector<1x64x256xbf16>
    %252 = vector.shape_cast %251 : vector<1x64x256xbf16> to vector<64x256xbf16>
    %cst_127 = arith.constant dense<0.000000e+00> : vector<128x256xf32>
    %253 = tpu.matmul %250, %252, %cst_127 {dimension_numbers = #tpu.dot_dimension_numbers<[1], [0], [0], [1], [0, 0, 1, 1], [], []>} : vector<128x64xbf16>, vector<64x256xbf16>, vector<128x256xf32> -> vector<128x256xf32>
    %c0_128 = arith.constant 0 : index
    %c0_129 = arith.constant 0 : index
    %c0_130 = arith.constant 0 : index
    %254 = vector.load %arg15[%c0_128, %c0_129, %c0_130] : memref<2x1x256xf32, #tpu.memory_space<vmem>>, vector<1x1x256xf32>
    %255 = vector.shape_cast %254 : vector<1x1x256xf32> to vector<1x256xf32>
    %256 = vector.broadcast %255 : vector<1x256xf32> to vector<128x256xf32>
    %257 = arith.addf %253, %256 : vector<128x256xf32>
    %cst_131 = arith.constant 5.000000e-01 : f32
    %258 = vector.broadcast %cst_131 : f32 to vector<128x256xf32>
    %259 = arith.mulf %258, %257 : vector<128x256xf32>
    %cst_132 = arith.constant 4.471500e-02 : f32
    %260 = vector.broadcast %cst_132 : f32 to vector<128x256xf32>
    %261 = arith.mulf %260, %257 : vector<128x256xf32>
    %262 = arith.mulf %261, %257 : vector<128x256xf32>
    %263 = arith.mulf %262, %257 : vector<128x256xf32>
    %264 = arith.addf %257, %263 : vector<128x256xf32>
    %cst_133 = arith.constant 0.797884583 : f32
    %265 = vector.broadcast %cst_133 : f32 to vector<128x256xf32>
    %266 = arith.mulf %265, %264 : vector<128x256xf32>
    %267 = math.tanh %266 : vector<128x256xf32>
    %cst_134 = arith.constant 1.000000e+00 : f32
    %268 = vector.broadcast %cst_134 : f32 to vector<128x256xf32>
    %269 = arith.addf %268, %267 : vector<128x256xf32>
    %270 = arith.mulf %259, %269 : vector<128x256xf32>
    %271 = arith.truncf %270 : vector<128x256xf32> to vector<128x256xbf16>
    %c0_135 = arith.constant 0 : index
    %c0_136 = arith.constant 0 : index
    %c0_137 = arith.constant 0 : index
    %272 = vector.load %arg16[%c0_135, %c0_136, %c0_137] : memref<2x256x64xbf16, #tpu.memory_space<vmem>>, vector<1x256x64xbf16>
    %273 = vector.shape_cast %272 : vector<1x256x64xbf16> to vector<256x64xbf16>
    %cst_138 = arith.constant dense<0.000000e+00> : vector<128x64xf32>
    %274 = tpu.matmul %271, %273, %cst_138 {dimension_numbers = #tpu.dot_dimension_numbers<[1], [0], [0], [1], [0, 0, 1, 1], [], []>} : vector<128x256xbf16>, vector<256x64xbf16>, vector<128x64xf32> -> vector<128x64xf32>
    %c0_139 = arith.constant 0 : index
    %c0_140 = arith.constant 0 : index
    %c0_141 = arith.constant 0 : index
    %275 = vector.load %arg17[%c0_139, %c0_140, %c0_141] : memref<2x1x64xf32, #tpu.memory_space<vmem>>, vector<1x1x64xf32>
    %276 = vector.shape_cast %275 : vector<1x1x64xf32> to vector<1x64xf32>
    %277 = vector.broadcast %276 : vector<1x64xf32> to vector<128x64xf32>
    %278 = arith.addf %274, %277 : vector<128x64xf32>
    %279 = vector.extract_strided_slice %278 {offsets = [0, 0], sizes = [64, 64], strides = [1, 1]} : vector<128x64xf32> to vector<64x64xf32>
    %280 = vector.extract_strided_slice %6 {offsets = [5, 0], sizes = [1, 64], strides = [1, 1]} : vector<14x64xf32> to vector<1x64xf32>
    %281 = vector.broadcast %280 : vector<1x64xf32> to vector<64x64xf32>
    %282 = arith.mulf %279, %281 : vector<64x64xf32>
    %283 = vector.extract_strided_slice %278 {offsets = [64, 0], sizes = [64, 64], strides = [1, 1]} : vector<128x64xf32> to vector<64x64xf32>
    %284 = vector.extract_strided_slice %8 {offsets = [5, 0], sizes = [1, 64], strides = [1, 1]} : vector<14x64xf32> to vector<1x64xf32>
    %285 = vector.broadcast %284 : vector<1x64xf32> to vector<64x64xf32>
    %286 = arith.mulf %283, %285 : vector<64x64xf32>
    %287 = tpu.concatenate %282, %286 in 0 : vector<64x64xf32>, vector<64x64xf32> -> vector<128x64xf32>
    %288 = arith.addf %212, %287 : vector<128x64xf32>
    %cst_142 = arith.constant dense<0.000000e+00> : vector<128xf32>
    %289 = vector.multi_reduction <add>, %288, %cst_142 [1] : vector<128x64xf32> to vector<128xf32>
    %290 = vector.shape_cast %289 : vector<128xf32> to vector<128x1xf32>
    %cst_143 = arith.constant 6.400000e+01 : f32
    %291 = vector.broadcast %cst_143 : f32 to vector<128x1xf32>
    %292 = arith.divf %290, %291 : vector<128x1xf32>
    %293 = vector.broadcast %292 : vector<128x1xf32> to vector<128x64xf32>
    %294 = arith.subf %288, %293 : vector<128x64xf32>
    %295 = arith.mulf %294, %294 : vector<128x64xf32>
    %cst_144 = arith.constant dense<0.000000e+00> : vector<128xf32>
    %296 = vector.multi_reduction <add>, %295, %cst_144 [1] : vector<128x64xf32> to vector<128xf32>
    %297 = vector.shape_cast %296 : vector<128xf32> to vector<128x1xf32>
    %cst_145 = arith.constant 6.400000e+01 : f32
    %298 = vector.broadcast %cst_145 : f32 to vector<128x1xf32>
    %299 = arith.divf %297, %298 : vector<128x1xf32>
    %300 = vector.broadcast %292 : vector<128x1xf32> to vector<128x64xf32>
    %301 = arith.subf %288, %300 : vector<128x64xf32>
    %cst_146 = arith.constant 9.99999997E-7 : f32
    %302 = vector.broadcast %cst_146 : f32 to vector<128x1xf32>
    %303 = arith.addf %299, %302 : vector<128x1xf32>
    %304 = math.rsqrt %303 : vector<128x1xf32>
    %305 = vector.broadcast %304 : vector<128x1xf32> to vector<128x64xf32>
    %306 = arith.mulf %301, %305 : vector<128x64xf32>
    %307 = vector.extract_strided_slice %306 {offsets = [0, 0], sizes = [64, 64], strides = [1, 1]} : vector<128x64xf32> to vector<64x64xf32>
    %308 = vector.extract_strided_slice %6 {offsets = [7, 0], sizes = [1, 64], strides = [1, 1]} : vector<14x64xf32> to vector<1x64xf32>
    %cst_147 = arith.constant 1.000000e+00 : f32
    %309 = vector.broadcast %cst_147 : f32 to vector<1x64xf32>
    %310 = arith.addf %309, %308 : vector<1x64xf32>
    %311 = vector.broadcast %310 : vector<1x64xf32> to vector<64x64xf32>
    %312 = arith.mulf %307, %311 : vector<64x64xf32>
    %313 = vector.extract_strided_slice %6 {offsets = [6, 0], sizes = [1, 64], strides = [1, 1]} : vector<14x64xf32> to vector<1x64xf32>
    %314 = vector.broadcast %313 : vector<1x64xf32> to vector<64x64xf32>
    %315 = arith.addf %312, %314 : vector<64x64xf32>
    %316 = vector.extract_strided_slice %306 {offsets = [64, 0], sizes = [64, 64], strides = [1, 1]} : vector<128x64xf32> to vector<64x64xf32>
    %317 = vector.extract_strided_slice %8 {offsets = [7, 0], sizes = [1, 64], strides = [1, 1]} : vector<14x64xf32> to vector<1x64xf32>
    %cst_148 = arith.constant 1.000000e+00 : f32
    %318 = vector.broadcast %cst_148 : f32 to vector<1x64xf32>
    %319 = arith.addf %318, %317 : vector<1x64xf32>
    %320 = vector.broadcast %319 : vector<1x64xf32> to vector<64x64xf32>
    %321 = arith.mulf %316, %320 : vector<64x64xf32>
    %322 = vector.extract_strided_slice %8 {offsets = [6, 0], sizes = [1, 64], strides = [1, 1]} : vector<14x64xf32> to vector<1x64xf32>
    %323 = vector.broadcast %322 : vector<1x64xf32> to vector<64x64xf32>
    %324 = arith.addf %321, %323 : vector<64x64xf32>
    %325 = tpu.concatenate %315, %324 in 0 : vector<64x64xf32>, vector<64x64xf32> -> vector<128x64xf32>
    %326 = arith.truncf %325 : vector<128x64xf32> to vector<128x64xbf16>
    %c1_149 = arith.constant 1 : index
    %c0_150 = arith.constant 0 : index
    %c0_151 = arith.constant 0 : index
    %327 = vector.load %arg6[%c1_149, %c0_150, %c0_151] : memref<2x64x64xbf16, #tpu.memory_space<vmem>>, vector<1x64x64xbf16>
    %328 = vector.shape_cast %327 : vector<1x64x64xbf16> to vector<64x64xbf16>
    %cst_152 = arith.constant dense<0.000000e+00> : vector<128x64xf32>
    %329 = tpu.matmul %326, %328, %cst_152 {dimension_numbers = #tpu.dot_dimension_numbers<[1], [0], [0], [1], [0, 0, 1, 1], [], []>} : vector<128x64xbf16>, vector<64x64xbf16>, vector<128x64xf32> -> vector<128x64xf32>
    %c1_153 = arith.constant 1 : index
    %c0_154 = arith.constant 0 : index
    %c0_155 = arith.constant 0 : index
    %330 = vector.load %arg7[%c1_153, %c0_154, %c0_155] : memref<2x1x64xf32, #tpu.memory_space<vmem>>, vector<1x1x64xf32>
    %331 = vector.shape_cast %330 : vector<1x1x64xf32> to vector<1x64xf32>
    %332 = vector.broadcast %331 : vector<1x64xf32> to vector<128x64xf32>
    %333 = arith.addf %329, %332 : vector<128x64xf32>
    %c1_156 = arith.constant 1 : index
    %c0_157 = arith.constant 0 : index
    %c0_158 = arith.constant 0 : index
    %334 = vector.load %arg8[%c1_156, %c0_157, %c0_158] : memref<2x64x64xbf16, #tpu.memory_space<vmem>>, vector<1x64x64xbf16>
    %335 = vector.shape_cast %334 : vector<1x64x64xbf16> to vector<64x64xbf16>
    %cst_159 = arith.constant dense<0.000000e+00> : vector<128x64xf32>
    %336 = tpu.matmul %326, %335, %cst_159 {dimension_numbers = #tpu.dot_dimension_numbers<[1], [0], [0], [1], [0, 0, 1, 1], [], []>} : vector<128x64xbf16>, vector<64x64xbf16>, vector<128x64xf32> -> vector<128x64xf32>
    %c1_160 = arith.constant 1 : index
    %c0_161 = arith.constant 0 : index
    %c0_162 = arith.constant 0 : index
    %337 = vector.load %arg9[%c1_160, %c0_161, %c0_162] : memref<2x1x64xf32, #tpu.memory_space<vmem>>, vector<1x1x64xf32>
    %338 = vector.shape_cast %337 : vector<1x1x64xf32> to vector<1x64xf32>
    %339 = vector.broadcast %338 : vector<1x64xf32> to vector<128x64xf32>
    %340 = arith.addf %336, %339 : vector<128x64xf32>
    %c1_163 = arith.constant 1 : index
    %c0_164 = arith.constant 0 : index
    %c0_165 = arith.constant 0 : index
    %341 = vector.load %arg10[%c1_163, %c0_164, %c0_165] : memref<2x64x64xbf16, #tpu.memory_space<vmem>>, vector<1x64x64xbf16>
    %342 = vector.shape_cast %341 : vector<1x64x64xbf16> to vector<64x64xbf16>
    %cst_166 = arith.constant dense<0.000000e+00> : vector<128x64xf32>
    %343 = tpu.matmul %326, %342, %cst_166 {dimension_numbers = #tpu.dot_dimension_numbers<[1], [0], [0], [1], [0, 0, 1, 1], [], []>} : vector<128x64xbf16>, vector<64x64xbf16>, vector<128x64xf32> -> vector<128x64xf32>
    %c1_167 = arith.constant 1 : index
    %c0_168 = arith.constant 0 : index
    %c0_169 = arith.constant 0 : index
    %344 = vector.load %arg11[%c1_167, %c0_168, %c0_169] : memref<2x1x64xf32, #tpu.memory_space<vmem>>, vector<1x1x64xf32>
    %345 = vector.shape_cast %344 : vector<1x1x64xf32> to vector<1x64xf32>
    %346 = vector.broadcast %345 : vector<1x64xf32> to vector<128x64xf32>
    %347 = arith.addf %343, %346 : vector<128x64xf32>
    %348 = vector.extract_strided_slice %340 {offsets = [0, 0], sizes = [64, 64], strides = [1, 1]} : vector<128x64xf32> to vector<64x64xf32>
    %349 = tpu.transpose %348, [1, 0] : vector<64x64xf32> -> vector<64x64xf32>
    %350 = vector.extract_strided_slice %347 {offsets = [0, 0], sizes = [64, 64], strides = [1, 1]} : vector<128x64xf32> to vector<64x64xf32>
    %351 = vector.extract_strided_slice %349 {offsets = [0, 0], sizes = [16, 64], strides = [1, 1]} : vector<64x64xf32> to vector<16x64xf32>
    %352 = arith.truncf %351 : vector<16x64xf32> to vector<16x64xbf16>
    %c0_170 = arith.constant 0 : index
    %c0_171 = arith.constant 0 : index
    %c0_172 = arith.constant 0 : index
    %353 = vector.load %arg21[%c0_170, %c0_171, %c0_172] : memref<2x64x256xbf16, #tpu.memory_space<vmem>>, vector<1x16x64xbf16>
    %354 = vector.shape_cast %353 : vector<1x16x64xbf16> to vector<16x64xbf16>
    %355 = vector.shape_cast %352 : vector<16x64xbf16> to vector<1x16x64xbf16>
    tpu.vector_store %arg21[%c0_170, %c0_171, %c0_172], %355 {strides = array<i32>} : memref<2x64x256xbf16, #tpu.memory_space<vmem>>, vector<1x16x64xbf16>,
    %356 = vector.extract_strided_slice %350 {offsets = [0, 0], sizes = [64, 16], strides = [1, 1]} : vector<64x64xf32> to vector<64x16xf32>
    %357 = arith.truncf %356 : vector<64x16xf32> to vector<64x16xbf16>
    %c0_173 = arith.constant 0 : index
    %c0_174 = arith.constant 0 : index
    %c0_175 = arith.constant 0 : index
    %358 = vector.load %arg22[%c0_173, %c0_174, %c0_175] : memref<2x256x64xbf16, #tpu.memory_space<vmem>>, vector<1x64x16xbf16>
    %359 = vector.shape_cast %358 : vector<1x64x16xbf16> to vector<64x16xbf16>
    %360 = vector.shape_cast %357 : vector<64x16xbf16> to vector<1x64x16xbf16>
    tpu.vector_store %arg22[%c0_173, %c0_174, %c0_175], %360 {strides = array<i32>} : memref<2x256x64xbf16, #tpu.memory_space<vmem>>, vector<1x64x16xbf16>,
    %361 = vector.extract_strided_slice %349 {offsets = [16, 0], sizes = [16, 64], strides = [1, 1]} : vector<64x64xf32> to vector<16x64xf32>
    %362 = arith.truncf %361 : vector<16x64xf32> to vector<16x64xbf16>
    %c0_176 = arith.constant 0 : index
    %c16_177 = arith.constant 16 : index
    %c64_178 = arith.constant 64 : index
    %363 = vector.load %arg21[%c0_176, %c16_177, %c64_178] : memref<2x64x256xbf16, #tpu.memory_space<vmem>>, vector<1x16x64xbf16>
    %364 = vector.shape_cast %363 : vector<1x16x64xbf16> to vector<16x64xbf16>
    %365 = vector.shape_cast %362 : vector<16x64xbf16> to vector<1x16x64xbf16>
    tpu.vector_store %arg21[%c0_176, %c16_177, %c64_178], %365 {strides = array<i32>} : memref<2x64x256xbf16, #tpu.memory_space<vmem>>, vector<1x16x64xbf16>,
    %366 = vector.extract_strided_slice %350 {offsets = [0, 16], sizes = [64, 16], strides = [1, 1]} : vector<64x64xf32> to vector<64x16xf32>
    %367 = arith.truncf %366 : vector<64x16xf32> to vector<64x16xbf16>
    %c0_179 = arith.constant 0 : index
    %c64_180 = arith.constant 64 : index
    %c16_181 = arith.constant 16 : index
    %368 = vector.load %arg22[%c0_179, %c64_180, %c16_181] : memref<2x256x64xbf16, #tpu.memory_space<vmem>>, vector<1x64x16xbf16>
    %369 = vector.shape_cast %368 : vector<1x64x16xbf16> to vector<64x16xbf16>
    %370 = vector.shape_cast %367 : vector<64x16xbf16> to vector<1x64x16xbf16>
    tpu.vector_store %arg22[%c0_179, %c64_180, %c16_181], %370 {strides = array<i32>} : memref<2x256x64xbf16, #tpu.memory_space<vmem>>, vector<1x64x16xbf16>,
    %371 = vector.extract_strided_slice %349 {offsets = [32, 0], sizes = [16, 64], strides = [1, 1]} : vector<64x64xf32> to vector<16x64xf32>
    %372 = arith.truncf %371 : vector<16x64xf32> to vector<16x64xbf16>
    %c0_182 = arith.constant 0 : index
    %c32_183 = arith.constant 32 : index
    %c128_184 = arith.constant 128 : index
    %373 = vector.load %arg21[%c0_182, %c32_183, %c128_184] : memref<2x64x256xbf16, #tpu.memory_space<vmem>>, vector<1x16x64xbf16>
    %374 = vector.shape_cast %373 : vector<1x16x64xbf16> to vector<16x64xbf16>
    %375 = vector.shape_cast %372 : vector<16x64xbf16> to vector<1x16x64xbf16>
    tpu.vector_store %arg21[%c0_182, %c32_183, %c128_184], %375 {strides = array<i32>} : memref<2x64x256xbf16, #tpu.memory_space<vmem>>, vector<1x16x64xbf16>,
    %376 = vector.extract_strided_slice %350 {offsets = [0, 32], sizes = [64, 16], strides = [1, 1]} : vector<64x64xf32> to vector<64x16xf32>
    %377 = arith.truncf %376 : vector<64x16xf32> to vector<64x16xbf16>
    %c0_185 = arith.constant 0 : index
    %c128_186 = arith.constant 128 : index
    %c32_187 = arith.constant 32 : index
    %378 = vector.load %arg22[%c0_185, %c128_186, %c32_187] : memref<2x256x64xbf16, #tpu.memory_space<vmem>>, vector<1x64x16xbf16>
    %379 = vector.shape_cast %378 : vector<1x64x16xbf16> to vector<64x16xbf16>
    %380 = vector.shape_cast %377 : vector<64x16xbf16> to vector<1x64x16xbf16>
    tpu.vector_store %arg22[%c0_185, %c128_186, %c32_187], %380 {strides = array<i32>} : memref<2x256x64xbf16, #tpu.memory_space<vmem>>, vector<1x64x16xbf16>,
    %381 = vector.extract_strided_slice %349 {offsets = [48, 0], sizes = [16, 64], strides = [1, 1]} : vector<64x64xf32> to vector<16x64xf32>
    %382 = arith.truncf %381 : vector<16x64xf32> to vector<16x64xbf16>
    %c0_188 = arith.constant 0 : index
    %c48_189 = arith.constant 48 : index
    %c192_190 = arith.constant 192 : index
    %383 = vector.load %arg21[%c0_188, %c48_189, %c192_190] : memref<2x64x256xbf16, #tpu.memory_space<vmem>>, vector<1x16x64xbf16>
    %384 = vector.shape_cast %383 : vector<1x16x64xbf16> to vector<16x64xbf16>
    %385 = vector.shape_cast %382 : vector<16x64xbf16> to vector<1x16x64xbf16>
    tpu.vector_store %arg21[%c0_188, %c48_189, %c192_190], %385 {strides = array<i32>} : memref<2x64x256xbf16, #tpu.memory_space<vmem>>, vector<1x16x64xbf16>,
    %386 = vector.extract_strided_slice %350 {offsets = [0, 48], sizes = [64, 16], strides = [1, 1]} : vector<64x64xf32> to vector<64x16xf32>
    %387 = arith.truncf %386 : vector<64x16xf32> to vector<64x16xbf16>
    %c0_191 = arith.constant 0 : index
    %c192_192 = arith.constant 192 : index
    %c48_193 = arith.constant 48 : index
    %388 = vector.load %arg22[%c0_191, %c192_192, %c48_193] : memref<2x256x64xbf16, #tpu.memory_space<vmem>>, vector<1x64x16xbf16>
    %389 = vector.shape_cast %388 : vector<1x64x16xbf16> to vector<64x16xbf16>
    %390 = vector.shape_cast %387 : vector<64x16xbf16> to vector<1x64x16xbf16>
    tpu.vector_store %arg22[%c0_191, %c192_192, %c48_193], %390 {strides = array<i32>} : memref<2x256x64xbf16, #tpu.memory_space<vmem>>, vector<1x64x16xbf16>,
    %391 = vector.extract_strided_slice %340 {offsets = [64, 0], sizes = [64, 64], strides = [1, 1]} : vector<128x64xf32> to vector<64x64xf32>
    %392 = tpu.transpose %391, [1, 0] : vector<64x64xf32> -> vector<64x64xf32>
    %393 = vector.extract_strided_slice %347 {offsets = [64, 0], sizes = [64, 64], strides = [1, 1]} : vector<128x64xf32> to vector<64x64xf32>
    %394 = vector.extract_strided_slice %392 {offsets = [0, 0], sizes = [16, 64], strides = [1, 1]} : vector<64x64xf32> to vector<16x64xf32>
    %395 = arith.truncf %394 : vector<16x64xf32> to vector<16x64xbf16>
    %c1_194 = arith.constant 1 : index
    %c0_195 = arith.constant 0 : index
    %c0_196 = arith.constant 0 : index
    %396 = vector.load %arg21[%c1_194, %c0_195, %c0_196] : memref<2x64x256xbf16, #tpu.memory_space<vmem>>, vector<1x16x64xbf16>
    %397 = vector.shape_cast %396 : vector<1x16x64xbf16> to vector<16x64xbf16>
    %398 = vector.shape_cast %395 : vector<16x64xbf16> to vector<1x16x64xbf16>
    tpu.vector_store %arg21[%c1_194, %c0_195, %c0_196], %398 {strides = array<i32>} : memref<2x64x256xbf16, #tpu.memory_space<vmem>>, vector<1x16x64xbf16>,
    %399 = vector.extract_strided_slice %393 {offsets = [0, 0], sizes = [64, 16], strides = [1, 1]} : vector<64x64xf32> to vector<64x16xf32>
    %400 = arith.truncf %399 : vector<64x16xf32> to vector<64x16xbf16>
    %c1_197 = arith.constant 1 : index
    %c0_198 = arith.constant 0 : index
    %c0_199 = arith.constant 0 : index
    %401 = vector.load %arg22[%c1_197, %c0_198, %c0_199] : memref<2x256x64xbf16, #tpu.memory_space<vmem>>, vector<1x64x16xbf16>
    %402 = vector.shape_cast %401 : vector<1x64x16xbf16> to vector<64x16xbf16>
    %403 = vector.shape_cast %400 : vector<64x16xbf16> to vector<1x64x16xbf16>
    tpu.vector_store %arg22[%c1_197, %c0_198, %c0_199], %403 {strides = array<i32>} : memref<2x256x64xbf16, #tpu.memory_space<vmem>>, vector<1x64x16xbf16>,
    %404 = vector.extract_strided_slice %392 {offsets = [16, 0], sizes = [16, 64], strides = [1, 1]} : vector<64x64xf32> to vector<16x64xf32>
    %405 = arith.truncf %404 : vector<16x64xf32> to vector<16x64xbf16>
    %c1_200 = arith.constant 1 : index
    %c16_201 = arith.constant 16 : index
    %c64_202 = arith.constant 64 : index
    %406 = vector.load %arg21[%c1_200, %c16_201, %c64_202] : memref<2x64x256xbf16, #tpu.memory_space<vmem>>, vector<1x16x64xbf16>
    %407 = vector.shape_cast %406 : vector<1x16x64xbf16> to vector<16x64xbf16>
    %408 = vector.shape_cast %405 : vector<16x64xbf16> to vector<1x16x64xbf16>
    tpu.vector_store %arg21[%c1_200, %c16_201, %c64_202], %408 {strides = array<i32>} : memref<2x64x256xbf16, #tpu.memory_space<vmem>>, vector<1x16x64xbf16>,
    %409 = vector.extract_strided_slice %393 {offsets = [0, 16], sizes = [64, 16], strides = [1, 1]} : vector<64x64xf32> to vector<64x16xf32>
    %410 = arith.truncf %409 : vector<64x16xf32> to vector<64x16xbf16>
    %c1_203 = arith.constant 1 : index
    %c64_204 = arith.constant 64 : index
    %c16_205 = arith.constant 16 : index
    %411 = vector.load %arg22[%c1_203, %c64_204, %c16_205] : memref<2x256x64xbf16, #tpu.memory_space<vmem>>, vector<1x64x16xbf16>
    %412 = vector.shape_cast %411 : vector<1x64x16xbf16> to vector<64x16xbf16>
    %413 = vector.shape_cast %410 : vector<64x16xbf16> to vector<1x64x16xbf16>
    tpu.vector_store %arg22[%c1_203, %c64_204, %c16_205], %413 {strides = array<i32>} : memref<2x256x64xbf16, #tpu.memory_space<vmem>>, vector<1x64x16xbf16>,
    %414 = vector.extract_strided_slice %392 {offsets = [32, 0], sizes = [16, 64], strides = [1, 1]} : vector<64x64xf32> to vector<16x64xf32>
    %415 = arith.truncf %414 : vector<16x64xf32> to vector<16x64xbf16>
    %c1_206 = arith.constant 1 : index
    %c32_207 = arith.constant 32 : index
    %c128_208 = arith.constant 128 : index
    %416 = vector.load %arg21[%c1_206, %c32_207, %c128_208] : memref<2x64x256xbf16, #tpu.memory_space<vmem>>, vector<1x16x64xbf16>
    %417 = vector.shape_cast %416 : vector<1x16x64xbf16> to vector<16x64xbf16>
    %418 = vector.shape_cast %415 : vector<16x64xbf16> to vector<1x16x64xbf16>
    tpu.vector_store %arg21[%c1_206, %c32_207, %c128_208], %418 {strides = array<i32>} : memref<2x64x256xbf16, #tpu.memory_space<vmem>>, vector<1x16x64xbf16>,
    %419 = vector.extract_strided_slice %393 {offsets = [0, 32], sizes = [64, 16], strides = [1, 1]} : vector<64x64xf32> to vector<64x16xf32>
    %420 = arith.truncf %419 : vector<64x16xf32> to vector<64x16xbf16>
    %c1_209 = arith.constant 1 : index
    %c128_210 = arith.constant 128 : index
    %c32_211 = arith.constant 32 : index
    %421 = vector.load %arg22[%c1_209, %c128_210, %c32_211] : memref<2x256x64xbf16, #tpu.memory_space<vmem>>, vector<1x64x16xbf16>
    %422 = vector.shape_cast %421 : vector<1x64x16xbf16> to vector<64x16xbf16>
    %423 = vector.shape_cast %420 : vector<64x16xbf16> to vector<1x64x16xbf16>
    tpu.vector_store %arg22[%c1_209, %c128_210, %c32_211], %423 {strides = array<i32>} : memref<2x256x64xbf16, #tpu.memory_space<vmem>>, vector<1x64x16xbf16>,
    %424 = vector.extract_strided_slice %392 {offsets = [48, 0], sizes = [16, 64], strides = [1, 1]} : vector<64x64xf32> to vector<16x64xf32>
    %425 = arith.truncf %424 : vector<16x64xf32> to vector<16x64xbf16>
    %c1_212 = arith.constant 1 : index
    %c48_213 = arith.constant 48 : index
    %c192_214 = arith.constant 192 : index
    %426 = vector.load %arg21[%c1_212, %c48_213, %c192_214] : memref<2x64x256xbf16, #tpu.memory_space<vmem>>, vector<1x16x64xbf16>
    %427 = vector.shape_cast %426 : vector<1x16x64xbf16> to vector<16x64xbf16>
    %428 = vector.shape_cast %425 : vector<16x64xbf16> to vector<1x16x64xbf16>
    tpu.vector_store %arg21[%c1_212, %c48_213, %c192_214], %428 {strides = array<i32>} : memref<2x64x256xbf16, #tpu.memory_space<vmem>>, vector<1x16x64xbf16>,
    %429 = vector.extract_strided_slice %393 {offsets = [0, 48], sizes = [64, 16], strides = [1, 1]} : vector<64x64xf32> to vector<64x16xf32>
    %430 = arith.truncf %429 : vector<64x16xf32> to vector<64x16xbf16>
    %c1_215 = arith.constant 1 : index
    %c192_216 = arith.constant 192 : index
    %c48_217 = arith.constant 48 : index
    %431 = vector.load %arg22[%c1_215, %c192_216, %c48_217] : memref<2x256x64xbf16, #tpu.memory_space<vmem>>, vector<1x64x16xbf16>
    %432 = vector.shape_cast %431 : vector<1x64x16xbf16> to vector<64x16xbf16>
    %433 = vector.shape_cast %430 : vector<64x16xbf16> to vector<1x64x16xbf16>
    tpu.vector_store %arg22[%c1_215, %c192_216, %c48_217], %433 {strides = array<i32>} : memref<2x256x64xbf16, #tpu.memory_space<vmem>>, vector<1x64x16xbf16>,
    %434 = vector.extract_strided_slice %333 {offsets = [0, 0], sizes = [64, 64], strides = [1, 1]} : vector<128x64xf32> to vector<64x64xf32>
    %435 = arith.truncf %434 : vector<64x64xf32> to vector<64x64xbf16>
    %c0_218 = arith.constant 0 : index
    %c0_219 = arith.constant 0 : index
    %c0_220 = arith.constant 0 : index
    %436 = vector.load %arg21[%c0_218, %c0_219, %c0_220] : memref<2x64x256xbf16, #tpu.memory_space<vmem>>, vector<1x64x256xbf16>
    %437 = vector.shape_cast %436 : vector<1x64x256xbf16> to vector<64x256xbf16>
    %cst_221 = arith.constant dense<0.000000e+00> : vector<64x256xf32>
    %438 = tpu.matmul %435, %437, %cst_221 {dimension_numbers = #tpu.dot_dimension_numbers<[1], [0], [0], [1], [0, 0, 1, 1], [], []>} : vector<64x64xbf16>, vector<64x256xbf16>, vector<64x256xf32> -> vector<64x256xf32>
    %cst_222 = arith.constant dense<0xFF800000> : vector<64xf32>
    %439 = vector.multi_reduction <maximumf>, %438, %cst_222 [1] : vector<64x256xf32> to vector<64xf32>
    %440 = vector.shape_cast %439 : vector<64xf32> to vector<64x1xf32>
    %441 = vector.broadcast %440 : vector<64x1xf32> to vector<64x256xf32>
    %442 = arith.subf %438, %441 : vector<64x256xf32>
    %443 = math.exp %442 : vector<64x256xf32>
    %444 = arith.truncf %443 : vector<64x256xf32> to vector<64x256xbf16>
    %c0_223 = arith.constant 0 : index
    %c0_224 = arith.constant 0 : index
    %c0_225 = arith.constant 0 : index
    %445 = vector.load %arg22[%c0_223, %c0_224, %c0_225] : memref<2x256x64xbf16, #tpu.memory_space<vmem>>, vector<1x256x64xbf16>
    %446 = vector.shape_cast %445 : vector<1x256x64xbf16> to vector<256x64xbf16>
    %cst_226 = arith.constant dense<0.000000e+00> : vector<64x64xf32>
    %447 = tpu.matmul %444, %446, %cst_226 {dimension_numbers = #tpu.dot_dimension_numbers<[1], [0], [0], [1], [0, 0, 1, 1], [], []>} : vector<64x256xbf16>, vector<256x64xbf16>, vector<64x64xf32> -> vector<64x64xf32>
    %cst_227 = arith.constant dense<0.000000e+00> : vector<64x64xf32>
    %448 = tpu.matmul %444, %4, %cst_227 {dimension_numbers = #tpu.dot_dimension_numbers<[1], [0], [0], [1], [0, 0, 1, 1], [], []>} : vector<64x256xbf16>, vector<256x64xbf16>, vector<64x64xf32> -> vector<64x64xf32>
    %449 = tpu.reciprocal %448 {approx = true} : vector<64x64xf32> -> vector<64x64xf32>
    %450 = arith.mulf %447, %449 : vector<64x64xf32>
    %451 = vector.extract_strided_slice %333 {offsets = [64, 0], sizes = [64, 64], strides = [1, 1]} : vector<128x64xf32> to vector<64x64xf32>
    %452 = arith.truncf %451 : vector<64x64xf32> to vector<64x64xbf16>
    %c1_228 = arith.constant 1 : index
    %c0_229 = arith.constant 0 : index
    %c0_230 = arith.constant 0 : index
    %453 = vector.load %arg21[%c1_228, %c0_229, %c0_230] : memref<2x64x256xbf16, #tpu.memory_space<vmem>>, vector<1x64x256xbf16>
    %454 = vector.shape_cast %453 : vector<1x64x256xbf16> to vector<64x256xbf16>
    %cst_231 = arith.constant dense<0.000000e+00> : vector<64x256xf32>
    %455 = tpu.matmul %452, %454, %cst_231 {dimension_numbers = #tpu.dot_dimension_numbers<[1], [0], [0], [1], [0, 0, 1, 1], [], []>} : vector<64x64xbf16>, vector<64x256xbf16>, vector<64x256xf32> -> vector<64x256xf32>
    %cst_232 = arith.constant dense<0xFF800000> : vector<64xf32>
    %456 = vector.multi_reduction <maximumf>, %455, %cst_232 [1] : vector<64x256xf32> to vector<64xf32>
    %457 = vector.shape_cast %456 : vector<64xf32> to vector<64x1xf32>
    %458 = vector.broadcast %457 : vector<64x1xf32> to vector<64x256xf32>
    %459 = arith.subf %455, %458 : vector<64x256xf32>
    %460 = math.exp %459 : vector<64x256xf32>
    %461 = arith.truncf %460 : vector<64x256xf32> to vector<64x256xbf16>
    %c1_233 = arith.constant 1 : index
    %c0_234 = arith.constant 0 : index
    %c0_235 = arith.constant 0 : index
    %462 = vector.load %arg22[%c1_233, %c0_234, %c0_235] : memref<2x256x64xbf16, #tpu.memory_space<vmem>>, vector<1x256x64xbf16>
    %463 = vector.shape_cast %462 : vector<1x256x64xbf16> to vector<256x64xbf16>
    %cst_236 = arith.constant dense<0.000000e+00> : vector<64x64xf32>
    %464 = tpu.matmul %461, %463, %cst_236 {dimension_numbers = #tpu.dot_dimension_numbers<[1], [0], [0], [1], [0, 0, 1, 1], [], []>} : vector<64x256xbf16>, vector<256x64xbf16>, vector<64x64xf32> -> vector<64x64xf32>
    %cst_237 = arith.constant dense<0.000000e+00> : vector<64x64xf32>
    %465 = tpu.matmul %461, %4, %cst_237 {dimension_numbers = #tpu.dot_dimension_numbers<[1], [0], [0], [1], [0, 0, 1, 1], [], []>} : vector<64x256xbf16>, vector<256x64xbf16>, vector<64x64xf32> -> vector<64x64xf32>
    %466 = tpu.reciprocal %465 {approx = true} : vector<64x64xf32> -> vector<64x64xf32>
    %467 = arith.mulf %464, %466 : vector<64x64xf32>
    %468 = tpu.concatenate %450, %467 in 0 : vector<64x64xf32>, vector<64x64xf32> -> vector<128x64xf32>
    %469 = arith.truncf %468 : vector<128x64xf32> to vector<128x64xbf16>
    %c1_238 = arith.constant 1 : index
    %c0_239 = arith.constant 0 : index
    %c0_240 = arith.constant 0 : index
    %470 = vector.load %arg12[%c1_238, %c0_239, %c0_240] : memref<2x64x64xbf16, #tpu.memory_space<vmem>>, vector<1x64x64xbf16>
    %471 = vector.shape_cast %470 : vector<1x64x64xbf16> to vector<64x64xbf16>
    %cst_241 = arith.constant dense<0.000000e+00> : vector<128x64xf32>
    %472 = tpu.matmul %469, %471, %cst_241 {dimension_numbers = #tpu.dot_dimension_numbers<[1], [0], [0], [1], [0, 0, 1, 1], [], []>} : vector<128x64xbf16>, vector<64x64xbf16>, vector<128x64xf32> -> vector<128x64xf32>
    %c1_242 = arith.constant 1 : index
    %c0_243 = arith.constant 0 : index
    %c0_244 = arith.constant 0 : index
    %473 = vector.load %arg13[%c1_242, %c0_243, %c0_244] : memref<2x1x64xf32, #tpu.memory_space<vmem>>, vector<1x1x64xf32>
    %474 = vector.shape_cast %473 : vector<1x1x64xf32> to vector<1x64xf32>
    %475 = vector.broadcast %474 : vector<1x64xf32> to vector<128x64xf32>
    %476 = arith.addf %472, %475 : vector<128x64xf32>
    %477 = vector.extract_strided_slice %476 {offsets = [0, 0], sizes = [64, 64], strides = [1, 1]} : vector<128x64xf32> to vector<64x64xf32>
    %478 = vector.extract_strided_slice %6 {offsets = [8, 0], sizes = [1, 64], strides = [1, 1]} : vector<14x64xf32> to vector<1x64xf32>
    %479 = vector.broadcast %478 : vector<1x64xf32> to vector<64x64xf32>
    %480 = arith.mulf %477, %479 : vector<64x64xf32>
    %481 = vector.extract_strided_slice %476 {offsets = [64, 0], sizes = [64, 64], strides = [1, 1]} : vector<128x64xf32> to vector<64x64xf32>
    %482 = vector.extract_strided_slice %8 {offsets = [8, 0], sizes = [1, 64], strides = [1, 1]} : vector<14x64xf32> to vector<1x64xf32>
    %483 = vector.broadcast %482 : vector<1x64xf32> to vector<64x64xf32>
    %484 = arith.mulf %481, %483 : vector<64x64xf32>
    %485 = tpu.concatenate %480, %484 in 0 : vector<64x64xf32>, vector<64x64xf32> -> vector<128x64xf32>
    %486 = arith.addf %288, %485 : vector<128x64xf32>
    %cst_245 = arith.constant dense<0.000000e+00> : vector<128xf32>
    %487 = vector.multi_reduction <add>, %486, %cst_245 [1] : vector<128x64xf32> to vector<128xf32>
    %488 = vector.shape_cast %487 : vector<128xf32> to vector<128x1xf32>
    %cst_246 = arith.constant 6.400000e+01 : f32
    %489 = vector.broadcast %cst_246 : f32 to vector<128x1xf32>
    %490 = arith.divf %488, %489 : vector<128x1xf32>
    %491 = vector.broadcast %490 : vector<128x1xf32> to vector<128x64xf32>
    %492 = arith.subf %486, %491 : vector<128x64xf32>
    %493 = arith.mulf %492, %492 : vector<128x64xf32>
    %cst_247 = arith.constant dense<0.000000e+00> : vector<128xf32>
    %494 = vector.multi_reduction <add>, %493, %cst_247 [1] : vector<128x64xf32> to vector<128xf32>
    %495 = vector.shape_cast %494 : vector<128xf32> to vector<128x1xf32>
    %cst_248 = arith.constant 6.400000e+01 : f32
    %496 = vector.broadcast %cst_248 : f32 to vector<128x1xf32>
    %497 = arith.divf %495, %496 : vector<128x1xf32>
    %498 = vector.broadcast %490 : vector<128x1xf32> to vector<128x64xf32>
    %499 = arith.subf %486, %498 : vector<128x64xf32>
    %cst_249 = arith.constant 9.99999997E-7 : f32
    %500 = vector.broadcast %cst_249 : f32 to vector<128x1xf32>
    %501 = arith.addf %497, %500 : vector<128x1xf32>
    %502 = math.rsqrt %501 : vector<128x1xf32>
    %503 = vector.broadcast %502 : vector<128x1xf32> to vector<128x64xf32>
    %504 = arith.mulf %499, %503 : vector<128x64xf32>
    %505 = vector.extract_strided_slice %504 {offsets = [0, 0], sizes = [64, 64], strides = [1, 1]} : vector<128x64xf32> to vector<64x64xf32>
    %506 = vector.extract_strided_slice %6 {offsets = [10, 0], sizes = [1, 64], strides = [1, 1]} : vector<14x64xf32> to vector<1x64xf32>
    %cst_250 = arith.constant 1.000000e+00 : f32
    %507 = vector.broadcast %cst_250 : f32 to vector<1x64xf32>
    %508 = arith.addf %507, %506 : vector<1x64xf32>
    %509 = vector.broadcast %508 : vector<1x64xf32> to vector<64x64xf32>
    %510 = arith.mulf %505, %509 : vector<64x64xf32>
    %511 = vector.extract_strided_slice %6 {offsets = [9, 0], sizes = [1, 64], strides = [1, 1]} : vector<14x64xf32> to vector<1x64xf32>
    %512 = vector.broadcast %511 : vector<1x64xf32> to vector<64x64xf32>
    %513 = arith.addf %510, %512 : vector<64x64xf32>
    %514 = vector.extract_strided_slice %504 {offsets = [64, 0], sizes = [64, 64], strides = [1, 1]} : vector<128x64xf32> to vector<64x64xf32>
    %515 = vector.extract_strided_slice %8 {offsets = [10, 0], sizes = [1, 64], strides = [1, 1]} : vector<14x64xf32> to vector<1x64xf32>
    %cst_251 = arith.constant 1.000000e+00 : f32
    %516 = vector.broadcast %cst_251 : f32 to vector<1x64xf32>
    %517 = arith.addf %516, %515 : vector<1x64xf32>
    %518 = vector.broadcast %517 : vector<1x64xf32> to vector<64x64xf32>
    %519 = arith.mulf %514, %518 : vector<64x64xf32>
    %520 = vector.extract_strided_slice %8 {offsets = [9, 0], sizes = [1, 64], strides = [1, 1]} : vector<14x64xf32> to vector<1x64xf32>
    %521 = vector.broadcast %520 : vector<1x64xf32> to vector<64x64xf32>
    %522 = arith.addf %519, %521 : vector<64x64xf32>
    %523 = tpu.concatenate %513, %522 in 0 : vector<64x64xf32>, vector<64x64xf32> -> vector<128x64xf32>
    %524 = arith.truncf %523 : vector<128x64xf32> to vector<128x64xbf16>
    %c1_252 = arith.constant 1 : index
    %c0_253 = arith.constant 0 : index
    %c0_254 = arith.constant 0 : index
    %525 = vector.load %arg14[%c1_252, %c0_253, %c0_254] : memref<2x64x256xbf16, #tpu.memory_space<vmem>>, vector<1x64x256xbf16>
    %526 = vector.shape_cast %525 : vector<1x64x256xbf16> to vector<64x256xbf16>
    %cst_255 = arith.constant dense<0.000000e+00> : vector<128x256xf32>
    %527 = tpu.matmul %524, %526, %cst_255 {dimension_numbers = #tpu.dot_dimension_numbers<[1], [0], [0], [1], [0, 0, 1, 1], [], []>} : vector<128x64xbf16>, vector<64x256xbf16>, vector<128x256xf32> -> vector<128x256xf32>
    %c1_256 = arith.constant 1 : index
    %c0_257 = arith.constant 0 : index
    %c0_258 = arith.constant 0 : index
    %528 = vector.load %arg15[%c1_256, %c0_257, %c0_258] : memref<2x1x256xf32, #tpu.memory_space<vmem>>, vector<1x1x256xf32>
    %529 = vector.shape_cast %528 : vector<1x1x256xf32> to vector<1x256xf32>
    %530 = vector.broadcast %529 : vector<1x256xf32> to vector<128x256xf32>
    %531 = arith.addf %527, %530 : vector<128x256xf32>
    %cst_259 = arith.constant 5.000000e-01 : f32
    %532 = vector.broadcast %cst_259 : f32 to vector<128x256xf32>
    %533 = arith.mulf %532, %531 : vector<128x256xf32>
    %cst_260 = arith.constant 4.471500e-02 : f32
    %534 = vector.broadcast %cst_260 : f32 to vector<128x256xf32>
    %535 = arith.mulf %534, %531 : vector<128x256xf32>
    %536 = arith.mulf %535, %531 : vector<128x256xf32>
    %537 = arith.mulf %536, %531 : vector<128x256xf32>
    %538 = arith.addf %531, %537 : vector<128x256xf32>
    %cst_261 = arith.constant 0.797884583 : f32
    %539 = vector.broadcast %cst_261 : f32 to vector<128x256xf32>
    %540 = arith.mulf %539, %538 : vector<128x256xf32>
    %541 = math.tanh %540 : vector<128x256xf32>
    %cst_262 = arith.constant 1.000000e+00 : f32
    %542 = vector.broadcast %cst_262 : f32 to vector<128x256xf32>
    %543 = arith.addf %542, %541 : vector<128x256xf32>
    %544 = arith.mulf %533, %543 : vector<128x256xf32>
    %545 = arith.truncf %544 : vector<128x256xf32> to vector<128x256xbf16>
    %c1_263 = arith.constant 1 : index
    %c0_264 = arith.constant 0 : index
    %c0_265 = arith.constant 0 : index
    %546 = vector.load %arg16[%c1_263, %c0_264, %c0_265] : memref<2x256x64xbf16, #tpu.memory_space<vmem>>, vector<1x256x64xbf16>
    %547 = vector.shape_cast %546 : vector<1x256x64xbf16> to vector<256x64xbf16>
    %cst_266 = arith.constant dense<0.000000e+00> : vector<128x64xf32>
    %548 = tpu.matmul %545, %547, %cst_266 {dimension_numbers = #tpu.dot_dimension_numbers<[1], [0], [0], [1], [0, 0, 1, 1], [], []>} : vector<128x256xbf16>, vector<256x64xbf16>, vector<128x64xf32> -> vector<128x64xf32>
    %c1_267 = arith.constant 1 : index
    %c0_268 = arith.constant 0 : index
    %c0_269 = arith.constant 0 : index
    %549 = vector.load %arg17[%c1_267, %c0_268, %c0_269] : memref<2x1x64xf32, #tpu.memory_space<vmem>>, vector<1x1x64xf32>
    %550 = vector.shape_cast %549 : vector<1x1x64xf32> to vector<1x64xf32>
    %551 = vector.broadcast %550 : vector<1x64xf32> to vector<128x64xf32>
    %552 = arith.addf %548, %551 : vector<128x64xf32>
    %553 = vector.extract_strided_slice %552 {offsets = [0, 0], sizes = [64, 64], strides = [1, 1]} : vector<128x64xf32> to vector<64x64xf32>
    %554 = vector.extract_strided_slice %6 {offsets = [11, 0], sizes = [1, 64], strides = [1, 1]} : vector<14x64xf32> to vector<1x64xf32>
    %555 = vector.broadcast %554 : vector<1x64xf32> to vector<64x64xf32>
    %556 = arith.mulf %553, %555 : vector<64x64xf32>
    %557 = vector.extract_strided_slice %552 {offsets = [64, 0], sizes = [64, 64], strides = [1, 1]} : vector<128x64xf32> to vector<64x64xf32>
    %558 = vector.extract_strided_slice %8 {offsets = [11, 0], sizes = [1, 64], strides = [1, 1]} : vector<14x64xf32> to vector<1x64xf32>
    %559 = vector.broadcast %558 : vector<1x64xf32> to vector<64x64xf32>
    %560 = arith.mulf %557, %559 : vector<64x64xf32>
    %561 = tpu.concatenate %556, %560 in 0 : vector<64x64xf32>, vector<64x64xf32> -> vector<128x64xf32>
    %562 = arith.addf %486, %561 : vector<128x64xf32>
    %cst_270 = arith.constant dense<0.000000e+00> : vector<128xf32>
    %563 = vector.multi_reduction <add>, %562, %cst_270 [1] : vector<128x64xf32> to vector<128xf32>
    %564 = vector.shape_cast %563 : vector<128xf32> to vector<128x1xf32>
    %cst_271 = arith.constant 6.400000e+01 : f32
    %565 = vector.broadcast %cst_271 : f32 to vector<128x1xf32>
    %566 = arith.divf %564, %565 : vector<128x1xf32>
    %567 = vector.broadcast %566 : vector<128x1xf32> to vector<128x64xf32>
    %568 = arith.subf %562, %567 : vector<128x64xf32>
    %569 = arith.mulf %568, %568 : vector<128x64xf32>
    %cst_272 = arith.constant dense<0.000000e+00> : vector<128xf32>
    %570 = vector.multi_reduction <add>, %569, %cst_272 [1] : vector<128x64xf32> to vector<128xf32>
    %571 = vector.shape_cast %570 : vector<128xf32> to vector<128x1xf32>
    %cst_273 = arith.constant 6.400000e+01 : f32
    %572 = vector.broadcast %cst_273 : f32 to vector<128x1xf32>
    %573 = arith.divf %571, %572 : vector<128x1xf32>
    %574 = vector.broadcast %566 : vector<128x1xf32> to vector<128x64xf32>
    %575 = arith.subf %562, %574 : vector<128x64xf32>
    %cst_274 = arith.constant 9.99999997E-7 : f32
    %576 = vector.broadcast %cst_274 : f32 to vector<128x1xf32>
    %577 = arith.addf %573, %576 : vector<128x1xf32>
    %578 = math.rsqrt %577 : vector<128x1xf32>
    %579 = vector.broadcast %578 : vector<128x1xf32> to vector<128x64xf32>
    %580 = arith.mulf %575, %579 : vector<128x64xf32>
    %581 = vector.extract_strided_slice %580 {offsets = [0, 0], sizes = [64, 64], strides = [1, 1]} : vector<128x64xf32> to vector<64x64xf32>
    %582 = vector.extract_strided_slice %6 {offsets = [13, 0], sizes = [1, 64], strides = [1, 1]} : vector<14x64xf32> to vector<1x64xf32>
    %cst_275 = arith.constant 1.000000e+00 : f32
    %583 = vector.broadcast %cst_275 : f32 to vector<1x64xf32>
    %584 = arith.addf %583, %582 : vector<1x64xf32>
    %585 = vector.broadcast %584 : vector<1x64xf32> to vector<64x64xf32>
    %586 = arith.mulf %581, %585 : vector<64x64xf32>
    %587 = vector.extract_strided_slice %6 {offsets = [12, 0], sizes = [1, 64], strides = [1, 1]} : vector<14x64xf32> to vector<1x64xf32>
    %588 = vector.broadcast %587 : vector<1x64xf32> to vector<64x64xf32>
    %589 = arith.addf %586, %588 : vector<64x64xf32>
    %590 = vector.extract_strided_slice %580 {offsets = [64, 0], sizes = [64, 64], strides = [1, 1]} : vector<128x64xf32> to vector<64x64xf32>
    %591 = vector.extract_strided_slice %8 {offsets = [13, 0], sizes = [1, 64], strides = [1, 1]} : vector<14x64xf32> to vector<1x64xf32>
    %cst_276 = arith.constant 1.000000e+00 : f32
    %592 = vector.broadcast %cst_276 : f32 to vector<1x64xf32>
    %593 = arith.addf %592, %591 : vector<1x64xf32>
    %594 = vector.broadcast %593 : vector<1x64xf32> to vector<64x64xf32>
    %595 = arith.mulf %590, %594 : vector<64x64xf32>
    %596 = vector.extract_strided_slice %8 {offsets = [12, 0], sizes = [1, 64], strides = [1, 1]} : vector<14x64xf32> to vector<1x64xf32>
    %597 = vector.broadcast %596 : vector<1x64xf32> to vector<64x64xf32>
    %598 = arith.addf %595, %597 : vector<64x64xf32>
    %599 = tpu.concatenate %589, %598 in 0 : vector<64x64xf32>, vector<64x64xf32> -> vector<128x64xf32>
    %600 = arith.truncf %599 : vector<128x64xf32> to vector<128x64xbf16>
    %c0_277 = arith.constant 0 : index
    %c0_278 = arith.constant 0 : index
    %601 = vector.load %arg18[%c0_277, %c0_278] : memref<64x128xbf16, #tpu.memory_space<vmem>>, vector<64x128xbf16>
    %cst_279 = arith.constant dense<0.000000e+00> : vector<128x128xf32>
    %602 = tpu.matmul %600, %601, %cst_279 {dimension_numbers = #tpu.dot_dimension_numbers<[1], [0], [0], [1], [0, 0, 1, 1], [], []>} : vector<128x64xbf16>, vector<64x128xbf16>, vector<128x128xf32> -> vector<128x128xf32>
    %c0_280 = arith.constant 0 : index
    %c0_281 = arith.constant 0 : index
    %603 = vector.load %arg19[%c0_280, %c0_281] : memref<1x128xf32, #tpu.memory_space<vmem>>, vector<1x128xf32>
    %604 = vector.broadcast %603 : vector<1x128xf32> to vector<128x128xf32>
    %605 = arith.addf %602, %604 : vector<128x128xf32>
    %c0_282 = arith.constant 0 : index
    %c0_283 = arith.constant 0 : index
    %606 = vector.load %arg20[%c0_282, %c0_283] : memref<128x128xf32, #tpu.memory_space<vmem>>, vector<128x128xf32>
    tpu.vector_store %arg20[%c0_282, %c0_283], %605 {strides = array<i32>} : memref<128x128xf32, #tpu.memory_space<vmem>>, vector<128x128xf32>,
    return
  }
  func.func @transform_0(%arg0: i32) -> (i32, i32) {
    %c0_i32 = arith.constant 0 : i32
    %c0_i32_0 = arith.constant 0 : i32
    %c0_i32_1 = arith.constant 0 : i32
    return %c0_i32, %c0_i32_0 : i32, i32
  }
  func.func @transform_1(%arg0: i32) -> (i32, i32) {
    %c0_i32 = arith.constant 0 : i32
    %c0_i32_0 = arith.constant 0 : i32
    %c0_i32_1 = arith.constant 0 : i32
    return %c0_i32, %c0_i32_0 : i32, i32
  }
  func.func @transform_2(%arg0: i32) -> (i32, i32, i32) {
    %c0_i32 = arith.constant 0 : i32
    %c0_i32_0 = arith.constant 0 : i32
    %c0_i32_1 = arith.constant 0 : i32
    %c0_i32_2 = arith.constant 0 : i32
    return %c0_i32, %c0_i32_0, %c0_i32_1 : i32, i32, i32
  }
  func.func @transform_3(%arg0: i32) -> (i32, i32) {
    %c0_i32 = arith.constant 0 : i32
    %c0_i32_0 = arith.constant 0 : i32
    %c0_i32_1 = arith.constant 0 : i32
    return %c0_i32, %c0_i32_0 : i32, i32
  }
  func.func @transform_4(%arg0: i32) -> (i32, i32) {
    %c0_i32 = arith.constant 0 : i32
    %c0_i32_0 = arith.constant 0 : i32
    %c0_i32_1 = arith.constant 0 : i32
    return %c0_i32, %c0_i32_0 : i32, i32
  }
  func.func @transform_5(%arg0: i32) -> (i32, i32, i32) {
    %c0_i32 = arith.constant 0 : i32
    %c0_i32_0 = arith.constant 0 : i32
    %c0_i32_1 = arith.constant 0 : i32
    %c0_i32_2 = arith.constant 0 : i32
    return %c0_i32, %c0_i32_0, %c0_i32_1 : i32, i32, i32
  }
  func.func @transform_6(%arg0: i32) -> (i32, i32, i32) {
    %c0_i32 = arith.constant 0 : i32
    %c0_i32_0 = arith.constant 0 : i32
    %c0_i32_1 = arith.constant 0 : i32
    %c0_i32_2 = arith.constant 0 : i32
    return %c0_i32, %c0_i32_0, %c0_i32_1 : i32, i32, i32
  }
  func.func @transform_7(%arg0: i32) -> (i32, i32, i32) {
    %c0_i32 = arith.constant 0 : i32
    %c0_i32_0 = arith.constant 0 : i32
    %c0_i32_1 = arith.constant 0 : i32
    %c0_i32_2 = arith.constant 0 : i32
    return %c0_i32, %c0_i32_0, %c0_i32_1 : i32, i32, i32
  }
  func.func @transform_8(%arg0: i32) -> (i32, i32, i32) {
    %c0_i32 = arith.constant 0 : i32
    %c0_i32_0 = arith.constant 0 : i32
    %c0_i32_1 = arith.constant 0 : i32
    %c0_i32_2 = arith.constant 0 : i32
    return %c0_i32, %c0_i32_0, %c0_i32_1 : i32, i32, i32
  }
  func.func @transform_9(%arg0: i32) -> (i32, i32, i32) {
    %c0_i32 = arith.constant 0 : i32
    %c0_i32_0 = arith.constant 0 : i32
    %c0_i32_1 = arith.constant 0 : i32
    %c0_i32_2 = arith.constant 0 : i32
    return %c0_i32, %c0_i32_0, %c0_i32_1 : i32, i32, i32
  }
  func.func @transform_10(%arg0: i32) -> (i32, i32, i32) {
    %c0_i32 = arith.constant 0 : i32
    %c0_i32_0 = arith.constant 0 : i32
    %c0_i32_1 = arith.constant 0 : i32
    %c0_i32_2 = arith.constant 0 : i32
    return %c0_i32, %c0_i32_0, %c0_i32_1 : i32, i32, i32
  }
  func.func @transform_11(%arg0: i32) -> (i32, i32, i32) {
    %c0_i32 = arith.constant 0 : i32
    %c0_i32_0 = arith.constant 0 : i32
    %c0_i32_1 = arith.constant 0 : i32
    %c0_i32_2 = arith.constant 0 : i32
    return %c0_i32, %c0_i32_0, %c0_i32_1 : i32, i32, i32
  }
  func.func @transform_12(%arg0: i32) -> (i32, i32, i32) {
    %c0_i32 = arith.constant 0 : i32
    %c0_i32_0 = arith.constant 0 : i32
    %c0_i32_1 = arith.constant 0 : i32
    %c0_i32_2 = arith.constant 0 : i32
    return %c0_i32, %c0_i32_0, %c0_i32_1 : i32, i32, i32
  }
  func.func @transform_13(%arg0: i32) -> (i32, i32, i32) {
    %c0_i32 = arith.constant 0 : i32
    %c0_i32_0 = arith.constant 0 : i32
    %c0_i32_1 = arith.constant 0 : i32
    %c0_i32_2 = arith.constant 0 : i32
    return %c0_i32, %c0_i32_0, %c0_i32_1 : i32, i32, i32
  }
  func.func @transform_14(%arg0: i32) -> (i32, i32, i32) {
    %c0_i32 = arith.constant 0 : i32
    %c0_i32_0 = arith.constant 0 : i32
    %c0_i32_1 = arith.constant 0 : i32
    %c0_i32_2 = arith.constant 0 : i32
    return %c0_i32, %c0_i32_0, %c0_i32_1 : i32, i32, i32
  }
  func.func @transform_15(%arg0: i32) -> (i32, i32, i32) {
    %c0_i32 = arith.constant 0 : i32
    %c0_i32_0 = arith.constant 0 : i32
    %c0_i32_1 = arith.constant 0 : i32
    %c0_i32_2 = arith.constant 0 : i32
    return %c0_i32, %c0_i32_0, %c0_i32_1 : i32, i32, i32
  }
  func.func @transform_16(%arg0: i32) -> (i32, i32, i32) {
    %c0_i32 = arith.constant 0 : i32
    %c0_i32_0 = arith.constant 0 : i32
    %c0_i32_1 = arith.constant 0 : i32
    %c0_i32_2 = arith.constant 0 : i32
    return %c0_i32, %c0_i32_0, %c0_i32_1 : i32, i32, i32
  }
  func.func @transform_17(%arg0: i32) -> (i32, i32) {
    %c0_i32 = arith.constant 0 : i32
    %c0_i32_0 = arith.constant 0 : i32
    %c0_i32_1 = arith.constant 0 : i32
    return %c0_i32, %c0_i32_0 : i32, i32
  }
  func.func @transform_18(%arg0: i32) -> (i32, i32) {
    %c0_i32 = arith.constant 0 : i32
    %c0_i32_0 = arith.constant 0 : i32
    %c0_i32_1 = arith.constant 0 : i32
    return %c0_i32, %c0_i32_0 : i32, i32
  }
  func.func @transform_19(%arg0: i32) -> (i32, i32) {
    %c0_i32 = arith.constant 0 : i32
    %c0_i32_0 = arith.constant 0 : i32
    %c0_i32_1 = arith.constant 0 : i32
    return %c0_i32, %c0_i32_0 : i32, i32
  }
}

</mosaic_0001>

<llo_original>
// kernel: dit_forward_pallas.1
$region0: #{dit_forward_pallas.1}
  #allocation0 [shape = 'u32[]', space=smem, size = 0x4, offset = 0x4, fixed_abs, tag = 'smem constant byte address 0x4 - core index']
  #allocation1 [shape = 'u32[144,128]{1,0:T(1,128)}', space=vmem, size = 0x12000, scoped, tag = 'internal scratch']
  #allocation2 [shape = 'bf16[2,64,256]{2,1,0:T(16,128)(2,1)}', space=vmem, size = 0x10000, scoped, tag = 'scratch operand']
  #allocation3 [shape = 'bf16[2,256,64]{2,1,0:T(16,128)(2,1)}', space=vmem, size = 0x20000, scoped, tag = 'scratch operand']
  %s0 = inlined_call_operand.vmem [shape: f32[128,16], index: 0, kind: input, shape index: {}]
  %s1 = inlined_call_operand.vmem [shape: f32[128,64], index: 1, kind: input, shape index: {}]
  %s2 = inlined_call_operand.vmem [shape: f32[2,14,64], index: 2, kind: input, shape index: {}]
  %s3 = inlined_call_operand.vmem [shape: bf16[256,64], index: 3, kind: input, shape index: {}]
  %s4 = inlined_call_operand.vmem [shape: bf16[16,64], index: 4, kind: input, shape index: {}]
  %s5 = inlined_call_operand.vmem [shape: bf16[2,64,64], index: 5, kind: input, shape index: {}]
  %s6 = inlined_call_operand.vmem [shape: f32[2,1,64], index: 6, kind: input, shape index: {}]
  %s7 = inlined_call_operand.vmem [shape: bf16[2,64,64], index: 7, kind: input, shape index: {}]
  %s8 = inlined_call_operand.vmem [shape: f32[2,1,64], index: 8, kind: input, shape index: {}]
  %s9 = inlined_call_operand.vmem [shape: bf16[2,64,64], index: 9, kind: input, shape index: {}]
  %s10 = inlined_call_operand.vmem [shape: f32[2,1,64], index: 10, kind: input, shape index: {}]
  %s11 = inlined_call_operand.vmem [shape: bf16[2,64,64], index: 11, kind: input, shape index: {}]
  %s12 = inlined_call_operand.vmem [shape: f32[2,1,64], index: 12, kind: input, shape index: {}]
  %s13 = inlined_call_operand.vmem [shape: bf16[2,64,256], index: 13, kind: input, shape index: {}]
  %s14 = inlined_call_operand.vmem [shape: f32[2,1,256], index: 14, kind: input, shape index: {}]
  %s15 = inlined_call_operand.vmem [shape: bf16[2,256,64], index: 15, kind: input, shape index: {}]
  %s16 = inlined_call_operand.vmem [shape: f32[2,1,64], index: 16, kind: input, shape index: {}]
  %s17 = inlined_call_operand.vmem [shape: bf16[64,128], index: 17, kind: input, shape index: {}]
  %s18 = inlined_call_operand.vmem [shape: f32[1,128], index: 18, kind: input, shape index: {}]
  %s19 = inlined_call_operand.vmem [shape: f32[128,128], index: 19, kind: output, shape index: {}]
  %s20 = sld [smem:[#allocation0]]
  $region86: #{dit_forward_pallas.1} parent=0
    _
  %s22 = ssub.s32 1, %s20
  %s23 = scalar_select 0, %s22, %s20
  // Predicated region
  $region2: #{dit_forward_pallas.1} parent=0 // pred_check
    _
  $region3: #{dit_forward_pallas.1} parent=0 // pred_check_branch
    %25 = sbr.rel (0) target = $region5
  $region4: #{dit_forward_pallas.1} parent=0 // pred_region
    _
  $region5: #{dit_forward_pallas.1} parent=0 // pred_fallthru
    _
  // Predicated region
  $region6: #{dit_forward_pallas.1} parent=0 // pred_check
    _
  $region7: #{dit_forward_pallas.1} parent=0 // pred_check_branch
    %27 = sbr.rel (0) target = $region9
  $region8: #{dit_forward_pallas.1} parent=0 // pred_region
    _
  $region9: #{dit_forward_pallas.1} parent=0 // pred_fallthru
    _
  // Predicated region
  $region10: #{dit_forward_pallas.1} parent=0 // pred_check
    _
  $region11: #{dit_forward_pallas.1} parent=0 // pred_check_branch
    %29 = sbr.rel (0) target = $region13
  $region12: #{dit_forward_pallas.1} parent=0 // pred_region
    _
  $region13: #{dit_forward_pallas.1} parent=0 // pred_fallthru
    _
  // Predicated region
  $region14: #{dit_forward_pallas.1} parent=0 // pred_check
    _
  $region15: #{dit_forward_pallas.1} parent=0 // pred_check_branch
    %31 = sbr.rel (0) target = $region17
  $region16: #{dit_forward_pallas.1} parent=0 // pred_region
    _
  $region17: #{dit_forward_pallas.1} parent=0 // pred_fallthru
    _
  // Predicated region
  $region18: #{dit_forward_pallas.1} parent=0 // pred_check
    _
  $region19: #{dit_forward_pallas.1} parent=0 // pred_check_branch
    %33 = sbr.rel (0) target = $region21
  $region20: #{dit_forward_pallas.1} parent=0 // pred_region
    _
  $region21: #{dit_forward_pallas.1} parent=0 // pred_fallthru
    _
  // Predicated region
  $region22: #{dit_forward_pallas.1} parent=0 // pred_check
    _
  $region23: #{dit_forward_pallas.1} parent=0 // pred_check_branch
    %35 = sbr.rel (0) target = $region25
  $region24: #{dit_forward_pallas.1} parent=0 // pred_region
    _
  $region25: #{dit_forward_pallas.1} parent=0 // pred_fallthru
    _
  // Predicated region
  $region26: #{dit_forward_pallas.1} parent=0 // pred_check
    _
  $region27: #{dit_forward_pallas.1} parent=0 // pred_check_branch
    %37 = sbr.rel (0) target = $region29
  $region28: #{dit_forward_pallas.1} parent=0 // pred_region
    _
  $region29: #{dit_forward_pallas.1} parent=0 // pred_fallthru
    _
  // Predicated region
  $region30: #{dit_forward_pallas.1} parent=0 // pred_check
    _
  $region31: #{dit_forward_pallas.1} parent=0 // pred_check_branch
    %39 = sbr.rel (0) target = $region33
  $region32: #{dit_forward_pallas.1} parent=0 // pred_region
    _
  $region33: #{dit_forward_pallas.1} parent=0 // pred_fallthru
    _
  // Predicated region
  $region34: #{dit_forward_pallas.1} parent=0 // pred_check
    _
  $region35: #{dit_forward_pallas.1} parent=0 // pred_check_branch
    %41 = sbr.rel (0) target = $region37
  $region36: #{dit_forward_pallas.1} parent=0 // pred_region
    _
  $region37: #{dit_forward_pallas.1} parent=0 // pred_fallthru
    _
  // Predicated region
  $region38: #{dit_forward_pallas.1} parent=0 // pred_check
    _
  $region39: #{dit_forward_pallas.1} parent=0 // pred_check_branch
    %43 = sbr.rel (0) target = $region41
  $region40: #{dit_forward_pallas.1} parent=0 // pred_region
    _
  $region41: #{dit_forward_pallas.1} parent=0 // pred_fallthru
    _
  // Predicated region
  $region42: #{dit_forward_pallas.1} parent=0 // pred_check
    _
  $region43: #{dit_forward_pallas.1} parent=0 // pred_check_branch
    %45 = sbr.rel (0) target = $region45
  $region44: #{dit_forward_pallas.1} parent=0 // pred_region
    _
  $region45: #{dit_forward_pallas.1} parent=0 // pred_fallthru
    _
  // Predicated region
  $region46: #{dit_forward_pallas.1} parent=0 // pred_check
    _
  $region47: #{dit_forward_pallas.1} parent=0 // pred_check_branch
    %47 = sbr.rel (0) target = $region49
  $region48: #{dit_forward_pallas.1} parent=0 // pred_region
    _
  $region49: #{dit_forward_pallas.1} parent=0 // pred_fallthru
    _
  // Predicated region
  $region50: #{dit_forward_pallas.1} parent=0 // pred_check
    _
  $region51: #{dit_forward_pallas.1} parent=0 // pred_check_branch
    %49 = sbr.rel (0) target = $region53
  $region52: #{dit_forward_pallas.1} parent=0 // pred_region
    _
  $region53: #{dit_forward_pallas.1} parent=0 // pred_fallthru
    _
  // Predicated region
  $region54: #{dit_forward_pallas.1} parent=0 // pred_check
    _
  $region55: #{dit_forward_pallas.1} parent=0 // pred_check_branch
    %51 = sbr.rel (0) target = $region57
  $region56: #{dit_forward_pallas.1} parent=0 // pred_region
    _
  $region57: #{dit_forward_pallas.1} parent=0 // pred_fallthru
    _
  // Predicated region
  $region58: #{dit_forward_pallas.1} parent=0 // pred_check
    _
  $region59: #{dit_forward_pallas.1} parent=0 // pred_check_branch
    %53 = sbr.rel (0) target = $region61
  $region60: #{dit_forward_pallas.1} parent=0 // pred_region
    _
  $region61: #{dit_forward_pallas.1} parent=0 // pred_fallthru
    _
  // Predicated region
  $region62: #{dit_forward_pallas.1} parent=0 // pred_check
    _
  $region63: #{dit_forward_pallas.1} parent=0 // pred_check_branch
    %55 = sbr.rel (0) target = $region65
  $region64: #{dit_forward_pallas.1} parent=0 // pred_region
    _
  $region65: #{dit_forward_pallas.1} parent=0 // pred_fallthru
    _
  // Predicated region
  $region66: #{dit_forward_pallas.1} parent=0 // pred_check
    _
  $region67: #{dit_forward_pallas.1} parent=0 // pred_check_branch
    %57 = sbr.rel (0) target = $region69
  $region68: #{dit_forward_pallas.1} parent=0 // pred_region
    _
  $region69: #{dit_forward_pallas.1} parent=0 // pred_fallthru
    _
  // Predicated region
  $region70: #{dit_forward_pallas.1} parent=0 // pred_check
    _
  $region71: #{dit_forward_pallas.1} parent=0 // pred_check_branch
    %59 = sbr.rel (0) target = $region73
  $region72: #{dit_forward_pallas.1} parent=0 // pred_region
    _
  $region73: #{dit_forward_pallas.1} parent=0 // pred_fallthru
    _
  // Predicated region
  $region74: #{dit_forward_pallas.1} parent=0 // pred_check
    _
  $region75: #{dit_forward_pallas.1} parent=0 // pred_check_branch
    %61 = sbr.rel (0) target = $region77
  $region76: #{dit_forward_pallas.1} parent=0 // pred_region
    _
  $region77: #{dit_forward_pallas.1} parent=0 // pred_fallthru
    _
  %63 = vst [vmem:[#allocation2] sm:$0xff] 0
  %64 = vst [vmem:[#allocation2 + $0x8] sm:$0xff] 0
  %65 = vst [vmem:[#allocation2 + $0x10] sm:$0xff] 0
  %66 = vst [vmem:[#allocation2 + $0x18] sm:$0xff] 0
  %67 = vst [vmem:[#allocation2 + $0x20] sm:$0xff] 0
  %68 = vst [vmem:[#allocation2 + $0x28] sm:$0xff] 0
  %69 = vst [vmem:[#allocation2 + $0x30] sm:$0xff] 0
  %70 = vst [vmem:[#allocation2 + $0x38] sm:$0xff] 0
  %71 = vst [vmem:[#allocation2 + $0x40] sm:$0xff] 0
  %72 = vst [vmem:[#allocation2 + $0x48] sm:$0xff] 0
  %73 = vst [vmem:[#allocation2 + $0x50] sm:$0xff] 0
  %74 = vst [vmem:[#allocation2 + $0x58] sm:$0xff] 0
  %75 = vst [vmem:[#allocation2 + $0x60] sm:$0xff] 0
  %76 = vst [vmem:[#allocation2 + $0x68] sm:$0xff] 0
  %77 = vst [vmem:[#allocation2 + $0x70] sm:$0xff] 0
  %78 = vst [vmem:[#allocation2 + $0x78] sm:$0xff] 0
  %vm79 = vcmask 523264
  %80 = vst.msk [vmem:[#allocation3] sm:$0xff] %vm79, 0
  %81 = vst.msk [vmem:[#allocation3 + $0x8] sm:$0xff] %vm79, 0
  %82 = vst.msk [vmem:[#allocation3 + $0x10] sm:$0xff] %vm79, 0
  %83 = vst.msk [vmem:[#allocation3 + $0x18] sm:$0xff] %vm79, 0
  %84 = vst.msk [vmem:[#allocation3 + $0x20] sm:$0xff] %vm79, 0
  %85 = vst.msk [vmem:[#allocation3 + $0x28] sm:$0xff] %vm79, 0
  %86 = vst.msk [vmem:[#allocation3 + $0x30] sm:$0xff] %vm79, 0
  %87 = vst.msk [vmem:[#allocation3 + $0x38] sm:$0xff] %vm79, 0
  %88 = vst.msk [vmem:[#allocation3 + $0x40] sm:$0xff] %vm79, 0
  %89 = vst.msk [vmem:[#allocation3 + $0x48] sm:$0xff] %vm79, 0
  %90 = vst.msk [vmem:[#allocation3 + $0x50] sm:$0xff] %vm79, 0
  %91 = vst.msk [vmem:[#allocation3 + $0x58] sm:$0xff] %vm79, 0
  %92 = vst.msk [vmem:[#allocation3 + $0x60] sm:$0xff] %vm79, 0
  %93 = vst.msk [vmem:[#allocation3 + $0x68] sm:$0xff] %vm79, 0
  %94 = vst.msk [vmem:[#allocation3 + $0x70] sm:$0xff] %vm79, 0
  %95 = vst.msk [vmem:[#allocation3 + $0x78] sm:$0xff] %vm79, 0
  %96 = vst.msk [vmem:[#allocation3 + $0x80] sm:$0xff] %vm79, 0
  %97 = vst.msk [vmem:[#allocation3 + $0x88] sm:$0xff] %vm79, 0
  %98 = vst.msk [vmem:[#allocation3 + $0x90] sm:$0xff] %vm79, 0
  %99 = vst.msk [vmem:[#allocation3 + $0x98] sm:$0xff] %vm79, 0
  %100 = vst.msk [vmem:[#allocation3 + $0xa0] sm:$0xff] %vm79, 0
  %101 = vst.msk [vmem:[#allocation3 + $0xa8] sm:$0xff] %vm79, 0
  %102 = vst.msk [vmem:[#allocation3 + $0xb0] sm:$0xff] %vm79, 0
  %103 = vst.msk [vmem:[#allocation3 + $0xb8] sm:$0xff] %vm79, 0
  %104 = vst.msk [vmem:[#allocation3 + $0xc0] sm:$0xff] %vm79, 0
  %105 = vst.msk [vmem:[#allocation3 + $0xc8] sm:$0xff] %vm79, 0
  %106 = vst.msk [vmem:[#allocation3 + $0xd0] sm:$0xff] %vm79, 0
  %107 = vst.msk [vmem:[#allocation3 + $0xd8] sm:$0xff] %vm79, 0
  %108 = vst.msk [vmem:[#allocation3 + $0xe0] sm:$0xff] %vm79, 0
  %109 = vst.msk [vmem:[#allocation3 + $0xe8] sm:$0xff] %vm79, 0
  %110 = vst.msk [vmem:[#allocation3 + $0xf0] sm:$0xff] %vm79, 0
  %111 = vst.msk [vmem:[#allocation3 + $0xf8] sm:$0xff] %vm79, 0
  %v112 = vld [vmem:[%s3] sm:$0xf]
  %v113 = vld [vmem:[%s3 + $0x4] sm:$0xf]
  %v114 = vld [vmem:[%s3 + $0x8] sm:$0xf]
  %v115 = vld [vmem:[%s3 + $0xc] sm:$0xf]
  %v116 = vld [vmem:[%s3 + $0x10] sm:$0xf]
  %v117 = vld [vmem:[%s3 + $0x14] sm:$0xf]
  %v118 = vld [vmem:[%s3 + $0x18] sm:$0xf]
  %v119 = vld [vmem:[%s3 + $0x1c] sm:$0xf]
  %v120 = vld [vmem:[%s3 + $0x20] sm:$0xf]
  %v121 = vld [vmem:[%s3 + $0x24] sm:$0xf]
  %v122 = vld [vmem:[%s3 + $0x28] sm:$0xf]
  %v123 = vld [vmem:[%s3 + $0x2c] sm:$0xf]
  %v124 = vld [vmem:[%s3 + $0x30] sm:$0xf]
  %v125 = vld [vmem:[%s3 + $0x34] sm:$0xf]
  %v126 = vld [vmem:[%s3 + $0x38] sm:$0xf]
  %v127 = vld [vmem:[%s3 + $0x3c] sm:$0xf]
  %v128 = vld [vmem:[%s3 + $0x40] sm:$0xf]
  %v129 = vld [vmem:[%s3 + $0x44] sm:$0xf]
  %v130 = vld [vmem:[%s3 + $0x48] sm:$0xf]
  %v131 = vld [vmem:[%s3 + $0x4c] sm:$0xf]
  %v132 = vld [vmem:[%s3 + $0x50] sm:$0xf]
  %v133 = vld [vmem:[%s3 + $0x54] sm:$0xf]
  %v134 = vld [vmem:[%s3 + $0x58] sm:$0xf]
  %v135 = vld [vmem:[%s3 + $0x5c] sm:$0xf]
  %v136 = vld [vmem:[%s3 + $0x60] sm:$0xf]
  %v137 = vld [vmem:[%s3 + $0x64] sm:$0xf]
  %v138 = vld [vmem:[%s3 + $0x68] sm:$0xf]
  %v139 = vld [vmem:[%s3 + $0x6c] sm:$0xf]
  %v140 = vld [vmem:[%s3 + $0x70] sm:$0xf]
  %v141 = vld [vmem:[%s3 + $0x74] sm:$0xf]
  %v142 = vld [vmem:[%s3 + $0x78] sm:$0xf]
  %v143 = vld [vmem:[%s3 + $0x7c] sm:$0xf]
  %v144 = vld [vmem:[%s2] sm:$0xff]
  %v145 = vld [vmem:[%s2 + $0x8] sm:$0x3f]
  %s146 = scalar_lea.vmem %s2, 16
  %v147 = vld [vmem:[%s146] sm:$0xff]
  %v148 = vld [vmem:[%s146 + $0x8] sm:$0x3f]
  %v149 = vld [vmem:[%s0] sm:$0xff]
  %v150 = vld [vmem:[%s0 + $0x8] sm:$0xff]
  %v151 = vld [vmem:[%s0 + $0x10] sm:$0xff]
  %v152 = vld [vmem:[%s0 + $0x18] sm:$0xff]
  %v153 = vld [vmem:[%s0 + $0x20] sm:$0xff]
  %v154 = vld [vmem:[%s0 + $0x28] sm:$0xff]
  %v155 = vld [vmem:[%s0 + $0x30] sm:$0xff]
  %v156 = vld [vmem:[%s0 + $0x38] sm:$0xff]
  %v157 = vld [vmem:[%s0 + $0x40] sm:$0xff]
  %v158 = vld [vmem:[%s0 + $0x48] sm:$0xff]
  %v159 = vld [vmem:[%s0 + $0x50] sm:$0xff]
  %v160 = vld [vmem:[%s0 + $0x58] sm:$0xff]
  %v161 = vld [vmem:[%s0 + $0x60] sm:$0xff]
  %v162 = vld [vmem:[%s0 + $0x68] sm:$0xff]
  %v163 = vld [vmem:[%s0 + $0x70] sm:$0xff]
  %v164 = vld [vmem:[%s0 + $0x78] sm:$0xff]
  %v165 = vpack.c.bf16 %v150, %v149
  %v166 = vpack.c.bf16 %v152, %v151
  %v167 = vpack.c.bf16 %v154, %v153
  %v168 = vpack.c.bf16 %v156, %v155
  %v169 = vpack.c.bf16 %v158, %v157
  %v170 = vpack.c.bf16 %v160, %v159
  %v171 = vpack.c.bf16 %v162, %v161
  %v172 = vpack.c.bf16 %v164, %v163
  %v173 = vld [vmem:[%s4] sm:$0xf]
  %v174 = vld [vmem:[%s4 + $0x4] sm:$0xf]
  %v175 = vld [vmem:[%s1] sm:$0xff]
  %v176 = vld [vmem:[%s1 + $0x8] sm:$0xff]
  %v177 = vld [vmem:[%s1 + $0x10] sm:$0xff]
  %v178 = vld [vmem:[%s1 + $0x18] sm:$0xff]
  %v179 = vld [vmem:[%s1 + $0x20] sm:$0xff]
  %v180 = vld [vmem:[%s1 + $0x28] sm:$0xff]
  %v181 = vld [vmem:[%s1 + $0x30] sm:$0xff]
  %v182 = vld [vmem:[%s1 + $0x38] sm:$0xff]
  %v183 = vld [vmem:[%s1 + $0x40] sm:$0xff]
  %v184 = vld [vmem:[%s1 + $0x48] sm:$0xff]
  %v185 = vld [vmem:[%s1 + $0x50] sm:$0xff]
  %v186 = vld [vmem:[%s1 + $0x58] sm:$0xff]
  %v187 = vld [vmem:[%s1 + $0x60] sm:$0xff]
  %v188 = vld [vmem:[%s1 + $0x68] sm:$0xff]
  %v189 = vld [vmem:[%s1 + $0x70] sm:$0xff]
  %v190 = vld [vmem:[%s1 + $0x78] sm:$0xff]
  %v193 = vunpack.c.l.b16 %v173
  %v194 = vunpack.c.l.b16 %v174
  %v195 = vpack.c.b16 %v194, %v193
  %vm197 = vcmask 130048
  %v199 = vsel %vm197, %v165, 0
  %v202 = vsel %vm197, %v166, 0
  %v205 = vsel %vm197, %v167, 0
  %v208 = vsel %vm197, %v168, 0
  %v211 = vsel %vm197, %v169, 0
  %v214 = vsel %vm197, %v170, 0
  %v217 = vsel %vm197, %v171, 0
  %v220 = vsel %vm197, %v172, 0
  %222 = vmatprep.subr.bf16.mxu0 0
  %223 = vmatpush1.bf16.msra.mxu0 %v195
  %224 = vmatprep.subr.bf16.mxu0 0
  %225 = vmatpush1.bf16.msra.mxu0 0
  %226 = vmatprep.subr.bf16.mxu0 0
  %227 = vmatpush1.bf16.msra.mxu0 0
  %228 = vmatprep.subr.bf16.mxu0 0
  %229 = vmatpush1.bf16.msra.mxu0 0
  %230 = vmatprep.subr.bf16.mxu0 0
  %231 = vmatpush1.bf16.msra.mxu0 0
  %232 = vmatprep.subr.bf16.mxu0 0
  %233 = vmatpush1.bf16.msra.mxu0 0
  %234 = vmatprep.subr.bf16.mxu0 0
  %235 = vmatpush1.bf16.msra.mxu0 0
  %236 = vmatprep.subr.bf16.mxu0 0
  %237 = vmatpush1.bf16.msra.mxu0 0
  %238 = vmatprep.subr.bf16.mxu0 0
  %239 = vmatpush1.bf16.msra.mxu0 0
  %240 = vmatprep.subr.bf16.mxu0 0
  %241 = vmatpush1.bf16.msra.mxu0 0
  %242 = vmatprep.subr.bf16.mxu0 0
  %243 = vmatpush1.bf16.msra.mxu0 0
  %244 = vmatprep.subr.bf16.mxu0 0
  %245 = vmatpush1.bf16.msra.mxu0 0
  %246 = vmatprep.subr.bf16.mxu0 0
  %247 = vmatpush1.bf16.msra.mxu0 0
  %248 = vmatprep.subr.bf16.mxu0 0
  %249 = vmatpush1.bf16.msra.mxu0 0
  %250 = vmatprep.subr.bf16.mxu0 0
  %251 = vmatpush1.bf16.msra.mxu0 0
  %252 = vmatprep.subr.bf16.mxu0 0
  %253 = vmatpush1.bf16.msra.mxu0 0
  %254 = vmatprep.mubr.bf16.mxu0 0
  %255 = vmatmul.mubr.bf16.gmra.mrb[0].mxu0 %v199
  %v256 = vpop.f32.mrb[0].mxu0
  %v257 = vadd.f32 %v175, %v256
  %v258 = vpop.f32.mrb[0].mxu0
  %v259 = vpop.f32.mrb[0].mxu0
  %v260 = vadd.f32 %v176, %v259
  %v261 = vpop.f32.mrb[0].mxu0
  %262 = vmatprep.mubr.bf16.mxu0 0
  %263 = vmatmul.mubr.bf16.gmra.mrb[0].mxu0 %v202
  %v264 = vpop.f32.mrb[0].mxu0
  %v265 = vadd.f32 %v177, %v264
  %v266 = vpop.f32.mrb[0].mxu0
  %v267 = vpop.f32.mrb[0].mxu0
  %v268 = vadd.f32 %v178, %v267
  %v269 = vpop.f32.mrb[0].mxu0
  %270 = vmatprep.mubr.bf16.mxu0 0
  %271 = vmatmul.mubr.bf16.gmra.mrb[0].mxu0 %v205
  %v272 = vpop.f32.mrb[0].mxu0
  %v273 = vadd.f32 %v179, %v272
  %v274 = vpop.f32.mrb[0].mxu0
  %v275 = vpop.f32.mrb[0].mxu0
  %v276 = vadd.f32 %v180, %v275
  %v277 = vpop.f32.mrb[0].mxu0
  %278 = vmatprep.mubr.bf16.mxu0 0
  %279 = vmatmul.mubr.bf16.gmra.mrb[0].mxu0 %v208
  %v280 = vpop.f32.mrb[0].mxu0
  %v281 = vadd.f32 %v181, %v280
  %v282 = vpop.f32.mrb[0].mxu0
  %v283 = vpop.f32.mrb[0].mxu0
  %v284 = vadd.f32 %v182, %v283
  %v285 = vpop.f32.mrb[0].mxu0
  %286 = vmatprep.mubr.bf16.mxu0 0
  %287 = vmatmul.mubr.bf16.gmra.mrb[0].mxu0 %v211
  %v288 = vpop.f32.mrb[0].mxu0
  %v289 = vadd.f32 %v183, %v288
  %v290 = vpop.f32.mrb[0].mxu0
  %v291 = vpop.f32.mrb[0].mxu0
  %v292 = vadd.f32 %v184, %v291
  %v293 = vpop.f32.mrb[0].mxu0
  %294 = vmatprep.mubr.bf16.mxu0 0
  %295 = vmatmul.mubr.bf16.gmra.mrb[0].mxu0 %v214
  %v296 = vpop.f32.mrb[0].mxu0
  %v297 = vadd.f32 %v185, %v296
  %v298 = vpop.f32.mrb[0].mxu0
  %v299 = vpop.f32.mrb[0].mxu0
  %v300 = vadd.f32 %v186, %v299
  %v301 = vpop.f32.mrb[0].mxu0
  %302 = vmatprep.mubr.bf16.mxu0 0
  %303 = vmatmul.mubr.bf16.gmra.mrb[0].mxu0 %v217
  %v304 = vpop.f32.mrb[0].mxu0
  %v305 = vadd.f32 %v187, %v304
  %v306 = vpop.f32.mrb[0].mxu0
  %v307 = vpop.f32.mrb[0].mxu0
  %v308 = vadd.f32 %v188, %v307
  %v309 = vpop.f32.mrb[0].mxu0
  %310 = vmatprep.mubr.bf16.mxu0 0
  %311 = vmatmul.mubr.bf16.gmra.mrb[0].mxu0 %v220
  %v312 = vpop.f32.mrb[0].mxu0
  %v313 = vadd.f32 %v189, %v312
  %v314 = vpop.f32.mrb[0].mxu0
  %v315 = vpop.f32.mrb[0].mxu0
  %v316 = vadd.f32 %v190, %v315
  %v317 = vpop.f32.mrb[0].mxu0
  %318 = vdwg.mxu0
  %v319 = vsel %vm79, %v257, 0.0
  %320 = vadd.xlane.f32.xlu0 %v319
  %v321 = vpop.xlane.xlu0 %320
  %v322 = vsel %vm79, %v260, 0.0
  %323 = vadd.xlane.f32.xlu0 %v322
  %v324 = vpop.xlane.xlu0 %323
  %v325 = vsel %vm79, %v265, 0.0
  %326 = vadd.xlane.f32.xlu0 %v325
  %v327 = vpop.xlane.xlu0 %326
  %v328 = vsel %vm79, %v268, 0.0
  %329 = vadd.xlane.f32.xlu0 %v328
  %v330 = vpop.xlane.xlu0 %329
  %v331 = vsel %vm79, %v273, 0.0
  %332 = vadd.xlane.f32.xlu0 %v331
  %v333 = vpop.xlane.xlu0 %332
  %v334 = vsel %vm79, %v276, 0.0
  %335 = vadd.xlane.f32.xlu0 %v334
  %v336 = vpop.xlane.xlu0 %335
  %v337 = vsel %vm79, %v281, 0.0
  %338 = vadd.xlane.f32.xlu0 %v337
  %v339 = vpop.xlane.xlu0 %338
  %v340 = vsel %vm79, %v284, 0.0
  %341 = vadd.xlane.f32.xlu0 %v340
  %v342 = vpop.xlane.xlu0 %341
  %v343 = vsel %vm79, %v289, 0.0
  %344 = vadd.xlane.f32.xlu0 %v343
  %v345 = vpop.xlane.xlu0 %344
  %v346 = vsel %vm79, %v292, 0.0
  %347 = vadd.xlane.f32.xlu0 %v346
  %v348 = vpop.xlane.xlu0 %347
  %v349 = vsel %vm79, %v297, 0.0
  %350 = vadd.xlane.f32.xlu0 %v349
  %v351 = vpop.xlane.xlu0 %350
  %v352 = vsel %vm79, %v300, 0.0
  %353 = vadd.xlane.f32.xlu0 %v352
  %v354 = vpop.xlane.xlu0 %353
  %v355 = vsel %vm79, %v305, 0.0
  %356 = vadd.xlane.f32.xlu0 %v355
  %v357 = vpop.xlane.xlu0 %356
  %v358 = vsel %vm79, %v308, 0.0
  %359 = vadd.xlane.f32.xlu0 %v358
  %v360 = vpop.xlane.xlu0 %359
  %v361 = vsel %vm79, %v313, 0.0
  %362 = vadd.xlane.f32.xlu0 %v361
  %v363 = vpop.xlane.xlu0 %362
  %v364 = vsel %vm79, %v316, 0.0
  %365 = vadd.xlane.f32.xlu0 %v364
  %v366 = vpop.xlane.xlu0 %365
  %v367 = vrcp.pop 64.0
  %v368 = vmul.f32 %v321, %v367
  %v369 = vmul.f32 %v324, %v367
  %v370 = vmul.f32 %v327, %v367
  %v371 = vmul.f32 %v330, %v367
  %v372 = vmul.f32 %v333, %v367
  %v373 = vmul.f32 %v336, %v367
  %v374 = vmul.f32 %v339, %v367
  %v375 = vmul.f32 %v342, %v367
  %v376 = vmul.f32 %v345, %v367
  %v377 = vmul.f32 %v348, %v367
  %v378 = vmul.f32 %v351, %v367
  %v379 = vmul.f32 %v354, %v367
  %v380 = vmul.f32 %v357, %v367
  %v381 = vmul.f32 %v360, %v367
  %v382 = vmul.f32 %v363, %v367
  %v383 = vmul.f32 %v366, %v367
  %v384 = vsub.f32 %v257, %v368
  %v385 = vsub.f32 %v260, %v369
  %v386 = vsub.f32 %v265, %v370
  %v387 = vsub.f32 %v268, %v371
  %v388 = vsub.f32 %v273, %v372
  %v389 = vsub.f32 %v276, %v373
  %v390 = vsub.f32 %v281, %v374
  %v391 = vsub.f32 %v284, %v375
  %v392 = vsub.f32 %v289, %v376
  %v393 = vsub.f32 %v292, %v377
  %v394 = vsub.f32 %v297, %v378
  %v395 = vsub.f32 %v300, %v379
  %v396 = vsub.f32 %v305, %v380
  %v397 = vsub.f32 %v308, %v381
  %v398 = vsub.f32 %v313, %v382
  %v399 = vsub.f32 %v316, %v383
  %v400 = vmul.f32 %v384, %v384
  %v401 = vmul.f32 %v385, %v385
  %v402 = vmul.f32 %v386, %v386
  %v403 = vmul.f32 %v387, %v387
  %v404 = vmul.f32 %v388, %v388
  %v405 = vmul.f32 %v389, %v389
  %v406 = vmul.f32 %v390, %v390
  %v407 = vmul.f32 %v391, %v391
  %v408 = vmul.f32 %v392, %v392
  %v409 = vmul.f32 %v393, %v393
  %v410 = vmul.f32 %v394, %v394
  %v411 = vmul.f32 %v395, %v395
  %v412 = vmul.f32 %v396, %v396
  %v413 = vmul.f32 %v397, %v397
  %v414 = vmul.f32 %v398, %v398
  %v415 = vmul.f32 %v399, %v399
  %v416 = vsel %vm79, %v400, 0.0
  %417 = vadd.xlane.f32.xlu0 %v416
  %v418 = vpop.xlane.xlu0 %417
  %v419 = vsel %vm79, %v401, 0.0
  %420 = vadd.xlane.f32.xlu0 %v419
  %v421 = vpop.xlane.xlu0 %420
  %v422 = vsel %vm79, %v402, 0.0
  %423 = vadd.xlane.f32.xlu0 %v422
  %v424 = vpop.xlane.xlu0 %423
  %v425 = vsel %vm79, %v403, 0.0
  %426 = vadd.xlane.f32.xlu0 %v425
  %v427 = vpop.xlane.xlu0 %426
  %v428 = vsel %vm79, %v404, 0.0
  %429 = vadd.xlane.f32.xlu0 %v428
  %v430 = vpop.xlane.xlu0 %429
  %v431 = vsel %vm79, %v405, 0.0
  %432 = vadd.xlane.f32.xlu0 %v431
  %v433 = vpop.xlane.xlu0 %432
  %v434 = vsel %vm79, %v406, 0.0
  %435 = vadd.xlane.f32.xlu0 %v434
  %v436 = vpop.xlane.xlu0 %435
  %v437 = vsel %vm79, %v407, 0.0
  %438 = vadd.xlane.f32.xlu0 %v437
  %v439 = vpop.xlane.xlu0 %438
  %v440 = vsel %vm79, %v408, 0.0
  %441 = vadd.xlane.f32.xlu0 %v440
  %v442 = vpop.xlane.xlu0 %441
  %v443 = vsel %vm79, %v409, 0.0
  %444 = vadd.xlane.f32.xlu0 %v443
  %v445 = vpop.xlane.xlu0 %444
  %v446 = vsel %vm79, %v410, 0.0
  %447 = vadd.xlane.f32.xlu0 %v446
  %v448 = vpop.xlane.xlu0 %447
  %v449 = vsel %vm79, %v411, 0.0
  %450 = vadd.xlane.f32.xlu0 %v449
  %v451 = vpop.xlane.xlu0 %450
  %v452 = vsel %vm79, %v412, 0.0
  %453 = vadd.xlane.f32.xlu0 %v452
  %v454 = vpop.xlane.xlu0 %453
  %v455 = vsel %vm79, %v413, 0.0
  %456 = vadd.xlane.f32.xlu0 %v455
  %v457 = vpop.xlane.xlu0 %456
  %v458 = vsel %vm79, %v414, 0.0
  %459 = vadd.xlane.f32.xlu0 %v458
  %v460 = vpop.xlane.xlu0 %459
  %v461 = vsel %vm79, %v415, 0.0
  %462 = vadd.xlane.f32.xlu0 %v461
  %v463 = vpop.xlane.xlu0 %462
  %v464 = vmul.f32 %v418, %v367
  %v465 = vmul.f32 %v421, %v367
  %v466 = vmul.f32 %v424, %v367
  %v467 = vmul.f32 %v427, %v367
  %v468 = vmul.f32 %v430, %v367
  %v469 = vmul.f32 %v433, %v367
  %v470 = vmul.f32 %v436, %v367
  %v471 = vmul.f32 %v439, %v367
  %v472 = vmul.f32 %v442, %v367
  %v473 = vmul.f32 %v445, %v367
  %v474 = vmul.f32 %v448, %v367
  %v475 = vmul.f32 %v451, %v367
  %v476 = vmul.f32 %v454, %v367
  %v477 = vmul.f32 %v457, %v367
  %v478 = vmul.f32 %v460, %v367
  %v479 = vmul.f32 %v463, %v367
  %v480 = vadd.f32 %v464, 1e-06
  %v481 = vadd.f32 %v465, 1e-06
  %v482 = vadd.f32 %v466, 1e-06
  %v483 = vadd.f32 %v467, 1e-06
  %v484 = vadd.f32 %v468, 1e-06
  %v485 = vadd.f32 %v469, 1e-06
  %v486 = vadd.f32 %v470, 1e-06
  %v487 = vadd.f32 %v471, 1e-06
  %v488 = vadd.f32 %v472, 1e-06
  %v489 = vadd.f32 %v473, 1e-06
  %v490 = vadd.f32 %v474, 1e-06
  %v491 = vadd.f32 %v475, 1e-06
  %v492 = vadd.f32 %v476, 1e-06
  %v493 = vadd.f32 %v477, 1e-06
  %v494 = vadd.f32 %v478, 1e-06
  %v495 = vadd.f32 %v479, 1e-06
  %v496 = vrsqrt.pop %v480
  %v497 = vrsqrt.pop %v481
  %v498 = vrsqrt.pop %v482
  %v499 = vrsqrt.pop %v483
  %v500 = vrsqrt.pop %v484
  %v501 = vrsqrt.pop %v485
  %v502 = vrsqrt.pop %v486
  %v503 = vrsqrt.pop %v487
  %v504 = vrsqrt.pop %v488
  %v505 = vrsqrt.pop %v489
  %v506 = vrsqrt.pop %v490
  %v507 = vrsqrt.pop %v491
  %v508 = vrsqrt.pop %v492
  %v509 = vrsqrt.pop %v493
  %v510 = vrsqrt.pop %v494
  %v511 = vrsqrt.pop %v495
  %v512 = vmul.f32 %v384, %v496
  %v513 = vmul.f32 %v385, %v497
  %v514 = vmul.f32 %v386, %v498
  %v515 = vmul.f32 %v387, %v499
  %v516 = vmul.f32 %v388, %v500
  %v517 = vmul.f32 %v389, %v501
  %v518 = vmul.f32 %v390, %v502
  %v519 = vmul.f32 %v391, %v503
  %v520 = vmul.f32 %v392, %v504
  %v521 = vmul.f32 %v393, %v505
  %v522 = vmul.f32 %v394, %v506
  %v523 = vmul.f32 %v395, %v507
  %v524 = vmul.f32 %v396, %v508
  %v525 = vmul.f32 %v397, %v509
  %v526 = vmul.f32 %v398, %v510
  %v527 = vmul.f32 %v399, %v511
  %v528 = vadd.f32 %v144, 1.0
  %v529 = vlaneseq
  %v530 = vshrl.u32 %v529, 7
  %v531 = vsub.s32 1, %v530
  %v532 = vrot.slane %v528, %v531
  %v533 = vmul.f32 %v512, %v532
  %v534 = vmul.f32 %v513, %v532
  %v535 = vmul.f32 %v514, %v532
  %v536 = vmul.f32 %v515, %v532
  %v537 = vmul.f32 %v516, %v532
  %v538 = vmul.f32 %v517, %v532
  %v539 = vmul.f32 %v518, %v532
  %v540 = vmul.f32 %v519, %v532
  %v541 = vlaneseq
  %v542 = vshrl.u32 %v541, 7
  %v543 = vsub.s32 0, %v542
  %v544 = vrot.slane %v144, %v543
  %v545 = vadd.f32 %v533, %v544
  %v546 = vadd.f32 %v534, %v544
  %v547 = vadd.f32 %v535, %v544
  %v548 = vadd.f32 %v536, %v544
  %v549 = vadd.f32 %v537, %v544
  %v550 = vadd.f32 %v538, %v544
  %v551 = vadd.f32 %v539, %v544
  %v552 = vadd.f32 %v540, %v544
  %v553 = vadd.f32 %v147, 1.0
  %v554 = vlaneseq
  %v555 = vshrl.u32 %v554, 7
  %v556 = vsub.s32 1, %v555
  %v557 = vrot.slane %v553, %v556
  %v558 = vmul.f32 %v520, %v557
  %v559 = vmul.f32 %v521, %v557
  %v560 = vmul.f32 %v522, %v557
  %v561 = vmul.f32 %v523, %v557
  %v562 = vmul.f32 %v524, %v557
  %v563 = vmul.f32 %v525, %v557
  %v564 = vmul.f32 %v526, %v557
  %v565 = vmul.f32 %v527, %v557
  %v566 = vlaneseq
  %v567 = vshrl.u32 %v566, 7
  %v568 = vsub.s32 0, %v567
  %v569 = vrot.slane %v147, %v568
  %v570 = vadd.f32 %v558, %v569
  %v571 = vadd.f32 %v559, %v569
  %v572 = vadd.f32 %v560, %v569
  %v573 = vadd.f32 %v561, %v569
  %v574 = vadd.f32 %v562, %v569
  %v575 = vadd.f32 %v563, %v569
  %v576 = vadd.f32 %v564, %v569
  %v577 = vadd.f32 %v565, %v569
  %v578 = vpack.c.bf16 %v546, %v545
  %v579 = vpack.c.bf16 %v548, %v547
  %v580 = vpack.c.bf16 %v550, %v549
  %v581 = vpack.c.bf16 %v552, %v551
  %v582 = vpack.c.bf16 %v571, %v570
  %v583 = vpack.c.bf16 %v573, %v572
  %v584 = vpack.c.bf16 %v575, %v574
  %v585 = vpack.c.bf16 %v577, %v576
  %v586 = vld [vmem:[%s5] sm:$0xf]
  %v587 = vld [vmem:[%s5 + $0x4] sm:$0xf]
  %v588 = vld [vmem:[%s5 + $0x8] sm:$0xf]
  %v589 = vld [vmem:[%s5 + $0xc] sm:$0xf]
  %v590 = vld [vmem:[%s5 + $0x10] sm:$0xf]
  %v591 = vld [vmem:[%s5 + $0x14] sm:$0xf]
  %v592 = vld [vmem:[%s5 + $0x18] sm:$0xf]
  %v593 = vld [vmem:[%s5 + $0x1c] sm:$0xf]
  %v594 = vld [vmem:[%s6] sm:$0x1]
  %v596 = vlaneseq
  %v597 = vshrl.u32 %v596, 7
  %v598 = vsub.s32 0, %v597
  %v599 = vrot.slane %v594, %v598
  %v609 = vunpack.c.l.b16 %v586
  %v610 = vunpack.c.l.b16 %v587
  %v611 = vunpack.c.l.b16 %v588
  %v612 = vunpack.c.l.b16 %v589
  %v613 = vunpack.c.l.b16 %v590
  %v614 = vunpack.c.l.b16 %v591
  %v615 = vunpack.c.l.b16 %v592
  %v616 = vunpack.c.l.b16 %v593
  %v617 = vpack.c.b16 %v610, %v609
  %v618 = vpack.c.b16 %v612, %v611
  %v619 = vpack.c.b16 %v614, %v613
  %v620 = vpack.c.b16 %v616, %v615
  %v626 = vsel %vm79, %v578, 0
  %v629 = vsel %vm79, %v579, 0
  %v632 = vsel %vm79, %v580, 0
  %v635 = vsel %vm79, %v581, 0
  %v638 = vsel %vm79, %v582, 0
  %v641 = vsel %vm79, %v583, 0
  %v644 = vsel %vm79, %v584, 0
  %v647 = vsel %vm79, %v585, 0
  %649 = vmatprep.subr.bf16.mxu0 0
  %650 = vmatpush1.bf16.msra.mxu0 %v617
  %651 = vmatprep.subr.bf16.mxu0 0
  %652 = vmatpush1.bf16.msra.mxu0 %v618
  %653 = vmatprep.subr.bf16.mxu0 0
  %654 = vmatpush1.bf16.msra.mxu0 %v619
  %655 = vmatprep.subr.bf16.mxu0 0
  %656 = vmatpush1.bf16.msra.mxu0 %v620
  %657 = vmatprep.subr.bf16.mxu0 0
  %658 = vmatpush1.bf16.msra.mxu0 0
  %659 = vmatprep.subr.bf16.mxu0 0
  %660 = vmatpush1.bf16.msra.mxu0 0
  %661 = vmatprep.subr.bf16.mxu0 0
  %662 = vmatpush1.bf16.msra.mxu0 0
  %663 = vmatprep.subr.bf16.mxu0 0
  %664 = vmatpush1.bf16.msra.mxu0 0
  %665 = vmatprep.subr.bf16.mxu0 0
  %666 = vmatpush1.bf16.msra.mxu0 0
  %667 = vmatprep.subr.bf16.mxu0 0
  %668 = vmatpush1.bf16.msra.mxu0 0
  %669 = vmatprep.subr.bf16.mxu0 0
  %670 = vmatpush1.bf16.msra.mxu0 0
  %671 = vmatprep.subr.bf16.mxu0 0
  %672 = vmatpush1.bf16.msra.mxu0 0
  %673 = vmatprep.subr.bf16.mxu0 0
  %674 = vmatpush1.bf16.msra.mxu0 0
  %675 = vmatprep.subr.bf16.mxu0 0
  %676 = vmatpush1.bf16.msra.mxu0 0
  %677 = vmatprep.subr.bf16.mxu0 0
  %678 = vmatpush1.bf16.msra.mxu0 0
  %679 = vmatprep.subr.bf16.mxu0 0
  %680 = vmatpush1.bf16.msra.mxu0 0
  %681 = vmatprep.mubr.bf16.mxu0 0
  %682 = vmatmul.mubr.bf16.gmra.mrb[0].mxu0 %v626
  %v683 = vpop.f32.mrb[0].mxu0
  %v684 = vadd.f32 %v599, %v683
  %v685 = vpop.f32.mrb[0].mxu0
  %v686 = vpop.f32.mrb[0].mxu0
  %v687 = vadd.f32 %v599, %v686
  %v688 = vpop.f32.mrb[0].mxu0
  %689 = vmatprep.mubr.bf16.mxu0 0
  %690 = vmatmul.mubr.bf16.gmra.mrb[0].mxu0 %v629
  %v691 = vpop.f32.mrb[0].mxu0
  %v692 = vadd.f32 %v599, %v691
  %v693 = vpop.f32.mrb[0].mxu0
  %v694 = vpop.f32.mrb[0].mxu0
  %v695 = vadd.f32 %v599, %v694
  %v696 = vpop.f32.mrb[0].mxu0
  %697 = vmatprep.mubr.bf16.mxu0 0
  %698 = vmatmul.mubr.bf16.gmra.mrb[0].mxu0 %v632
  %v699 = vpop.f32.mrb[0].mxu0
  %v700 = vadd.f32 %v599, %v699
  %v701 = vpop.f32.mrb[0].mxu0
  %v702 = vpop.f32.mrb[0].mxu0
  %v703 = vadd.f32 %v599, %v702
  %v704 = vpop.f32.mrb[0].mxu0
  %705 = vmatprep.mubr.bf16.mxu0 0
  %706 = vmatmul.mubr.bf16.gmra.mrb[0].mxu0 %v635
  %v707 = vpop.f32.mrb[0].mxu0
  %v708 = vadd.f32 %v599, %v707
  %v709 = vpop.f32.mrb[0].mxu0
  %v710 = vpop.f32.mrb[0].mxu0
  %v711 = vadd.f32 %v599, %v710
  %v712 = vpop.f32.mrb[0].mxu0
  %713 = vmatprep.mubr.bf16.mxu0 0
  %714 = vmatmul.mubr.bf16.gmra.mrb[0].mxu0 %v638
  %v715 = vpop.f32.mrb[0].mxu0
  %v716 = vadd.f32 %v599, %v715
  %v717 = vpop.f32.mrb[0].mxu0
  %v718 = vpop.f32.mrb[0].mxu0
  %v719 = vadd.f32 %v599, %v718
  %v720 = vpop.f32.mrb[0].mxu0
  %721 = vmatprep.mubr.bf16.mxu0 0
  %722 = vmatmul.mubr.bf16.gmra.mrb[0].mxu0 %v641
  %v723 = vpop.f32.mrb[0].mxu0
  %v724 = vadd.f32 %v599, %v723
  %v725 = vpop.f32.mrb[0].mxu0
  %v726 = vpop.f32.mrb[0].mxu0
  %v727 = vadd.f32 %v599, %v726
  %v728 = vpop.f32.mrb[0].mxu0
  %729 = vmatprep.mubr.bf16.mxu0 0
  %730 = vmatmul.mubr.bf16.gmra.mrb[0].mxu0 %v644
  %v731 = vpop.f32.mrb[0].mxu0
  %v732 = vadd.f32 %v599, %v731
  %v733 = vpop.f32.mrb[0].mxu0
  %v734 = vpop.f32.mrb[0].mxu0
  %v735 = vadd.f32 %v599, %v734
  %v736 = vpop.f32.mrb[0].mxu0
  %737 = vmatprep.mubr.bf16.mxu0 0
  %738 = vmatmul.mubr.bf16.gmra.mrb[0].mxu0 %v647
  %v739 = vpop.f32.mrb[0].mxu0
  %v740 = vadd.f32 %v599, %v739
  %v741 = vpop.f32.mrb[0].mxu0
  %v742 = vpop.f32.mrb[0].mxu0
  %v743 = vadd.f32 %v599, %v742
  %v744 = vpop.f32.mrb[0].mxu0
  %745 = vdwg.mxu0
  %v746 = vld [vmem:[%s7] sm:$0xf]
  %v747 = vld [vmem:[%s7 + $0x4] sm:$0xf]
  %v748 = vld [vmem:[%s7 + $0x8] sm:$0xf]
  %v749 = vld [vmem:[%s7 + $0xc] sm:$0xf]
  %v750 = vld [vmem:[%s7 + $0x10] sm:$0xf]
  %v751 = vld [vmem:[%s7 + $0x14] sm:$0xf]
  %v752 = vld [vmem:[%s7 + $0x18] sm:$0xf]
  %v753 = vld [vmem:[%s7 + $0x1c] sm:$0xf]
  %v754 = vld [vmem:[%s8] sm:$0x1]
  %v756 = vlaneseq
  %v757 = vshrl.u32 %v756, 7
  %v758 = vsub.s32 0, %v757
  %v759 = vrot.slane %v754, %v758
  %v769 = vunpack.c.l.b16 %v746
  %v770 = vunpack.c.l.b16 %v747
  %v771 = vunpack.c.l.b16 %v748
  %v772 = vunpack.c.l.b16 %v749
  %v773 = vunpack.c.l.b16 %v750
  %v774 = vunpack.c.l.b16 %v751
  %v775 = vunpack.c.l.b16 %v752
  %v776 = vunpack.c.l.b16 %v753
  %v777 = vpack.c.b16 %v770, %v769
  %v778 = vpack.c.b16 %v772, %v771
  %v779 = vpack.c.b16 %v774, %v773
  %v780 = vpack.c.b16 %v776, %v775
  %785 = vmatprep.subr.bf16.mxu0 0
  %786 = vmatpush1.bf16.msra.mxu0 %v777
  %787 = vmatprep.subr.bf16.mxu0 0
  %788 = vmatpush1.bf16.msra.mxu0 %v778
  %789 = vmatprep.subr.bf16.mxu0 0
  %790 = vmatpush1.bf16.msra.mxu0 %v779
  %791 = vmatprep.subr.bf16.mxu0 0
  %792 = vmatpush1.bf16.msra.mxu0 %v780
  %793 = vmatprep.subr.bf16.mxu0 0
  %794 = vmatpush1.bf16.msra.mxu0 0
  %795 = vmatprep.subr.bf16.mxu0 0
  %796 = vmatpush1.bf16.msra.mxu0 0
  %797 = vmatprep.subr.bf16.mxu0 0
  %798 = vmatpush1.bf16.msra.mxu0 0
  %799 = vmatprep.subr.bf16.mxu0 0
  %800 = vmatpush1.bf16.msra.mxu0 0
  %801 = vmatprep.subr.bf16.mxu0 0
  %802 = vmatpush1.bf16.msra.mxu0 0
  %803 = vmatprep.subr.bf16.mxu0 0
  %804 = vmatpush1.bf16.msra.mxu0 0
  %805 = vmatprep.subr.bf16.mxu0 0
  %806 = vmatpush1.bf16.msra.mxu0 0
  %807 = vmatprep.subr.bf16.mxu0 0
  %808 = vmatpush1.bf16.msra.mxu0 0
  %809 = vmatprep.subr.bf16.mxu0 0
  %810 = vmatpush1.bf16.msra.mxu0 0
  %811 = vmatprep.subr.bf16.mxu0 0
  %812 = vmatpush1.bf16.msra.mxu0 0
  %813 = vmatprep.subr.bf16.mxu0 0
  %814 = vmatpush1.bf16.msra.mxu0 0
  %815 = vmatprep.subr.bf16.mxu0 0
  %816 = vmatpush1.bf16.msra.mxu0 0
  %817 = vmatprep.mubr.bf16.mxu0 0
  %818 = vmatmul.mubr.bf16.gmra.mrb[0].mxu0 %v626
  %v819 = vpop.f32.mrb[0].mxu0
  %v820 = vadd.f32 %v759, %v819
  %v821 = vpop.f32.mrb[0].mxu0
  %v822 = vpop.f32.mrb[0].mxu0
  %v823 = vadd.f32 %v759, %v822
  %v824 = vpop.f32.mrb[0].mxu0
  %825 = vmatprep.mubr.bf16.mxu0 0
  %826 = vmatmul.mubr.bf16.gmra.mrb[0].mxu0 %v629
  %v827 = vpop.f32.mrb[0].mxu0
  %v828 = vadd.f32 %v759, %v827
  %v829 = vpop.f32.mrb[0].mxu0
  %v830 = vpop.f32.mrb[0].mxu0
  %v831 = vadd.f32 %v759, %v830
  %v832 = vpop.f32.mrb[0].mxu0
  %833 = vmatprep.mubr.bf16.mxu0 0
  %834 = vmatmul.mubr.bf16.gmra.mrb[0].mxu0 %v632
  %v835 = vpop.f32.mrb[0].mxu0
  %v836 = vadd.f32 %v759, %v835
  %v837 = vpop.f32.mrb[0].mxu0
  %v838 = vpop.f32.mrb[0].mxu0
  %v839 = vadd.f32 %v759, %v838
  %v840 = vpop.f32.mrb[0].mxu0
  %841 = vmatprep.mubr.bf16.mxu0 0
  %842 = vmatmul.mubr.bf16.gmra.mrb[0].mxu0 %v635
  %v843 = vpop.f32.mrb[0].mxu0
  %v844 = vadd.f32 %v759, %v843
  %v845 = vpop.f32.mrb[0].mxu0
  %v846 = vpop.f32.mrb[0].mxu0
  %v847 = vadd.f32 %v759, %v846
  %v848 = vpop.f32.mrb[0].mxu0
  %849 = vmatprep.mubr.bf16.mxu0 0
  %850 = vmatmul.mubr.bf16.gmra.mrb[0].mxu0 %v638
  %v851 = vpop.f32.mrb[0].mxu0
  %v852 = vadd.f32 %v759, %v851
  %v853 = vpop.f32.mrb[0].mxu0
  %v854 = vpop.f32.mrb[0].mxu0
  %v855 = vadd.f32 %v759, %v854
  %v856 = vpop.f32.mrb[0].mxu0
  %857 = vmatprep.mubr.bf16.mxu0 0
  %858 = vmatmul.mubr.bf16.gmra.mrb[0].mxu0 %v641
  %v859 = vpop.f32.mrb[0].mxu0
  %v860 = vadd.f32 %v759, %v859
  %v861 = vpop.f32.mrb[0].mxu0
  %v862 = vpop.f32.mrb[0].mxu0
  %v863 = vadd.f32 %v759, %v862
  %v864 = vpop.f32.mrb[0].mxu0
  %865 = vmatprep.mubr.bf16.mxu0 0
  %866 = vmatmul.mubr.bf16.gmra.mrb[0].mxu0 %v644
  %v867 = vpop.f32.mrb[0].mxu0
  %v868 = vadd.f32 %v759, %v867
  %v869 = vpop.f32.mrb[0].mxu0
  %v870 = vpop.f32.mrb[0].mxu0
  %v871 = vadd.f32 %v759, %v870
  %v872 = vpop.f32.mrb[0].mxu0
  %873 = vmatprep.mubr.bf16.mxu0 0
  %874 = vmatmul.mubr.bf16.gmra.mrb[0].mxu0 %v647
  %v875 = vpop.f32.mrb[0].mxu0
  %v876 = vadd.f32 %v759, %v875
  %v877 = vpop.f32.mrb[0].mxu0
  %v878 = vpop.f32.mrb[0].mxu0
  %v879 = vadd.f32 %v759, %v878
  %v880 = vpop.f32.mrb[0].mxu0
  %881 = vdwg.mxu0
  %v882 = vld [vmem:[%s9] sm:$0xf]
  %v883 = vld [vmem:[%s9 + $0x4] sm:$0xf]
  %v884 = vld [vmem:[%s9 + $0x8] sm:$0xf]
  %v885 = vld [vmem:[%s9 + $0xc] sm:$0xf]
  %v886 = vld [vmem:[%s9 + $0x10] sm:$0xf]
  %v887 = vld [vmem:[%s9 + $0x14] sm:$0xf]
  %v888 = vld [vmem:[%s9 + $0x18] sm:$0xf]
  %v889 = vld [vmem:[%s9 + $0x1c] sm:$0xf]
  %v890 = vld [vmem:[%s10] sm:$0x1]
  %v892 = vlaneseq
  %v893 = vshrl.u32 %v892, 7
  %v894 = vsub.s32 0, %v893
  %v895 = vrot.slane %v890, %v894
  %v905 = vunpack.c.l.b16 %v882
  %v906 = vunpack.c.l.b16 %v883
  %v907 = vunpack.c.l.b16 %v884
  %v908 = vunpack.c.l.b16 %v885
  %v909 = vunpack.c.l.b16 %v886
  %v910 = vunpack.c.l.b16 %v887
  %v911 = vunpack.c.l.b16 %v888
  %v912 = vunpack.c.l.b16 %v889
  %v913 = vpack.c.b16 %v906, %v905
  %v914 = vpack.c.b16 %v908, %v907
  %v915 = vpack.c.b16 %v910, %v909
  %v916 = vpack.c.b16 %v912, %v911
  %921 = vmatprep.subr.bf16.mxu0 0
  %922 = vmatpush1.bf16.msra.mxu0 %v913
  %923 = vmatprep.subr.bf16.mxu0 0
  %924 = vmatpush1.bf16.msra.mxu0 %v914
  %925 = vmatprep.subr.bf16.mxu0 0
  %926 = vmatpush1.bf16.msra.mxu0 %v915
  %927 = vmatprep.subr.bf16.mxu0 0
  %928 = vmatpush1.bf16.msra.mxu0 %v916
  %929 = vmatprep.subr.bf16.mxu0 0
  %930 = vmatpush1.bf16.msra.mxu0 0
  %931 = vmatprep.subr.bf16.mxu0 0
  %932 = vmatpush1.bf16.msra.mxu0 0
  %933 = vmatprep.subr.bf16.mxu0 0
  %934 = vmatpush1.bf16.msra.mxu0 0
  %935 = vmatprep.subr.bf16.mxu0 0
  %936 = vmatpush1.bf16.msra.mxu0 0
  %937 = vmatprep.subr.bf16.mxu0 0
  %938 = vmatpush1.bf16.msra.mxu0 0
  %939 = vmatprep.subr.bf16.mxu0 0
  %940 = vmatpush1.bf16.msra.mxu0 0
  %941 = vmatprep.subr.bf16.mxu0 0
  %942 = vmatpush1.bf16.msra.mxu0 0
  %943 = vmatprep.subr.bf16.mxu0 0
  %944 = vmatpush1.bf16.msra.mxu0 0
  %945 = vmatprep.subr.bf16.mxu0 0
  %946 = vmatpush1.bf16.msra.mxu0 0
  %947 = vmatprep.subr.bf16.mxu0 0
  %948 = vmatpush1.bf16.msra.mxu0 0
  %949 = vmatprep.subr.bf16.mxu0 0
  %950 = vmatpush1.bf16.msra.mxu0 0
  %951 = vmatprep.subr.bf16.mxu0 0
  %952 = vmatpush1.bf16.msra.mxu0 0
  %953 = vmatprep.mubr.bf16.mxu0 0
  %954 = vmatmul.mubr.bf16.gmra.mrb[0].mxu0 %v626
  %v955 = vpop.f32.mrb[0].mxu0
  %v956 = vadd.f32 %v895, %v955
  %v957 = vpop.f32.mrb[0].mxu0
  %v958 = vpop.f32.mrb[0].mxu0
  %v959 = vadd.f32 %v895, %v958
  %v960 = vpop.f32.mrb[0].mxu0
  %961 = vmatprep.mubr.bf16.mxu0 0
  %962 = vmatmul.mubr.bf16.gmra.mrb[0].mxu0 %v629
  %v963 = vpop.f32.mrb[0].mxu0
  %v964 = vadd.f32 %v895, %v963
  %v965 = vpop.f32.mrb[0].mxu0
  %v966 = vpop.f32.mrb[0].mxu0
  %v967 = vadd.f32 %v895, %v966
  %v968 = vpop.f32.mrb[0].mxu0
  %969 = vmatprep.mubr.bf16.mxu0 0
  %970 = vmatmul.mubr.bf16.gmra.mrb[0].mxu0 %v632
  %v971 = vpop.f32.mrb[0].mxu0
  %v972 = vadd.f32 %v895, %v971
  %v973 = vpop.f32.mrb[0].mxu0
  %v974 = vpop.f32.mrb[0].mxu0
  %v975 = vadd.f32 %v895, %v974
  %v976 = vpop.f32.mrb[0].mxu0
  %977 = vmatprep.mubr.bf16.mxu0 0
  %978 = vmatmul.mubr.bf16.gmra.mrb[0].mxu0 %v635
  %v979 = vpop.f32.mrb[0].mxu0
  %v980 = vadd.f32 %v895, %v979
  %v981 = vpop.f32.mrb[0].mxu0
  %v982 = vpop.f32.mrb[0].mxu0
  %v983 = vadd.f32 %v895, %v982
  %v984 = vpop.f32.mrb[0].mxu0
  %985 = vmatprep.mubr.bf16.mxu0 0
  %986 = vmatmul.mubr.bf16.gmra.mrb[0].mxu0 %v638
  %v987 = vpop.f32.mrb[0].mxu0
  %v988 = vadd.f32 %v895, %v987
  %v989 = vpop.f32.mrb[0].mxu0
  %v990 = vpop.f32.mrb[0].mxu0
  %v991 = vadd.f32 %v895, %v990
  %v992 = vpop.f32.mrb[0].mxu0
  %993 = vmatprep.mubr.bf16.mxu0 0
  %994 = vmatmul.mubr.bf16.gmra.mrb[0].mxu0 %v641
  %v995 = vpop.f32.mrb[0].mxu0
  %v996 = vadd.f32 %v895, %v995
  %v997 = vpop.f32.mrb[0].mxu0
  %v998 = vpop.f32.mrb[0].mxu0
  %v999 = vadd.f32 %v895, %v998
  %v1000 = vpop.f32.mrb[0].mxu0
  %1001 = vmatprep.mubr.bf16.mxu0 0
  %1002 = vmatmul.mubr.bf16.gmra.mrb[0].mxu0 %v644
  %v1003 = vpop.f32.mrb[0].mxu0
  %v1004 = vadd.f32 %v895, %v1003
  %v1005 = vpop.f32.mrb[0].mxu0
  %v1006 = vpop.f32.mrb[0].mxu0
  %v1007 = vadd.f32 %v895, %v1006
  %v1008 = vpop.f32.mrb[0].mxu0
  %1009 = vmatprep.mubr.bf16.mxu0 0
  %1010 = vmatmul.mubr.bf16.gmra.mrb[0].mxu0 %v647
  %v1011 = vpop.f32.mrb[0].mxu0
  %v1012 = vadd.f32 %v895, %v1011
  %v1013 = vpop.f32.mrb[0].mxu0
  %v1014 = vpop.f32.mrb[0].mxu0
  %v1015 = vadd.f32 %v895, %v1014
  %v1016 = vpop.f32.mrb[0].mxu0
  %1017 = vdwg.mxu0
  %1018 = vxpose.xlu0.b32.start [1/16] %v820, 128
  %1019 = vxpose.xlu0.b32.cont [2/16] %v823, 128
  %1020 = vxpose.xlu0.b32.cont [3/16] %v828, 128
  %1021 = vxpose.xlu0.b32.cont [4/16] %v831, 128
  %1022 = vxpose.xlu0.b32.cont [5/16] %v836, 128
  %1023 = vxpose.xlu0.b32.cont [6/16] %v839, 128
  %1024 = vxpose.xlu0.b32.cont [7/16] %v844, 128
  %1025 = vxpose.xlu0.b32.cont [8/16] %v847, 128
  %1026 = vxpose.xlu0.b32.cont [9/16] 0.0, 128
  %1027 = vxpose.xlu0.b32.cont [10/16] 0.0, 128
  %1028 = vxpose.xlu0.b32.cont [11/16] 0.0, 128
  %1029 = vxpose.xlu0.b32.cont [12/16] 0.0, 128
  %1030 = vxpose.xlu0.b32.cont [13/16] 0.0, 128
  %1031 = vxpose.xlu0.b32.cont [14/16] 0.0, 128
  %1032 = vxpose.xlu0.b32.cont [15/16] 0.0, 128
  %1033 = vxpose.xlu0.b32.end [16/16] 0.0, 128
  %v1034 = vpop.trf.xlu0
  %v1035 = vpop.trf.xlu0
  %v1036 = vpop.trf.xlu0
  %v1037 = vpop.trf.xlu0
  %v1038 = vpop.trf.xlu0
  %v1039 = vpop.trf.xlu0
  %v1040 = vpop.trf.xlu0
  %v1041 = vpop.trf.xlu0
  %v1042 = vpop.trf.xlu0
  %v1043 = vpop.trf.xlu0
  %v1044 = vpop.trf.xlu0
  %v1045 = vpop.trf.xlu0
  %v1046 = vpop.trf.xlu0
  %v1047 = vpop.trf.xlu0
  %v1048 = vpop.trf.xlu0
  %v1049 = vpop.trf.xlu0
  %v1050 = vpack.c.bf16 %v1035, %v1034
  %1051 = vst.msk [vmem:[#allocation2] sm:$0xff] %vm79, %v1050
  %v1052 = vpack.c.bf16 %v959, %v956
  %v1053 = vpack.c.bf16 %v967, %v964
  %v1054 = vpack.c.bf16 %v975, %v972
  %v1055 = vpack.c.bf16 %v983, %v980
  %1056 = vst.msk [vmem:[#allocation3] sm:$0xff] %vm197, %v1052
  %1057 = vst.msk [vmem:[#allocation3 + $0x8] sm:$0xff] %vm197, %v1053
  %1058 = vst.msk [vmem:[#allocation3 + $0x10] sm:$0xff] %vm197, %v1054
  %1059 = vst.msk [vmem:[#allocation3 + $0x18] sm:$0xff] %vm197, %v1055
  %v1060 = vpack.c.bf16 %v1037, %v1036
  %1062 = vrot.lane.b32.xlu0 %v1060, 64
  %v1063 = vpop.permute.xlu0 %1062
  %vm1065 = vcmask 1048064
  %1066 = vst.msk [vmem:[#allocation2 + $0x10] sm:$0xff] %vm1065, %v1063
  %vm1067 = vcmask 261248
  %1068 = vst.msk [vmem:[#allocation3 + $0x20] sm:$0xff] %vm1067, %v1052
  %1069 = vst.msk [vmem:[#allocation3 + $0x28] sm:$0xff] %vm1067, %v1053
  %1070 = vst.msk [vmem:[#allocation3 + $0x30] sm:$0xff] %vm1067, %v1054
  %1071 = vst.msk [vmem:[#allocation3 + $0x38] sm:$0xff] %vm1067, %v1055
  %v1072 = vpack.c.bf16 %v1039, %v1038
  %1073 = vst.msk [vmem:[#allocation2 + $0x28] sm:$0xff] %vm79, %v1072
  %vm1074 = vcmask 392448
  %1075 = vst.msk [vmem:[#allocation3 + $0x40] sm:$0xff] %vm1074, %v1052
  %1076 = vst.msk [vmem:[#allocation3 + $0x48] sm:$0xff] %vm1074, %v1053
  %1077 = vst.msk [vmem:[#allocation3 + $0x50] sm:$0xff] %vm1074, %v1054
  %1078 = vst.msk [vmem:[#allocation3 + $0x58] sm:$0xff] %vm1074, %v1055
  %v1079 = vpack.c.bf16 %v1041, %v1040
  %1081 = vrot.lane.b32.xlu0 %v1079, 64
  %v1082 = vpop.permute.xlu0 %1081
  %1084 = vst.msk [vmem:[#allocation2 + $0x38] sm:$0xff] %vm1065, %v1082
  %vm1085 = vcmask 523648
  %1086 = vst.msk [vmem:[#allocation3 + $0x60] sm:$0xff] %vm1085, %v1052
  %1087 = vst.msk [vmem:[#allocation3 + $0x68] sm:$0xff] %vm1085, %v1053
  %1088 = vst.msk [vmem:[#allocation3 + $0x70] sm:$0xff] %vm1085, %v1054
  %1089 = vst.msk [vmem:[#allocation3 + $0x78] sm:$0xff] %vm1085, %v1055
  %1090 = vxpose.xlu0.b32.start [1/16] %v852, 128
  %1091 = vxpose.xlu0.b32.cont [2/16] %v855, 128
  %1092 = vxpose.xlu0.b32.cont [3/16] %v860, 128
  %1093 = vxpose.xlu0.b32.cont [4/16] %v863, 128
  %1094 = vxpose.xlu0.b32.cont [5/16] %v868, 128
  %1095 = vxpose.xlu0.b32.cont [6/16] %v871, 128
  %1096 = vxpose.xlu0.b32.cont [7/16] %v876, 128
  %1097 = vxpose.xlu0.b32.cont [8/16] %v879, 128
  %1098 = vxpose.xlu0.b32.cont [9/16] 0.0, 128
  %1099 = vxpose.xlu0.b32.cont [10/16] 0.0, 128
  %1100 = vxpose.xlu0.b32.cont [11/16] 0.0, 128
  %1101 = vxpose.xlu0.b32.cont [12/16] 0.0, 128
  %1102 = vxpose.xlu0.b32.cont [13/16] 0.0, 128
  %1103 = vxpose.xlu0.b32.cont [14/16] 0.0, 128
  %1104 = vxpose.xlu0.b32.cont [15/16] 0.0, 128
  %1105 = vxpose.xlu0.b32.end [16/16] 0.0, 128
  %v1106 = vpop.trf.xlu0
  %v1107 = vpop.trf.xlu0
  %v1108 = vpop.trf.xlu0
  %v1109 = vpop.trf.xlu0
  %v1110 = vpop.trf.xlu0
  %v1111 = vpop.trf.xlu0
  %v1112 = vpop.trf.xlu0
  %v1113 = vpop.trf.xlu0
  %v1114 = vpop.trf.xlu0
  %v1115 = vpop.trf.xlu0
  %v1116 = vpop.trf.xlu0
  %v1117 = vpop.trf.xlu0
  %v1118 = vpop.trf.xlu0
  %v1119 = vpop.trf.xlu0
  %v1120 = vpop.trf.xlu0
  %v1121 = vpop.trf.xlu0
  %v1122 = vpack.c.bf16 %v1107, %v1106
  %s1123 = scalar_lea.vmem [#allocation2], 64
  %1124 = vst.msk [vmem:[%s1123] sm:$0xff] %vm79, %v1122
  %v1125 = vpack.c.bf16 %v991, %v988
  %v1126 = vpack.c.bf16 %v999, %v996
  %v1127 = vpack.c.bf16 %v1007, %v1004
  %v1128 = vpack.c.bf16 %v1015, %v1012
  %s1129 = scalar_lea.vmem [#allocation3], 128
  %1130 = vst.msk [vmem:[%s1129] sm:$0xff] %vm197, %v1125
  %1131 = vst.msk [vmem:[%s1129 + $0x8] sm:$0xff] %vm197, %v1126
  %1132 = vst.msk [vmem:[%s1129 + $0x10] sm:$0xff] %vm197, %v1127
  %1133 = vst.msk [vmem:[%s1129 + $0x18] sm:$0xff] %vm197, %v1128
  %v1134 = vpack.c.bf16 %v1109, %v1108
  %1136 = vrot.lane.b32.xlu0 %v1134, 64
  %v1137 = vpop.permute.xlu0 %1136
  %1139 = vst.msk [vmem:[%s1123 + $0x10] sm:$0xff] %vm1065, %v1137
  %1140 = vst.msk [vmem:[%s1129 + $0x20] sm:$0xff] %vm1067, %v1125
  %1141 = vst.msk [vmem:[%s1129 + $0x28] sm:$0xff] %vm1067, %v1126
  %1142 = vst.msk [vmem:[%s1129 + $0x30] sm:$0xff] %vm1067, %v1127
  %1143 = vst.msk [vmem:[%s1129 + $0x38] sm:$0xff] %vm1067, %v1128
  %v1144 = vpack.c.bf16 %v1111, %v1110
  %1145 = vst.msk [vmem:[%s1123 + $0x28] sm:$0xff] %vm79, %v1144
  %1146 = vst.msk [vmem:[%s1129 + $0x40] sm:$0xff] %vm1074, %v1125
  %1147 = vst.msk [vmem:[%s1129 + $0x48] sm:$0xff] %vm1074, %v1126
  %1148 = vst.msk [vmem:[%s1129 + $0x50] sm:$0xff] %vm1074, %v1127
  %1149 = vst.msk [vmem:[%s1129 + $0x58] sm:$0xff] %vm1074, %v1128
  %v1150 = vpack.c.bf16 %v1113, %v1112
  %1152 = vrot.lane.b32.xlu0 %v1150, 64
  %v1153 = vpop.permute.xlu0 %1152
  %1155 = vst.msk [vmem:[%s1123 + $0x38] sm:$0xff] %vm1065, %v1153
  %1156 = vst.msk [vmem:[%s1129 + $0x60] sm:$0xff] %vm1085, %v1125
  %1157 = vst.msk [vmem:[%s1129 + $0x68] sm:$0xff] %vm1085, %v1126
  %1158 = vst.msk [vmem:[%s1129 + $0x70] sm:$0xff] %vm1085, %v1127
  %1159 = vst.msk [vmem:[%s1129 + $0x78] sm:$0xff] %vm1085, %v1128
  %v1160 = vpack.c.bf16 %v687, %v684
  %v1161 = vpack.c.bf16 %v695, %v692
  %v1162 = vpack.c.bf16 %v703, %v700
  %v1163 = vpack.c.bf16 %v711, %v708
  %v1164 = vld [vmem:[#allocation2] sm:$0xff]
  %v1165 = vld [vmem:[#allocation2 + $0x8] sm:$0xff]
  %v1166 = vld [vmem:[#allocation2 + $0x10] sm:$0xff]
  %v1167 = vld [vmem:[#allocation2 + $0x18] sm:$0xff]
  %v1168 = vld [vmem:[#allocation2 + $0x20] sm:$0xff]
  %v1169 = vld [vmem:[#allocation2 + $0x28] sm:$0xff]
  %v1170 = vld [vmem:[#allocation2 + $0x30] sm:$0xff]
  %v1171 = vld [vmem:[#allocation2 + $0x38] sm:$0xff]
  %v1173 = vsel %vm79, %v1160, 0
  %v1176 = vsel %vm79, %v1161, 0
  %v1179 = vsel %vm79, %v1162, 0
  %v1182 = vsel %vm79, %v1163, 0
  %1184 = vmatprep.subr.bf16.mxu0 %v1165
  %1185 = vmatpush1.bf16.msra.mxu0 %v1164
  %1186 = vmatprep.subr.bf16.mxu0 %v1167
  %1187 = vmatpush1.bf16.msra.mxu0 %v1166
  %1188 = vmatprep.subr.bf16.mxu0 %v1169
  %1189 = vmatpush1.bf16.msra.mxu0 %v1168
  %1190 = vmatprep.subr.bf16.mxu0 %v1171
  %1191 = vmatpush1.bf16.msra.mxu0 %v1170
  %1192 = vmatprep.subr.bf16.mxu0 0
  %1193 = vmatpush1.bf16.msra.mxu0 0
  %1194 = vmatprep.subr.bf16.mxu0 0
  %1195 = vmatpush1.bf16.msra.mxu0 0
  %1196 = vmatprep.subr.bf16.mxu0 0
  %1197 = vmatpush1.bf16.msra.mxu0 0
  %1198 = vmatprep.subr.bf16.mxu0 0
  %1199 = vmatpush1.bf16.msra.mxu0 0
  %1200 = vmatprep.subr.bf16.mxu0 0
  %1201 = vmatpush1.bf16.msra.mxu0 0
  %1202 = vmatprep.subr.bf16.mxu0 0
  %1203 = vmatpush1.bf16.msra.mxu0 0
  %1204 = vmatprep.subr.bf16.mxu0 0
  %1205 = vmatpush1.bf16.msra.mxu0 0
  %1206 = vmatprep.subr.bf16.mxu0 0
  %1207 = vmatpush1.bf16.msra.mxu0 0
  %1208 = vmatprep.subr.bf16.mxu0 0
  %1209 = vmatpush1.bf16.msra.mxu0 0
  %1210 = vmatprep.subr.bf16.mxu0 0
  %1211 = vmatpush1.bf16.msra.mxu0 0
  %1212 = vmatprep.subr.bf16.mxu0 0
  %1213 = vmatpush1.bf16.msra.mxu0 0
  %1214 = vmatprep.subr.bf16.mxu0 0
  %1215 = vmatpush1.bf16.msra.mxu0 0
  %1216 = vmatprep.mubr.bf16.mxu0 0
  %1217 = vmatmul.mubr.bf16.gmra.mrb[0].mxu0 %v1173
  %v1218 = vpop.f32.mrb[0].mxu0
  %v1219 = vadd.f32 0.0, %v1218
  %v1220 = vpop.f32.mrb[0].mxu0
  %v1221 = vadd.f32 0.0, %v1220
  %v1222 = vpop.f32.mrb[0].mxu0
  %v1223 = vadd.f32 0.0, %v1222
  %v1224 = vpop.f32.mrb[0].mxu0
  %v1225 = vadd.f32 0.0, %v1224
  %1226 = vmatprep.mubr.bf16.mxu0 0
  %1227 = vmatmul.mubr.bf16.gmra.mrb[0].mxu0 %v1176
  %v1228 = vpop.f32.mrb[0].mxu0
  %v1229 = vadd.f32 0.0, %v1228
  %v1230 = vpop.f32.mrb[0].mxu0
  %v1231 = vadd.f32 0.0, %v1230
  %v1232 = vpop.f32.mrb[0].mxu0
  %v1233 = vadd.f32 0.0, %v1232
  %v1234 = vpop.f32.mrb[0].mxu0
  %v1235 = vadd.f32 0.0, %v1234
  %1236 = vmatprep.mubr.bf16.mxu0 0
  %1237 = vmatmul.mubr.bf16.gmra.mrb[0].mxu0 %v1179
  %v1238 = vpop.f32.mrb[0].mxu0
  %v1239 = vadd.f32 0.0, %v1238
  %v1240 = vpop.f32.mrb[0].mxu0
  %v1241 = vadd.f32 0.0, %v1240
  %v1242 = vpop.f32.mrb[0].mxu0
  %v1243 = vadd.f32 0.0, %v1242
  %v1244 = vpop.f32.mrb[0].mxu0
  %v1245 = vadd.f32 0.0, %v1244
  %1246 = vmatprep.mubr.bf16.mxu0 0
  %1247 = vmatmul.mubr.bf16.gmra.mrb[0].mxu0 %v1182
  %v1248 = vpop.f32.mrb[0].mxu0
  %v1249 = vadd.f32 0.0, %v1248
  %v1250 = vpop.f32.mrb[0].mxu0
  %v1251 = vadd.f32 0.0, %v1250
  %v1252 = vpop.f32.mrb[0].mxu0
  %v1253 = vadd.f32 0.0, %v1252
  %v1254 = vpop.f32.mrb[0].mxu0
  %v1255 = vadd.f32 0.0, %v1254
  %1256 = vdwg.mxu0
  %v1257 = vmax.f32 %v1219, %v1221
  %1258 = vmax.xlane.f32.xlu0 %v1257
  %v1259 = vpop.xlane.xlu0 %1258
  %v1260 = vmax.f32 %v1223, %v1225
  %1261 = vmax.xlane.f32.xlu0 %v1260
  %v1262 = vpop.xlane.xlu0 %1261
  %v1263 = vmax.f32 %v1229, %v1231
  %1264 = vmax.xlane.f32.xlu0 %v1263
  %v1265 = vpop.xlane.xlu0 %1264
  %v1266 = vmax.f32 %v1233, %v1235
  %1267 = vmax.xlane.f32.xlu0 %v1266
  %v1268 = vpop.xlane.xlu0 %1267
  %v1269 = vmax.f32 %v1239, %v1241
  %1270 = vmax.xlane.f32.xlu0 %v1269
  %v1271 = vpop.xlane.xlu0 %1270
  %v1272 = vmax.f32 %v1243, %v1245
  %1273 = vmax.xlane.f32.xlu0 %v1272
  %v1274 = vpop.xlane.xlu0 %1273
  %v1275 = vmax.f32 %v1249, %v1251
  %1276 = vmax.xlane.f32.xlu0 %v1275
  %v1277 = vpop.xlane.xlu0 %1276
  %v1278 = vmax.f32 %v1253, %v1255
  %1279 = vmax.xlane.f32.xlu0 %v1278
  %v1280 = vpop.xlane.xlu0 %1279
  %v1281 = vsub.f32 %v1219, %v1259
  %v1282 = vsub.f32 %v1221, %v1259
  %v1283 = vsub.f32 %v1223, %v1262
  %v1284 = vsub.f32 %v1225, %v1262
  %v1285 = vsub.f32 %v1229, %v1265
  %v1286 = vsub.f32 %v1231, %v1265
  %v1287 = vsub.f32 %v1233, %v1268
  %v1288 = vsub.f32 %v1235, %v1268
  %v1289 = vsub.f32 %v1239, %v1271
  %v1290 = vsub.f32 %v1241, %v1271
  %v1291 = vsub.f32 %v1243, %v1274
  %v1292 = vsub.f32 %v1245, %v1274
  %v1293 = vsub.f32 %v1249, %v1277
  %v1294 = vsub.f32 %v1251, %v1277
  %v1295 = vsub.f32 %v1253, %v1280
  %v1296 = vsub.f32 %v1255, %v1280
  %v1297 = vmul.f32 %v1281, 1.442695
  %v1298 = vpow.pop %v1297
  %v1299 = vmul.f32 %v1282, 1.442695
  %v1300 = vpow.pop %v1299
  %v1301 = vmul.f32 %v1283, 1.442695
  %v1302 = vpow.pop %v1301
  %v1303 = vmul.f32 %v1284, 1.442695
  %v1304 = vpow.pop %v1303
  %v1305 = vmul.f32 %v1285, 1.442695
  %v1306 = vpow.pop %v1305
  %v1307 = vmul.f32 %v1286, 1.442695
  %v1308 = vpow.pop %v1307
  %v1309 = vmul.f32 %v1287, 1.442695
  %v1310 = vpow.pop %v1309
  %v1311 = vmul.f32 %v1288, 1.442695
  %v1312 = vpow.pop %v1311
  %v1313 = vmul.f32 %v1289, 1.442695
  %v1314 = vpow.pop %v1313
  %v1315 = vmul.f32 %v1290, 1.442695
  %v1316 = vpow.pop %v1315
  %v1317 = vmul.f32 %v1291, 1.442695
  %v1318 = vpow.pop %v1317
  %v1319 = vmul.f32 %v1292, 1.442695
  %v1320 = vpow.pop %v1319
  %v1321 = vmul.f32 %v1293, 1.442695
  %v1322 = vpow.pop %v1321
  %v1323 = vmul.f32 %v1294, 1.442695
  %v1324 = vpow.pop %v1323
  %v1325 = vmul.f32 %v1295, 1.442695
  %v1326 = vpow.pop %v1325
  %v1327 = vmul.f32 %v1296, 1.442695
  %v1328 = vpow.pop %v1327
  %v1329 = vpack.c.bf16 %v1302, %v1298
  %v1330 = vpack.c.bf16 %v1304, %v1300
  %v1331 = vpack.c.bf16 %v1310, %v1306
  %v1332 = vpack.c.bf16 %v1312, %v1308
  %v1333 = vpack.c.bf16 %v1318, %v1314
  %v1334 = vpack.c.bf16 %v1320, %v1316
  %v1335 = vpack.c.bf16 %v1326, %v1322
  %v1336 = vpack.c.bf16 %v1328, %v1324
  %v1337 = vld [vmem:[#allocation3] sm:$0xff]
  %v1338 = vld [vmem:[#allocation3 + $0x8] sm:$0xff]
  %v1339 = vld [vmem:[#allocation3 + $0x10] sm:$0xff]
  %v1340 = vld [vmem:[#allocation3 + $0x18] sm:$0xff]
  %v1341 = vld [vmem:[#allocation3 + $0x20] sm:$0xff]
  %v1342 = vld [vmem:[#allocation3 + $0x28] sm:$0xff]
  %v1343 = vld [vmem:[#allocation3 + $0x30] sm:$0xff]
  %v1344 = vld [vmem:[#allocation3 + $0x38] sm:$0xff]
  %v1345 = vld [vmem:[#allocation3 + $0x40] sm:$0xff]
  %v1346 = vld [vmem:[#allocation3 + $0x48] sm:$0xff]
  %v1347 = vld [vmem:[#allocation3 + $0x50] sm:$0xff]
  %v1348 = vld [vmem:[#allocation3 + $0x58] sm:$0xff]
  %v1349 = vld [vmem:[#allocation3 + $0x60] sm:$0xff]
  %v1350 = vld [vmem:[#allocation3 + $0x68] sm:$0xff]
  %v1351 = vld [vmem:[#allocation3 + $0x70] sm:$0xff]
  %v1352 = vld [vmem:[#allocation3 + $0x78] sm:$0xff]
  %1353 = vmatprep.subr.bf16.mxu0 0
  %1354 = vmatpush1.bf16.msra.mxu0 %v1337
  %1355 = vmatprep.subr.bf16.mxu0 0
  %1356 = vmatpush1.bf16.msra.mxu0 %v1338
  %1357 = vmatprep.subr.bf16.mxu0 0
  %1358 = vmatpush1.bf16.msra.mxu0 %v1339
  %1359 = vmatprep.subr.bf16.mxu0 0
  %1360 = vmatpush1.bf16.msra.mxu0 %v1340
  %1361 = vmatprep.subr.bf16.mxu0 0
  %1362 = vmatpush1.bf16.msra.mxu0 %v1341
  %1363 = vmatprep.subr.bf16.mxu0 0
  %1364 = vmatpush1.bf16.msra.mxu0 %v1342
  %1365 = vmatprep.subr.bf16.mxu0 0
  %1366 = vmatpush1.bf16.msra.mxu0 %v1343
  %1367 = vmatprep.subr.bf16.mxu0 0
  %1368 = vmatpush1.bf16.msra.mxu0 %v1344
  %1369 = vmatprep.subr.bf16.mxu0 0
  %1370 = vmatpush1.bf16.msra.mxu0 %v1345
  %1371 = vmatprep.subr.bf16.mxu0 0
  %1372 = vmatpush1.bf16.msra.mxu0 %v1346
  %1373 = vmatprep.subr.bf16.mxu0 0
  %1374 = vmatpush1.bf16.msra.mxu0 %v1347
  %1375 = vmatprep.subr.bf16.mxu0 0
  %1376 = vmatpush1.bf16.msra.mxu0 %v1348
  %1377 = vmatprep.subr.bf16.mxu0 0
  %1378 = vmatpush1.bf16.msra.mxu0 %v1349
  %1379 = vmatprep.subr.bf16.mxu0 0
  %1380 = vmatpush1.bf16.msra.mxu0 %v1350
  %1381 = vmatprep.subr.bf16.mxu0 0
  %1382 = vmatpush1.bf16.msra.mxu0 %v1351
  %1383 = vmatprep.subr.bf16.mxu0 0
  %1384 = vmatpush1.bf16.msra.mxu0 %v1352
  %1385 = vmatprep.mubr.bf16.mxu0 %v1330
  %1386 = vmatmul.mubr.bf16.gmra.mrb[0].mxu0 %v1329
  %v1387 = vpop.f32.mrb[0].mxu0
  %v1388 = vadd.f32 0.0, %v1387
  %v1389 = vpop.f32.mrb[0].mxu0
  %v1390 = vpop.f32.mrb[0].mxu0
  %v1391 = vadd.f32 0.0, %v1390
  %v1392 = vpop.f32.mrb[0].mxu0
  %1393 = vmatprep.mubr.bf16.mxu0 %v1332
  %1394 = vmatmul.mubr.bf16.gmra.mrb[0].mxu0 %v1331
  %v1395 = vpop.f32.mrb[0].mxu0
  %v1396 = vadd.f32 0.0, %v1395
  %v1397 = vpop.f32.mrb[0].mxu0
  %v1398 = vpop.f32.mrb[0].mxu0
  %v1399 = vadd.f32 0.0, %v1398
  %v1400 = vpop.f32.mrb[0].mxu0
  %1401 = vmatprep.mubr.bf16.mxu0 %v1334
  %1402 = vmatmul.mubr.bf16.gmra.mrb[0].mxu0 %v1333
  %v1403 = vpop.f32.mrb[0].mxu0
  %v1404 = vadd.f32 0.0, %v1403
  %v1405 = vpop.f32.mrb[0].mxu0
  %v1406 = vpop.f32.mrb[0].mxu0
  %v1407 = vadd.f32 0.0, %v1406
  %v1408 = vpop.f32.mrb[0].mxu0
  %1409 = vmatprep.mubr.bf16.mxu0 %v1336
  %1410 = vmatmul.mubr.bf16.gmra.mrb[0].mxu0 %v1335
  %v1411 = vpop.f32.mrb[0].mxu0
  %v1412 = vadd.f32 0.0, %v1411
  %v1413 = vpop.f32.mrb[0].mxu0
  %v1414 = vpop.f32.mrb[0].mxu0
  %v1415 = vadd.f32 0.0, %v1414
  %v1416 = vpop.f32.mrb[0].mxu0
  %1417 = vdwg.mxu0
  %v1450 = vunpack.c.l.b16 %v112
  %v1451 = vunpack.c.l.b16 %v113
  %v1452 = vunpack.c.l.b16 %v114
  %v1453 = vunpack.c.l.b16 %v115
  %v1454 = vunpack.c.l.b16 %v116
  %v1455 = vunpack.c.l.b16 %v117
  %v1456 = vunpack.c.l.b16 %v118
  %v1457 = vunpack.c.l.b16 %v119
  %v1458 = vunpack.c.l.b16 %v120
  %v1459 = vunpack.c.l.b16 %v121
  %v1460 = vunpack.c.l.b16 %v122
  %v1461 = vunpack.c.l.b16 %v123
  %v1462 = vunpack.c.l.b16 %v124
  %v1463 = vunpack.c.l.b16 %v125
  %v1464 = vunpack.c.l.b16 %v126
  %v1465 = vunpack.c.l.b16 %v127
  %v1466 = vunpack.c.l.b16 %v128
  %v1467 = vunpack.c.l.b16 %v129
  %v1468 = vunpack.c.l.b16 %v130
  %v1469 = vunpack.c.l.b16 %v131
  %v1470 = vunpack.c.l.b16 %v132
  %v1471 = vunpack.c.l.b16 %v133
  %v1472 = vunpack.c.l.b16 %v134
  %v1473 = vunpack.c.l.b16 %v135
  %v1474 = vunpack.c.l.b16 %v136
  %v1475 = vunpack.c.l.b16 %v137
  %v1476 = vunpack.c.l.b16 %v138
  %v1477 = vunpack.c.l.b16 %v139
  %v1478 = vunpack.c.l.b16 %v140
  %v1479 = vunpack.c.l.b16 %v141
  %v1480 = vunpack.c.l.b16 %v142
  %v1481 = vunpack.c.l.b16 %v143
  %v1482 = vpack.c.b16 %v1451, %v1450
  %v1483 = vpack.c.b16 %v1453, %v1452
  %v1484 = vpack.c.b16 %v1455, %v1454
  %v1485 = vpack.c.b16 %v1457, %v1456
  %v1486 = vpack.c.b16 %v1459, %v1458
  %v1487 = vpack.c.b16 %v1461, %v1460
  %v1488 = vpack.c.b16 %v1463, %v1462
  %v1489 = vpack.c.b16 %v1465, %v1464
  %v1490 = vpack.c.b16 %v1467, %v1466
  %v1491 = vpack.c.b16 %v1469, %v1468
  %v1492 = vpack.c.b16 %v1471, %v1470
  %v1493 = vpack.c.b16 %v1473, %v1472
  %v1494 = vpack.c.b16 %v1475, %v1474
  %v1495 = vpack.c.b16 %v1477, %v1476
  %v1496 = vpack.c.b16 %v1479, %v1478
  %v1497 = vpack.c.b16 %v1481, %v1480
  %1514 = vmatprep.subr.bf16.mxu0 0
  %1515 = vmatpush1.bf16.msra.mxu0 %v1482
  %1516 = vmatprep.subr.bf16.mxu0 0
  %1517 = vmatpush1.bf16.msra.mxu0 %v1483
  %1518 = vmatprep.subr.bf16.mxu0 0
  %1519 = vmatpush1.bf16.msra.mxu0 %v1484
  %1520 = vmatprep.subr.bf16.mxu0 0
  %1521 = vmatpush1.bf16.msra.mxu0 %v1485
  %1522 = vmatprep.subr.bf16.mxu0 0
  %1523 = vmatpush1.bf16.msra.mxu0 %v1486
  %1524 = vmatprep.subr.bf16.mxu0 0
  %1525 = vmatpush1.bf16.msra.mxu0 %v1487
  %1526 = vmatprep.subr.bf16.mxu0 0
  %1527 = vmatpush1.bf16.msra.mxu0 %v1488
  %1528 = vmatprep.subr.bf16.mxu0 0
  %1529 = vmatpush1.bf16.msra.mxu0 %v1489
  %1530 = vmatprep.subr.bf16.mxu0 0
  %1531 = vmatpush1.bf16.msra.mxu0 %v1490
  %1532 = vmatprep.subr.bf16.mxu0 0
  %1533 = vmatpush1.bf16.msra.mxu0 %v1491
  %1534 = vmatprep.subr.bf16.mxu0 0
  %1535 = vmatpush1.bf16.msra.mxu0 %v1492
  %1536 = vmatprep.subr.bf16.mxu0 0
  %1537 = vmatpush1.bf16.msra.mxu0 %v1493
  %1538 = vmatprep.subr.bf16.mxu0 0
  %1539 = vmatpush1.bf16.msra.mxu0 %v1494
  %1540 = vmatprep.subr.bf16.mxu0 0
  %1541 = vmatpush1.bf16.msra.mxu0 %v1495
  %1542 = vmatprep.subr.bf16.mxu0 0
  %1543 = vmatpush1.bf16.msra.mxu0 %v1496
  %1544 = vmatprep.subr.bf16.mxu0 0
  %1545 = vmatpush1.bf16.msra.mxu0 %v1497
  %1546 = vmatprep.mubr.bf16.mxu0 %v1330
  %1547 = vmatmul.mubr.bf16.gmra.mrb[0].mxu0 %v1329
  %v1548 = vpop.f32.mrb[0].mxu0
  %v1549 = vadd.f32 0.0, %v1548
  %v1550 = vpop.f32.mrb[0].mxu0
  %v1551 = vpop.f32.mrb[0].mxu0
  %v1552 = vadd.f32 0.0, %v1551
  %v1553 = vpop.f32.mrb[0].mxu0
  %1554 = vmatprep.mubr.bf16.mxu0 %v1332
  %1555 = vmatmul.mubr.bf16.gmra.mrb[0].mxu0 %v1331
  %v1556 = vpop.f32.mrb[0].mxu0
  %v1557 = vadd.f32 0.0, %v1556
  %v1558 = vpop.f32.mrb[0].mxu0
  %v1559 = vpop.f32.mrb[0].mxu0
  %v1560 = vadd.f32 0.0, %v1559
  %v1561 = vpop.f32.mrb[0].mxu0
  %1562 = vmatprep.mubr.bf16.mxu0 %v1334
  %1563 = vmatmul.mubr.bf16.gmra.mrb[0].mxu0 %v1333
  %v1564 = vpop.f32.mrb[0].mxu0
  %v1565 = vadd.f32 0.0, %v1564
  %v1566 = vpop.f32.mrb[0].mxu0
  %v1567 = vpop.f32.mrb[0].mxu0
  %v1568 = vadd.f32 0.0, %v1567
  %v1569 = vpop.f32.mrb[0].mxu0
  %1570 = vmatprep.mubr.bf16.mxu0 %v1336
  %1571 = vmatmul.mubr.bf16.gmra.mrb[0].mxu0 %v1335
  %v1572 = vpop.f32.mrb[0].mxu0
  %v1573 = vadd.f32 0.0, %v1572
  %v1574 = vpop.f32.mrb[0].mxu0
  %v1575 = vpop.f32.mrb[0].mxu0
  %v1576 = vadd.f32 0.0, %v1575
  %v1577 = vpop.f32.mrb[0].mxu0
  %1578 = vdwg.mxu0
  %v1579 = vrcp.pop %v1549
  %v1580 = vrcp.pop %v1552
  %v1581 = vrcp.pop %v1557
  %v1582 = vrcp.pop %v1560
  %v1583 = vrcp.pop %v1565
  %v1584 = vrcp.pop %v1568
  %v1585 = vrcp.pop %v1573
  %v1586 = vrcp.pop %v1576
  %v1587 = vmul.f32 %v1388, %v1579
  %v1588 = vmul.f32 %v1391, %v1580
  %v1589 = vmul.f32 %v1396, %v1581
  %v1590 = vmul.f32 %v1399, %v1582
  %v1591 = vmul.f32 %v1404, %v1583
  %v1592 = vmul.f32 %v1407, %v1584
  %v1593 = vmul.f32 %v1412, %v1585
  %v1594 = vmul.f32 %v1415, %v1586
  %v1595 = vpack.c.bf16 %v719, %v716
  %v1596 = vpack.c.bf16 %v727, %v724
  %v1597 = vpack.c.bf16 %v735, %v732
  %v1598 = vpack.c.bf16 %v743, %v740
  %v1599 = vld [vmem:[%s1123] sm:$0xff]
  %v1600 = vld [vmem:[%s1123 + $0x8] sm:$0xff]
  %v1601 = vld [vmem:[%s1123 + $0x10] sm:$0xff]
  %v1602 = vld [vmem:[%s1123 + $0x18] sm:$0xff]
  %v1603 = vld [vmem:[%s1123 + $0x20] sm:$0xff]
  %v1604 = vld [vmem:[%s1123 + $0x28] sm:$0xff]
  %v1605 = vld [vmem:[%s1123 + $0x30] sm:$0xff]
  %v1606 = vld [vmem:[%s1123 + $0x38] sm:$0xff]
  %v1608 = vsel %vm79, %v1595, 0
  %v1611 = vsel %vm79, %v1596, 0
  %v1614 = vsel %vm79, %v1597, 0
  %v1617 = vsel %vm79, %v1598, 0
  %1619 = vmatprep.subr.bf16.mxu0 %v1600
  %1620 = vmatpush1.bf16.msra.mxu0 %v1599
  %1621 = vmatprep.subr.bf16.mxu0 %v1602
  %1622 = vmatpush1.bf16.msra.mxu0 %v1601
  %1623 = vmatprep.subr.bf16.mxu0 %v1604
  %1624 = vmatpush1.bf16.msra.mxu0 %v1603
  %1625 = vmatprep.subr.bf16.mxu0 %v1606
  %1626 = vmatpush1.bf16.msra.mxu0 %v1605
  %1627 = vmatprep.subr.bf16.mxu0 0
  %1628 = vmatpush1.bf16.msra.mxu0 0
  %1629 = vmatprep.subr.bf16.mxu0 0
  %1630 = vmatpush1.bf16.msra.mxu0 0
  %1631 = vmatprep.subr.bf16.mxu0 0
  %1632 = vmatpush1.bf16.msra.mxu0 0
  %1633 = vmatprep.subr.bf16.mxu0 0
  %1634 = vmatpush1.bf16.msra.mxu0 0
  %1635 = vmatprep.subr.bf16.mxu0 0
  %1636 = vmatpush1.bf16.msra.mxu0 0
  %1637 = vmatprep.subr.bf16.mxu0 0
  %1638 = vmatpush1.bf16.msra.mxu0 0
  %1639 = vmatprep.subr.bf16.mxu0 0
  %1640 = vmatpush1.bf16.msra.mxu0 0
  %1641 = vmatprep.subr.bf16.mxu0 0
  %1642 = vmatpush1.bf16.msra.mxu0 0
  %1643 = vmatprep.subr.bf16.mxu0 0
  %1644 = vmatpush1.bf16.msra.mxu0 0
  %1645 = vmatprep.subr.bf16.mxu0 0
  %1646 = vmatpush1.bf16.msra.mxu0 0
  %1647 = vmatprep.subr.bf16.mxu0 0
  %1648 = vmatpush1.bf16.msra.mxu0 0
  %1649 = vmatprep.subr.bf16.mxu0 0
  %1650 = vmatpush1.bf16.msra.mxu0 0
  %1651 = vmatprep.mubr.bf16.mxu0 0
  %1652 = vmatmul.mubr.bf16.gmra.mrb[0].mxu0 %v1608
  %v1653 = vpop.f32.mrb[0].mxu0
  %v1654 = vadd.f32 0.0, %v1653
  %v1655 = vpop.f32.mrb[0].mxu0
  %v1656 = vadd.f32 0.0, %v1655
  %v1657 = vpop.f32.mrb[0].mxu0
  %v1658 = vadd.f32 0.0, %v1657
  %v1659 = vpop.f32.mrb[0].mxu0
  %v1660 = vadd.f32 0.0, %v1659
  %1661 = vmatprep.mubr.bf16.mxu0 0
  %1662 = vmatmul.mubr.bf16.gmra.mrb[0].mxu0 %v1611
  %v1663 = vpop.f32.mrb[0].mxu0
  %v1664 = vadd.f32 0.0, %v1663
  %v1665 = vpop.f32.mrb[0].mxu0
  %v1666 = vadd.f32 0.0, %v1665
  %v1667 = vpop.f32.mrb[0].mxu0
  %v1668 = vadd.f32 0.0, %v1667
  %v1669 = vpop.f32.mrb[0].mxu0
  %v1670 = vadd.f32 0.0, %v1669
  %1671 = vmatprep.mubr.bf16.mxu0 0
  %1672 = vmatmul.mubr.bf16.gmra.mrb[0].mxu0 %v1614
  %v1673 = vpop.f32.mrb[0].mxu0
  %v1674 = vadd.f32 0.0, %v1673
  %v1675 = vpop.f32.mrb[0].mxu0
  %v1676 = vadd.f32 0.0, %v1675
  %v1677 = vpop.f32.mrb[0].mxu0
  %v1678 = vadd.f32 0.0, %v1677
  %v1679 = vpop.f32.mrb[0].mxu0
  %v1680 = vadd.f32 0.0, %v1679
  %1681 = vmatprep.mubr.bf16.mxu0 0
  %1682 = vmatmul.mubr.bf16.gmra.mrb[0].mxu0 %v1617
  %v1683 = vpop.f32.mrb[0].mxu0
  %v1684 = vadd.f32 0.0, %v1683
  %v1685 = vpop.f32.mrb[0].mxu0
  %v1686 = vadd.f32 0.0, %v1685
  %v1687 = vpop.f32.mrb[0].mxu0
  %v1688 = vadd.f32 0.0, %v1687
  %v1689 = vpop.f32.mrb[0].mxu0
  %v1690 = vadd.f32 0.0, %v1689
  %1691 = vdwg.mxu0
  %v1692 = vmax.f32 %v1654, %v1656
  %1693 = vmax.xlane.f32.xlu0 %v1692
  %v1694 = vpop.xlane.xlu0 %1693
  %v1695 = vmax.f32 %v1658, %v1660
  %1696 = vmax.xlane.f32.xlu0 %v1695
  %v1697 = vpop.xlane.xlu0 %1696
  %v1698 = vmax.f32 %v1664, %v1666
  %1699 = vmax.xlane.f32.xlu0 %v1698
  %v1700 = vpop.xlane.xlu0 %1699
  %v1701 = vmax.f32 %v1668, %v1670
  %1702 = vmax.xlane.f32.xlu0 %v1701
  %v1703 = vpop.xlane.xlu0 %1702
  %v1704 = vmax.f32 %v1674, %v1676
  %1705 = vmax.xlane.f32.xlu0 %v1704
  %v1706 = vpop.xlane.xlu0 %1705
  %v1707 = vmax.f32 %v1678, %v1680
  %1708 = vmax.xlane.f32.xlu0 %v1707
  %v1709 = vpop.xlane.xlu0 %1708
  %v1710 = vmax.f32 %v1684, %v1686
  %1711 = vmax.xlane.f32.xlu0 %v1710
  %v1712 = vpop.xlane.xlu0 %1711
  %v1713 = vmax.f32 %v1688, %v1690
  %1714 = vmax.xlane.f32.xlu0 %v1713
  %v1715 = vpop.xlane.xlu0 %1714
  %v1716 = vsub.f32 %v1654, %v1694
  %v1717 = vsub.f32 %v1656, %v1694
  %v1718 = vsub.f32 %v1658, %v1697
  %v1719 = vsub.f32 %v1660, %v1697
  %v1720 = vsub.f32 %v1664, %v1700
  %v1721 = vsub.f32 %v1666, %v1700
  %v1722 = vsub.f32 %v1668, %v1703
  %v1723 = vsub.f32 %v1670, %v1703
  %v1724 = vsub.f32 %v1674, %v1706
  %v1725 = vsub.f32 %v1676, %v1706
  %v1726 = vsub.f32 %v1678, %v1709
  %v1727 = vsub.f32 %v1680, %v1709
  %v1728 = vsub.f32 %v1684, %v1712
  %v1729 = vsub.f32 %v1686, %v1712
  %v1730 = vsub.f32 %v1688, %v1715
  %v1731 = vsub.f32 %v1690, %v1715
  %v1732 = vmul.f32 %v1716, 1.442695
  %v1733 = vpow.pop %v1732
  %v1734 = vmul.f32 %v1717, 1.442695
  %v1735 = vpow.pop %v1734
  %v1736 = vmul.f32 %v1718, 1.442695
  %v1737 = vpow.pop %v1736
  %v1738 = vmul.f32 %v1719, 1.442695
  %v1739 = vpow.pop %v1738
  %v1740 = vmul.f32 %v1720, 1.442695
  %v1741 = vpow.pop %v1740
  %v1742 = vmul.f32 %v1721, 1.442695
  %v1743 = vpow.pop %v1742
  %v1744 = vmul.f32 %v1722, 1.442695
  %v1745 = vpow.pop %v1744
  %v1746 = vmul.f32 %v1723, 1.442695
  %v1747 = vpow.pop %v1746
  %v1748 = vmul.f32 %v1724, 1.442695
  %v1749 = vpow.pop %v1748
  %v1750 = vmul.f32 %v1725, 1.442695
  %v1751 = vpow.pop %v1750
  %v1752 = vmul.f32 %v1726, 1.442695
  %v1753 = vpow.pop %v1752
  %v1754 = vmul.f32 %v1727, 1.442695
  %v1755 = vpow.pop %v1754
  %v1756 = vmul.f32 %v1728, 1.442695
  %v1757 = vpow.pop %v1756
  %v1758 = vmul.f32 %v1729, 1.442695
  %v1759 = vpow.pop %v1758
  %v1760 = vmul.f32 %v1730, 1.442695
  %v1761 = vpow.pop %v1760
  %v1762 = vmul.f32 %v1731, 1.442695
  %v1763 = vpow.pop %v1762
  %v1764 = vpack.c.bf16 %v1737, %v1733
  %v1765 = vpack.c.bf16 %v1739, %v1735
  %v1766 = vpack.c.bf16 %v1745, %v1741
  %v1767 = vpack.c.bf16 %v1747, %v1743
  %v1768 = vpack.c.bf16 %v1753, %v1749
  %v1769 = vpack.c.bf16 %v1755, %v1751
  %v1770 = vpack.c.bf16 %v1761, %v1757
  %v1771 = vpack.c.bf16 %v1763, %v1759
  %v1772 = vld [vmem:[%s1129] sm:$0xff]
  %v1773 = vld [vmem:[%s1129 + $0x8] sm:$0xff]
  %v1774 = vld [vmem:[%s1129 + $0x10] sm:$0xff]
  %v1775 = vld [vmem:[%s1129 + $0x18] sm:$0xff]
  %v1776 = vld [vmem:[%s1129 + $0x20] sm:$0xff]
  %v1777 = vld [vmem:[%s1129 + $0x28] sm:$0xff]
  %v1778 = vld [vmem:[%s1129 + $0x30] sm:$0xff]
  %v1779 = vld [vmem:[%s1129 + $0x38] sm:$0xff]
  %v1780 = vld [vmem:[%s1129 + $0x40] sm:$0xff]
  %v1781 = vld [vmem:[%s1129 + $0x48] sm:$0xff]
  %v1782 = vld [vmem:[%s1129 + $0x50] sm:$0xff]
  %v1783 = vld [vmem:[%s1129 + $0x58] sm:$0xff]
  %v1784 = vld [vmem:[%s1129 + $0x60] sm:$0xff]
  %v1785 = vld [vmem:[%s1129 + $0x68] sm:$0xff]
  %v1786 = vld [vmem:[%s1129 + $0x70] sm:$0xff]
  %v1787 = vld [vmem:[%s1129 + $0x78] sm:$0xff]
  %1788 = vmatprep.subr.bf16.mxu0 0
  %1789 = vmatpush1.bf16.msra.mxu0 %v1772
  %1790 = vmatprep.subr.bf16.mxu0 0
  %1791 = vmatpush1.bf16.msra.mxu0 %v1773
  %1792 = vmatprep.subr.bf16.mxu0 0
  %1793 = vmatpush1.bf16.msra.mxu0 %v1774
  %1794 = vmatprep.subr.bf16.mxu0 0
  %1795 = vmatpush1.bf16.msra.mxu0 %v1775
  %1796 = vmatprep.subr.bf16.mxu0 0
  %1797 = vmatpush1.bf16.msra.mxu0 %v1776
  %1798 = vmatprep.subr.bf16.mxu0 0
  %1799 = vmatpush1.bf16.msra.mxu0 %v1777
  %1800 = vmatprep.subr.bf16.mxu0 0
  %1801 = vmatpush1.bf16.msra.mxu0 %v1778
  %1802 = vmatprep.subr.bf16.mxu0 0
  %1803 = vmatpush1.bf16.msra.mxu0 %v1779
  %1804 = vmatprep.subr.bf16.mxu0 0
  %1805 = vmatpush1.bf16.msra.mxu0 %v1780
  %1806 = vmatprep.subr.bf16.mxu0 0
  %1807 = vmatpush1.bf16.msra.mxu0 %v1781
  %1808 = vmatprep.subr.bf16.mxu0 0
  %1809 = vmatpush1.bf16.msra.mxu0 %v1782
  %1810 = vmatprep.subr.bf16.mxu0 0
  %1811 = vmatpush1.bf16.msra.mxu0 %v1783
  %1812 = vmatprep.subr.bf16.mxu0 0
  %1813 = vmatpush1.bf16.msra.mxu0 %v1784
  %1814 = vmatprep.subr.bf16.mxu0 0
  %1815 = vmatpush1.bf16.msra.mxu0 %v1785
  %1816 = vmatprep.subr.bf16.mxu0 0
  %1817 = vmatpush1.bf16.msra.mxu0 %v1786
  %1818 = vmatprep.subr.bf16.mxu0 0
  %1819 = vmatpush1.bf16.msra.mxu0 %v1787
  %1820 = vmatprep.mubr.bf16.mxu0 %v1765
  %1821 = vmatmul.mubr.bf16.gmra.mrb[0].mxu0 %v1764
  %v1822 = vpop.f32.mrb[0].mxu0
  %v1823 = vadd.f32 0.0, %v1822
  %v1824 = vpop.f32.mrb[0].mxu0
  %v1825 = vpop.f32.mrb[0].mxu0
  %v1826 = vadd.f32 0.0, %v1825
  %v1827 = vpop.f32.mrb[0].mxu0
  %1828 = vmatprep.mubr.bf16.mxu0 %v1767
  %1829 = vmatmul.mubr.bf16.gmra.mrb[0].mxu0 %v1766
  %v1830 = vpop.f32.mrb[0].mxu0
  %v1831 = vadd.f32 0.0, %v1830
  %v1832 = vpop.f32.mrb[0].mxu0
  %v1833 = vpop.f32.mrb[0].mxu0
  %v1834 = vadd.f32 0.0, %v1833
  %v1835 = vpop.f32.mrb[0].mxu0
  %1836 = vmatprep.mubr.bf16.mxu0 %v1769
  %1837 = vmatmul.mubr.bf16.gmra.mrb[0].mxu0 %v1768
  %v1838 = vpop.f32.mrb[0].mxu0
  %v1839 = vadd.f32 0.0, %v1838
  %v1840 = vpop.f32.mrb[0].mxu0
  %v1841 = vpop.f32.mrb[0].mxu0
  %v1842 = vadd.f32 0.0, %v1841
  %v1843 = vpop.f32.mrb[0].mxu0
  %1844 = vmatprep.mubr.bf16.mxu0 %v1771
  %1845 = vmatmul.mubr.bf16.gmra.mrb[0].mxu0 %v1770
  %v1846 = vpop.f32.mrb[0].mxu0
  %v1847 = vadd.f32 0.0, %v1846
  %v1848 = vpop.f32.mrb[0].mxu0
  %v1849 = vpop.f32.mrb[0].mxu0
  %v1850 = vadd.f32 0.0, %v1849
  %v1851 = vpop.f32.mrb[0].mxu0
  %1852 = vdwg.mxu0
  %1853 = vmatprep.subr.bf16.mxu0 0
  %1854 = vmatpush1.bf16.msra.mxu0 %v1482
  %1855 = vmatprep.subr.bf16.mxu0 0
  %1856 = vmatpush1.bf16.msra.mxu0 %v1483
  %1857 = vmatprep.subr.bf16.mxu0 0
  %1858 = vmatpush1.bf16.msra.mxu0 %v1484
  %1859 = vmatprep.subr.bf16.mxu0 0
  %1860 = vmatpush1.bf16.msra.mxu0 %v1485
  %1861 = vmatprep.subr.bf16.mxu0 0
  %1862 = vmatpush1.bf16.msra.mxu0 %v1486
  %1863 = vmatprep.subr.bf16.mxu0 0
  %1864 = vmatpush1.bf16.msra.mxu0 %v1487
  %1865 = vmatprep.subr.bf16.mxu0 0
  %1866 = vmatpush1.bf16.msra.mxu0 %v1488
  %1867 = vmatprep.subr.bf16.mxu0 0
  %1868 = vmatpush1.bf16.msra.mxu0 %v1489
  %1869 = vmatprep.subr.bf16.mxu0 0
  %1870 = vmatpush1.bf16.msra.mxu0 %v1490
  %1871 = vmatprep.subr.bf16.mxu0 0
  %1872 = vmatpush1.bf16.msra.mxu0 %v1491
  %1873 = vmatprep.subr.bf16.mxu0 0
  %1874 = vmatpush1.bf16.msra.mxu0 %v1492
  %1875 = vmatprep.subr.bf16.mxu0 0
  %1876 = vmatpush1.bf16.msra.mxu0 %v1493
  %1877 = vmatprep.subr.bf16.mxu0 0
  %1878 = vmatpush1.bf16.msra.mxu0 %v1494
  %1879 = vmatprep.subr.bf16.mxu0 0
  %1880 = vmatpush1.bf16.msra.mxu0 %v1495
  %1881 = vmatprep.subr.bf16.mxu0 0
  %1882 = vmatpush1.bf16.msra.mxu0 %v1496
  %1883 = vmatprep.subr.bf16.mxu0 0
  %1884 = vmatpush1.bf16.msra.mxu0 %v1497
  %1885 = vmatprep.mubr.bf16.mxu0 %v1765
  %1886 = vmatmul.mubr.bf16.gmra.mrb[0].mxu0 %v1764
  %v1887 = vpop.f32.mrb[0].mxu0
  %v1888 = vadd.f32 0.0, %v1887
  %v1889 = vpop.f32.mrb[0].mxu0
  %v1890 = vpop.f32.mrb[0].mxu0
  %v1891 = vadd.f32 0.0, %v1890
  %v1892 = vpop.f32.mrb[0].mxu0
  %1893 = vmatprep.mubr.bf16.mxu0 %v1767
  %1894 = vmatmul.mubr.bf16.gmra.mrb[0].mxu0 %v1766
  %v1895 = vpop.f32.mrb[0].mxu0
  %v1896 = vadd.f32 0.0, %v1895
  %v1897 = vpop.f32.mrb[0].mxu0
  %v1898 = vpop.f32.mrb[0].mxu0
  %v1899 = vadd.f32 0.0, %v1898
  %v1900 = vpop.f32.mrb[0].mxu0
  %1901 = vmatprep.mubr.bf16.mxu0 %v1769
  %1902 = vmatmul.mubr.bf16.gmra.mrb[0].mxu0 %v1768
  %v1903 = vpop.f32.mrb[0].mxu0
  %v1904 = vadd.f32 0.0, %v1903
  %v1905 = vpop.f32.mrb[0].mxu0
  %v1906 = vpop.f32.mrb[0].mxu0
  %v1907 = vadd.f32 0.0, %v1906
  %v1908 = vpop.f32.mrb[0].mxu0
  %1909 = vmatprep.mubr.bf16.mxu0 %v1771
  %1910 = vmatmul.mubr.bf16.gmra.mrb[0].mxu0 %v1770
  %v1911 = vpop.f32.mrb[0].mxu0
  %v1912 = vadd.f32 0.0, %v1911
  %v1913 = vpop.f32.mrb[0].mxu0
  %v1914 = vpop.f32.mrb[0].mxu0
  %v1915 = vadd.f32 0.0, %v1914
  %v1916 = vpop.f32.mrb[0].mxu0
  %1917 = vdwg.mxu0
  %v1918 = vrcp.pop %v1888
  %v1919 = vrcp.pop %v1891
  %v1920 = vrcp.pop %v1896
  %v1921 = vrcp.pop %v1899
  %v1922 = vrcp.pop %v1904
  %v1923 = vrcp.pop %v1907
  %v1924 = vrcp.pop %v1912
  %v1925 = vrcp.pop %v1915
  %v1926 = vmul.f32 %v1823, %v1918
  %v1927 = vmul.f32 %v1826, %v1919
  %v1928 = vmul.f32 %v1831, %v1920
  %v1929 = vmul.f32 %v1834, %v1921
  %v1930 = vmul.f32 %v1839, %v1922
  %v1931 = vmul.f32 %v1842, %v1923
  %v1932 = vmul.f32 %v1847, %v1924
  %v1933 = vmul.f32 %v1850, %v1925
  %v1934 = vpack.c.bf16 %v1588, %v1587
  %v1935 = vpack.c.bf16 %v1590, %v1589
  %v1936 = vpack.c.bf16 %v1592, %v1591
  %v1937 = vpack.c.bf16 %v1594, %v1593
  %v1938 = vpack.c.bf16 %v1927, %v1926
  %v1939 = vpack.c.bf16 %v1929, %v1928
  %v1940 = vpack.c.bf16 %v1931, %v1930
  %v1941 = vpack.c.bf16 %v1933, %v1932
  %v1942 = vld [vmem:[%s11] sm:$0xf]
  %v1943 = vld [vmem:[%s11 + $0x4] sm:$0xf]
  %v1944 = vld [vmem:[%s11 + $0x8] sm:$0xf]
  %v1945 = vld [vmem:[%s11 + $0xc] sm:$0xf]
  %v1946 = vld [vmem:[%s11 + $0x10] sm:$0xf]
  %v1947 = vld [vmem:[%s11 + $0x14] sm:$0xf]
  %v1948 = vld [vmem:[%s11 + $0x18] sm:$0xf]
  %v1949 = vld [vmem:[%s11 + $0x1c] sm:$0xf]
  %v1950 = vld [vmem:[%s12] sm:$0x1]
  %v1952 = vlaneseq
  %v1953 = vshrl.u32 %v1952, 7
  %v1954 = vsub.s32 0, %v1953
  %v1955 = vrot.slane %v1950, %v1954
  %v1965 = vunpack.c.l.b16 %v1942
  %v1966 = vunpack.c.l.b16 %v1943
  %v1967 = vunpack.c.l.b16 %v1944
  %v1968 = vunpack.c.l.b16 %v1945
  %v1969 = vunpack.c.l.b16 %v1946
  %v1970 = vunpack.c.l.b16 %v1947
  %v1971 = vunpack.c.l.b16 %v1948
  %v1972 = vunpack.c.l.b16 %v1949
  %v1973 = vpack.c.b16 %v1966, %v1965
  %v1974 = vpack.c.b16 %v1968, %v1967
  %v1975 = vpack.c.b16 %v1970, %v1969
  %v1976 = vpack.c.b16 %v1972, %v1971
  %v1982 = vsel %vm79, %v1934, 0
  %v1985 = vsel %vm79, %v1935, 0
  %v1988 = vsel %vm79, %v1936, 0
  %v1991 = vsel %vm79, %v1937, 0
  %v1994 = vsel %vm79, %v1938, 0
  %v1997 = vsel %vm79, %v1939, 0
  %v2000 = vsel %vm79, %v1940, 0
  %v2003 = vsel %vm79, %v1941, 0
  %2005 = vmatprep.subr.bf16.mxu0 0
  %2006 = vmatpush1.bf16.msra.mxu0 %v1973
  %2007 = vmatprep.subr.bf16.mxu0 0
  %2008 = vmatpush1.bf16.msra.mxu0 %v1974
  %2009 = vmatprep.subr.bf16.mxu0 0
  %2010 = vmatpush1.bf16.msra.mxu0 %v1975
  %2011 = vmatprep.subr.bf16.mxu0 0
  %2012 = vmatpush1.bf16.msra.mxu0 %v1976
  %2013 = vmatprep.subr.bf16.mxu0 0
  %2014 = vmatpush1.bf16.msra.mxu0 0
  %2015 = vmatprep.subr.bf16.mxu0 0
  %2016 = vmatpush1.bf16.msra.mxu0 0
  %2017 = vmatprep.subr.bf16.mxu0 0
  %2018 = vmatpush1.bf16.msra.mxu0 0
  %2019 = vmatprep.subr.bf16.mxu0 0
  %2020 = vmatpush1.bf16.msra.mxu0 0
  %2021 = vmatprep.subr.bf16.mxu0 0
  %2022 = vmatpush1.bf16.msra.mxu0 0
  %2023 = vmatprep.subr.bf16.mxu0 0
  %2024 = vmatpush1.bf16.msra.mxu0 0
  %2025 = vmatprep.subr.bf16.mxu0 0
  %2026 = vmatpush1.bf16.msra.mxu0 0
  %2027 = vmatprep.subr.bf16.mxu0 0
  %2028 = vmatpush1.bf16.msra.mxu0 0
  %2029 = vmatprep.subr.bf16.mxu0 0
  %2030 = vmatpush1.bf16.msra.mxu0 0
  %2031 = vmatprep.subr.bf16.mxu0 0
  %2032 = vmatpush1.bf16.msra.mxu0 0
  %2033 = vmatprep.subr.bf16.mxu0 0
  %2034 = vmatpush1.bf16.msra.mxu0 0
  %2035 = vmatprep.subr.bf16.mxu0 0
  %2036 = vmatpush1.bf16.msra.mxu0 0
  %2037 = vmatprep.mubr.bf16.mxu0 0
  %2038 = vmatmul.mubr.bf16.gmra.mrb[0].mxu0 %v1982
  %v2039 = vpop.f32.mrb[0].mxu0
  %v2040 = vadd.f32 %v1955, %v2039
  %v2041 = vpop.f32.mrb[0].mxu0
  %v2042 = vpop.f32.mrb[0].mxu0
  %v2043 = vadd.f32 %v1955, %v2042
  %v2044 = vpop.f32.mrb[0].mxu0
  %2045 = vmatprep.mubr.bf16.mxu0 0
  %2046 = vmatmul.mubr.bf16.gmra.mrb[0].mxu0 %v1985
  %v2047 = vpop.f32.mrb[0].mxu0
  %v2048 = vadd.f32 %v1955, %v2047
  %v2049 = vpop.f32.mrb[0].mxu0
  %v2050 = vpop.f32.mrb[0].mxu0
  %v2051 = vadd.f32 %v1955, %v2050
  %v2052 = vpop.f32.mrb[0].mxu0
  %2053 = vmatprep.mubr.bf16.mxu0 0
  %2054 = vmatmul.mubr.bf16.gmra.mrb[0].mxu0 %v1988
  %v2055 = vpop.f32.mrb[0].mxu0
  %v2056 = vadd.f32 %v1955, %v2055
  %v2057 = vpop.f32.mrb[0].mxu0
  %v2058 = vpop.f32.mrb[0].mxu0
  %v2059 = vadd.f32 %v1955, %v2058
  %v2060 = vpop.f32.mrb[0].mxu0
  %2061 = vmatprep.mubr.bf16.mxu0 0
  %2062 = vmatmul.mubr.bf16.gmra.mrb[0].mxu0 %v1991
  %v2063 = vpop.f32.mrb[0].mxu0
  %v2064 = vadd.f32 %v1955, %v2063
  %v2065 = vpop.f32.mrb[0].mxu0
  %v2066 = vpop.f32.mrb[0].mxu0
  %v2067 = vadd.f32 %v1955, %v2066
  %v2068 = vpop.f32.mrb[0].mxu0
  %2069 = vmatprep.mubr.bf16.mxu0 0
  %2070 = vmatmul.mubr.bf16.gmra.mrb[0].mxu0 %v1994
  %v2071 = vpop.f32.mrb[0].mxu0
  %v2072 = vadd.f32 %v1955, %v2071
  %v2073 = vpop.f32.mrb[0].mxu0
  %v2074 = vpop.f32.mrb[0].mxu0
  %v2075 = vadd.f32 %v1955, %v2074
  %v2076 = vpop.f32.mrb[0].mxu0
  %2077 = vmatprep.mubr.bf16.mxu0 0
  %2078 = vmatmul.mubr.bf16.gmra.mrb[0].mxu0 %v1997
  %v2079 = vpop.f32.mrb[0].mxu0
  %v2080 = vadd.f32 %v1955, %v2079
  %v2081 = vpop.f32.mrb[0].mxu0
  %v2082 = vpop.f32.mrb[0].mxu0
  %v2083 = vadd.f32 %v1955, %v2082
  %v2084 = vpop.f32.mrb[0].mxu0
  %2085 = vmatprep.mubr.bf16.mxu0 0
  %2086 = vmatmul.mubr.bf16.gmra.mrb[0].mxu0 %v2000
  %v2087 = vpop.f32.mrb[0].mxu0
  %v2088 = vadd.f32 %v1955, %v2087
  %v2089 = vpop.f32.mrb[0].mxu0
  %v2090 = vpop.f32.mrb[0].mxu0
  %v2091 = vadd.f32 %v1955, %v2090
  %v2092 = vpop.f32.mrb[0].mxu0
  %2093 = vmatprep.mubr.bf16.mxu0 0
  %2094 = vmatmul.mubr.bf16.gmra.mrb[0].mxu0 %v2003
  %v2095 = vpop.f32.mrb[0].mxu0
  %v2096 = vadd.f32 %v1955, %v2095
  %v2097 = vpop.f32.mrb[0].mxu0
  %v2098 = vpop.f32.mrb[0].mxu0
  %v2099 = vadd.f32 %v1955, %v2098
  %v2100 = vpop.f32.mrb[0].mxu0
  %2101 = vdwg.mxu0
  %v2102 = vlaneseq
  %v2103 = vshrl.u32 %v2102, 7
  %v2104 = vsub.s32 2, %v2103
  %v2105 = vrot.slane %v144, %v2104
  %v2106 = vmul.f32 %v2040, %v2105
  %v2107 = vmul.f32 %v2043, %v2105
  %v2108 = vmul.f32 %v2048, %v2105
  %v2109 = vmul.f32 %v2051, %v2105
  %v2110 = vmul.f32 %v2056, %v2105
  %v2111 = vmul.f32 %v2059, %v2105
  %v2112 = vmul.f32 %v2064, %v2105
  %v2113 = vmul.f32 %v2067, %v2105
  %v2114 = vlaneseq
  %v2115 = vshrl.u32 %v2114, 7
  %v2116 = vsub.s32 2, %v2115
  %v2117 = vrot.slane %v147, %v2116
  %v2118 = vmul.f32 %v2072, %v2117
  %v2119 = vmul.f32 %v2075, %v2117
  %v2120 = vmul.f32 %v2080, %v2117
  %v2121 = vmul.f32 %v2083, %v2117
  %v2122 = vmul.f32 %v2088, %v2117
  %v2123 = vmul.f32 %v2091, %v2117
  %v2124 = vmul.f32 %v2096, %v2117
  %v2125 = vmul.f32 %v2099, %v2117
  %v2126 = vadd.f32 %v257, %v2106
  %v2127 = vadd.f32 %v260, %v2107
  %v2128 = vadd.f32 %v265, %v2108
  %v2129 = vadd.f32 %v268, %v2109
  %v2130 = vadd.f32 %v273, %v2110
  %v2131 = vadd.f32 %v276, %v2111
  %v2132 = vadd.f32 %v281, %v2112
  %v2133 = vadd.f32 %v284, %v2113
  %v2134 = vadd.f32 %v289, %v2118
  %v2135 = vadd.f32 %v292, %v2119
  %v2136 = vadd.f32 %v297, %v2120
  %v2137 = vadd.f32 %v300, %v2121
  %v2138 = vadd.f32 %v305, %v2122
  %v2139 = vadd.f32 %v308, %v2123
  %v2140 = vadd.f32 %v313, %v2124
  %v2141 = vadd.f32 %v316, %v2125
  %v2142 = vsel %vm79, %v2126, 0.0
  %2143 = vadd.xlane.f32.xlu0 %v2142
  %v2144 = vpop.xlane.xlu0 %2143
  %v2145 = vsel %vm79, %v2127, 0.0
  %2146 = vadd.xlane.f32.xlu0 %v2145
  %v2147 = vpop.xlane.xlu0 %2146
  %v2148 = vsel %vm79, %v2128, 0.0
  %2149 = vadd.xlane.f32.xlu0 %v2148
  %v2150 = vpop.xlane.xlu0 %2149
  %v2151 = vsel %vm79, %v2129, 0.0
  %2152 = vadd.xlane.f32.xlu0 %v2151
  %v2153 = vpop.xlane.xlu0 %2152
  %v2154 = vsel %vm79, %v2130, 0.0
  %2155 = vadd.xlane.f32.xlu0 %v2154
  %v2156 = vpop.xlane.xlu0 %2155
  %v2157 = vsel %vm79, %v2131, 0.0
  %2158 = vadd.xlane.f32.xlu0 %v2157
  %v2159 = vpop.xlane.xlu0 %2158
  %v2160 = vsel %vm79, %v2132, 0.0
  %2161 = vadd.xlane.f32.xlu0 %v2160
  %v2162 = vpop.xlane.xlu0 %2161
  %v2163 = vsel %vm79, %v2133, 0.0
  %2164 = vadd.xlane.f32.xlu0 %v2163
  %v2165 = vpop.xlane.xlu0 %2164
  %v2166 = vsel %vm79, %v2134, 0.0
  %2167 = vadd.xlane.f32.xlu0 %v2166
  %v2168 = vpop.xlane.xlu0 %2167
  %v2169 = vsel %vm79, %v2135, 0.0
  %2170 = vadd.xlane.f32.xlu0 %v2169
  %v2171 = vpop.xlane.xlu0 %2170
  %v2172 = vsel %vm79, %v2136, 0.0
  %2173 = vadd.xlane.f32.xlu0 %v2172
  %v2174 = vpop.xlane.xlu0 %2173
  %v2175 = vsel %vm79, %v2137, 0.0
  %2176 = vadd.xlane.f32.xlu0 %v2175
  %v2177 = vpop.xlane.xlu0 %2176
  %v2178 = vsel %vm79, %v2138, 0.0
  %2179 = vadd.xlane.f32.xlu0 %v2178
  %v2180 = vpop.xlane.xlu0 %2179
  %v2181 = vsel %vm79, %v2139, 0.0
  %2182 = vadd.xlane.f32.xlu0 %v2181
  %v2183 = vpop.xlane.xlu0 %2182
  %v2184 = vsel %vm79, %v2140, 0.0
  %2185 = vadd.xlane.f32.xlu0 %v2184
  %v2186 = vpop.xlane.xlu0 %2185
  %v2187 = vsel %vm79, %v2141, 0.0
  %2188 = vadd.xlane.f32.xlu0 %v2187
  %v2189 = vpop.xlane.xlu0 %2188
  %v2190 = vmul.f32 %v2144, %v367
  %v2191 = vmul.f32 %v2147, %v367
  %v2192 = vmul.f32 %v2150, %v367
  %v2193 = vmul.f32 %v2153, %v367
  %v2194 = vmul.f32 %v2156, %v367
  %v2195 = vmul.f32 %v2159, %v367
  %v2196 = vmul.f32 %v2162, %v367
  %v2197 = vmul.f32 %v2165, %v367
  %v2198 = vmul.f32 %v2168, %v367
  %v2199 = vmul.f32 %v2171, %v367
  %v2200 = vmul.f32 %v2174, %v367
  %v2201 = vmul.f32 %v2177, %v367
  %v2202 = vmul.f32 %v2180, %v367
  %v2203 = vmul.f32 %v2183, %v367
  %v2204 = vmul.f32 %v2186, %v367
  %v2205 = vmul.f32 %v2189, %v367
  %v2206 = vsub.f32 %v2126, %v2190
  %v2207 = vsub.f32 %v2127, %v2191
  %v2208 = vsub.f32 %v2128, %v2192
  %v2209 = vsub.f32 %v2129, %v2193
  %v2210 = vsub.f32 %v2130, %v2194
  %v2211 = vsub.f32 %v2131, %v2195
  %v2212 = vsub.f32 %v2132, %v2196
  %v2213 = vsub.f32 %v2133, %v2197
  %v2214 = vsub.f32 %v2134, %v2198
  %v2215 = vsub.f32 %v2135, %v2199
  %v2216 = vsub.f32 %v2136, %v2200
  %v2217 = vsub.f32 %v2137, %v2201
  %v2218 = vsub.f32 %v2138, %v2202
  %v2219 = vsub.f32 %v2139, %v2203
  %v2220 = vsub.f32 %v2140, %v2204
  %v2221 = vsub.f32 %v2141, %v2205
  %v2222 = vmul.f32 %v2206, %v2206
  %v2223 = vmul.f32 %v2207, %v2207
  %v2224 = vmul.f32 %v2208, %v2208
  %v2225 = vmul.f32 %v2209, %v2209
  %v2226 = vmul.f32 %v2210, %v2210
  %v2227 = vmul.f32 %v2211, %v2211
  %v2228 = vmul.f32 %v2212, %v2212
  %v2229 = vmul.f32 %v2213, %v2213
  %v2230 = vmul.f32 %v2214, %v2214
  %v2231 = vmul.f32 %v2215, %v2215
  %v2232 = vmul.f32 %v2216, %v2216
  %v2233 = vmul.f32 %v2217, %v2217
  %v2234 = vmul.f32 %v2218, %v2218
  %v2235 = vmul.f32 %v2219, %v2219
  %v2236 = vmul.f32 %v2220, %v2220
  %v2237 = vmul.f32 %v2221, %v2221
  %v2238 = vsel %vm79, %v2222, 0.0
  %2239 = vadd.xlane.f32.xlu0 %v2238
  %v2240 = vpop.xlane.xlu0 %2239
  %v2241 = vsel %vm79, %v2223, 0.0
  %2242 = vadd.xlane.f32.xlu0 %v2241
  %v2243 = vpop.xlane.xlu0 %2242
  %v2244 = vsel %vm79, %v2224, 0.0
  %2245 = vadd.xlane.f32.xlu0 %v2244
  %v2246 = vpop.xlane.xlu0 %2245
  %v2247 = vsel %vm79, %v2225, 0.0
  %2248 = vadd.xlane.f32.xlu0 %v2247
  %v2249 = vpop.xlane.xlu0 %2248
  %v2250 = vsel %vm79, %v2226, 0.0
  %2251 = vadd.xlane.f32.xlu0 %v2250
  %v2252 = vpop.xlane.xlu0 %2251
  %v2253 = vsel %vm79, %v2227, 0.0
  %2254 = vadd.xlane.f32.xlu0 %v2253
  %v2255 = vpop.xlane.xlu0 %2254
  %v2256 = vsel %vm79, %v2228, 0.0
  %2257 = vadd.xlane.f32.xlu0 %v2256
  %v2258 = vpop.xlane.xlu0 %2257
  %v2259 = vsel %vm79, %v2229, 0.0
  %2260 = vadd.xlane.f32.xlu0 %v2259
  %v2261 = vpop.xlane.xlu0 %2260
  %v2262 = vsel %vm79, %v2230, 0.0
  %2263 = vadd.xlane.f32.xlu0 %v2262
  %v2264 = vpop.xlane.xlu0 %2263
  %v2265 = vsel %vm79, %v2231, 0.0
  %2266 = vadd.xlane.f32.xlu0 %v2265
  %v2267 = vpop.xlane.xlu0 %2266
  %v2268 = vsel %vm79, %v2232, 0.0
  %2269 = vadd.xlane.f32.xlu0 %v2268
  %v2270 = vpop.xlane.xlu0 %2269
  %v2271 = vsel %vm79, %v2233, 0.0
  %2272 = vadd.xlane.f32.xlu0 %v2271
  %v2273 = vpop.xlane.xlu0 %2272
  %v2274 = vsel %vm79, %v2234, 0.0
  %2275 = vadd.xlane.f32.xlu0 %v2274
  %v2276 = vpop.xlane.xlu0 %2275
  %v2277 = vsel %vm79, %v2235, 0.0
  %2278 = vadd.xlane.f32.xlu0 %v2277
  %v2279 = vpop.xlane.xlu0 %2278
  %v2280 = vsel %vm79, %v2236, 0.0
  %2281 = vadd.xlane.f32.xlu0 %v2280
  %v2282 = vpop.xlane.xlu0 %2281
  %v2283 = vsel %vm79, %v2237, 0.0
  %2284 = vadd.xlane.f32.xlu0 %v2283
  %v2285 = vpop.xlane.xlu0 %2284
  %v2286 = vmul.f32 %v2240, %v367
  %v2287 = vmul.f32 %v2243, %v367
  %v2288 = vmul.f32 %v2246, %v367
  %v2289 = vmul.f32 %v2249, %v367
  %v2290 = vmul.f32 %v2252, %v367
  %v2291 = vmul.f32 %v2255, %v367
  %v2292 = vmul.f32 %v2258, %v367
  %v2293 = vmul.f32 %v2261, %v367
  %v2294 = vmul.f32 %v2264, %v367
  %v2295 = vmul.f32 %v2267, %v367
  %v2296 = vmul.f32 %v2270, %v367
  %v2297 = vmul.f32 %v2273, %v367
  %v2298 = vmul.f32 %v2276, %v367
  %v2299 = vmul.f32 %v2279, %v367
  %v2300 = vmul.f32 %v2282, %v367
  %v2301 = vmul.f32 %v2285, %v367
  %v2302 = vadd.f32 %v2286, 1e-06
  %v2303 = vadd.f32 %v2287, 1e-06
  %v2304 = vadd.f32 %v2288, 1e-06
  %v2305 = vadd.f32 %v2289, 1e-06
  %v2306 = vadd.f32 %v2290, 1e-06
  %v2307 = vadd.f32 %v2291, 1e-06
  %v2308 = vadd.f32 %v2292, 1e-06
  %v2309 = vadd.f32 %v2293, 1e-06
  %v2310 = vadd.f32 %v2294, 1e-06
  %v2311 = vadd.f32 %v2295, 1e-06
  %v2312 = vadd.f32 %v2296, 1e-06
  %v2313 = vadd.f32 %v2297, 1e-06
  %v2314 = vadd.f32 %v2298, 1e-06
  %v2315 = vadd.f32 %v2299, 1e-06
  %v2316 = vadd.f32 %v2300, 1e-06
  %v2317 = vadd.f32 %v2301, 1e-06
  %v2318 = vrsqrt.pop %v2302
  %v2319 = vrsqrt.pop %v2303
  %v2320 = vrsqrt.pop %v2304
  %v2321 = vrsqrt.pop %v2305
  %v2322 = vrsqrt.pop %v2306
  %v2323 = vrsqrt.pop %v2307
  %v2324 = vrsqrt.pop %v2308
  %v2325 = vrsqrt.pop %v2309
  %v2326 = vrsqrt.pop %v2310
  %v2327 = vrsqrt.pop %v2311
  %v2328 = vrsqrt.pop %v2312
  %v2329 = vrsqrt.pop %v2313
  %v2330 = vrsqrt.pop %v2314
  %v2331 = vrsqrt.pop %v2315
  %v2332 = vrsqrt.pop %v2316
  %v2333 = vrsqrt.pop %v2317
  %v2334 = vmul.f32 %v2206, %v2318
  %v2335 = vmul.f32 %v2207, %v2319
  %v2336 = vmul.f32 %v2208, %v2320
  %v2337 = vmul.f32 %v2209, %v2321
  %v2338 = vmul.f32 %v2210, %v2322
  %v2339 = vmul.f32 %v2211, %v2323
  %v2340 = vmul.f32 %v2212, %v2324
  %v2341 = vmul.f32 %v2213, %v2325
  %v2342 = vmul.f32 %v2214, %v2326
  %v2343 = vmul.f32 %v2215, %v2327
  %v2344 = vmul.f32 %v2216, %v2328
  %v2345 = vmul.f32 %v2217, %v2329
  %v2346 = vmul.f32 %v2218, %v2330
  %v2347 = vmul.f32 %v2219, %v2331
  %v2348 = vmul.f32 %v2220, %v2332
  %v2349 = vmul.f32 %v2221, %v2333
  %v2350 = vlaneseq
  %v2351 = vshrl.u32 %v2350, 7
  %v2352 = vsub.s32 4, %v2351
  %v2353 = vrot.slane %v528, %v2352
  %v2354 = vmul.f32 %v2334, %v2353
  %v2355 = vmul.f32 %v2335, %v2353
  %v2356 = vmul.f32 %v2336, %v2353
  %v2357 = vmul.f32 %v2337, %v2353
  %v2358 = vmul.f32 %v2338, %v2353
  %v2359 = vmul.f32 %v2339, %v2353
  %v2360 = vmul.f32 %v2340, %v2353
  %v2361 = vmul.f32 %v2341, %v2353
  %v2362 = vlaneseq
  %v2363 = vshrl.u32 %v2362, 7
  %v2364 = vsub.s32 3, %v2363
  %v2365 = vrot.slane %v144, %v2364
  %v2366 = vadd.f32 %v2354, %v2365
  %v2367 = vadd.f32 %v2355, %v2365
  %v2368 = vadd.f32 %v2356, %v2365
  %v2369 = vadd.f32 %v2357, %v2365
  %v2370 = vadd.f32 %v2358, %v2365
  %v2371 = vadd.f32 %v2359, %v2365
  %v2372 = vadd.f32 %v2360, %v2365
  %v2373 = vadd.f32 %v2361, %v2365
  %v2374 = vlaneseq
  %v2375 = vshrl.u32 %v2374, 7
  %v2376 = vsub.s32 4, %v2375
  %v2377 = vrot.slane %v553, %v2376
  %v2378 = vmul.f32 %v2342, %v2377
  %v2379 = vmul.f32 %v2343, %v2377
  %v2380 = vmul.f32 %v2344, %v2377
  %v2381 = vmul.f32 %v2345, %v2377
  %v2382 = vmul.f32 %v2346, %v2377
  %v2383 = vmul.f32 %v2347, %v2377
  %v2384 = vmul.f32 %v2348, %v2377
  %v2385 = vmul.f32 %v2349, %v2377
  %v2386 = vlaneseq
  %v2387 = vshrl.u32 %v2386, 7
  %v2388 = vsub.s32 3, %v2387
  %v2389 = vrot.slane %v147, %v2388
  %v2390 = vadd.f32 %v2378, %v2389
  %v2391 = vadd.f32 %v2379, %v2389
  %v2392 = vadd.f32 %v2380, %v2389
  %v2393 = vadd.f32 %v2381, %v2389
  %v2394 = vadd.f32 %v2382, %v2389
  %v2395 = vadd.f32 %v2383, %v2389
  %v2396 = vadd.f32 %v2384, %v2389
  %v2397 = vadd.f32 %v2385, %v2389
  %v2398 = vpack.c.bf16 %v2367, %v2366
  %v2399 = vpack.c.bf16 %v2369, %v2368
  %v2400 = vpack.c.bf16 %v2371, %v2370
  %v2401 = vpack.c.bf16 %v2373, %v2372
  %v2402 = vpack.c.bf16 %v2391, %v2390
  %v2403 = vpack.c.bf16 %v2393, %v2392
  %v2404 = vpack.c.bf16 %v2395, %v2394
  %v2405 = vpack.c.bf16 %v2397, %v2396
  %v2406 = vld [vmem:[%s13] sm:$0xff]
  %v2407 = vld [vmem:[%s13 + $0x8] sm:$0xff]
  %v2408 = vld [vmem:[%s13 + $0x10] sm:$0xff]
  %v2409 = vld [vmem:[%s13 + $0x18] sm:$0xff]
  %v2410 = vld [vmem:[%s13 + $0x20] sm:$0xff]
  %v2411 = vld [vmem:[%s13 + $0x28] sm:$0xff]
  %v2412 = vld [vmem:[%s13 + $0x30] sm:$0xff]
  %v2413 = vld [vmem:[%s13 + $0x38] sm:$0xff]
  %v2414 = vld [vmem:[%s14] sm:$0x3]
  %v2416 = vlaneseq
  %v2417 = vshrl.u32 %v2416, 7
  %v2418 = vsub.s32 0, %v2417
  %v2419 = vrot.slane %v2414, %v2418
  %v2420 = vlaneseq
  %v2421 = vshrl.u32 %v2420, 7
  %v2422 = vsub.s32 1, %v2421
  %v2423 = vrot.slane %v2414, %v2422
  %v2434 = vunpack.c.l.b16 %v2406
  %v2435 = vunpack.c.h.b16 %v2406
  %v2436 = vunpack.c.l.b16 %v2407
  %v2437 = vunpack.c.h.b16 %v2407
  %v2438 = vunpack.c.l.b16 %v2408
  %v2439 = vunpack.c.h.b16 %v2408
  %v2440 = vunpack.c.l.b16 %v2409
  %v2441 = vunpack.c.h.b16 %v2409
  %v2442 = vunpack.c.l.b16 %v2410
  %v2443 = vunpack.c.h.b16 %v2410
  %v2444 = vunpack.c.l.b16 %v2411
  %v2445 = vunpack.c.h.b16 %v2411
  %v2446 = vunpack.c.l.b16 %v2412
  %v2447 = vunpack.c.h.b16 %v2412
  %v2448 = vunpack.c.l.b16 %v2413
  %v2449 = vunpack.c.h.b16 %v2413
  %v2450 = vpack.c.b16 %v2436, %v2434
  %v2451 = vpack.c.b16 %v2437, %v2435
  %v2452 = vpack.c.b16 %v2440, %v2438
  %v2453 = vpack.c.b16 %v2441, %v2439
  %v2454 = vpack.c.b16 %v2444, %v2442
  %v2455 = vpack.c.b16 %v2445, %v2443
  %v2456 = vpack.c.b16 %v2448, %v2446
  %v2457 = vpack.c.b16 %v2449, %v2447
  %v2467 = vsel %vm79, %v2398, 0
  %v2470 = vsel %vm79, %v2399, 0
  %v2473 = vsel %vm79, %v2400, 0
  %v2476 = vsel %vm79, %v2401, 0
  %v2479 = vsel %vm79, %v2402, 0
  %v2482 = vsel %vm79, %v2403, 0
  %v2485 = vsel %vm79, %v2404, 0
  %v2488 = vsel %vm79, %v2405, 0
  %2490 = vmatprep.subr.bf16.mxu0 %v2451
  %2491 = vmatpush1.bf16.msra.mxu0 %v2450
  %2492 = vmatprep.subr.bf16.mxu0 %v2453
  %2493 = vmatpush1.bf16.msra.mxu0 %v2452
  %2494 = vmatprep.subr.bf16.mxu0 %v2455
  %2495 = vmatpush1.bf16.msra.mxu0 %v2454
  %2496 = vmatprep.subr.bf16.mxu0 %v2457
  %2497 = vmatpush1.bf16.msra.mxu0 %v2456
  %2498 = vmatprep.subr.bf16.mxu0 0
  %2499 = vmatpush1.bf16.msra.mxu0 0
  %2500 = vmatprep.subr.bf16.mxu0 0
  %2501 = vmatpush1.bf16.msra.mxu0 0
  %2502 = vmatprep.subr.bf16.mxu0 0
  %2503 = vmatpush1.bf16.msra.mxu0 0
  %2504 = vmatprep.subr.bf16.mxu0 0
  %2505 = vmatpush1.bf16.msra.mxu0 0
  %2506 = vmatprep.subr.bf16.mxu0 0
  %2507 = vmatpush1.bf16.msra.mxu0 0
  %2508 = vmatprep.subr.bf16.mxu0 0
  %2509 = vmatpush1.bf16.msra.mxu0 0
  %2510 = vmatprep.subr.bf16.mxu0 0
  %2511 = vmatpush1.bf16.msra.mxu0 0
  %2512 = vmatprep.subr.bf16.mxu0 0
  %2513 = vmatpush1.bf16.msra.mxu0 0
  %2514 = vmatprep.subr.bf16.mxu0 0
  %2515 = vmatpush1.bf16.msra.mxu0 0
  %2516 = vmatprep.subr.bf16.mxu0 0
  %2517 = vmatpush1.bf16.msra.mxu0 0
  %2518 = vmatprep.subr.bf16.mxu0 0
  %2519 = vmatpush1.bf16.msra.mxu0 0
  %2520 = vmatprep.subr.bf16.mxu0 0
  %2521 = vmatpush1.bf16.msra.mxu0 0
  %2522 = vmatprep.mubr.bf16.mxu0 0
  %2523 = vmatmul.mubr.bf16.gmra.mrb[0].mxu0 %v2467
  %v2524 = vpop.f32.mrb[0].mxu0
  %v2525 = vadd.f32 %v2419, %v2524
  %v2526 = vpop.f32.mrb[0].mxu0
  %v2527 = vadd.f32 %v2423, %v2526
  %v2528 = vpop.f32.mrb[0].mxu0
  %v2529 = vadd.f32 %v2419, %v2528
  %v2530 = vpop.f32.mrb[0].mxu0
  %v2531 = vadd.f32 %v2423, %v2530
  %2532 = vmatprep.mubr.bf16.mxu0 0
  %2533 = vmatmul.mubr.bf16.gmra.mrb[0].mxu0 %v2470
  %v2534 = vpop.f32.mrb[0].mxu0
  %v2535 = vadd.f32 %v2419, %v2534
  %v2536 = vpop.f32.mrb[0].mxu0
  %v2537 = vadd.f32 %v2423, %v2536
  %v2538 = vpop.f32.mrb[0].mxu0
  %v2539 = vadd.f32 %v2419, %v2538
  %v2540 = vpop.f32.mrb[0].mxu0
  %v2541 = vadd.f32 %v2423, %v2540
  %2542 = vmatprep.mubr.bf16.mxu0 0
  %2543 = vmatmul.mubr.bf16.gmra.mrb[0].mxu0 %v2473
  %v2544 = vpop.f32.mrb[0].mxu0
  %v2545 = vadd.f32 %v2419, %v2544
  %v2546 = vpop.f32.mrb[0].mxu0
  %v2547 = vadd.f32 %v2423, %v2546
  %v2548 = vpop.f32.mrb[0].mxu0
  %v2549 = vadd.f32 %v2419, %v2548
  %v2550 = vpop.f32.mrb[0].mxu0
  %v2551 = vadd.f32 %v2423, %v2550
  %2552 = vmatprep.mubr.bf16.mxu0 0
  %2553 = vmatmul.mubr.bf16.gmra.mrb[0].mxu0 %v2476
  %v2554 = vpop.f32.mrb[0].mxu0
  %v2555 = vadd.f32 %v2419, %v2554
  %v2556 = vpop.f32.mrb[0].mxu0
  %v2557 = vadd.f32 %v2423, %v2556
  %v2558 = vpop.f32.mrb[0].mxu0
  %v2559 = vadd.f32 %v2419, %v2558
  %v2560 = vpop.f32.mrb[0].mxu0
  %v2561 = vadd.f32 %v2423, %v2560
  %2562 = vmatprep.mubr.bf16.mxu0 0
  %2563 = vmatmul.mubr.bf16.gmra.mrb[0].mxu0 %v2479
  %v2564 = vpop.f32.mrb[0].mxu0
  %v2565 = vadd.f32 %v2419, %v2564
  %v2566 = vpop.f32.mrb[0].mxu0
  %v2567 = vadd.f32 %v2423, %v2566
  %v2568 = vpop.f32.mrb[0].mxu0
  %v2569 = vadd.f32 %v2419, %v2568
  %v2570 = vpop.f32.mrb[0].mxu0
  %v2571 = vadd.f32 %v2423, %v2570
  %2572 = vmatprep.mubr.bf16.mxu0 0
  %2573 = vmatmul.mubr.bf16.gmra.mrb[0].mxu0 %v2482
  %v2574 = vpop.f32.mrb[0].mxu0
  %v2575 = vadd.f32 %v2419, %v2574
  %v2576 = vpop.f32.mrb[0].mxu0
  %v2577 = vadd.f32 %v2423, %v2576
  %v2578 = vpop.f32.mrb[0].mxu0
  %v2579 = vadd.f32 %v2419, %v2578
  %v2580 = vpop.f32.mrb[0].mxu0
  %v2581 = vadd.f32 %v2423, %v2580
  %2582 = vmatprep.mubr.bf16.mxu0 0
  %2583 = vmatmul.mubr.bf16.gmra.mrb[0].mxu0 %v2485
  %v2584 = vpop.f32.mrb[0].mxu0
  %v2585 = vadd.f32 %v2419, %v2584
  %v2586 = vpop.f32.mrb[0].mxu0
  %v2587 = vadd.f32 %v2423, %v2586
  %v2588 = vpop.f32.mrb[0].mxu0
  %v2589 = vadd.f32 %v2419, %v2588
  %v2590 = vpop.f32.mrb[0].mxu0
  %v2591 = vadd.f32 %v2423, %v2590
  %2592 = vmatprep.mubr.bf16.mxu0 0
  %2593 = vmatmul.mubr.bf16.gmra.mrb[0].mxu0 %v2488
  %v2594 = vpop.f32.mrb[0].mxu0
  %v2595 = vadd.f32 %v2419, %v2594
  %v2596 = vpop.f32.mrb[0].mxu0
  %v2597 = vadd.f32 %v2423, %v2596
  %v2598 = vpop.f32.mrb[0].mxu0
  %v2599 = vadd.f32 %v2419, %v2598
  %v2600 = vpop.f32.mrb[0].mxu0
  %v2601 = vadd.f32 %v2423, %v2600
  %2602 = vdwg.mxu0
  %v2603 = vmul.f32 %v2525, 0.5
  %v2604 = vmul.f32 %v2527, 0.5
  %v2605 = vmul.f32 %v2529, 0.5
  %v2606 = vmul.f32 %v2531, 0.5
  %v2607 = vmul.f32 %v2535, 0.5
  %v2608 = vmul.f32 %v2537, 0.5
  %v2609 = vmul.f32 %v2539, 0.5
  %v2610 = vmul.f32 %v2541, 0.5
  %v2611 = vmul.f32 %v2545, 0.5
  %v2612 = vmul.f32 %v2547, 0.5
  %v2613 = vmul.f32 %v2549, 0.5
  %v2614 = vmul.f32 %v2551, 0.5
  %v2615 = vmul.f32 %v2555, 0.5
  %v2616 = vmul.f32 %v2557, 0.5
  %v2617 = vmul.f32 %v2559, 0.5
  %v2618 = vmul.f32 %v2561, 0.5
  %v2619 = vmul.f32 %v2565, 0.5
  %v2620 = vmul.f32 %v2567, 0.5
  %v2621 = vmul.f32 %v2569, 0.5
  %v2622 = vmul.f32 %v2571, 0.5
  %v2623 = vmul.f32 %v2575, 0.5
  %v2624 = vmul.f32 %v2577, 0.5
  %v2625 = vmul.f32 %v2579, 0.5
  %v2626 = vmul.f32 %v2581, 0.5
  %v2627 = vmul.f32 %v2585, 0.5
  %v2628 = vmul.f32 %v2587, 0.5
  %v2629 = vmul.f32 %v2589, 0.5
  %v2630 = vmul.f32 %v2591, 0.5
  %v2631 = vmul.f32 %v2595, 0.5
  %v2632 = vmul.f32 %v2597, 0.5
  %v2633 = vmul.f32 %v2599, 0.5
  %v2634 = vmul.f32 %v2601, 0.5
  %v2635 = vmul.f32 %v2525, 0.044715
  %v2636 = vmul.f32 %v2527, 0.044715
  %v2637 = vmul.f32 %v2529, 0.044715
  %v2638 = vmul.f32 %v2531, 0.044715
  %v2639 = vmul.f32 %v2535, 0.044715
  %v2640 = vmul.f32 %v2537, 0.044715
  %v2641 = vmul.f32 %v2539, 0.044715
  %v2642 = vmul.f32 %v2541, 0.044715
  %v2643 = vmul.f32 %v2545, 0.044715
  %v2644 = vmul.f32 %v2547, 0.044715
  %v2645 = vmul.f32 %v2549, 0.044715
  %v2646 = vmul.f32 %v2551, 0.044715
  %v2647 = vmul.f32 %v2555, 0.044715
  %v2648 = vmul.f32 %v2557, 0.044715
  %v2649 = vmul.f32 %v2559, 0.044715
  %v2650 = vmul.f32 %v2561, 0.044715
  %v2651 = vmul.f32 %v2565, 0.044715
  %v2652 = vmul.f32 %v2567, 0.044715
  %v2653 = vmul.f32 %v2569, 0.044715
  %v2654 = vmul.f32 %v2571, 0.044715
  %v2655 = vmul.f32 %v2575, 0.044715
  %v2656 = vmul.f32 %v2577, 0.044715
  %v2657 = vmul.f32 %v2579, 0.044715
  %v2658 = vmul.f32 %v2581, 0.044715
  %v2659 = vmul.f32 %v2585, 0.044715
  %v2660 = vmul.f32 %v2587, 0.044715
  %v2661 = vmul.f32 %v2589, 0.044715
  %v2662 = vmul.f32 %v2591, 0.044715
  %v2663 = vmul.f32 %v2595, 0.044715
  %v2664 = vmul.f32 %v2597, 0.044715
  %v2665 = vmul.f32 %v2599, 0.044715
  %v2666 = vmul.f32 %v2601, 0.044715
  %v2667 = vmul.f32 %v2635, %v2525
  %v2668 = vmul.f32 %v2636, %v2527
  %v2669 = vmul.f32 %v2637, %v2529
  %v2670 = vmul.f32 %v2638, %v2531
  %v2671 = vmul.f32 %v2639, %v2535
  %v2672 = vmul.f32 %v2640, %v2537
  %v2673 = vmul.f32 %v2641, %v2539
  %v2674 = vmul.f32 %v2642, %v2541
  %v2675 = vmul.f32 %v2643, %v2545
  %v2676 = vmul.f32 %v2644, %v2547
  %v2677 = vmul.f32 %v2645, %v2549
  %v2678 = vmul.f32 %v2646, %v2551
  %v2679 = vmul.f32 %v2647, %v2555
  %v2680 = vmul.f32 %v2648, %v2557
  %v2681 = vmul.f32 %v2649, %v2559
  %v2682 = vmul.f32 %v2650, %v2561
  %v2683 = vmul.f32 %v2651, %v2565
  %v2684 = vmul.f32 %v2652, %v2567
  %v2685 = vmul.f32 %v2653, %v2569
  %v2686 = vmul.f32 %v2654, %v2571
  %v2687 = vmul.f32 %v2655, %v2575
  %v2688 = vmul.f32 %v2656, %v2577
  %v2689 = vmul.f32 %v2657, %v2579
  %v2690 = vmul.f32 %v2658, %v2581
  %v2691 = vmul.f32 %v2659, %v2585
  %v2692 = vmul.f32 %v2660, %v2587
  %v2693 = vmul.f32 %v2661, %v2589
  %v2694 = vmul.f32 %v2662, %v2591
  %v2695 = vmul.f32 %v2663, %v2595
  %v2696 = vmul.f32 %v2664, %v2597
  %v2697 = vmul.f32 %v2665, %v2599
  %v2698 = vmul.f32 %v2666, %v2601
  %v2699 = vmul.f32 %v2667, %v2525
  %v2700 = vmul.f32 %v2668, %v2527
  %v2701 = vmul.f32 %v2669, %v2529
  %v2702 = vmul.f32 %v2670, %v2531
  %v2703 = vmul.f32 %v2671, %v2535
  %v2704 = vmul.f32 %v2672, %v2537
  %v2705 = vmul.f32 %v2673, %v2539
  %v2706 = vmul.f32 %v2674, %v2541
  %v2707 = vmul.f32 %v2675, %v2545
  %v2708 = vmul.f32 %v2676, %v2547
  %v2709 = vmul.f32 %v2677, %v2549
  %v2710 = vmul.f32 %v2678, %v2551
  %v2711 = vmul.f32 %v2679, %v2555
  %v2712 = vmul.f32 %v2680, %v2557
  %v2713 = vmul.f32 %v2681, %v2559
  %v2714 = vmul.f32 %v2682, %v2561
  %v2715 = vmul.f32 %v2683, %v2565
  %v2716 = vmul.f32 %v2684, %v2567
  %v2717 = vmul.f32 %v2685, %v2569
  %v2718 = vmul.f32 %v2686, %v2571
  %v2719 = vmul.f32 %v2687, %v2575
  %v2720 = vmul.f32 %v2688, %v2577
  %v2721 = vmul.f32 %v2689, %v2579
  %v2722 = vmul.f32 %v2690, %v2581
  %v2723 = vmul.f32 %v2691, %v2585
  %v2724 = vmul.f32 %v2692, %v2587
  %v2725 = vmul.f32 %v2693, %v2589
  %v2726 = vmul.f32 %v2694, %v2591
  %v2727 = vmul.f32 %v2695, %v2595
  %v2728 = vmul.f32 %v2696, %v2597
  %v2729 = vmul.f32 %v2697, %v2599
  %v2730 = vmul.f32 %v2698, %v2601
  %v2731 = vadd.f32 %v2525, %v2699
  %v2732 = vadd.f32 %v2527, %v2700
  %v2733 = vadd.f32 %v2529, %v2701
  %v2734 = vadd.f32 %v2531, %v2702
  %v2735 = vadd.f32 %v2535, %v2703
  %v2736 = vadd.f32 %v2537, %v2704
  %v2737 = vadd.f32 %v2539, %v2705
  %v2738 = vadd.f32 %v2541, %v2706
  %v2739 = vadd.f32 %v2545, %v2707
  %v2740 = vadd.f32 %v2547, %v2708
  %v2741 = vadd.f32 %v2549, %v2709
  %v2742 = vadd.f32 %v2551, %v2710
  %v2743 = vadd.f32 %v2555, %v2711
  %v2744 = vadd.f32 %v2557, %v2712
  %v2745 = vadd.f32 %v2559, %v2713
  %v2746 = vadd.f32 %v2561, %v2714
  %v2747 = vadd.f32 %v2565, %v2715
  %v2748 = vadd.f32 %v2567, %v2716
  %v2749 = vadd.f32 %v2569, %v2717
  %v2750 = vadd.f32 %v2571, %v2718
  %v2751 = vadd.f32 %v2575, %v2719
  %v2752 = vadd.f32 %v2577, %v2720
  %v2753 = vadd.f32 %v2579, %v2721
  %v2754 = vadd.f32 %v2581, %v2722
  %v2755 = vadd.f32 %v2585, %v2723
  %v2756 = vadd.f32 %v2587, %v2724
  %v2757 = vadd.f32 %v2589, %v2725
  %v2758 = vadd.f32 %v2591, %v2726
  %v2759 = vadd.f32 %v2595, %v2727
  %v2760 = vadd.f32 %v2597, %v2728
  %v2761 = vadd.f32 %v2599, %v2729
  %v2762 = vadd.f32 %v2601, %v2730
  %v2763 = vmul.f32 %v2731, 0.7978846
  %v2764 = vmul.f32 %v2732, 0.7978846
  %v2765 = vmul.f32 %v2733, 0.7978846
  %v2766 = vmul.f32 %v2734, 0.7978846
  %v2767 = vmul.f32 %v2735, 0.7978846
  %v2768 = vmul.f32 %v2736, 0.7978846
  %v2769 = vmul.f32 %v2737, 0.7978846
  %v2770 = vmul.f32 %v2738, 0.7978846
  %v2771 = vmul.f32 %v2739, 0.7978846
  %v2772 = vmul.f32 %v2740, 0.7978846
  %v2773 = vmul.f32 %v2741, 0.7978846
  %v2774 = vmul.f32 %v2742, 0.7978846
  %v2775 = vmul.f32 %v2743, 0.7978846
  %v2776 = vmul.f32 %v2744, 0.7978846
  %v2777 = vmul.f32 %v2745, 0.7978846
  %v2778 = vmul.f32 %v2746, 0.7978846
  %v2779 = vmul.f32 %v2747, 0.7978846
  %v2780 = vmul.f32 %v2748, 0.7978846
  %v2781 = vmul.f32 %v2749, 0.7978846
  %v2782 = vmul.f32 %v2750, 0.7978846
  %v2783 = vmul.f32 %v2751, 0.7978846
  %v2784 = vmul.f32 %v2752, 0.7978846
  %v2785 = vmul.f32 %v2753, 0.7978846
  %v2786 = vmul.f32 %v2754, 0.7978846
  %v2787 = vmul.f32 %v2755, 0.7978846
  %v2788 = vmul.f32 %v2756, 0.7978846
  %v2789 = vmul.f32 %v2757, 0.7978846
  %v2790 = vmul.f32 %v2758, 0.7978846
  %v2791 = vmul.f32 %v2759, 0.7978846
  %v2792 = vmul.f32 %v2760, 0.7978846
  %v2793 = vmul.f32 %v2761, 0.7978846
  %v2794 = vmul.f32 %v2762, 0.7978846
  %v2795 = vtanh.pop %v2763
  %v2796 = vtanh.pop %v2764
  %v2797 = vtanh.pop %v2765
  %v2798 = vtanh.pop %v2766
  %v2799 = vtanh.pop %v2767
  %v2800 = vtanh.pop %v2768
  %v2801 = vtanh.pop %v2769
  %v2802 = vtanh.pop %v2770
  %v2803 = vtanh.pop %v2771
  %v2804 = vtanh.pop %v2772
  %v2805 = vtanh.pop %v2773
  %v2806 = vtanh.pop %v2774
  %v2807 = vtanh.pop %v2775
  %v2808 = vtanh.pop %v2776
  %v2809 = vtanh.pop %v2777
  %v2810 = vtanh.pop %v2778
  %v2811 = vtanh.pop %v2779
  %v2812 = vtanh.pop %v2780
  %v2813 = vtanh.pop %v2781
  %v2814 = vtanh.pop %v2782
  %v2815 = vtanh.pop %v2783
  %v2816 = vtanh.pop %v2784
  %v2817 = vtanh.pop %v2785
  %v2818 = vtanh.pop %v2786
  %v2819 = vtanh.pop %v2787
  %v2820 = vtanh.pop %v2788
  %v2821 = vtanh.pop %v2789
  %v2822 = vtanh.pop %v2790
  %v2823 = vtanh.pop %v2791
  %v2824 = vtanh.pop %v2792
  %v2825 = vtanh.pop %v2793
  %v2826 = vtanh.pop %v2794
  %v2827 = vadd.f32 %v2795, 1.0
  %v2828 = vadd.f32 %v2796, 1.0
  %v2829 = vadd.f32 %v2797, 1.0
  %v2830 = vadd.f32 %v2798, 1.0
  %v2831 = vadd.f32 %v2799, 1.0
  %v2832 = vadd.f32 %v2800, 1.0
  %v2833 = vadd.f32 %v2801, 1.0
  %v2834 = vadd.f32 %v2802, 1.0
  %v2835 = vadd.f32 %v2803, 1.0
  %v2836 = vadd.f32 %v2804, 1.0
  %v2837 = vadd.f32 %v2805, 1.0
  %v2838 = vadd.f32 %v2806, 1.0
  %v2839 = vadd.f32 %v2807, 1.0
  %v2840 = vadd.f32 %v2808, 1.0
  %v2841 = vadd.f32 %v2809, 1.0
  %v2842 = vadd.f32 %v2810, 1.0
  %v2843 = vadd.f32 %v2811, 1.0
  %v2844 = vadd.f32 %v2812, 1.0
  %v2845 = vadd.f32 %v2813, 1.0
  %v2846 = vadd.f32 %v2814, 1.0
  %v2847 = vadd.f32 %v2815, 1.0
  %v2848 = vadd.f32 %v2816, 1.0
  %v2849 = vadd.f32 %v2817, 1.0
  %v2850 = vadd.f32 %v2818, 1.0
  %v2851 = vadd.f32 %v2819, 1.0
  %v2852 = vadd.f32 %v2820, 1.0
  %v2853 = vadd.f32 %v2821, 1.0
  %v2854 = vadd.f32 %v2822, 1.0
  %v2855 = vadd.f32 %v2823, 1.0
  %v2856 = vadd.f32 %v2824, 1.0
  %v2857 = vadd.f32 %v2825, 1.0
  %v2858 = vadd.f32 %v2826, 1.0
  %v2859 = vmul.f32 %v2603, %v2827
  %v2860 = vmul.f32 %v2604, %v2828
  %v2861 = vmul.f32 %v2605, %v2829
  %v2862 = vmul.f32 %v2606, %v2830
  %v2863 = vmul.f32 %v2607, %v2831
  %v2864 = vmul.f32 %v2608, %v2832
  %v2865 = vmul.f32 %v2609, %v2833
  %v2866 = vmul.f32 %v2610, %v2834
  %v2867 = vmul.f32 %v2611, %v2835
  %v2868 = vmul.f32 %v2612, %v2836
  %v2869 = vmul.f32 %v2613, %v2837
  %v2870 = vmul.f32 %v2614, %v2838
  %v2871 = vmul.f32 %v2615, %v2839
  %v2872 = vmul.f32 %v2616, %v2840
  %v2873 = vmul.f32 %v2617, %v2841
  %v2874 = vmul.f32 %v2618, %v2842
  %v2875 = vmul.f32 %v2619, %v2843
  %v2876 = vmul.f32 %v2620, %v2844
  %v2877 = vmul.f32 %v2621, %v2845
  %v2878 = vmul.f32 %v2622, %v2846
  %v2879 = vmul.f32 %v2623, %v2847
  %v2880 = vmul.f32 %v2624, %v2848
  %v2881 = vmul.f32 %v2625, %v2849
  %v2882 = vmul.f32 %v2626, %v2850
  %v2883 = vmul.f32 %v2627, %v2851
  %v2884 = vmul.f32 %v2628, %v2852
  %v2885 = vmul.f32 %v2629, %v2853
  %v2886 = vmul.f32 %v2630, %v2854
  %v2887 = vmul.f32 %v2631, %v2855
  %v2888 = vmul.f32 %v2632, %v2856
  %v2889 = vmul.f32 %v2633, %v2857
  %v2890 = vmul.f32 %v2634, %v2858
  %v2891 = vpack.c.bf16 %v2861, %v2859
  %v2892 = vpack.c.bf16 %v2862, %v2860
  %v2893 = vpack.c.bf16 %v2865, %v2863
  %v2894 = vpack.c.bf16 %v2866, %v2864
  %v2895 = vpack.c.bf16 %v2869, %v2867
  %v2896 = vpack.c.bf16 %v2870, %v2868
  %v2897 = vpack.c.bf16 %v2873, %v2871
  %v2898 = vpack.c.bf16 %v2874, %v2872
  %v2899 = vpack.c.bf16 %v2877, %v2875
  %v2900 = vpack.c.bf16 %v2878, %v2876
  %v2901 = vpack.c.bf16 %v2881, %v2879
  %v2902 = vpack.c.bf16 %v2882, %v2880
  %v2903 = vpack.c.bf16 %v2885, %v2883
  %v2904 = vpack.c.bf16 %v2886, %v2884
  %v2905 = vpack.c.bf16 %v2889, %v2887
  %v2906 = vpack.c.bf16 %v2890, %v2888
  %v2907 = vld [vmem:[%s15] sm:$0xf]
  %v2908 = vld [vmem:[%s15 + $0x4] sm:$0xf]
  %v2909 = vld [vmem:[%s15 + $0x8] sm:$0xf]
  %v2910 = vld [vmem:[%s15 + $0xc] sm:$0xf]
  %v2911 = vld [vmem:[%s15 + $0x10] sm:$0xf]
  %v2912 = vld [vmem:[%s15 + $0x14] sm:$0xf]
  %v2913 = vld [vmem:[%s15 + $0x18] sm:$0xf]
  %v2914 = vld [vmem:[%s15 + $0x1c] sm:$0xf]
  %v2915 = vld [vmem:[%s15 + $0x20] sm:$0xf]
  %v2916 = vld [vmem:[%s15 + $0x24] sm:$0xf]
  %v2917 = vld [vmem:[%s15 + $0x28] sm:$0xf]
  %v2918 = vld [vmem:[%s15 + $0x2c] sm:$0xf]
  %v2919 = vld [vmem:[%s15 + $0x30] sm:$0xf]
  %v2920 = vld [vmem:[%s15 + $0x34] sm:$0xf]
  %v2921 = vld [vmem:[%s15 + $0x38] sm:$0xf]
  %v2922 = vld [vmem:[%s15 + $0x3c] sm:$0xf]
  %v2923 = vld [vmem:[%s15 + $0x40] sm:$0xf]
  %v2924 = vld [vmem:[%s15 + $0x44] sm:$0xf]
  %v2925 = vld [vmem:[%s15 + $0x48] sm:$0xf]
  %v2926 = vld [vmem:[%s15 + $0x4c] sm:$0xf]
  %v2927 = vld [vmem:[%s15 + $0x50] sm:$0xf]
  %v2928 = vld [vmem:[%s15 + $0x54] sm:$0xf]
  %v2929 = vld [vmem:[%s15 + $0x58] sm:$0xf]
  %v2930 = vld [vmem:[%s15 + $0x5c] sm:$0xf]
  %v2931 = vld [vmem:[%s15 + $0x60] sm:$0xf]
  %v2932 = vld [vmem:[%s15 + $0x64] sm:$0xf]
  %v2933 = vld [vmem:[%s15 + $0x68] sm:$0xf]
  %v2934 = vld [vmem:[%s15 + $0x6c] sm:$0xf]
  %v2935 = vld [vmem:[%s15 + $0x70] sm:$0xf]
  %v2936 = vld [vmem:[%s15 + $0x74] sm:$0xf]
  %v2937 = vld [vmem:[%s15 + $0x78] sm:$0xf]
  %v2938 = vld [vmem:[%s15 + $0x7c] sm:$0xf]
  %v2939 = vld [vmem:[%s16] sm:$0x1]
  %v2941 = vlaneseq
  %v2942 = vshrl.u32 %v2941, 7
  %v2943 = vsub.s32 0, %v2942
  %v2944 = vrot.slane %v2939, %v2943
  %v2978 = vunpack.c.l.b16 %v2907
  %v2979 = vunpack.c.l.b16 %v2908
  %v2980 = vunpack.c.l.b16 %v2909
  %v2981 = vunpack.c.l.b16 %v2910
  %v2982 = vunpack.c.l.b16 %v2911
  %v2983 = vunpack.c.l.b16 %v2912
  %v2984 = vunpack.c.l.b16 %v2913
  %v2985 = vunpack.c.l.b16 %v2914
  %v2986 = vunpack.c.l.b16 %v2915
  %v2987 = vunpack.c.l.b16 %v2916
  %v2988 = vunpack.c.l.b16 %v2917
  %v2989 = vunpack.c.l.b16 %v2918
  %v2990 = vunpack.c.l.b16 %v2919
  %v2991 = vunpack.c.l.b16 %v2920
  %v2992 = vunpack.c.l.b16 %v2921
  %v2993 = vunpack.c.l.b16 %v2922
  %v2994 = vunpack.c.l.b16 %v2923
  %v2995 = vunpack.c.l.b16 %v2924
  %v2996 = vunpack.c.l.b16 %v2925
  %v2997 = vunpack.c.l.b16 %v2926
  %v2998 = vunpack.c.l.b16 %v2927
  %v2999 = vunpack.c.l.b16 %v2928
  %v3000 = vunpack.c.l.b16 %v2929
  %v3001 = vunpack.c.l.b16 %v2930
  %v3002 = vunpack.c.l.b16 %v2931
  %v3003 = vunpack.c.l.b16 %v2932
  %v3004 = vunpack.c.l.b16 %v2933
  %v3005 = vunpack.c.l.b16 %v2934
  %v3006 = vunpack.c.l.b16 %v2935
  %v3007 = vunpack.c.l.b16 %v2936
  %v3008 = vunpack.c.l.b16 %v2937
  %v3009 = vunpack.c.l.b16 %v2938
  %v3010 = vpack.c.b16 %v2979, %v2978
  %v3011 = vpack.c.b16 %v2981, %v2980
  %v3012 = vpack.c.b16 %v2983, %v2982
  %v3013 = vpack.c.b16 %v2985, %v2984
  %v3014 = vpack.c.b16 %v2987, %v2986
  %v3015 = vpack.c.b16 %v2989, %v2988
  %v3016 = vpack.c.b16 %v2991, %v2990
  %v3017 = vpack.c.b16 %v2993, %v2992
  %v3018 = vpack.c.b16 %v2995, %v2994
  %v3019 = vpack.c.b16 %v2997, %v2996
  %v3020 = vpack.c.b16 %v2999, %v2998
  %v3021 = vpack.c.b16 %v3001, %v3000
  %v3022 = vpack.c.b16 %v3003, %v3002
  %v3023 = vpack.c.b16 %v3005, %v3004
  %v3024 = vpack.c.b16 %v3007, %v3006
  %v3025 = vpack.c.b16 %v3009, %v3008
  %3042 = vmatprep.subr.bf16.mxu0 0
  %3043 = vmatpush1.bf16.msra.mxu0 %v3010
  %3044 = vmatprep.subr.bf16.mxu0 0
  %3045 = vmatpush1.bf16.msra.mxu0 %v3011
  %3046 = vmatprep.subr.bf16.mxu0 0
  %3047 = vmatpush1.bf16.msra.mxu0 %v3012
  %3048 = vmatprep.subr.bf16.mxu0 0
  %3049 = vmatpush1.bf16.msra.mxu0 %v3013
  %3050 = vmatprep.subr.bf16.mxu0 0
  %3051 = vmatpush1.bf16.msra.mxu0 %v3014
  %3052 = vmatprep.subr.bf16.mxu0 0
  %3053 = vmatpush1.bf16.msra.mxu0 %v3015
  %3054 = vmatprep.subr.bf16.mxu0 0
  %3055 = vmatpush1.bf16.msra.mxu0 %v3016
  %3056 = vmatprep.subr.bf16.mxu0 0
  %3057 = vmatpush1.bf16.msra.mxu0 %v3017
  %3058 = vmatprep.subr.bf16.mxu0 0
  %3059 = vmatpush1.bf16.msra.mxu0 %v3018
  %3060 = vmatprep.subr.bf16.mxu0 0
  %3061 = vmatpush1.bf16.msra.mxu0 %v3019
  %3062 = vmatprep.subr.bf16.mxu0 0
  %3063 = vmatpush1.bf16.msra.mxu0 %v3020
  %3064 = vmatprep.subr.bf16.mxu0 0
  %3065 = vmatpush1.bf16.msra.mxu0 %v3021
  %3066 = vmatprep.subr.bf16.mxu0 0
  %3067 = vmatpush1.bf16.msra.mxu0 %v3022
  %3068 = vmatprep.subr.bf16.mxu0 0
  %3069 = vmatpush1.bf16.msra.mxu0 %v3023
  %3070 = vmatprep.subr.bf16.mxu0 0
  %3071 = vmatpush1.bf16.msra.mxu0 %v3024
  %3072 = vmatprep.subr.bf16.mxu0 0
  %3073 = vmatpush1.bf16.msra.mxu0 %v3025
  %3074 = vmatprep.mubr.bf16.mxu0 %v2892
  %3075 = vmatmul.mubr.bf16.gmra.mrb[0].mxu0 %v2891
  %v3076 = vpop.f32.mrb[0].mxu0
  %v3077 = vadd.f32 %v2944, %v3076
  %v3078 = vpop.f32.mrb[0].mxu0
  %v3079 = vpop.f32.mrb[0].mxu0
  %v3080 = vadd.f32 %v2944, %v3079
  %v3081 = vpop.f32.mrb[0].mxu0
  %3082 = vmatprep.mubr.bf16.mxu0 %v2894
  %3083 = vmatmul.mubr.bf16.gmra.mrb[0].mxu0 %v2893
  %v3084 = vpop.f32.mrb[0].mxu0
  %v3085 = vadd.f32 %v2944, %v3084
  %v3086 = vpop.f32.mrb[0].mxu0
  %v3087 = vpop.f32.mrb[0].mxu0
  %v3088 = vadd.f32 %v2944, %v3087
  %v3089 = vpop.f32.mrb[0].mxu0
  %3090 = vmatprep.mubr.bf16.mxu0 %v2896
  %3091 = vmatmul.mubr.bf16.gmra.mrb[0].mxu0 %v2895
  %v3092 = vpop.f32.mrb[0].mxu0
  %v3093 = vadd.f32 %v2944, %v3092
  %v3094 = vpop.f32.mrb[0].mxu0
  %v3095 = vpop.f32.mrb[0].mxu0
  %v3096 = vadd.f32 %v2944, %v3095
  %v3097 = vpop.f32.mrb[0].mxu0
  %3098 = vmatprep.mubr.bf16.mxu0 %v2898
  %3099 = vmatmul.mubr.bf16.gmra.mrb[0].mxu0 %v2897
  %v3100 = vpop.f32.mrb[0].mxu0
  %v3101 = vadd.f32 %v2944, %v3100
  %v3102 = vpop.f32.mrb[0].mxu0
  %v3103 = vpop.f32.mrb[0].mxu0
  %v3104 = vadd.f32 %v2944, %v3103
  %v3105 = vpop.f32.mrb[0].mxu0
  %3106 = vmatprep.mubr.bf16.mxu0 %v2900
  %3107 = vmatmul.mubr.bf16.gmra.mrb[0].mxu0 %v2899
  %v3108 = vpop.f32.mrb[0].mxu0
  %v3109 = vadd.f32 %v2944, %v3108
  %v3110 = vpop.f32.mrb[0].mxu0
  %v3111 = vpop.f32.mrb[0].mxu0
  %v3112 = vadd.f32 %v2944, %v3111
  %v3113 = vpop.f32.mrb[0].mxu0
  %3114 = vmatprep.mubr.bf16.mxu0 %v2902
  %3115 = vmatmul.mubr.bf16.gmra.mrb[0].mxu0 %v2901
  %v3116 = vpop.f32.mrb[0].mxu0
  %v3117 = vadd.f32 %v2944, %v3116
  %v3118 = vpop.f32.mrb[0].mxu0
  %v3119 = vpop.f32.mrb[0].mxu0
  %v3120 = vadd.f32 %v2944, %v3119
  %v3121 = vpop.f32.mrb[0].mxu0
  %3122 = vmatprep.mubr.bf16.mxu0 %v2904
  %3123 = vmatmul.mubr.bf16.gmra.mrb[0].mxu0 %v2903
  %v3124 = vpop.f32.mrb[0].mxu0
  %v3125 = vadd.f32 %v2944, %v3124
  %v3126 = vpop.f32.mrb[0].mxu0
  %v3127 = vpop.f32.mrb[0].mxu0
  %v3128 = vadd.f32 %v2944, %v3127
  %v3129 = vpop.f32.mrb[0].mxu0
  %3130 = vmatprep.mubr.bf16.mxu0 %v2906
  %3131 = vmatmul.mubr.bf16.gmra.mrb[0].mxu0 %v2905
  %v3132 = vpop.f32.mrb[0].mxu0
  %v3133 = vadd.f32 %v2944, %v3132
  %v3134 = vpop.f32.mrb[0].mxu0
  %v3135 = vpop.f32.mrb[0].mxu0
  %v3136 = vadd.f32 %v2944, %v3135
  %v3137 = vpop.f32.mrb[0].mxu0
  %3138 = vdwg.mxu0
  %v3139 = vlaneseq
  %v3140 = vshrl.u32 %v3139, 7
  %v3141 = vsub.s32 5, %v3140
  %v3142 = vrot.slane %v144, %v3141
  %v3143 = vmul.f32 %v3077, %v3142
  %v3144 = vmul.f32 %v3080, %v3142
  %v3145 = vmul.f32 %v3085, %v3142
  %v3146 = vmul.f32 %v3088, %v3142
  %v3147 = vmul.f32 %v3093, %v3142
  %v3148 = vmul.f32 %v3096, %v3142
  %v3149 = vmul.f32 %v3101, %v3142
  %v3150 = vmul.f32 %v3104, %v3142
  %v3151 = vlaneseq
  %v3152 = vshrl.u32 %v3151, 7
  %v3153 = vsub.s32 5, %v3152
  %v3154 = vrot.slane %v147, %v3153
  %v3155 = vmul.f32 %v3109, %v3154
  %v3156 = vmul.f32 %v3112, %v3154
  %v3157 = vmul.f32 %v3117, %v3154
  %v3158 = vmul.f32 %v3120, %v3154
  %v3159 = vmul.f32 %v3125, %v3154
  %v3160 = vmul.f32 %v3128, %v3154
  %v3161 = vmul.f32 %v3133, %v3154
  %v3162 = vmul.f32 %v3136, %v3154
  %v3163 = vadd.f32 %v2126, %v3143
  %v3164 = vadd.f32 %v2127, %v3144
  %v3165 = vadd.f32 %v2128, %v3145
  %v3166 = vadd.f32 %v2129, %v3146
  %v3167 = vadd.f32 %v2130, %v3147
  %v3168 = vadd.f32 %v2131, %v3148
  %v3169 = vadd.f32 %v2132, %v3149
  %v3170 = vadd.f32 %v2133, %v3150
  %v3171 = vadd.f32 %v2134, %v3155
  %v3172 = vadd.f32 %v2135, %v3156
  %v3173 = vadd.f32 %v2136, %v3157
  %v3174 = vadd.f32 %v2137, %v3158
  %v3175 = vadd.f32 %v2138, %v3159
  %v3176 = vadd.f32 %v2139, %v3160
  %v3177 = vadd.f32 %v2140, %v3161
  %v3178 = vadd.f32 %v2141, %v3162
  %v3179 = vsel %vm79, %v3163, 0.0
  %3180 = vadd.xlane.f32.xlu0 %v3179
  %v3181 = vpop.xlane.xlu0 %3180
  %v3182 = vsel %vm79, %v3164, 0.0
  %3183 = vadd.xlane.f32.xlu0 %v3182
  %v3184 = vpop.xlane.xlu0 %3183
  %v3185 = vsel %vm79, %v3165, 0.0
  %3186 = vadd.xlane.f32.xlu0 %v3185
  %v3187 = vpop.xlane.xlu0 %3186
  %v3188 = vsel %vm79, %v3166, 0.0
  %3189 = vadd.xlane.f32.xlu0 %v3188
  %v3190 = vpop.xlane.xlu0 %3189
  %v3191 = vsel %vm79, %v3167, 0.0
  %3192 = vadd.xlane.f32.xlu0 %v3191
  %v3193 = vpop.xlane.xlu0 %3192
  %v3194 = vsel %vm79, %v3168, 0.0
  %3195 = vadd.xlane.f32.xlu0 %v3194
  %v3196 = vpop.xlane.xlu0 %3195
  %v3197 = vsel %vm79, %v3169, 0.0
  %3198 = vadd.xlane.f32.xlu0 %v3197
  %v3199 = vpop.xlane.xlu0 %3198
  %v3200 = vsel %vm79, %v3170, 0.0
  %3201 = vadd.xlane.f32.xlu0 %v3200
  %v3202 = vpop.xlane.xlu0 %3201
  %v3203 = vsel %vm79, %v3171, 0.0
  %3204 = vadd.xlane.f32.xlu0 %v3203
  %v3205 = vpop.xlane.xlu0 %3204
  %v3206 = vsel %vm79, %v3172, 0.0
  %3207 = vadd.xlane.f32.xlu0 %v3206
  %v3208 = vpop.xlane.xlu0 %3207
  %v3209 = vsel %vm79, %v3173, 0.0
  %3210 = vadd.xlane.f32.xlu0 %v3209
  %v3211 = vpop.xlane.xlu0 %3210
  %v3212 = vsel %vm79, %v3174, 0.0
  %3213 = vadd.xlane.f32.xlu0 %v3212
  %v3214 = vpop.xlane.xlu0 %3213
  %v3215 = vsel %vm79, %v3175, 0.0
  %3216 = vadd.xlane.f32.xlu0 %v3215
  %v3217 = vpop.xlane.xlu0 %3216
  %v3218 = vsel %vm79, %v3176, 0.0
  %3219 = vadd.xlane.f32.xlu0 %v3218
  %v3220 = vpop.xlane.xlu0 %3219
  %v3221 = vsel %vm79, %v3177, 0.0
  %3222 = vadd.xlane.f32.xlu0 %v3221
  %v3223 = vpop.xlane.xlu0 %3222
  %v3224 = vsel %vm79, %v3178, 0.0
  %3225 = vadd.xlane.f32.xlu0 %v3224
  %v3226 = vpop.xlane.xlu0 %3225
  %v3227 = vmul.f32 %v3181, %v367
  %v3228 = vmul.f32 %v3184, %v367
  %v3229 = vmul.f32 %v3187, %v367
  %v3230 = vmul.f32 %v3190, %v367
  %v3231 = vmul.f32 %v3193, %v367
  %v3232 = vmul.f32 %v3196, %v367
  %v3233 = vmul.f32 %v3199, %v367
  %v3234 = vmul.f32 %v3202, %v367
  %v3235 = vmul.f32 %v3205, %v367
  %v3236 = vmul.f32 %v3208, %v367
  %v3237 = vmul.f32 %v3211, %v367
  %v3238 = vmul.f32 %v3214, %v367
  %v3239 = vmul.f32 %v3217, %v367
  %v3240 = vmul.f32 %v3220, %v367
  %v3241 = vmul.f32 %v3223, %v367
  %v3242 = vmul.f32 %v3226, %v367
  %v3243 = vsub.f32 %v3163, %v3227
  %v3244 = vsub.f32 %v3164, %v3228
  %v3245 = vsub.f32 %v3165, %v3229
  %v3246 = vsub.f32 %v3166, %v3230
  %v3247 = vsub.f32 %v3167, %v3231
  %v3248 = vsub.f32 %v3168, %v3232
  %v3249 = vsub.f32 %v3169, %v3233
  %v3250 = vsub.f32 %v3170, %v3234
  %v3251 = vsub.f32 %v3171, %v3235
  %v3252 = vsub.f32 %v3172, %v3236
  %v3253 = vsub.f32 %v3173, %v3237
  %v3254 = vsub.f32 %v3174, %v3238
  %v3255 = vsub.f32 %v3175, %v3239
  %v3256 = vsub.f32 %v3176, %v3240
  %v3257 = vsub.f32 %v3177, %v3241
  %v3258 = vsub.f32 %v3178, %v3242
  %v3259 = vmul.f32 %v3243, %v3243
  %v3260 = vmul.f32 %v3244, %v3244
  %v3261 = vmul.f32 %v3245, %v3245
  %v3262 = vmul.f32 %v3246, %v3246
  %v3263 = vmul.f32 %v3247, %v3247
  %v3264 = vmul.f32 %v3248, %v3248
  %v3265 = vmul.f32 %v3249, %v3249
  %v3266 = vmul.f32 %v3250, %v3250
  %v3267 = vmul.f32 %v3251, %v3251
  %v3268 = vmul.f32 %v3252, %v3252
  %v3269 = vmul.f32 %v3253, %v3253
  %v3270 = vmul.f32 %v3254, %v3254
  %v3271 = vmul.f32 %v3255, %v3255
  %v3272 = vmul.f32 %v3256, %v3256
  %v3273 = vmul.f32 %v3257, %v3257
  %v3274 = vmul.f32 %v3258, %v3258
  %v3275 = vsel %vm79, %v3259, 0.0
  %3276 = vadd.xlane.f32.xlu0 %v3275
  %v3277 = vpop.xlane.xlu0 %3276
  %v3278 = vsel %vm79, %v3260, 0.0
  %3279 = vadd.xlane.f32.xlu0 %v3278
  %v3280 = vpop.xlane.xlu0 %3279
  %v3281 = vsel %vm79, %v3261, 0.0
  %3282 = vadd.xlane.f32.xlu0 %v3281
  %v3283 = vpop.xlane.xlu0 %3282
  %v3284 = vsel %vm79, %v3262, 0.0
  %3285 = vadd.xlane.f32.xlu0 %v3284
  %v3286 = vpop.xlane.xlu0 %3285
  %v3287 = vsel %vm79, %v3263, 0.0
  %3288 = vadd.xlane.f32.xlu0 %v3287
  %v3289 = vpop.xlane.xlu0 %3288
  %v3290 = vsel %vm79, %v3264, 0.0
  %3291 = vadd.xlane.f32.xlu0 %v3290
  %v3292 = vpop.xlane.xlu0 %3291
  %v3293 = vsel %vm79, %v3265, 0.0
  %3294 = vadd.xlane.f32.xlu0 %v3293
  %v3295 = vpop.xlane.xlu0 %3294
  %v3296 = vsel %vm79, %v3266, 0.0
  %3297 = vadd.xlane.f32.xlu0 %v3296
  %v3298 = vpop.xlane.xlu0 %3297
  %v3299 = vsel %vm79, %v3267, 0.0
  %3300 = vadd.xlane.f32.xlu0 %v3299
  %v3301 = vpop.xlane.xlu0 %3300
  %v3302 = vsel %vm79, %v3268, 0.0
  %3303 = vadd.xlane.f32.xlu0 %v3302
  %v3304 = vpop.xlane.xlu0 %3303
  %v3305 = vsel %vm79, %v3269, 0.0
  %3306 = vadd.xlane.f32.xlu0 %v3305
  %v3307 = vpop.xlane.xlu0 %3306
  %v3308 = vsel %vm79, %v3270, 0.0
  %3309 = vadd.xlane.f32.xlu0 %v3308
  %v3310 = vpop.xlane.xlu0 %3309
  %v3311 = vsel %vm79, %v3271, 0.0
  %3312 = vadd.xlane.f32.xlu0 %v3311
  %v3313 = vpop.xlane.xlu0 %3312
  %v3314 = vsel %vm79, %v3272, 0.0
  %3315 = vadd.xlane.f32.xlu0 %v3314
  %v3316 = vpop.xlane.xlu0 %3315
  %v3317 = vsel %vm79, %v3273, 0.0
  %3318 = vadd.xlane.f32.xlu0 %v3317
  %v3319 = vpop.xlane.xlu0 %3318
  %v3320 = vsel %vm79, %v3274, 0.0
  %3321 = vadd.xlane.f32.xlu0 %v3320
  %v3322 = vpop.xlane.xlu0 %3321
  %v3323 = vmul.f32 %v3277, %v367
  %v3324 = vmul.f32 %v3280, %v367
  %v3325 = vmul.f32 %v3283, %v367
  %v3326 = vmul.f32 %v3286, %v367
  %v3327 = vmul.f32 %v3289, %v367
  %v3328 = vmul.f32 %v3292, %v367
  %v3329 = vmul.f32 %v3295, %v367
  %v3330 = vmul.f32 %v3298, %v367
  %v3331 = vmul.f32 %v3301, %v367
  %v3332 = vmul.f32 %v3304, %v367
  %v3333 = vmul.f32 %v3307, %v367
  %v3334 = vmul.f32 %v3310, %v367
  %v3335 = vmul.f32 %v3313, %v367
  %v3336 = vmul.f32 %v3316, %v367
  %v3337 = vmul.f32 %v3319, %v367
  %v3338 = vmul.f32 %v3322, %v367
  %v3339 = vadd.f32 %v3323, 1e-06
  %v3340 = vadd.f32 %v3324, 1e-06
  %v3341 = vadd.f32 %v3325, 1e-06
  %v3342 = vadd.f32 %v3326, 1e-06
  %v3343 = vadd.f32 %v3327, 1e-06
  %v3344 = vadd.f32 %v3328, 1e-06
  %v3345 = vadd.f32 %v3329, 1e-06
  %v3346 = vadd.f32 %v3330, 1e-06
  %v3347 = vadd.f32 %v3331, 1e-06
  %v3348 = vadd.f32 %v3332, 1e-06
  %v3349 = vadd.f32 %v3333, 1e-06
  %v3350 = vadd.f32 %v3334, 1e-06
  %v3351 = vadd.f32 %v3335, 1e-06
  %v3352 = vadd.f32 %v3336, 1e-06
  %v3353 = vadd.f32 %v3337, 1e-06
  %v3354 = vadd.f32 %v3338, 1e-06
  %v3355 = vrsqrt.pop %v3339
  %v3356 = vrsqrt.pop %v3340
  %v3357 = vrsqrt.pop %v3341
  %v3358 = vrsqrt.pop %v3342
  %v3359 = vrsqrt.pop %v3343
  %v3360 = vrsqrt.pop %v3344
  %v3361 = vrsqrt.pop %v3345
  %v3362 = vrsqrt.pop %v3346
  %v3363 = vrsqrt.pop %v3347
  %v3364 = vrsqrt.pop %v3348
  %v3365 = vrsqrt.pop %v3349
  %v3366 = vrsqrt.pop %v3350
  %v3367 = vrsqrt.pop %v3351
  %v3368 = vrsqrt.pop %v3352
  %v3369 = vrsqrt.pop %v3353
  %v3370 = vrsqrt.pop %v3354
  %v3371 = vmul.f32 %v3243, %v3355
  %v3372 = vmul.f32 %v3244, %v3356
  %v3373 = vmul.f32 %v3245, %v3357
  %v3374 = vmul.f32 %v3246, %v3358
  %v3375 = vmul.f32 %v3247, %v3359
  %v3376 = vmul.f32 %v3248, %v3360
  %v3377 = vmul.f32 %v3249, %v3361
  %v3378 = vmul.f32 %v3250, %v3362
  %v3379 = vmul.f32 %v3251, %v3363
  %v3380 = vmul.f32 %v3252, %v3364
  %v3381 = vmul.f32 %v3253, %v3365
  %v3382 = vmul.f32 %v3254, %v3366
  %v3383 = vmul.f32 %v3255, %v3367
  %v3384 = vmul.f32 %v3256, %v3368
  %v3385 = vmul.f32 %v3257, %v3369
  %v3386 = vmul.f32 %v3258, %v3370
  %v3387 = vlaneseq
  %v3388 = vshrl.u32 %v3387, 7
  %v3389 = vsub.s32 7, %v3388
  %v3390 = vrot.slane %v528, %v3389
  %v3391 = vmul.f32 %v3371, %v3390
  %v3392 = vmul.f32 %v3372, %v3390
  %v3393 = vmul.f32 %v3373, %v3390
  %v3394 = vmul.f32 %v3374, %v3390
  %v3395 = vmul.f32 %v3375, %v3390
  %v3396 = vmul.f32 %v3376, %v3390
  %v3397 = vmul.f32 %v3377, %v3390
  %v3398 = vmul.f32 %v3378, %v3390
  %v3399 = vlaneseq
  %v3400 = vshrl.u32 %v3399, 7
  %v3401 = vsub.s32 6, %v3400
  %v3402 = vrot.slane %v144, %v3401
  %v3403 = vadd.f32 %v3391, %v3402
  %v3404 = vadd.f32 %v3392, %v3402
  %v3405 = vadd.f32 %v3393, %v3402
  %v3406 = vadd.f32 %v3394, %v3402
  %v3407 = vadd.f32 %v3395, %v3402
  %v3408 = vadd.f32 %v3396, %v3402
  %v3409 = vadd.f32 %v3397, %v3402
  %v3410 = vadd.f32 %v3398, %v3402
  %v3411 = vlaneseq
  %v3412 = vshrl.u32 %v3411, 7
  %v3413 = vsub.s32 7, %v3412
  %v3414 = vrot.slane %v553, %v3413
  %v3415 = vmul.f32 %v3379, %v3414
  %v3416 = vmul.f32 %v3380, %v3414
  %v3417 = vmul.f32 %v3381, %v3414
  %v3418 = vmul.f32 %v3382, %v3414
  %v3419 = vmul.f32 %v3383, %v3414
  %v3420 = vmul.f32 %v3384, %v3414
  %v3421 = vmul.f32 %v3385, %v3414
  %v3422 = vmul.f32 %v3386, %v3414
  %v3423 = vlaneseq
  %v3424 = vshrl.u32 %v3423, 7
  %v3425 = vsub.s32 6, %v3424
  %v3426 = vrot.slane %v147, %v3425
  %v3427 = vadd.f32 %v3415, %v3426
  %v3428 = vadd.f32 %v3416, %v3426
  %v3429 = vadd.f32 %v3417, %v3426
  %v3430 = vadd.f32 %v3418, %v3426
  %v3431 = vadd.f32 %v3419, %v3426
  %v3432 = vadd.f32 %v3420, %v3426
  %v3433 = vadd.f32 %v3421, %v3426
  %v3434 = vadd.f32 %v3422, %v3426
  %v3435 = vpack.c.bf16 %v3404, %v3403
  %v3436 = vpack.c.bf16 %v3406, %v3405
  %v3437 = vpack.c.bf16 %v3408, %v3407
  %v3438 = vpack.c.bf16 %v3410, %v3409
  %v3439 = vpack.c.bf16 %v3428, %v3427
  %v3440 = vpack.c.bf16 %v3430, %v3429
  %v3441 = vpack.c.bf16 %v3432, %v3431
  %v3442 = vpack.c.bf16 %v3434, %v3433
  %s3443 = scalar_lea.vmem %s5, 32
  %v3444 = vld [vmem:[%s3443] sm:$0xf]
  %v3445 = vld [vmem:[%s3443 + $0x4] sm:$0xf]
  %v3446 = vld [vmem:[%s3443 + $0x8] sm:$0xf]
  %v3447 = vld [vmem:[%s3443 + $0xc] sm:$0xf]
  %v3448 = vld [vmem:[%s3443 + $0x10] sm:$0xf]
  %v3449 = vld [vmem:[%s3443 + $0x14] sm:$0xf]
  %v3450 = vld [vmem:[%s3443 + $0x18] sm:$0xf]
  %v3451 = vld [vmem:[%s3443 + $0x1c] sm:$0xf]
  %s3452 = scalar_lea.vmem %s6, 1
  %v3453 = vld [vmem:[%s3452] sm:$0x1]
  %v3455 = vlaneseq
  %v3456 = vshrl.u32 %v3455, 7
  %v3457 = vsub.s32 0, %v3456
  %v3458 = vrot.slane %v3453, %v3457
  %v3468 = vunpack.c.l.b16 %v3444
  %v3469 = vunpack.c.l.b16 %v3445
  %v3470 = vunpack.c.l.b16 %v3446
  %v3471 = vunpack.c.l.b16 %v3447
  %v3472 = vunpack.c.l.b16 %v3448
  %v3473 = vunpack.c.l.b16 %v3449
  %v3474 = vunpack.c.l.b16 %v3450
  %v3475 = vunpack.c.l.b16 %v3451
  %v3476 = vpack.c.b16 %v3469, %v3468
  %v3477 = vpack.c.b16 %v3471, %v3470
  %v3478 = vpack.c.b16 %v3473, %v3472
  %v3479 = vpack.c.b16 %v3475, %v3474
  %v3485 = vsel %vm79, %v3435, 0
  %v3488 = vsel %vm79, %v3436, 0
  %v3491 = vsel %vm79, %v3437, 0
  %v3494 = vsel %vm79, %v3438, 0
  %v3497 = vsel %vm79, %v3439, 0
  %v3500 = vsel %vm79, %v3440, 0
  %v3503 = vsel %vm79, %v3441, 0
  %v3506 = vsel %vm79, %v3442, 0
  %3508 = vmatprep.subr.bf16.mxu0 0
  %3509 = vmatpush1.bf16.msra.mxu0 %v3476
  %3510 = vmatprep.subr.bf16.mxu0 0
  %3511 = vmatpush1.bf16.msra.mxu0 %v3477
  %3512 = vmatprep.subr.bf16.mxu0 0
  %3513 = vmatpush1.bf16.msra.mxu0 %v3478
  %3514 = vmatprep.subr.bf16.mxu0 0
  %3515 = vmatpush1.bf16.msra.mxu0 %v3479
  %3516 = vmatprep.subr.bf16.mxu0 0
  %3517 = vmatpush1.bf16.msra.mxu0 0
  %3518 = vmatprep.subr.bf16.mxu0 0
  %3519 = vmatpush1.bf16.msra.mxu0 0
  %3520 = vmatprep.subr.bf16.mxu0 0
  %3521 = vmatpush1.bf16.msra.mxu0 0
  %3522 = vmatprep.subr.bf16.mxu0 0
  %3523 = vmatpush1.bf16.msra.mxu0 0
  %3524 = vmatprep.subr.bf16.mxu0 0
  %3525 = vmatpush1.bf16.msra.mxu0 0
  %3526 = vmatprep.subr.bf16.mxu0 0
  %3527 = vmatpush1.bf16.msra.mxu0 0
  %3528 = vmatprep.subr.bf16.mxu0 0
  %3529 = vmatpush1.bf16.msra.mxu0 0
  %3530 = vmatprep.subr.bf16.mxu0 0
  %3531 = vmatpush1.bf16.msra.mxu0 0
  %3532 = vmatprep.subr.bf16.mxu0 0
  %3533 = vmatpush1.bf16.msra.mxu0 0
  %3534 = vmatprep.subr.bf16.mxu0 0
  %3535 = vmatpush1.bf16.msra.mxu0 0
  %3536 = vmatprep.subr.bf16.mxu0 0
  %3537 = vmatpush1.bf16.msra.mxu0 0
  %3538 = vmatprep.subr.bf16.mxu0 0
  %3539 = vmatpush1.bf16.msra.mxu0 0
  %3540 = vmatprep.mubr.bf16.mxu0 0
  %3541 = vmatmul.mubr.bf16.gmra.mrb[0].mxu0 %v3485
  %v3542 = vpop.f32.mrb[0].mxu0
  %v3543 = vadd.f32 %v3458, %v3542
  %v3544 = vpop.f32.mrb[0].mxu0
  %v3545 = vpop.f32.mrb[0].mxu0
  %v3546 = vadd.f32 %v3458, %v3545
  %v3547 = vpop.f32.mrb[0].mxu0
  %3548 = vmatprep.mubr.bf16.mxu0 0
  %3549 = vmatmul.mubr.bf16.gmra.mrb[0].mxu0 %v3488
  %v3550 = vpop.f32.mrb[0].mxu0
  %v3551 = vadd.f32 %v3458, %v3550
  %v3552 = vpop.f32.mrb[0].mxu0
  %v3553 = vpop.f32.mrb[0].mxu0
  %v3554 = vadd.f32 %v3458, %v3553
  %v3555 = vpop.f32.mrb[0].mxu0
  %3556 = vmatprep.mubr.bf16.mxu0 0
  %3557 = vmatmul.mubr.bf16.gmra.mrb[0].mxu0 %v3491
  %v3558 = vpop.f32.mrb[0].mxu0
  %v3559 = vadd.f32 %v3458, %v3558
  %v3560 = vpop.f32.mrb[0].mxu0
  %v3561 = vpop.f32.mrb[0].mxu0
  %v3562 = vadd.f32 %v3458, %v3561
  %v3563 = vpop.f32.mrb[0].mxu0
  %3564 = vmatprep.mubr.bf16.mxu0 0
  %3565 = vmatmul.mubr.bf16.gmra.mrb[0].mxu0 %v3494
  %v3566 = vpop.f32.mrb[0].mxu0
  %v3567 = vadd.f32 %v3458, %v3566
  %v3568 = vpop.f32.mrb[0].mxu0
  %v3569 = vpop.f32.mrb[0].mxu0
  %v3570 = vadd.f32 %v3458, %v3569
  %v3571 = vpop.f32.mrb[0].mxu0
  %3572 = vmatprep.mubr.bf16.mxu0 0
  %3573 = vmatmul.mubr.bf16.gmra.mrb[0].mxu0 %v3497
  %v3574 = vpop.f32.mrb[0].mxu0
  %v3575 = vadd.f32 %v3458, %v3574
  %v3576 = vpop.f32.mrb[0].mxu0
  %v3577 = vpop.f32.mrb[0].mxu0
  %v3578 = vadd.f32 %v3458, %v3577
  %v3579 = vpop.f32.mrb[0].mxu0
  %3580 = vmatprep.mubr.bf16.mxu0 0
  %3581 = vmatmul.mubr.bf16.gmra.mrb[0].mxu0 %v3500
  %v3582 = vpop.f32.mrb[0].mxu0
  %v3583 = vadd.f32 %v3458, %v3582
  %v3584 = vpop.f32.mrb[0].mxu0
  %v3585 = vpop.f32.mrb[0].mxu0
  %v3586 = vadd.f32 %v3458, %v3585
  %v3587 = vpop.f32.mrb[0].mxu0
  %3588 = vmatprep.mubr.bf16.mxu0 0
  %3589 = vmatmul.mubr.bf16.gmra.mrb[0].mxu0 %v3503
  %v3590 = vpop.f32.mrb[0].mxu0
  %v3591 = vadd.f32 %v3458, %v3590
  %v3592 = vpop.f32.mrb[0].mxu0
  %v3593 = vpop.f32.mrb[0].mxu0
  %v3594 = vadd.f32 %v3458, %v3593
  %v3595 = vpop.f32.mrb[0].mxu0
  %3596 = vmatprep.mubr.bf16.mxu0 0
  %3597 = vmatmul.mubr.bf16.gmra.mrb[0].mxu0 %v3506
  %v3598 = vpop.f32.mrb[0].mxu0
  %v3599 = vadd.f32 %v3458, %v3598
  %v3600 = vpop.f32.mrb[0].mxu0
  %v3601 = vpop.f32.mrb[0].mxu0
  %v3602 = vadd.f32 %v3458, %v3601
  %v3603 = vpop.f32.mrb[0].mxu0
  %3604 = vdwg.mxu0
  %s3605 = scalar_lea.vmem %s7, 32
  %v3606 = vld [vmem:[%s3605] sm:$0xf]
  %v3607 = vld [vmem:[%s3605 + $0x4] sm:$0xf]
  %v3608 = vld [vmem:[%s3605 + $0x8] sm:$0xf]
  %v3609 = vld [vmem:[%s3605 + $0xc] sm:$0xf]
  %v3610 = vld [vmem:[%s3605 + $0x10] sm:$0xf]
  %v3611 = vld [vmem:[%s3605 + $0x14] sm:$0xf]
  %v3612 = vld [vmem:[%s3605 + $0x18] sm:$0xf]
  %v3613 = vld [vmem:[%s3605 + $0x1c] sm:$0xf]
  %s3614 = scalar_lea.vmem %s8, 1
  %v3615 = vld [vmem:[%s3614] sm:$0x1]
  %v3617 = vlaneseq
  %v3618 = vshrl.u32 %v3617, 7
  %v3619 = vsub.s32 0, %v3618
  %v3620 = vrot.slane %v3615, %v3619
  %v3630 = vunpack.c.l.b16 %v3606
  %v3631 = vunpack.c.l.b16 %v3607
  %v3632 = vunpack.c.l.b16 %v3608
  %v3633 = vunpack.c.l.b16 %v3609
  %v3634 = vunpack.c.l.b16 %v3610
  %v3635 = vunpack.c.l.b16 %v3611
  %v3636 = vunpack.c.l.b16 %v3612
  %v3637 = vunpack.c.l.b16 %v3613
  %v3638 = vpack.c.b16 %v3631, %v3630
  %v3639 = vpack.c.b16 %v3633, %v3632
  %v3640 = vpack.c.b16 %v3635, %v3634
  %v3641 = vpack.c.b16 %v3637, %v3636
  %3646 = vmatprep.subr.bf16.mxu0 0
  %3647 = vmatpush1.bf16.msra.mxu0 %v3638
  %3648 = vmatprep.subr.bf16.mxu0 0
  %3649 = vmatpush1.bf16.msra.mxu0 %v3639
  %3650 = vmatprep.subr.bf16.mxu0 0
  %3651 = vmatpush1.bf16.msra.mxu0 %v3640
  %3652 = vmatprep.subr.bf16.mxu0 0
  %3653 = vmatpush1.bf16.msra.mxu0 %v3641
  %3654 = vmatprep.subr.bf16.mxu0 0
  %3655 = vmatpush1.bf16.msra.mxu0 0
  %3656 = vmatprep.subr.bf16.mxu0 0
  %3657 = vmatpush1.bf16.msra.mxu0 0
  %3658 = vmatprep.subr.bf16.mxu0 0
  %3659 = vmatpush1.bf16.msra.mxu0 0
  %3660 = vmatprep.subr.bf16.mxu0 0
  %3661 = vmatpush1.bf16.msra.mxu0 0
  %3662 = vmatprep.subr.bf16.mxu0 0
  %3663 = vmatpush1.bf16.msra.mxu0 0
  %3664 = vmatprep.subr.bf16.mxu0 0
  %3665 = vmatpush1.bf16.msra.mxu0 0
  %3666 = vmatprep.subr.bf16.mxu0 0
  %3667 = vmatpush1.bf16.msra.mxu0 0
  %3668 = vmatprep.subr.bf16.mxu0 0
  %3669 = vmatpush1.bf16.msra.mxu0 0
  %3670 = vmatprep.subr.bf16.mxu0 0
  %3671 = vmatpush1.bf16.msra.mxu0 0
  %3672 = vmatprep.subr.bf16.mxu0 0
  %3673 = vmatpush1.bf16.msra.mxu0 0
  %3674 = vmatprep.subr.bf16.mxu0 0
  %3675 = vmatpush1.bf16.msra.mxu0 0
  %3676 = vmatprep.subr.bf16.mxu0 0
  %3677 = vmatpush1.bf16.msra.mxu0 0
  %3678 = vmatprep.mubr.bf16.mxu0 0
  %3679 = vmatmul.mubr.bf16.gmra.mrb[0].mxu0 %v3485
  %v3680 = vpop.f32.mrb[0].mxu0
  %v3681 = vadd.f32 %v3620, %v3680
  %v3682 = vpop.f32.mrb[0].mxu0
  %v3683 = vpop.f32.mrb[0].mxu0
  %v3684 = vadd.f32 %v3620, %v3683
  %v3685 = vpop.f32.mrb[0].mxu0
  %3686 = vmatprep.mubr.bf16.mxu0 0
  %3687 = vmatmul.mubr.bf16.gmra.mrb[0].mxu0 %v3488
  %v3688 = vpop.f32.mrb[0].mxu0
  %v3689 = vadd.f32 %v3620, %v3688
  %v3690 = vpop.f32.mrb[0].mxu0
  %v3691 = vpop.f32.mrb[0].mxu0
  %v3692 = vadd.f32 %v3620, %v3691
  %v3693 = vpop.f32.mrb[0].mxu0
  %3694 = vmatprep.mubr.bf16.mxu0 0
  %3695 = vmatmul.mubr.bf16.gmra.mrb[0].mxu0 %v3491
  %v3696 = vpop.f32.mrb[0].mxu0
  %v3697 = vadd.f32 %v3620, %v3696
  %v3698 = vpop.f32.mrb[0].mxu0
  %v3699 = vpop.f32.mrb[0].mxu0
  %v3700 = vadd.f32 %v3620, %v3699
  %v3701 = vpop.f32.mrb[0].mxu0
  %3702 = vmatprep.mubr.bf16.mxu0 0
  %3703 = vmatmul.mubr.bf16.gmra.mrb[0].mxu0 %v3494
  %v3704 = vpop.f32.mrb[0].mxu0
  %v3705 = vadd.f32 %v3620, %v3704
  %v3706 = vpop.f32.mrb[0].mxu0
  %v3707 = vpop.f32.mrb[0].mxu0
  %v3708 = vadd.f32 %v3620, %v3707
  %v3709 = vpop.f32.mrb[0].mxu0
  %3710 = vmatprep.mubr.bf16.mxu0 0
  %3711 = vmatmul.mubr.bf16.gmra.mrb[0].mxu0 %v3497
  %v3712 = vpop.f32.mrb[0].mxu0
  %v3713 = vadd.f32 %v3620, %v3712
  %v3714 = vpop.f32.mrb[0].mxu0
  %v3715 = vpop.f32.mrb[0].mxu0
  %v3716 = vadd.f32 %v3620, %v3715
  %v3717 = vpop.f32.mrb[0].mxu0
  %3718 = vmatprep.mubr.bf16.mxu0 0
  %3719 = vmatmul.mubr.bf16.gmra.mrb[0].mxu0 %v3500
  %v3720 = vpop.f32.mrb[0].mxu0
  %v3721 = vadd.f32 %v3620, %v3720
  %v3722 = vpop.f32.mrb[0].mxu0
  %v3723 = vpop.f32.mrb[0].mxu0
  %v3724 = vadd.f32 %v3620, %v3723
  %v3725 = vpop.f32.mrb[0].mxu0
  %3726 = vmatprep.mubr.bf16.mxu0 0
  %3727 = vmatmul.mubr.bf16.gmra.mrb[0].mxu0 %v3503
  %v3728 = vpop.f32.mrb[0].mxu0
  %v3729 = vadd.f32 %v3620, %v3728
  %v3730 = vpop.f32.mrb[0].mxu0
  %v3731 = vpop.f32.mrb[0].mxu0
  %v3732 = vadd.f32 %v3620, %v3731
  %v3733 = vpop.f32.mrb[0].mxu0
  %3734 = vmatprep.mubr.bf16.mxu0 0
  %3735 = vmatmul.mubr.bf16.gmra.mrb[0].mxu0 %v3506
  %v3736 = vpop.f32.mrb[0].mxu0
  %v3737 = vadd.f32 %v3620, %v3736
  %v3738 = vpop.f32.mrb[0].mxu0
  %v3739 = vpop.f32.mrb[0].mxu0
  %v3740 = vadd.f32 %v3620, %v3739
  %v3741 = vpop.f32.mrb[0].mxu0
  %3742 = vdwg.mxu0
  %s3743 = scalar_lea.vmem %s9, 32
  %v3744 = vld [vmem:[%s3743] sm:$0xf]
  %v3745 = vld [vmem:[%s3743 + $0x4] sm:$0xf]
  %v3746 = vld [vmem:[%s3743 + $0x8] sm:$0xf]
  %v3747 = vld [vmem:[%s3743 + $0xc] sm:$0xf]
  %v3748 = vld [vmem:[%s3743 + $0x10] sm:$0xf]
  %v3749 = vld [vmem:[%s3743 + $0x14] sm:$0xf]
  %v3750 = vld [vmem:[%s3743 + $0x18] sm:$0xf]
  %v3751 = vld [vmem:[%s3743 + $0x1c] sm:$0xf]
  %s3752 = scalar_lea.vmem %s10, 1
  %v3753 = vld [vmem:[%s3752] sm:$0x1]
  %v3755 = vlaneseq
  %v3756 = vshrl.u32 %v3755, 7
  %v3757 = vsub.s32 0, %v3756
  %v3758 = vrot.slane %v3753, %v3757
  %v3768 = vunpack.c.l.b16 %v3744
  %v3769 = vunpack.c.l.b16 %v3745
  %v3770 = vunpack.c.l.b16 %v3746
  %v3771 = vunpack.c.l.b16 %v3747
  %v3772 = vunpack.c.l.b16 %v3748
  %v3773 = vunpack.c.l.b16 %v3749
  %v3774 = vunpack.c.l.b16 %v3750
  %v3775 = vunpack.c.l.b16 %v3751
  %v3776 = vpack.c.b16 %v3769, %v3768
  %v3777 = vpack.c.b16 %v3771, %v3770
  %v3778 = vpack.c.b16 %v3773, %v3772
  %v3779 = vpack.c.b16 %v3775, %v3774
  %3784 = vmatprep.subr.bf16.mxu0 0
  %3785 = vmatpush1.bf16.msra.mxu0 %v3776
  %3786 = vmatprep.subr.bf16.mxu0 0
  %3787 = vmatpush1.bf16.msra.mxu0 %v3777
  %3788 = vmatprep.subr.bf16.mxu0 0
  %3789 = vmatpush1.bf16.msra.mxu0 %v3778
  %3790 = vmatprep.subr.bf16.mxu0 0
  %3791 = vmatpush1.bf16.msra.mxu0 %v3779
  %3792 = vmatprep.subr.bf16.mxu0 0
  %3793 = vmatpush1.bf16.msra.mxu0 0
  %3794 = vmatprep.subr.bf16.mxu0 0
  %3795 = vmatpush1.bf16.msra.mxu0 0
  %3796 = vmatprep.subr.bf16.mxu0 0
  %3797 = vmatpush1.bf16.msra.mxu0 0
  %3798 = vmatprep.subr.bf16.mxu0 0
  %3799 = vmatpush1.bf16.msra.mxu0 0
  %3800 = vmatprep.subr.bf16.mxu0 0
  %3801 = vmatpush1.bf16.msra.mxu0 0
  %3802 = vmatprep.subr.bf16.mxu0 0
  %3803 = vmatpush1.bf16.msra.mxu0 0
  %3804 = vmatprep.subr.bf16.mxu0 0
  %3805 = vmatpush1.bf16.msra.mxu0 0
  %3806 = vmatprep.subr.bf16.mxu0 0
  %3807 = vmatpush1.bf16.msra.mxu0 0
  %3808 = vmatprep.subr.bf16.mxu0 0
  %3809 = vmatpush1.bf16.msra.mxu0 0
  %3810 = vmatprep.subr.bf16.mxu0 0
  %3811 = vmatpush1.bf16.msra.mxu0 0
  %3812 = vmatprep.subr.bf16.mxu0 0
  %3813 = vmatpush1.bf16.msra.mxu0 0
  %3814 = vmatprep.subr.bf16.mxu0 0
  %3815 = vmatpush1.bf16.msra.mxu0 0
  %3816 = vmatprep.mubr.bf16.mxu0 0
  %3817 = vmatmul.mubr.bf16.gmra.mrb[0].mxu0 %v3485
  %v3818 = vpop.f32.mrb[0].mxu0
  %v3819 = vadd.f32 %v3758, %v3818
  %v3820 = vpop.f32.mrb[0].mxu0
  %v3821 = vpop.f32.mrb[0].mxu0
  %v3822 = vadd.f32 %v3758, %v3821
  %v3823 = vpop.f32.mrb[0].mxu0
  %3824 = vmatprep.mubr.bf16.mxu0 0
  %3825 = vmatmul.mubr.bf16.gmra.mrb[0].mxu0 %v3488
  %v3826 = vpop.f32.mrb[0].mxu0
  %v3827 = vadd.f32 %v3758, %v3826
  %v3828 = vpop.f32.mrb[0].mxu0
  %v3829 = vpop.f32.mrb[0].mxu0
  %v3830 = vadd.f32 %v3758, %v3829
  %v3831 = vpop.f32.mrb[0].mxu0
  %3832 = vmatprep.mubr.bf16.mxu0 0
  %3833 = vmatmul.mubr.bf16.gmra.mrb[0].mxu0 %v3491
  %v3834 = vpop.f32.mrb[0].mxu0
  %v3835 = vadd.f32 %v3758, %v3834
  %v3836 = vpop.f32.mrb[0].mxu0
  %v3837 = vpop.f32.mrb[0].mxu0
  %v3838 = vadd.f32 %v3758, %v3837
  %v3839 = vpop.f32.mrb[0].mxu0
  %3840 = vmatprep.mubr.bf16.mxu0 0
  %3841 = vmatmul.mubr.bf16.gmra.mrb[0].mxu0 %v3494
  %v3842 = vpop.f32.mrb[0].mxu0
  %v3843 = vadd.f32 %v3758, %v3842
  %v3844 = vpop.f32.mrb[0].mxu0
  %v3845 = vpop.f32.mrb[0].mxu0
  %v3846 = vadd.f32 %v3758, %v3845
  %v3847 = vpop.f32.mrb[0].mxu0
  %3848 = vmatprep.mubr.bf16.mxu0 0
  %3849 = vmatmul.mubr.bf16.gmra.mrb[0].mxu0 %v3497
  %v3850 = vpop.f32.mrb[0].mxu0
  %v3851 = vadd.f32 %v3758, %v3850
  %v3852 = vpop.f32.mrb[0].mxu0
  %v3853 = vpop.f32.mrb[0].mxu0
  %v3854 = vadd.f32 %v3758, %v3853
  %v3855 = vpop.f32.mrb[0].mxu0
  %3856 = vmatprep.mubr.bf16.mxu0 0
  %3857 = vmatmul.mubr.bf16.gmra.mrb[0].mxu0 %v3500
  %v3858 = vpop.f32.mrb[0].mxu0
  %v3859 = vadd.f32 %v3758, %v3858
  %v3860 = vpop.f32.mrb[0].mxu0
  %v3861 = vpop.f32.mrb[0].mxu0
  %v3862 = vadd.f32 %v3758, %v3861
  %v3863 = vpop.f32.mrb[0].mxu0
  %3864 = vmatprep.mubr.bf16.mxu0 0
  %3865 = vmatmul.mubr.bf16.gmra.mrb[0].mxu0 %v3503
  %v3866 = vpop.f32.mrb[0].mxu0
  %v3867 = vadd.f32 %v3758, %v3866
  %v3868 = vpop.f32.mrb[0].mxu0
  %v3869 = vpop.f32.mrb[0].mxu0
  %v3870 = vadd.f32 %v3758, %v3869
  %v3871 = vpop.f32.mrb[0].mxu0
  %3872 = vmatprep.mubr.bf16.mxu0 0
  %3873 = vmatmul.mubr.bf16.gmra.mrb[0].mxu0 %v3506
  %v3874 = vpop.f32.mrb[0].mxu0
  %v3875 = vadd.f32 %v3758, %v3874
  %v3876 = vpop.f32.mrb[0].mxu0
  %v3877 = vpop.f32.mrb[0].mxu0
  %v3878 = vadd.f32 %v3758, %v3877
  %v3879 = vpop.f32.mrb[0].mxu0
  %3880 = vdwg.mxu0
  %3881 = vxpose.xlu0.b32.start [1/16] %v3681, 128
  %3882 = vxpose.xlu0.b32.cont [2/16] %v3684, 128
  %3883 = vxpose.xlu0.b32.cont [3/16] %v3689, 128
  %3884 = vxpose.xlu0.b32.cont [4/16] %v3692, 128
  %3885 = vxpose.xlu0.b32.cont [5/16] %v3697, 128
  %3886 = vxpose.xlu0.b32.cont [6/16] %v3700, 128
  %3887 = vxpose.xlu0.b32.cont [7/16] %v3705, 128
  %3888 = vxpose.xlu0.b32.cont [8/16] %v3708, 128
  %3889 = vxpose.xlu0.b32.cont [9/16] 0.0, 128
  %3890 = vxpose.xlu0.b32.cont [10/16] 0.0, 128
  %3891 = vxpose.xlu0.b32.cont [11/16] 0.0, 128
  %3892 = vxpose.xlu0.b32.cont [12/16] 0.0, 128
  %3893 = vxpose.xlu0.b32.cont [13/16] 0.0, 128
  %3894 = vxpose.xlu0.b32.cont [14/16] 0.0, 128
  %3895 = vxpose.xlu0.b32.cont [15/16] 0.0, 128
  %3896 = vxpose.xlu0.b32.end [16/16] 0.0, 128
  %v3897 = vpop.trf.xlu0
  %v3898 = vpop.trf.xlu0
  %v3899 = vpop.trf.xlu0
  %v3900 = vpop.trf.xlu0
  %v3901 = vpop.trf.xlu0
  %v3902 = vpop.trf.xlu0
  %v3903 = vpop.trf.xlu0
  %v3904 = vpop.trf.xlu0
  %v3905 = vpop.trf.xlu0
  %v3906 = vpop.trf.xlu0
  %v3907 = vpop.trf.xlu0
  %v3908 = vpop.trf.xlu0
  %v3909 = vpop.trf.xlu0
  %v3910 = vpop.trf.xlu0
  %v3911 = vpop.trf.xlu0
  %v3912 = vpop.trf.xlu0
  %v3913 = vpack.c.bf16 %v3898, %v3897
  %3914 = vst.msk [vmem:[#allocation2] sm:$0xff] %vm79, %v3913
  %v3915 = vpack.c.bf16 %v3822, %v3819
  %v3916 = vpack.c.bf16 %v3830, %v3827
  %v3917 = vpack.c.bf16 %v3838, %v3835
  %v3918 = vpack.c.bf16 %v3846, %v3843
  %3919 = vst.msk [vmem:[#allocation3] sm:$0xff] %vm197, %v3915
  %3920 = vst.msk [vmem:[#allocation3 + $0x8] sm:$0xff] %vm197, %v3916
  %3921 = vst.msk [vmem:[#allocation3 + $0x10] sm:$0xff] %vm197, %v3917
  %3922 = vst.msk [vmem:[#allocation3 + $0x18] sm:$0xff] %vm197, %v3918
  %v3923 = vpack.c.bf16 %v3900, %v3899
  %3925 = vrot.lane.b32.xlu0 %v3923, 64
  %v3926 = vpop.permute.xlu0 %3925
  %3928 = vst.msk [vmem:[#allocation2 + $0x10] sm:$0xff] %vm1065, %v3926
  %3929 = vst.msk [vmem:[#allocation3 + $0x20] sm:$0xff] %vm1067, %v3915
  %3930 = vst.msk [vmem:[#allocation3 + $0x28] sm:$0xff] %vm1067, %v3916
  %3931 = vst.msk [vmem:[#allocation3 + $0x30] sm:$0xff] %vm1067, %v3917
  %3932 = vst.msk [vmem:[#allocation3 + $0x38] sm:$0xff] %vm1067, %v3918
  %v3933 = vpack.c.bf16 %v3902, %v3901
  %3934 = vst.msk [vmem:[#allocation2 + $0x28] sm:$0xff] %vm79, %v3933
  %3935 = vst.msk [vmem:[#allocation3 + $0x40] sm:$0xff] %vm1074, %v3915
  %3936 = vst.msk [vmem:[#allocation3 + $0x48] sm:$0xff] %vm1074, %v3916
  %3937 = vst.msk [vmem:[#allocation3 + $0x50] sm:$0xff] %vm1074, %v3917
  %3938 = vst.msk [vmem:[#allocation3 + $0x58] sm:$0xff] %vm1074, %v3918
  %v3939 = vpack.c.bf16 %v3904, %v3903
  %3941 = vrot.lane.b32.xlu0 %v3939, 64
  %v3942 = vpop.permute.xlu0 %3941
  %3944 = vst.msk [vmem:[#allocation2 + $0x38] sm:$0xff] %vm1065, %v3942
  %3945 = vst.msk [vmem:[#allocation3 + $0x60] sm:$0xff] %vm1085, %v3915
  %3946 = vst.msk [vmem:[#allocation3 + $0x68] sm:$0xff] %vm1085, %v3916
  %3947 = vst.msk [vmem:[#allocation3 + $0x70] sm:$0xff] %vm1085, %v3917
  %3948 = vst.msk [vmem:[#allocation3 + $0x78] sm:$0xff] %vm1085, %v3918
  %3949 = vxpose.xlu0.b32.start [1/16] %v3713, 128
  %3950 = vxpose.xlu0.b32.cont [2/16] %v3716, 128
  %3951 = vxpose.xlu0.b32.cont [3/16] %v3721, 128
  %3952 = vxpose.xlu0.b32.cont [4/16] %v3724, 128
  %3953 = vxpose.xlu0.b32.cont [5/16] %v3729, 128
  %3954 = vxpose.xlu0.b32.cont [6/16] %v3732, 128
  %3955 = vxpose.xlu0.b32.cont [7/16] %v3737, 128
  %3956 = vxpose.xlu0.b32.cont [8/16] %v3740, 128
  %3957 = vxpose.xlu0.b32.cont [9/16] 0.0, 128
  %3958 = vxpose.xlu0.b32.cont [10/16] 0.0, 128
  %3959 = vxpose.xlu0.b32.cont [11/16] 0.0, 128
  %3960 = vxpose.xlu0.b32.cont [12/16] 0.0, 128
  %3961 = vxpose.xlu0.b32.cont [13/16] 0.0, 128
  %3962 = vxpose.xlu0.b32.cont [14/16] 0.0, 128
  %3963 = vxpose.xlu0.b32.cont [15/16] 0.0, 128
  %3964 = vxpose.xlu0.b32.end [16/16] 0.0, 128
  %v3965 = vpop.trf.xlu0
  %v3966 = vpop.trf.xlu0
  %v3967 = vpop.trf.xlu0
  %v3968 = vpop.trf.xlu0
  %v3969 = vpop.trf.xlu0
  %v3970 = vpop.trf.xlu0
  %v3971 = vpop.trf.xlu0
  %v3972 = vpop.trf.xlu0
  %v3973 = vpop.trf.xlu0
  %v3974 = vpop.trf.xlu0
  %v3975 = vpop.trf.xlu0
  %v3976 = vpop.trf.xlu0
  %v3977 = vpop.trf.xlu0
  %v3978 = vpop.trf.xlu0
  %v3979 = vpop.trf.xlu0
  %v3980 = vpop.trf.xlu0
  %v3981 = vpack.c.bf16 %v3966, %v3965
  %3982 = vst.msk [vmem:[%s1123] sm:$0xff] %vm79, %v3981
  %v3983 = vpack.c.bf16 %v3854, %v3851
  %v3984 = vpack.c.bf16 %v3862, %v3859
  %v3985 = vpack.c.bf16 %v3870, %v3867
  %v3986 = vpack.c.bf16 %v3878, %v3875
  %3987 = vst.msk [vmem:[%s1129] sm:$0xff] %vm197, %v3983
  %3988 = vst.msk [vmem:[%s1129 + $0x8] sm:$0xff] %vm197, %v3984
  %3989 = vst.msk [vmem:[%s1129 + $0x10] sm:$0xff] %vm197, %v3985
  %3990 = vst.msk [vmem:[%s1129 + $0x18] sm:$0xff] %vm197, %v3986
  %v3991 = vpack.c.bf16 %v3968, %v3967
  %3993 = vrot.lane.b32.xlu0 %v3991, 64
  %v3994 = vpop.permute.xlu0 %3993
  %3996 = vst.msk [vmem:[%s1123 + $0x10] sm:$0xff] %vm1065, %v3994
  %3997 = vst.msk [vmem:[%s1129 + $0x20] sm:$0xff] %vm1067, %v3983
  %3998 = vst.msk [vmem:[%s1129 + $0x28] sm:$0xff] %vm1067, %v3984
  %3999 = vst.msk [vmem:[%s1129 + $0x30] sm:$0xff] %vm1067, %v3985
  %4000 = vst.msk [vmem:[%s1129 + $0x38] sm:$0xff] %vm1067, %v3986
  %v4001 = vpack.c.bf16 %v3970, %v3969
  %4002 = vst.msk [vmem:[%s1123 + $0x28] sm:$0xff] %vm79, %v4001
  %4003 = vst.msk [vmem:[%s1129 + $0x40] sm:$0xff] %vm1074, %v3983
  %4004 = vst.msk [vmem:[%s1129 + $0x48] sm:$0xff] %vm1074, %v3984
  %4005 = vst.msk [vmem:[%s1129 + $0x50] sm:$0xff] %vm1074, %v3985
  %4006 = vst.msk [vmem:[%s1129 + $0x58] sm:$0xff] %vm1074, %v3986
  %v4007 = vpack.c.bf16 %v3972, %v3971
  %4009 = vrot.lane.b32.xlu0 %v4007, 64
  %v4010 = vpop.permute.xlu0 %4009
  %4012 = vst.msk [vmem:[%s1123 + $0x38] sm:$0xff] %vm1065, %v4010
  %4013 = vst.msk [vmem:[%s1129 + $0x60] sm:$0xff] %vm1085, %v3983
  %4014 = vst.msk [vmem:[%s1129 + $0x68] sm:$0xff] %vm1085, %v3984
  %4015 = vst.msk [vmem:[%s1129 + $0x70] sm:$0xff] %vm1085, %v3985
  %4016 = vst.msk [vmem:[%s1129 + $0x78] sm:$0xff] %vm1085, %v3986
  %v4017 = vpack.c.bf16 %v3546, %v3543
  %v4018 = vpack.c.bf16 %v3554, %v3551
  %v4019 = vpack.c.bf16 %v3562, %v3559
  %v4020 = vpack.c.bf16 %v3570, %v3567
  %v4021 = vld [vmem:[#allocation2] sm:$0xff]
  %v4022 = vld [vmem:[#allocation2 + $0x8] sm:$0xff]
  %v4023 = vld [vmem:[#allocation2 + $0x10] sm:$0xff]
  %v4024 = vld [vmem:[#allocation2 + $0x18] sm:$0xff]
  %v4025 = vld [vmem:[#allocation2 + $0x20] sm:$0xff]
  %v4026 = vld [vmem:[#allocation2 + $0x28] sm:$0xff]
  %v4027 = vld [vmem:[#allocation2 + $0x30] sm:$0xff]
  %v4028 = vld [vmem:[#allocation2 + $0x38] sm:$0xff]
  %v4030 = vsel %vm79, %v4017, 0
  %v4033 = vsel %vm79, %v4018, 0
  %v4036 = vsel %vm79, %v4019, 0
  %v4039 = vsel %vm79, %v4020, 0
  %4041 = vmatprep.subr.bf16.mxu0 %v4022
  %4042 = vmatpush1.bf16.msra.mxu0 %v4021
  %4043 = vmatprep.subr.bf16.mxu0 %v4024
  %4044 = vmatpush1.bf16.msra.mxu0 %v4023
  %4045 = vmatprep.subr.bf16.mxu0 %v4026
  %4046 = vmatpush1.bf16.msra.mxu0 %v4025
  %4047 = vmatprep.subr.bf16.mxu0 %v4028
  %4048 = vmatpush1.bf16.msra.mxu0 %v4027
  %4049 = vmatprep.subr.bf16.mxu0 0
  %4050 = vmatpush1.bf16.msra.mxu0 0
  %4051 = vmatprep.subr.bf16.mxu0 0
  %4052 = vmatpush1.bf16.msra.mxu0 0
  %4053 = vmatprep.subr.bf16.mxu0 0
  %4054 = vmatpush1.bf16.msra.mxu0 0
  %4055 = vmatprep.subr.bf16.mxu0 0
  %4056 = vmatpush1.bf16.msra.mxu0 0
  %4057 = vmatprep.subr.bf16.mxu0 0
  %4058 = vmatpush1.bf16.msra.mxu0 0
  %4059 = vmatprep.subr.bf16.mxu0 0
  %4060 = vmatpush1.bf16.msra.mxu0 0
  %4061 = vmatprep.subr.bf16.mxu0 0
  %4062 = vmatpush1.bf16.msra.mxu0 0
  %4063 = vmatprep.subr.bf16.mxu0 0
  %4064 = vmatpush1.bf16.msra.mxu0 0
  %4065 = vmatprep.subr.bf16.mxu0 0
  %4066 = vmatpush1.bf16.msra.mxu0 0
  %4067 = vmatprep.subr.bf16.mxu0 0
  %4068 = vmatpush1.bf16.msra.mxu0 0
  %4069 = vmatprep.subr.bf16.mxu0 0
  %4070 = vmatpush1.bf16.msra.mxu0 0
  %4071 = vmatprep.subr.bf16.mxu0 0
  %4072 = vmatpush1.bf16.msra.mxu0 0
  %4073 = vmatprep.mubr.bf16.mxu0 0
  %4074 = vmatmul.mubr.bf16.gmra.mrb[0].mxu0 %v4030
  %v4075 = vpop.f32.mrb[0].mxu0
  %v4076 = vadd.f32 0.0, %v4075
  %v4077 = vpop.f32.mrb[0].mxu0
  %v4078 = vadd.f32 0.0, %v4077
  %v4079 = vpop.f32.mrb[0].mxu0
  %v4080 = vadd.f32 0.0, %v4079
  %v4081 = vpop.f32.mrb[0].mxu0
  %v4082 = vadd.f32 0.0, %v4081
  %4083 = vmatprep.mubr.bf16.mxu0 0
  %4084 = vmatmul.mubr.bf16.gmra.mrb[0].mxu0 %v4033
  %v4085 = vpop.f32.mrb[0].mxu0
  %v4086 = vadd.f32 0.0, %v4085
  %v4087 = vpop.f32.mrb[0].mxu0
  %v4088 = vadd.f32 0.0, %v4087
  %v4089 = vpop.f32.mrb[0].mxu0
  %v4090 = vadd.f32 0.0, %v4089
  %v4091 = vpop.f32.mrb[0].mxu0
  %v4092 = vadd.f32 0.0, %v4091
  %4093 = vmatprep.mubr.bf16.mxu0 0
  %4094 = vmatmul.mubr.bf16.gmra.mrb[0].mxu0 %v4036
  %v4095 = vpop.f32.mrb[0].mxu0
  %v4096 = vadd.f32 0.0, %v4095
  %v4097 = vpop.f32.mrb[0].mxu0
  %v4098 = vadd.f32 0.0, %v4097
  %v4099 = vpop.f32.mrb[0].mxu0
  %v4100 = vadd.f32 0.0, %v4099
  %v4101 = vpop.f32.mrb[0].mxu0
  %v4102 = vadd.f32 0.0, %v4101
  %4103 = vmatprep.mubr.bf16.mxu0 0
  %4104 = vmatmul.mubr.bf16.gmra.mrb[0].mxu0 %v4039
  %v4105 = vpop.f32.mrb[0].mxu0
  %v4106 = vadd.f32 0.0, %v4105
  %v4107 = vpop.f32.mrb[0].mxu0
  %v4108 = vadd.f32 0.0, %v4107
  %v4109 = vpop.f32.mrb[0].mxu0
  %v4110 = vadd.f32 0.0, %v4109
  %v4111 = vpop.f32.mrb[0].mxu0
  %v4112 = vadd.f32 0.0, %v4111
  %4113 = vdwg.mxu0
  %v4114 = vmax.f32 %v4076, %v4078
  %4115 = vmax.xlane.f32.xlu0 %v4114
  %v4116 = vpop.xlane.xlu0 %4115
  %v4117 = vmax.f32 %v4080, %v4082
  %4118 = vmax.xlane.f32.xlu0 %v4117
  %v4119 = vpop.xlane.xlu0 %4118
  %v4120 = vmax.f32 %v4086, %v4088
  %4121 = vmax.xlane.f32.xlu0 %v4120
  %v4122 = vpop.xlane.xlu0 %4121
  %v4123 = vmax.f32 %v4090, %v4092
  %4124 = vmax.xlane.f32.xlu0 %v4123
  %v4125 = vpop.xlane.xlu0 %4124
  %v4126 = vmax.f32 %v4096, %v4098
  %4127 = vmax.xlane.f32.xlu0 %v4126
  %v4128 = vpop.xlane.xlu0 %4127
  %v4129 = vmax.f32 %v4100, %v4102
  %4130 = vmax.xlane.f32.xlu0 %v4129
  %v4131 = vpop.xlane.xlu0 %4130
  %v4132 = vmax.f32 %v4106, %v4108
  %4133 = vmax.xlane.f32.xlu0 %v4132
  %v4134 = vpop.xlane.xlu0 %4133
  %v4135 = vmax.f32 %v4110, %v4112
  %4136 = vmax.xlane.f32.xlu0 %v4135
  %v4137 = vpop.xlane.xlu0 %4136
  %v4138 = vsub.f32 %v4076, %v4116
  %v4139 = vsub.f32 %v4078, %v4116
  %v4140 = vsub.f32 %v4080, %v4119
  %v4141 = vsub.f32 %v4082, %v4119
  %v4142 = vsub.f32 %v4086, %v4122
  %v4143 = vsub.f32 %v4088, %v4122
  %v4144 = vsub.f32 %v4090, %v4125
  %v4145 = vsub.f32 %v4092, %v4125
  %v4146 = vsub.f32 %v4096, %v4128
  %v4147 = vsub.f32 %v4098, %v4128
  %v4148 = vsub.f32 %v4100, %v4131
  %v4149 = vsub.f32 %v4102, %v4131
  %v4150 = vsub.f32 %v4106, %v4134
  %v4151 = vsub.f32 %v4108, %v4134
  %v4152 = vsub.f32 %v4110, %v4137
  %v4153 = vsub.f32 %v4112, %v4137
  %v4154 = vmul.f32 %v4138, 1.442695
  %v4155 = vpow.pop %v4154
  %v4156 = vmul.f32 %v4139, 1.442695
  %v4157 = vpow.pop %v4156
  %v4158 = vmul.f32 %v4140, 1.442695
  %v4159 = vpow.pop %v4158
  %v4160 = vmul.f32 %v4141, 1.442695
  %v4161 = vpow.pop %v4160
  %v4162 = vmul.f32 %v4142, 1.442695
  %v4163 = vpow.pop %v4162
  %v4164 = vmul.f32 %v4143, 1.442695
  %v4165 = vpow.pop %v4164
  %v4166 = vmul.f32 %v4144, 1.442695
  %v4167 = vpow.pop %v4166
  %v4168 = vmul.f32 %v4145, 1.442695
  %v4169 = vpow.pop %v4168
  %v4170 = vmul.f32 %v4146, 1.442695
  %v4171 = vpow.pop %v4170
  %v4172 = vmul.f32 %v4147, 1.442695
  %v4173 = vpow.pop %v4172
  %v4174 = vmul.f32 %v4148, 1.442695
  %v4175 = vpow.pop %v4174
  %v4176 = vmul.f32 %v4149, 1.442695
  %v4177 = vpow.pop %v4176
  %v4178 = vmul.f32 %v4150, 1.442695
  %v4179 = vpow.pop %v4178
  %v4180 = vmul.f32 %v4151, 1.442695
  %v4181 = vpow.pop %v4180
  %v4182 = vmul.f32 %v4152, 1.442695
  %v4183 = vpow.pop %v4182
  %v4184 = vmul.f32 %v4153, 1.442695
  %v4185 = vpow.pop %v4184
  %v4186 = vpack.c.bf16 %v4159, %v4155
  %v4187 = vpack.c.bf16 %v4161, %v4157
  %v4188 = vpack.c.bf16 %v4167, %v4163
  %v4189 = vpack.c.bf16 %v4169, %v4165
  %v4190 = vpack.c.bf16 %v4175, %v4171
  %v4191 = vpack.c.bf16 %v4177, %v4173
  %v4192 = vpack.c.bf16 %v4183, %v4179
  %v4193 = vpack.c.bf16 %v4185, %v4181
  %v4194 = vld [vmem:[#allocation3] sm:$0xff]
  %v4195 = vld [vmem:[#allocation3 + $0x8] sm:$0xff]
  %v4196 = vld [vmem:[#allocation3 + $0x10] sm:$0xff]
  %v4197 = vld [vmem:[#allocation3 + $0x18] sm:$0xff]
  %v4198 = vld [vmem:[#allocation3 + $0x20] sm:$0xff]
  %v4199 = vld [vmem:[#allocation3 + $0x28] sm:$0xff]
  %v4200 = vld [vmem:[#allocation3 + $0x30] sm:$0xff]
  %v4201 = vld [vmem:[#allocation3 + $0x38] sm:$0xff]
  %v4202 = vld [vmem:[#allocation3 + $0x40] sm:$0xff]
  %v4203 = vld [vmem:[#allocation3 + $0x48] sm:$0xff]
  %v4204 = vld [vmem:[#allocation3 + $0x50] sm:$0xff]
  %v4205 = vld [vmem:[#allocation3 + $0x58] sm:$0xff]
  %v4206 = vld [vmem:[#allocation3 + $0x60] sm:$0xff]
  %v4207 = vld [vmem:[#allocation3 + $0x68] sm:$0xff]
  %v4208 = vld [vmem:[#allocation3 + $0x70] sm:$0xff]
  %v4209 = vld [vmem:[#allocation3 + $0x78] sm:$0xff]
  %4210 = vmatprep.subr.bf16.mxu0 0
  %4211 = vmatpush1.bf16.msra.mxu0 %v4194
  %4212 = vmatprep.subr.bf16.mxu0 0
  %4213 = vmatpush1.bf16.msra.mxu0 %v4195
  %4214 = vmatprep.subr.bf16.mxu0 0
  %4215 = vmatpush1.bf16.msra.mxu0 %v4196
  %4216 = vmatprep.subr.bf16.mxu0 0
  %4217 = vmatpush1.bf16.msra.mxu0 %v4197
  %4218 = vmatprep.subr.bf16.mxu0 0
  %4219 = vmatpush1.bf16.msra.mxu0 %v4198
  %4220 = vmatprep.subr.bf16.mxu0 0
  %4221 = vmatpush1.bf16.msra.mxu0 %v4199
  %4222 = vmatprep.subr.bf16.mxu0 0
  %4223 = vmatpush1.bf16.msra.mxu0 %v4200
  %4224 = vmatprep.subr.bf16.mxu0 0
  %4225 = vmatpush1.bf16.msra.mxu0 %v4201
  %4226 = vmatprep.subr.bf16.mxu0 0
  %4227 = vmatpush1.bf16.msra.mxu0 %v4202
  %4228 = vmatprep.subr.bf16.mxu0 0
  %4229 = vmatpush1.bf16.msra.mxu0 %v4203
  %4230 = vmatprep.subr.bf16.mxu0 0
  %4231 = vmatpush1.bf16.msra.mxu0 %v4204
  %4232 = vmatprep.subr.bf16.mxu0 0
  %4233 = vmatpush1.bf16.msra.mxu0 %v4205
  %4234 = vmatprep.subr.bf16.mxu0 0
  %4235 = vmatpush1.bf16.msra.mxu0 %v4206
  %4236 = vmatprep.subr.bf16.mxu0 0
  %4237 = vmatpush1.bf16.msra.mxu0 %v4207
  %4238 = vmatprep.subr.bf16.mxu0 0
  %4239 = vmatpush1.bf16.msra.mxu0 %v4208
  %4240 = vmatprep.subr.bf16.mxu0 0
  %4241 = vmatpush1.bf16.msra.mxu0 %v4209
  %4242 = vmatprep.mubr.bf16.mxu0 %v4187
  %4243 = vmatmul.mubr.bf16.gmra.mrb[0].mxu0 %v4186
  %v4244 = vpop.f32.mrb[0].mxu0
  %v4245 = vadd.f32 0.0, %v4244
  %v4246 = vpop.f32.mrb[0].mxu0
  %v4247 = vpop.f32.mrb[0].mxu0
  %v4248 = vadd.f32 0.0, %v4247
  %v4249 = vpop.f32.mrb[0].mxu0
  %4250 = vmatprep.mubr.bf16.mxu0 %v4189
  %4251 = vmatmul.mubr.bf16.gmra.mrb[0].mxu0 %v4188
  %v4252 = vpop.f32.mrb[0].mxu0
  %v4253 = vadd.f32 0.0, %v4252
  %v4254 = vpop.f32.mrb[0].mxu0
  %v4255 = vpop.f32.mrb[0].mxu0
  %v4256 = vadd.f32 0.0, %v4255
  %v4257 = vpop.f32.mrb[0].mxu0
  %4258 = vmatprep.mubr.bf16.mxu0 %v4191
  %4259 = vmatmul.mubr.bf16.gmra.mrb[0].mxu0 %v4190
  %v4260 = vpop.f32.mrb[0].mxu0
  %v4261 = vadd.f32 0.0, %v4260
  %v4262 = vpop.f32.mrb[0].mxu0
  %v4263 = vpop.f32.mrb[0].mxu0
  %v4264 = vadd.f32 0.0, %v4263
  %v4265 = vpop.f32.mrb[0].mxu0
  %4266 = vmatprep.mubr.bf16.mxu0 %v4193
  %4267 = vmatmul.mubr.bf16.gmra.mrb[0].mxu0 %v4192
  %v4268 = vpop.f32.mrb[0].mxu0
  %v4269 = vadd.f32 0.0, %v4268
  %v4270 = vpop.f32.mrb[0].mxu0
  %v4271 = vpop.f32.mrb[0].mxu0
  %v4272 = vadd.f32 0.0, %v4271
  %v4273 = vpop.f32.mrb[0].mxu0
  %4274 = vdwg.mxu0
  %4275 = vmatprep.subr.bf16.mxu0 0
  %4276 = vmatpush1.bf16.msra.mxu0 %v1482
  %4277 = vmatprep.subr.bf16.mxu0 0
  %4278 = vmatpush1.bf16.msra.mxu0 %v1483
  %4279 = vmatprep.subr.bf16.mxu0 0
  %4280 = vmatpush1.bf16.msra.mxu0 %v1484
  %4281 = vmatprep.subr.bf16.mxu0 0
  %4282 = vmatpush1.bf16.msra.mxu0 %v1485
  %4283 = vmatprep.subr.bf16.mxu0 0
  %4284 = vmatpush1.bf16.msra.mxu0 %v1486
  %4285 = vmatprep.subr.bf16.mxu0 0
  %4286 = vmatpush1.bf16.msra.mxu0 %v1487
  %4287 = vmatprep.subr.bf16.mxu0 0
  %4288 = vmatpush1.bf16.msra.mxu0 %v1488
  %4289 = vmatprep.subr.bf16.mxu0 0
  %4290 = vmatpush1.bf16.msra.mxu0 %v1489
  %4291 = vmatprep.subr.bf16.mxu0 0
  %4292 = vmatpush1.bf16.msra.mxu0 %v1490
  %4293 = vmatprep.subr.bf16.mxu0 0
  %4294 = vmatpush1.bf16.msra.mxu0 %v1491
  %4295 = vmatprep.subr.bf16.mxu0 0
  %4296 = vmatpush1.bf16.msra.mxu0 %v1492
  %4297 = vmatprep.subr.bf16.mxu0 0
  %4298 = vmatpush1.bf16.msra.mxu0 %v1493
  %4299 = vmatprep.subr.bf16.mxu0 0
  %4300 = vmatpush1.bf16.msra.mxu0 %v1494
  %4301 = vmatprep.subr.bf16.mxu0 0
  %4302 = vmatpush1.bf16.msra.mxu0 %v1495
  %4303 = vmatprep.subr.bf16.mxu0 0
  %4304 = vmatpush1.bf16.msra.mxu0 %v1496
  %4305 = vmatprep.subr.bf16.mxu0 0
  %4306 = vmatpush1.bf16.msra.mxu0 %v1497
  %4307 = vmatprep.mubr.bf16.mxu0 %v4187
  %4308 = vmatmul.mubr.bf16.gmra.mrb[0].mxu0 %v4186
  %v4309 = vpop.f32.mrb[0].mxu0
  %v4310 = vadd.f32 0.0, %v4309
  %v4311 = vpop.f32.mrb[0].mxu0
  %v4312 = vpop.f32.mrb[0].mxu0
  %v4313 = vadd.f32 0.0, %v4312
  %v4314 = vpop.f32.mrb[0].mxu0
  %4315 = vmatprep.mubr.bf16.mxu0 %v4189
  %4316 = vmatmul.mubr.bf16.gmra.mrb[0].mxu0 %v4188
  %v4317 = vpop.f32.mrb[0].mxu0
  %v4318 = vadd.f32 0.0, %v4317
  %v4319 = vpop.f32.mrb[0].mxu0
  %v4320 = vpop.f32.mrb[0].mxu0
  %v4321 = vadd.f32 0.0, %v4320
  %v4322 = vpop.f32.mrb[0].mxu0
  %4323 = vmatprep.mubr.bf16.mxu0 %v4191
  %4324 = vmatmul.mubr.bf16.gmra.mrb[0].mxu0 %v4190
  %v4325 = vpop.f32.mrb[0].mxu0
  %v4326 = vadd.f32 0.0, %v4325
  %v4327 = vpop.f32.mrb[0].mxu0
  %v4328 = vpop.f32.mrb[0].mxu0
  %v4329 = vadd.f32 0.0, %v4328
  %v4330 = vpop.f32.mrb[0].mxu0
  %4331 = vmatprep.mubr.bf16.mxu0 %v4193
  %4332 = vmatmul.mubr.bf16.gmra.mrb[0].mxu0 %v4192
  %v4333 = vpop.f32.mrb[0].mxu0
  %v4334 = vadd.f32 0.0, %v4333
  %v4335 = vpop.f32.mrb[0].mxu0
  %v4336 = vpop.f32.mrb[0].mxu0
  %v4337 = vadd.f32 0.0, %v4336
  %v4338 = vpop.f32.mrb[0].mxu0
  %4339 = vdwg.mxu0
  %v4340 = vrcp.pop %v4310
  %v4341 = vrcp.pop %v4313
  %v4342 = vrcp.pop %v4318
  %v4343 = vrcp.pop %v4321
  %v4344 = vrcp.pop %v4326
  %v4345 = vrcp.pop %v4329
  %v4346 = vrcp.pop %v4334
  %v4347 = vrcp.pop %v4337
  %v4348 = vmul.f32 %v4245, %v4340
  %v4349 = vmul.f32 %v4248, %v4341
  %v4350 = vmul.f32 %v4253, %v4342
  %v4351 = vmul.f32 %v4256, %v4343
  %v4352 = vmul.f32 %v4261, %v4344
  %v4353 = vmul.f32 %v4264, %v4345
  %v4354 = vmul.f32 %v4269, %v4346
  %v4355 = vmul.f32 %v4272, %v4347
  %v4356 = vpack.c.bf16 %v3578, %v3575
  %v4357 = vpack.c.bf16 %v3586, %v3583
  %v4358 = vpack.c.bf16 %v3594, %v3591
  %v4359 = vpack.c.bf16 %v3602, %v3599
  %v4360 = vld [vmem:[%s1123] sm:$0xff]
  %v4361 = vld [vmem:[%s1123 + $0x8] sm:$0xff]
  %v4362 = vld [vmem:[%s1123 + $0x10] sm:$0xff]
  %v4363 = vld [vmem:[%s1123 + $0x18] sm:$0xff]
  %v4364 = vld [vmem:[%s1123 + $0x20] sm:$0xff]
  %v4365 = vld [vmem:[%s1123 + $0x28] sm:$0xff]
  %v4366 = vld [vmem:[%s1123 + $0x30] sm:$0xff]
  %v4367 = vld [vmem:[%s1123 + $0x38] sm:$0xff]
  %v4369 = vsel %vm79, %v4356, 0
  %v4372 = vsel %vm79, %v4357, 0
  %v4375 = vsel %vm79, %v4358, 0
  %v4378 = vsel %vm79, %v4359, 0
  %4380 = vmatprep.subr.bf16.mxu0 %v4361
  %4381 = vmatpush1.bf16.msra.mxu0 %v4360
  %4382 = vmatprep.subr.bf16.mxu0 %v4363
  %4383 = vmatpush1.bf16.msra.mxu0 %v4362
  %4384 = vmatprep.subr.bf16.mxu0 %v4365
  %4385 = vmatpush1.bf16.msra.mxu0 %v4364
  %4386 = vmatprep.subr.bf16.mxu0 %v4367
  %4387 = vmatpush1.bf16.msra.mxu0 %v4366
  %4388 = vmatprep.subr.bf16.mxu0 0
  %4389 = vmatpush1.bf16.msra.mxu0 0
  %4390 = vmatprep.subr.bf16.mxu0 0
  %4391 = vmatpush1.bf16.msra.mxu0 0
  %4392 = vmatprep.subr.bf16.mxu0 0
  %4393 = vmatpush1.bf16.msra.mxu0 0
  %4394 = vmatprep.subr.bf16.mxu0 0
  %4395 = vmatpush1.bf16.msra.mxu0 0
  %4396 = vmatprep.subr.bf16.mxu0 0
  %4397 = vmatpush1.bf16.msra.mxu0 0
  %4398 = vmatprep.subr.bf16.mxu0 0
  %4399 = vmatpush1.bf16.msra.mxu0 0
  %4400 = vmatprep.subr.bf16.mxu0 0
  %4401 = vmatpush1.bf16.msra.mxu0 0
  %4402 = vmatprep.subr.bf16.mxu0 0
  %4403 = vmatpush1.bf16.msra.mxu0 0
  %4404 = vmatprep.subr.bf16.mxu0 0
  %4405 = vmatpush1.bf16.msra.mxu0 0
  %4406 = vmatprep.subr.bf16.mxu0 0
  %4407 = vmatpush1.bf16.msra.mxu0 0
  %4408 = vmatprep.subr.bf16.mxu0 0
  %4409 = vmatpush1.bf16.msra.mxu0 0
  %4410 = vmatprep.subr.bf16.mxu0 0
  %4411 = vmatpush1.bf16.msra.mxu0 0
  %4412 = vmatprep.mubr.bf16.mxu0 0
  %4413 = vmatmul.mubr.bf16.gmra.mrb[0].mxu0 %v4369
  %v4414 = vpop.f32.mrb[0].mxu0
  %v4415 = vadd.f32 0.0, %v4414
  %v4416 = vpop.f32.mrb[0].mxu0
  %v4417 = vadd.f32 0.0, %v4416
  %v4418 = vpop.f32.mrb[0].mxu0
  %v4419 = vadd.f32 0.0, %v4418
  %v4420 = vpop.f32.mrb[0].mxu0
  %v4421 = vadd.f32 0.0, %v4420
  %4422 = vmatprep.mubr.bf16.mxu0 0
  %4423 = vmatmul.mubr.bf16.gmra.mrb[0].mxu0 %v4372
  %v4424 = vpop.f32.mrb[0].mxu0
  %v4425 = vadd.f32 0.0, %v4424
  %v4426 = vpop.f32.mrb[0].mxu0
  %v4427 = vadd.f32 0.0, %v4426
  %v4428 = vpop.f32.mrb[0].mxu0
  %v4429 = vadd.f32 0.0, %v4428
  %v4430 = vpop.f32.mrb[0].mxu0
  %v4431 = vadd.f32 0.0, %v4430
  %4432 = vmatprep.mubr.bf16.mxu0 0
  %4433 = vmatmul.mubr.bf16.gmra.mrb[0].mxu0 %v4375
  %v4434 = vpop.f32.mrb[0].mxu0
  %v4435 = vadd.f32 0.0, %v4434
  %v4436 = vpop.f32.mrb[0].mxu0
  %v4437 = vadd.f32 0.0, %v4436
  %v4438 = vpop.f32.mrb[0].mxu0
  %v4439 = vadd.f32 0.0, %v4438
  %v4440 = vpop.f32.mrb[0].mxu0
  %v4441 = vadd.f32 0.0, %v4440
  %4442 = vmatprep.mubr.bf16.mxu0 0
  %4443 = vmatmul.mubr.bf16.gmra.mrb[0].mxu0 %v4378
  %v4444 = vpop.f32.mrb[0].mxu0
  %v4445 = vadd.f32 0.0, %v4444
  %v4446 = vpop.f32.mrb[0].mxu0
  %v4447 = vadd.f32 0.0, %v4446
  %v4448 = vpop.f32.mrb[0].mxu0
  %v4449 = vadd.f32 0.0, %v4448
  %v4450 = vpop.f32.mrb[0].mxu0
  %v4451 = vadd.f32 0.0, %v4450
  %4452 = vdwg.mxu0
  %v4453 = vmax.f32 %v4415, %v4417
  %4454 = vmax.xlane.f32.xlu0 %v4453
  %v4455 = vpop.xlane.xlu0 %4454
  %v4456 = vmax.f32 %v4419, %v4421
  %4457 = vmax.xlane.f32.xlu0 %v4456
  %v4458 = vpop.xlane.xlu0 %4457
  %v4459 = vmax.f32 %v4425, %v4427
  %4460 = vmax.xlane.f32.xlu0 %v4459
  %v4461 = vpop.xlane.xlu0 %4460
  %v4462 = vmax.f32 %v4429, %v4431
  %4463 = vmax.xlane.f32.xlu0 %v4462
  %v4464 = vpop.xlane.xlu0 %4463
  %v4465 = vmax.f32 %v4435, %v4437
  %4466 = vmax.xlane.f32.xlu0 %v4465
  %v4467 = vpop.xlane.xlu0 %4466
  %v4468 = vmax.f32 %v4439, %v4441
  %4469 = vmax.xlane.f32.xlu0 %v4468
  %v4470 = vpop.xlane.xlu0 %4469
  %v4471 = vmax.f32 %v4445, %v4447
  %4472 = vmax.xlane.f32.xlu0 %v4471
  %v4473 = vpop.xlane.xlu0 %4472
  %v4474 = vmax.f32 %v4449, %v4451
  %4475 = vmax.xlane.f32.xlu0 %v4474
  %v4476 = vpop.xlane.xlu0 %4475
  %v4477 = vsub.f32 %v4415, %v4455
  %v4478 = vsub.f32 %v4417, %v4455
  %v4479 = vsub.f32 %v4419, %v4458
  %v4480 = vsub.f32 %v4421, %v4458
  %v4481 = vsub.f32 %v4425, %v4461
  %v4482 = vsub.f32 %v4427, %v4461
  %v4483 = vsub.f32 %v4429, %v4464
  %v4484 = vsub.f32 %v4431, %v4464
  %v4485 = vsub.f32 %v4435, %v4467
  %v4486 = vsub.f32 %v4437, %v4467
  %v4487 = vsub.f32 %v4439, %v4470
  %v4488 = vsub.f32 %v4441, %v4470
  %v4489 = vsub.f32 %v4445, %v4473
  %v4490 = vsub.f32 %v4447, %v4473
  %v4491 = vsub.f32 %v4449, %v4476
  %v4492 = vsub.f32 %v4451, %v4476
  %v4493 = vmul.f32 %v4477, 1.442695
  %v4494 = vpow.pop %v4493
  %v4495 = vmul.f32 %v4478, 1.442695
  %v4496 = vpow.pop %v4495
  %v4497 = vmul.f32 %v4479, 1.442695
  %v4498 = vpow.pop %v4497
  %v4499 = vmul.f32 %v4480, 1.442695
  %v4500 = vpow.pop %v4499
  %v4501 = vmul.f32 %v4481, 1.442695
  %v4502 = vpow.pop %v4501
  %v4503 = vmul.f32 %v4482, 1.442695
  %v4504 = vpow.pop %v4503
  %v4505 = vmul.f32 %v4483, 1.442695
  %v4506 = vpow.pop %v4505
  %v4507 = vmul.f32 %v4484, 1.442695
  %v4508 = vpow.pop %v4507
  %v4509 = vmul.f32 %v4485, 1.442695
  %v4510 = vpow.pop %v4509
  %v4511 = vmul.f32 %v4486, 1.442695
  %v4512 = vpow.pop %v4511
  %v4513 = vmul.f32 %v4487, 1.442695
  %v4514 = vpow.pop %v4513
  %v4515 = vmul.f32 %v4488, 1.442695
  %v4516 = vpow.pop %v4515
  %v4517 = vmul.f32 %v4489, 1.442695
  %v4518 = vpow.pop %v4517
  %v4519 = vmul.f32 %v4490, 1.442695
  %v4520 = vpow.pop %v4519
  %v4521 = vmul.f32 %v4491, 1.442695
  %v4522 = vpow.pop %v4521
  %v4523 = vmul.f32 %v4492, 1.442695
  %v4524 = vpow.pop %v4523
  %v4525 = vpack.c.bf16 %v4498, %v4494
  %v4526 = vpack.c.bf16 %v4500, %v4496
  %v4527 = vpack.c.bf16 %v4506, %v4502
  %v4528 = vpack.c.bf16 %v4508, %v4504
  %v4529 = vpack.c.bf16 %v4514, %v4510
  %v4530 = vpack.c.bf16 %v4516, %v4512
  %v4531 = vpack.c.bf16 %v4522, %v4518
  %v4532 = vpack.c.bf16 %v4524, %v4520
  %v4533 = vld [vmem:[%s1129] sm:$0xff]
  %v4534 = vld [vmem:[%s1129 + $0x8] sm:$0xff]
  %v4535 = vld [vmem:[%s1129 + $0x10] sm:$0xff]
  %v4536 = vld [vmem:[%s1129 + $0x18] sm:$0xff]
  %v4537 = vld [vmem:[%s1129 + $0x20] sm:$0xff]
  %v4538 = vld [vmem:[%s1129 + $0x28] sm:$0xff]
  %v4539 = vld [vmem:[%s1129 + $0x30] sm:$0xff]
  %v4540 = vld [vmem:[%s1129 + $0x38] sm:$0xff]
  %v4541 = vld [vmem:[%s1129 + $0x40] sm:$0xff]
  %v4542 = vld [vmem:[%s1129 + $0x48] sm:$0xff]
  %v4543 = vld [vmem:[%s1129 + $0x50] sm:$0xff]
  %v4544 = vld [vmem:[%s1129 + $0x58] sm:$0xff]
  %v4545 = vld [vmem:[%s1129 + $0x60] sm:$0xff]
  %v4546 = vld [vmem:[%s1129 + $0x68] sm:$0xff]
  %v4547 = vld [vmem:[%s1129 + $0x70] sm:$0xff]
  %v4548 = vld [vmem:[%s1129 + $0x78] sm:$0xff]
  %4549 = vmatprep.subr.bf16.mxu0 0
  %4550 = vmatpush1.bf16.msra.mxu0 %v4533
  %4551 = vmatprep.subr.bf16.mxu0 0
  %4552 = vmatpush1.bf16.msra.mxu0 %v4534
  %4553 = vmatprep.subr.bf16.mxu0 0
  %4554 = vmatpush1.bf16.msra.mxu0 %v4535
  %4555 = vmatprep.subr.bf16.mxu0 0
  %4556 = vmatpush1.bf16.msra.mxu0 %v4536
  %4557 = vmatprep.subr.bf16.mxu0 0
  %4558 = vmatpush1.bf16.msra.mxu0 %v4537
  %4559 = vmatprep.subr.bf16.mxu0 0
  %4560 = vmatpush1.bf16.msra.mxu0 %v4538
  %4561 = vmatprep.subr.bf16.mxu0 0
  %4562 = vmatpush1.bf16.msra.mxu0 %v4539
  %4563 = vmatprep.subr.bf16.mxu0 0
  %4564 = vmatpush1.bf16.msra.mxu0 %v4540
  %4565 = vmatprep.subr.bf16.mxu0 0
  %4566 = vmatpush1.bf16.msra.mxu0 %v4541
  %4567 = vmatprep.subr.bf16.mxu0 0
  %4568 = vmatpush1.bf16.msra.mxu0 %v4542
  %4569 = vmatprep.subr.bf16.mxu0 0
  %4570 = vmatpush1.bf16.msra.mxu0 %v4543
  %4571 = vmatprep.subr.bf16.mxu0 0
  %4572 = vmatpush1.bf16.msra.mxu0 %v4544
  %4573 = vmatprep.subr.bf16.mxu0 0
  %4574 = vmatpush1.bf16.msra.mxu0 %v4545
  %4575 = vmatprep.subr.bf16.mxu0 0
  %4576 = vmatpush1.bf16.msra.mxu0 %v4546
  %4577 = vmatprep.subr.bf16.mxu0 0
  %4578 = vmatpush1.bf16.msra.mxu0 %v4547
  %4579 = vmatprep.subr.bf16.mxu0 0
  %4580 = vmatpush1.bf16.msra.mxu0 %v4548
  %4581 = vmatprep.mubr.bf16.mxu0 %v4526
  %4582 = vmatmul.mubr.bf16.gmra.mrb[0].mxu0 %v4525
  %v4583 = vpop.f32.mrb[0].mxu0
  %v4584 = vadd.f32 0.0, %v4583
  %v4585 = vpop.f32.mrb[0].mxu0
  %v4586 = vpop.f32.mrb[0].mxu0
  %v4587 = vadd.f32 0.0, %v4586
  %v4588 = vpop.f32.mrb[0].mxu0
  %4589 = vmatprep.mubr.bf16.mxu0 %v4528
  %4590 = vmatmul.mubr.bf16.gmra.mrb[0].mxu0 %v4527
  %v4591 = vpop.f32.mrb[0].mxu0
  %v4592 = vadd.f32 0.0, %v4591
  %v4593 = vpop.f32.mrb[0].mxu0
  %v4594 = vpop.f32.mrb[0].mxu0
  %v4595 = vadd.f32 0.0, %v4594
  %v4596 = vpop.f32.mrb[0].mxu0
  %4597 = vmatprep.mubr.bf16.mxu0 %v4530
  %4598 = vmatmul.mubr.bf16.gmra.mrb[0].mxu0 %v4529
  %v4599 = vpop.f32.mrb[0].mxu0
  %v4600 = vadd.f32 0.0, %v4599
  %v4601 = vpop.f32.mrb[0].mxu0
  %v4602 = vpop.f32.mrb[0].mxu0
  %v4603 = vadd.f32 0.0, %v4602
  %v4604 = vpop.f32.mrb[0].mxu0
  %4605 = vmatprep.mubr.bf16.mxu0 %v4532
  %4606 = vmatmul.mubr.bf16.gmra.mrb[0].mxu0 %v4531
  %v4607 = vpop.f32.mrb[0].mxu0
  %v4608 = vadd.f32 0.0, %v4607
  %v4609 = vpop.f32.mrb[0].mxu0
  %v4610 = vpop.f32.mrb[0].mxu0
  %v4611 = vadd.f32 0.0, %v4610
  %v4612 = vpop.f32.mrb[0].mxu0
  %4613 = vdwg.mxu0
  %4614 = vmatprep.subr.bf16.mxu0 0
  %4615 = vmatpush1.bf16.msra.mxu0 %v1482
  %4616 = vmatprep.subr.bf16.mxu0 0
  %4617 = vmatpush1.bf16.msra.mxu0 %v1483
  %4618 = vmatprep.subr.bf16.mxu0 0
  %4619 = vmatpush1.bf16.msra.mxu0 %v1484
  %4620 = vmatprep.subr.bf16.mxu0 0
  %4621 = vmatpush1.bf16.msra.mxu0 %v1485
  %4622 = vmatprep.subr.bf16.mxu0 0
  %4623 = vmatpush1.bf16.msra.mxu0 %v1486
  %4624 = vmatprep.subr.bf16.mxu0 0
  %4625 = vmatpush1.bf16.msra.mxu0 %v1487
  %4626 = vmatprep.subr.bf16.mxu0 0
  %4627 = vmatpush1.bf16.msra.mxu0 %v1488
  %4628 = vmatprep.subr.bf16.mxu0 0
  %4629 = vmatpush1.bf16.msra.mxu0 %v1489
  %4630 = vmatprep.subr.bf16.mxu0 0
  %4631 = vmatpush1.bf16.msra.mxu0 %v1490
  %4632 = vmatprep.subr.bf16.mxu0 0
  %4633 = vmatpush1.bf16.msra.mxu0 %v1491
  %4634 = vmatprep.subr.bf16.mxu0 0
  %4635 = vmatpush1.bf16.msra.mxu0 %v1492
  %4636 = vmatprep.subr.bf16.mxu0 0
  %4637 = vmatpush1.bf16.msra.mxu0 %v1493
  %4638 = vmatprep.subr.bf16.mxu0 0
  %4639 = vmatpush1.bf16.msra.mxu0 %v1494
  %4640 = vmatprep.subr.bf16.mxu0 0
  %4641 = vmatpush1.bf16.msra.mxu0 %v1495
  %4642 = vmatprep.subr.bf16.mxu0 0
  %4643 = vmatpush1.bf16.msra.mxu0 %v1496
  %4644 = vmatprep.subr.bf16.mxu0 0
  %4645 = vmatpush1.bf16.msra.mxu0 %v1497
  %4646 = vmatprep.mubr.bf16.mxu0 %v4526
  %4647 = vmatmul.mubr.bf16.gmra.mrb[0].mxu0 %v4525
  %v4648 = vpop.f32.mrb[0].mxu0
  %v4649 = vadd.f32 0.0, %v4648
  %v4650 = vpop.f32.mrb[0].mxu0
  %v4651 = vpop.f32.mrb[0].mxu0
  %v4652 = vadd.f32 0.0, %v4651
  %v4653 = vpop.f32.mrb[0].mxu0
  %4654 = vmatprep.mubr.bf16.mxu0 %v4528
  %4655 = vmatmul.mubr.bf16.gmra.mrb[0].mxu0 %v4527
  %v4656 = vpop.f32.mrb[0].mxu0
  %v4657 = vadd.f32 0.0, %v4656
  %v4658 = vpop.f32.mrb[0].mxu0
  %v4659 = vpop.f32.mrb[0].mxu0
  %v4660 = vadd.f32 0.0, %v4659
  %v4661 = vpop.f32.mrb[0].mxu0
  %4662 = vmatprep.mubr.bf16.mxu0 %v4530
  %4663 = vmatmul.mubr.bf16.gmra.mrb[0].mxu0 %v4529
  %v4664 = vpop.f32.mrb[0].mxu0
  %v4665 = vadd.f32 0.0, %v4664
  %v4666 = vpop.f32.mrb[0].mxu0
  %v4667 = vpop.f32.mrb[0].mxu0
  %v4668 = vadd.f32 0.0, %v4667
  %v4669 = vpop.f32.mrb[0].mxu0
  %4670 = vmatprep.mubr.bf16.mxu0 %v4532
  %4671 = vmatmul.mubr.bf16.gmra.mrb[0].mxu0 %v4531
  %v4672 = vpop.f32.mrb[0].mxu0
  %v4673 = vadd.f32 0.0, %v4672
  %v4674 = vpop.f32.mrb[0].mxu0
  %v4675 = vpop.f32.mrb[0].mxu0
  %v4676 = vadd.f32 0.0, %v4675
  %v4677 = vpop.f32.mrb[0].mxu0
  %4678 = vdwg.mxu0
  %v4679 = vrcp.pop %v4649
  %v4680 = vrcp.pop %v4652
  %v4681 = vrcp.pop %v4657
  %v4682 = vrcp.pop %v4660
  %v4683 = vrcp.pop %v4665
  %v4684 = vrcp.pop %v4668
  %v4685 = vrcp.pop %v4673
  %v4686 = vrcp.pop %v4676
  %v4687 = vmul.f32 %v4584, %v4679
  %v4688 = vmul.f32 %v4587, %v4680
  %v4689 = vmul.f32 %v4592, %v4681
  %v4690 = vmul.f32 %v4595, %v4682
  %v4691 = vmul.f32 %v4600, %v4683
  %v4692 = vmul.f32 %v4603, %v4684
  %v4693 = vmul.f32 %v4608, %v4685
  %v4694 = vmul.f32 %v4611, %v4686
  %v4695 = vpack.c.bf16 %v4349, %v4348
  %v4696 = vpack.c.bf16 %v4351, %v4350
  %v4697 = vpack.c.bf16 %v4353, %v4352
  %v4698 = vpack.c.bf16 %v4355, %v4354
  %v4699 = vpack.c.bf16 %v4688, %v4687
  %v4700 = vpack.c.bf16 %v4690, %v4689
  %v4701 = vpack.c.bf16 %v4692, %v4691
  %v4702 = vpack.c.bf16 %v4694, %v4693
  %s4703 = scalar_lea.vmem %s11, 32
  %v4704 = vld [vmem:[%s4703] sm:$0xf]
  %v4705 = vld [vmem:[%s4703 + $0x4] sm:$0xf]
  %v4706 = vld [vmem:[%s4703 + $0x8] sm:$0xf]
  %v4707 = vld [vmem:[%s4703 + $0xc] sm:$0xf]
  %v4708 = vld [vmem:[%s4703 + $0x10] sm:$0xf]
  %v4709 = vld [vmem:[%s4703 + $0x14] sm:$0xf]
  %v4710 = vld [vmem:[%s4703 + $0x18] sm:$0xf]
  %v4711 = vld [vmem:[%s4703 + $0x1c] sm:$0xf]
  %s4712 = scalar_lea.vmem %s12, 1
  %v4713 = vld [vmem:[%s4712] sm:$0x1]
  %v4715 = vlaneseq
  %v4716 = vshrl.u32 %v4715, 7
  %v4717 = vsub.s32 0, %v4716
  %v4718 = vrot.slane %v4713, %v4717
  %v4728 = vunpack.c.l.b16 %v4704
  %v4729 = vunpack.c.l.b16 %v4705
  %v4730 = vunpack.c.l.b16 %v4706
  %v4731 = vunpack.c.l.b16 %v4707
  %v4732 = vunpack.c.l.b16 %v4708
  %v4733 = vunpack.c.l.b16 %v4709
  %v4734 = vunpack.c.l.b16 %v4710
  %v4735 = vunpack.c.l.b16 %v4711
  %v4736 = vpack.c.b16 %v4729, %v4728
  %v4737 = vpack.c.b16 %v4731, %v4730
  %v4738 = vpack.c.b16 %v4733, %v4732
  %v4739 = vpack.c.b16 %v4735, %v4734
  %v4745 = vsel %vm79, %v4695, 0
  %v4748 = vsel %vm79, %v4696, 0
  %v4751 = vsel %vm79, %v4697, 0
  %v4754 = vsel %vm79, %v4698, 0
  %v4757 = vsel %vm79, %v4699, 0
  %v4760 = vsel %vm79, %v4700, 0
  %v4763 = vsel %vm79, %v4701, 0
  %v4766 = vsel %vm79, %v4702, 0
  %4768 = vmatprep.subr.bf16.mxu0 0
  %4769 = vmatpush1.bf16.msra.mxu0 %v4736
  %4770 = vmatprep.subr.bf16.mxu0 0
  %4771 = vmatpush1.bf16.msra.mxu0 %v4737
  %4772 = vmatprep.subr.bf16.mxu0 0
  %4773 = vmatpush1.bf16.msra.mxu0 %v4738
  %4774 = vmatprep.subr.bf16.mxu0 0
  %4775 = vmatpush1.bf16.msra.mxu0 %v4739
  %4776 = vmatprep.subr.bf16.mxu0 0
  %4777 = vmatpush1.bf16.msra.mxu0 0
  %4778 = vmatprep.subr.bf16.mxu0 0
  %4779 = vmatpush1.bf16.msra.mxu0 0
  %4780 = vmatprep.subr.bf16.mxu0 0
  %4781 = vmatpush1.bf16.msra.mxu0 0
  %4782 = vmatprep.subr.bf16.mxu0 0
  %4783 = vmatpush1.bf16.msra.mxu0 0
  %4784 = vmatprep.subr.bf16.mxu0 0
  %4785 = vmatpush1.bf16.msra.mxu0 0
  %4786 = vmatprep.subr.bf16.mxu0 0
  %4787 = vmatpush1.bf16.msra.mxu0 0
  %4788 = vmatprep.subr.bf16.mxu0 0
  %4789 = vmatpush1.bf16.msra.mxu0 0
  %4790 = vmatprep.subr.bf16.mxu0 0
  %4791 = vmatpush1.bf16.msra.mxu0 0
  %4792 = vmatprep.subr.bf16.mxu0 0
  %4793 = vmatpush1.bf16.msra.mxu0 0
  %4794 = vmatprep.subr.bf16.mxu0 0
  %4795 = vmatpush1.bf16.msra.mxu0 0
  %4796 = vmatprep.subr.bf16.mxu0 0
  %4797 = vmatpush1.bf16.msra.mxu0 0
  %4798 = vmatprep.subr.bf16.mxu0 0
  %4799 = vmatpush1.bf16.msra.mxu0 0
  %4800 = vmatprep.mubr.bf16.mxu0 0
  %4801 = vmatmul.mubr.bf16.gmra.mrb[0].mxu0 %v4745
  %v4802 = vpop.f32.mrb[0].mxu0
  %v4803 = vadd.f32 %v4718, %v4802
  %v4804 = vpop.f32.mrb[0].mxu0
  %v4805 = vpop.f32.mrb[0].mxu0
  %v4806 = vadd.f32 %v4718, %v4805
  %v4807 = vpop.f32.mrb[0].mxu0
  %4808 = vmatprep.mubr.bf16.mxu0 0
  %4809 = vmatmul.mubr.bf16.gmra.mrb[0].mxu0 %v4748
  %v4810 = vpop.f32.mrb[0].mxu0
  %v4811 = vadd.f32 %v4718, %v4810
  %v4812 = vpop.f32.mrb[0].mxu0
  %v4813 = vpop.f32.mrb[0].mxu0
  %v4814 = vadd.f32 %v4718, %v4813
  %v4815 = vpop.f32.mrb[0].mxu0
  %4816 = vmatprep.mubr.bf16.mxu0 0
  %4817 = vmatmul.mubr.bf16.gmra.mrb[0].mxu0 %v4751
  %v4818 = vpop.f32.mrb[0].mxu0
  %v4819 = vadd.f32 %v4718, %v4818
  %v4820 = vpop.f32.mrb[0].mxu0
  %v4821 = vpop.f32.mrb[0].mxu0
  %v4822 = vadd.f32 %v4718, %v4821
  %v4823 = vpop.f32.mrb[0].mxu0
  %4824 = vmatprep.mubr.bf16.mxu0 0
  %4825 = vmatmul.mubr.bf16.gmra.mrb[0].mxu0 %v4754
  %v4826 = vpop.f32.mrb[0].mxu0
  %v4827 = vadd.f32 %v4718, %v4826
  %v4828 = vpop.f32.mrb[0].mxu0
  %v4829 = vpop.f32.mrb[0].mxu0
  %v4830 = vadd.f32 %v4718, %v4829
  %v4831 = vpop.f32.mrb[0].mxu0
  %4832 = vmatprep.mubr.bf16.mxu0 0
  %4833 = vmatmul.mubr.bf16.gmra.mrb[0].mxu0 %v4757
  %v4834 = vpop.f32.mrb[0].mxu0
  %v4835 = vadd.f32 %v4718, %v4834
  %v4836 = vpop.f32.mrb[0].mxu0
  %v4837 = vpop.f32.mrb[0].mxu0
  %v4838 = vadd.f32 %v4718, %v4837
  %v4839 = vpop.f32.mrb[0].mxu0
  %4840 = vmatprep.mubr.bf16.mxu0 0
  %4841 = vmatmul.mubr.bf16.gmra.mrb[0].mxu0 %v4760
  %v4842 = vpop.f32.mrb[0].mxu0
  %v4843 = vadd.f32 %v4718, %v4842
  %v4844 = vpop.f32.mrb[0].mxu0
  %v4845 = vpop.f32.mrb[0].mxu0
  %v4846 = vadd.f32 %v4718, %v4845
  %v4847 = vpop.f32.mrb[0].mxu0
  %4848 = vmatprep.mubr.bf16.mxu0 0
  %4849 = vmatmul.mubr.bf16.gmra.mrb[0].mxu0 %v4763
  %v4850 = vpop.f32.mrb[0].mxu0
  %v4851 = vadd.f32 %v4718, %v4850
  %v4852 = vpop.f32.mrb[0].mxu0
  %v4853 = vpop.f32.mrb[0].mxu0
  %v4854 = vadd.f32 %v4718, %v4853
  %v4855 = vpop.f32.mrb[0].mxu0
  %4856 = vmatprep.mubr.bf16.mxu0 0
  %4857 = vmatmul.mubr.bf16.gmra.mrb[0].mxu0 %v4766
  %v4858 = vpop.f32.mrb[0].mxu0
  %v4859 = vadd.f32 %v4718, %v4858
  %v4860 = vpop.f32.mrb[0].mxu0
  %v4861 = vpop.f32.mrb[0].mxu0
  %v4862 = vadd.f32 %v4718, %v4861
  %v4863 = vpop.f32.mrb[0].mxu0
  %4864 = vdwg.mxu0
  %v4865 = vlaneseq
  %v4866 = vshrl.u32 %v4865, 7
  %v4867 = vsub.s32 0, %v4866
  %v4868 = vrot.slane %v145, %v4867
  %v4869 = vmul.f32 %v4803, %v4868
  %v4870 = vmul.f32 %v4806, %v4868
  %v4871 = vmul.f32 %v4811, %v4868
  %v4872 = vmul.f32 %v4814, %v4868
  %v4873 = vmul.f32 %v4819, %v4868
  %v4874 = vmul.f32 %v4822, %v4868
  %v4875 = vmul.f32 %v4827, %v4868
  %v4876 = vmul.f32 %v4830, %v4868
  %v4877 = vlaneseq
  %v4878 = vshrl.u32 %v4877, 7
  %v4879 = vsub.s32 0, %v4878
  %v4880 = vrot.slane %v148, %v4879
  %v4881 = vmul.f32 %v4835, %v4880
  %v4882 = vmul.f32 %v4838, %v4880
  %v4883 = vmul.f32 %v4843, %v4880
  %v4884 = vmul.f32 %v4846, %v4880
  %v4885 = vmul.f32 %v4851, %v4880
  %v4886 = vmul.f32 %v4854, %v4880
  %v4887 = vmul.f32 %v4859, %v4880
  %v4888 = vmul.f32 %v4862, %v4880
  %v4889 = vadd.f32 %v3163, %v4869
  %v4890 = vadd.f32 %v3164, %v4870
  %v4891 = vadd.f32 %v3165, %v4871
  %v4892 = vadd.f32 %v3166, %v4872
  %v4893 = vadd.f32 %v3167, %v4873
  %v4894 = vadd.f32 %v3168, %v4874
  %v4895 = vadd.f32 %v3169, %v4875
  %v4896 = vadd.f32 %v3170, %v4876
  %v4897 = vadd.f32 %v3171, %v4881
  %v4898 = vadd.f32 %v3172, %v4882
  %v4899 = vadd.f32 %v3173, %v4883
  %v4900 = vadd.f32 %v3174, %v4884
  %v4901 = vadd.f32 %v3175, %v4885
  %v4902 = vadd.f32 %v3176, %v4886
  %v4903 = vadd.f32 %v3177, %v4887
  %v4904 = vadd.f32 %v3178, %v4888
  %v4905 = vsel %vm79, %v4889, 0.0
  %4906 = vadd.xlane.f32.xlu0 %v4905
  %v4907 = vpop.xlane.xlu0 %4906
  %v4908 = vsel %vm79, %v4890, 0.0
  %4909 = vadd.xlane.f32.xlu0 %v4908
  %v4910 = vpop.xlane.xlu0 %4909
  %v4911 = vsel %vm79, %v4891, 0.0
  %4912 = vadd.xlane.f32.xlu0 %v4911
  %v4913 = vpop.xlane.xlu0 %4912
  %v4914 = vsel %vm79, %v4892, 0.0
  %4915 = vadd.xlane.f32.xlu0 %v4914
  %v4916 = vpop.xlane.xlu0 %4915
  %v4917 = vsel %vm79, %v4893, 0.0
  %4918 = vadd.xlane.f32.xlu0 %v4917
  %v4919 = vpop.xlane.xlu0 %4918
  %v4920 = vsel %vm79, %v4894, 0.0
  %4921 = vadd.xlane.f32.xlu0 %v4920
  %v4922 = vpop.xlane.xlu0 %4921
  %v4923 = vsel %vm79, %v4895, 0.0
  %4924 = vadd.xlane.f32.xlu0 %v4923
  %v4925 = vpop.xlane.xlu0 %4924
  %v4926 = vsel %vm79, %v4896, 0.0
  %4927 = vadd.xlane.f32.xlu0 %v4926
  %v4928 = vpop.xlane.xlu0 %4927
  %v4929 = vsel %vm79, %v4897, 0.0
  %4930 = vadd.xlane.f32.xlu0 %v4929
  %v4931 = vpop.xlane.xlu0 %4930
  %v4932 = vsel %vm79, %v4898, 0.0
  %4933 = vadd.xlane.f32.xlu0 %v4932
  %v4934 = vpop.xlane.xlu0 %4933
  %v4935 = vsel %vm79, %v4899, 0.0
  %4936 = vadd.xlane.f32.xlu0 %v4935
  %v4937 = vpop.xlane.xlu0 %4936
  %v4938 = vsel %vm79, %v4900, 0.0
  %4939 = vadd.xlane.f32.xlu0 %v4938
  %v4940 = vpop.xlane.xlu0 %4939
  %v4941 = vsel %vm79, %v4901, 0.0
  %4942 = vadd.xlane.f32.xlu0 %v4941
  %v4943 = vpop.xlane.xlu0 %4942
  %v4944 = vsel %vm79, %v4902, 0.0
  %4945 = vadd.xlane.f32.xlu0 %v4944
  %v4946 = vpop.xlane.xlu0 %4945
  %v4947 = vsel %vm79, %v4903, 0.0
  %4948 = vadd.xlane.f32.xlu0 %v4947
  %v4949 = vpop.xlane.xlu0 %4948
  %v4950 = vsel %vm79, %v4904, 0.0
  %4951 = vadd.xlane.f32.xlu0 %v4950
  %v4952 = vpop.xlane.xlu0 %4951
  %v4953 = vmul.f32 %v4907, %v367
  %v4954 = vmul.f32 %v4910, %v367
  %v4955 = vmul.f32 %v4913, %v367
  %v4956 = vmul.f32 %v4916, %v367
  %v4957 = vmul.f32 %v4919, %v367
  %v4958 = vmul.f32 %v4922, %v367
  %v4959 = vmul.f32 %v4925, %v367
  %v4960 = vmul.f32 %v4928, %v367
  %v4961 = vmul.f32 %v4931, %v367
  %v4962 = vmul.f32 %v4934, %v367
  %v4963 = vmul.f32 %v4937, %v367
  %v4964 = vmul.f32 %v4940, %v367
  %v4965 = vmul.f32 %v4943, %v367
  %v4966 = vmul.f32 %v4946, %v367
  %v4967 = vmul.f32 %v4949, %v367
  %v4968 = vmul.f32 %v4952, %v367
  %v4969 = vsub.f32 %v4889, %v4953
  %v4970 = vsub.f32 %v4890, %v4954
  %v4971 = vsub.f32 %v4891, %v4955
  %v4972 = vsub.f32 %v4892, %v4956
  %v4973 = vsub.f32 %v4893, %v4957
  %v4974 = vsub.f32 %v4894, %v4958
  %v4975 = vsub.f32 %v4895, %v4959
  %v4976 = vsub.f32 %v4896, %v4960
  %v4977 = vsub.f32 %v4897, %v4961
  %v4978 = vsub.f32 %v4898, %v4962
  %v4979 = vsub.f32 %v4899, %v4963
  %v4980 = vsub.f32 %v4900, %v4964
  %v4981 = vsub.f32 %v4901, %v4965
  %v4982 = vsub.f32 %v4902, %v4966
  %v4983 = vsub.f32 %v4903, %v4967
  %v4984 = vsub.f32 %v4904, %v4968
  %v4985 = vmul.f32 %v4969, %v4969
  %v4986 = vmul.f32 %v4970, %v4970
  %v4987 = vmul.f32 %v4971, %v4971
  %v4988 = vmul.f32 %v4972, %v4972
  %v4989 = vmul.f32 %v4973, %v4973
  %v4990 = vmul.f32 %v4974, %v4974
  %v4991 = vmul.f32 %v4975, %v4975
  %v4992 = vmul.f32 %v4976, %v4976
  %v4993 = vmul.f32 %v4977, %v4977
  %v4994 = vmul.f32 %v4978, %v4978
  %v4995 = vmul.f32 %v4979, %v4979
  %v4996 = vmul.f32 %v4980, %v4980
  %v4997 = vmul.f32 %v4981, %v4981
  %v4998 = vmul.f32 %v4982, %v4982
  %v4999 = vmul.f32 %v4983, %v4983
  %v5000 = vmul.f32 %v4984, %v4984
  %v5001 = vsel %vm79, %v4985, 0.0
  %5002 = vadd.xlane.f32.xlu0 %v5001
  %v5003 = vpop.xlane.xlu0 %5002
  %v5004 = vsel %vm79, %v4986, 0.0
  %5005 = vadd.xlane.f32.xlu0 %v5004
  %v5006 = vpop.xlane.xlu0 %5005
  %v5007 = vsel %vm79, %v4987, 0.0
  %5008 = vadd.xlane.f32.xlu0 %v5007
  %v5009 = vpop.xlane.xlu0 %5008
  %v5010 = vsel %vm79, %v4988, 0.0
  %5011 = vadd.xlane.f32.xlu0 %v5010
  %v5012 = vpop.xlane.xlu0 %5011
  %v5013 = vsel %vm79, %v4989, 0.0
  %5014 = vadd.xlane.f32.xlu0 %v5013
  %v5015 = vpop.xlane.xlu0 %5014
  %v5016 = vsel %vm79, %v4990, 0.0
  %5017 = vadd.xlane.f32.xlu0 %v5016
  %v5018 = vpop.xlane.xlu0 %5017
  %v5019 = vsel %vm79, %v4991, 0.0
  %5020 = vadd.xlane.f32.xlu0 %v5019
  %v5021 = vpop.xlane.xlu0 %5020
  %v5022 = vsel %vm79, %v4992, 0.0
  %5023 = vadd.xlane.f32.xlu0 %v5022
  %v5024 = vpop.xlane.xlu0 %5023
  %v5025 = vsel %vm79, %v4993, 0.0
  %5026 = vadd.xlane.f32.xlu0 %v5025
  %v5027 = vpop.xlane.xlu0 %5026
  %v5028 = vsel %vm79, %v4994, 0.0
  %5029 = vadd.xlane.f32.xlu0 %v5028
  %v5030 = vpop.xlane.xlu0 %5029
  %v5031 = vsel %vm79, %v4995, 0.0
  %5032 = vadd.xlane.f32.xlu0 %v5031
  %v5033 = vpop.xlane.xlu0 %5032
  %v5034 = vsel %vm79, %v4996, 0.0
  %5035 = vadd.xlane.f32.xlu0 %v5034
  %v5036 = vpop.xlane.xlu0 %5035
  %v5037 = vsel %vm79, %v4997, 0.0
  %5038 = vadd.xlane.f32.xlu0 %v5037
  %v5039 = vpop.xlane.xlu0 %5038
  %v5040 = vsel %vm79, %v4998, 0.0
  %5041 = vadd.xlane.f32.xlu0 %v5040
  %v5042 = vpop.xlane.xlu0 %5041
  %v5043 = vsel %vm79, %v4999, 0.0
  %5044 = vadd.xlane.f32.xlu0 %v5043
  %v5045 = vpop.xlane.xlu0 %5044
  %v5046 = vsel %vm79, %v5000, 0.0
  %5047 = vadd.xlane.f32.xlu0 %v5046
  %v5048 = vpop.xlane.xlu0 %5047
  %v5049 = vmul.f32 %v5003, %v367
  %v5050 = vmul.f32 %v5006, %v367
  %v5051 = vmul.f32 %v5009, %v367
  %v5052 = vmul.f32 %v5012, %v367
  %v5053 = vmul.f32 %v5015, %v367
  %v5054 = vmul.f32 %v5018, %v367
  %v5055 = vmul.f32 %v5021, %v367
  %v5056 = vmul.f32 %v5024, %v367
  %v5057 = vmul.f32 %v5027, %v367
  %v5058 = vmul.f32 %v5030, %v367
  %v5059 = vmul.f32 %v5033, %v367
  %v5060 = vmul.f32 %v5036, %v367
  %v5061 = vmul.f32 %v5039, %v367
  %v5062 = vmul.f32 %v5042, %v367
  %v5063 = vmul.f32 %v5045, %v367
  %v5064 = vmul.f32 %v5048, %v367
  %v5065 = vadd.f32 %v5049, 1e-06
  %v5066 = vadd.f32 %v5050, 1e-06
  %v5067 = vadd.f32 %v5051, 1e-06
  %v5068 = vadd.f32 %v5052, 1e-06
  %v5069 = vadd.f32 %v5053, 1e-06
  %v5070 = vadd.f32 %v5054, 1e-06
  %v5071 = vadd.f32 %v5055, 1e-06
  %v5072 = vadd.f32 %v5056, 1e-06
  %v5073 = vadd.f32 %v5057, 1e-06
  %v5074 = vadd.f32 %v5058, 1e-06
  %v5075 = vadd.f32 %v5059, 1e-06
  %v5076 = vadd.f32 %v5060, 1e-06
  %v5077 = vadd.f32 %v5061, 1e-06
  %v5078 = vadd.f32 %v5062, 1e-06
  %v5079 = vadd.f32 %v5063, 1e-06
  %v5080 = vadd.f32 %v5064, 1e-06
  %v5081 = vrsqrt.pop %v5065
  %v5082 = vrsqrt.pop %v5066
  %v5083 = vrsqrt.pop %v5067
  %v5084 = vrsqrt.pop %v5068
  %v5085 = vrsqrt.pop %v5069
  %v5086 = vrsqrt.pop %v5070
  %v5087 = vrsqrt.pop %v5071
  %v5088 = vrsqrt.pop %v5072
  %v5089 = vrsqrt.pop %v5073
  %v5090 = vrsqrt.pop %v5074
  %v5091 = vrsqrt.pop %v5075
  %v5092 = vrsqrt.pop %v5076
  %v5093 = vrsqrt.pop %v5077
  %v5094 = vrsqrt.pop %v5078
  %v5095 = vrsqrt.pop %v5079
  %v5096 = vrsqrt.pop %v5080
  %v5097 = vmul.f32 %v4969, %v5081
  %v5098 = vmul.f32 %v4970, %v5082
  %v5099 = vmul.f32 %v4971, %v5083
  %v5100 = vmul.f32 %v4972, %v5084
  %v5101 = vmul.f32 %v4973, %v5085
  %v5102 = vmul.f32 %v4974, %v5086
  %v5103 = vmul.f32 %v4975, %v5087
  %v5104 = vmul.f32 %v4976, %v5088
  %v5105 = vmul.f32 %v4977, %v5089
  %v5106 = vmul.f32 %v4978, %v5090
  %v5107 = vmul.f32 %v4979, %v5091
  %v5108 = vmul.f32 %v4980, %v5092
  %v5109 = vmul.f32 %v4981, %v5093
  %v5110 = vmul.f32 %v4982, %v5094
  %v5111 = vmul.f32 %v4983, %v5095
  %v5112 = vmul.f32 %v4984, %v5096
  %v5113 = vadd.f32 %v145, 1.0
  %v5114 = vlaneseq
  %v5115 = vshrl.u32 %v5114, 7
  %v5116 = vsub.s32 2, %v5115
  %v5117 = vrot.slane %v5113, %v5116
  %v5118 = vmul.f32 %v5097, %v5117
  %v5119 = vmul.f32 %v5098, %v5117
  %v5120 = vmul.f32 %v5099, %v5117
  %v5121 = vmul.f32 %v5100, %v5117
  %v5122 = vmul.f32 %v5101, %v5117
  %v5123 = vmul.f32 %v5102, %v5117
  %v5124 = vmul.f32 %v5103, %v5117
  %v5125 = vmul.f32 %v5104, %v5117
  %v5126 = vlaneseq
  %v5127 = vshrl.u32 %v5126, 7
  %v5128 = vsub.s32 1, %v5127
  %v5129 = vrot.slane %v145, %v5128
  %v5130 = vadd.f32 %v5118, %v5129
  %v5131 = vadd.f32 %v5119, %v5129
  %v5132 = vadd.f32 %v5120, %v5129
  %v5133 = vadd.f32 %v5121, %v5129
  %v5134 = vadd.f32 %v5122, %v5129
  %v5135 = vadd.f32 %v5123, %v5129
  %v5136 = vadd.f32 %v5124, %v5129
  %v5137 = vadd.f32 %v5125, %v5129
  %v5138 = vadd.f32 %v148, 1.0
  %v5139 = vlaneseq
  %v5140 = vshrl.u32 %v5139, 7
  %v5141 = vsub.s32 2, %v5140
  %v5142 = vrot.slane %v5138, %v5141
  %v5143 = vmul.f32 %v5105, %v5142
  %v5144 = vmul.f32 %v5106, %v5142
  %v5145 = vmul.f32 %v5107, %v5142
  %v5146 = vmul.f32 %v5108, %v5142
  %v5147 = vmul.f32 %v5109, %v5142
  %v5148 = vmul.f32 %v5110, %v5142
  %v5149 = vmul.f32 %v5111, %v5142
  %v5150 = vmul.f32 %v5112, %v5142
  %v5151 = vlaneseq
  %v5152 = vshrl.u32 %v5151, 7
  %v5153 = vsub.s32 1, %v5152
  %v5154 = vrot.slane %v148, %v5153
  %v5155 = vadd.f32 %v5143, %v5154
  %v5156 = vadd.f32 %v5144, %v5154
  %v5157 = vadd.f32 %v5145, %v5154
  %v5158 = vadd.f32 %v5146, %v5154
  %v5159 = vadd.f32 %v5147, %v5154
  %v5160 = vadd.f32 %v5148, %v5154
  %v5161 = vadd.f32 %v5149, %v5154
  %v5162 = vadd.f32 %v5150, %v5154
  %v5163 = vpack.c.bf16 %v5131, %v5130
  %v5164 = vpack.c.bf16 %v5133, %v5132
  %v5165 = vpack.c.bf16 %v5135, %v5134
  %v5166 = vpack.c.bf16 %v5137, %v5136
  %v5167 = vpack.c.bf16 %v5156, %v5155
  %v5168 = vpack.c.bf16 %v5158, %v5157
  %v5169 = vpack.c.bf16 %v5160, %v5159
  %v5170 = vpack.c.bf16 %v5162, %v5161
  %s5171 = scalar_lea.vmem %s13, 64
  %v5172 = vld [vmem:[%s5171] sm:$0xff]
  %v5173 = vld [vmem:[%s5171 + $0x8] sm:$0xff]
  %v5174 = vld [vmem:[%s5171 + $0x10] sm:$0xff]
  %v5175 = vld [vmem:[%s5171 + $0x18] sm:$0xff]
  %v5176 = vld [vmem:[%s5171 + $0x20] sm:$0xff]
  %v5177 = vld [vmem:[%s5171 + $0x28] sm:$0xff]
  %v5178 = vld [vmem:[%s5171 + $0x30] sm:$0xff]
  %v5179 = vld [vmem:[%s5171 + $0x38] sm:$0xff]
  %s5180 = scalar_lea.vmem %s14, 2
  %v5181 = vld [vmem:[%s5180] sm:$0x3]
  %v5183 = vlaneseq
  %v5184 = vshrl.u32 %v5183, 7
  %v5185 = vsub.s32 0, %v5184
  %v5186 = vrot.slane %v5181, %v5185
  %v5187 = vlaneseq
  %v5188 = vshrl.u32 %v5187, 7
  %v5189 = vsub.s32 1, %v5188
  %v5190 = vrot.slane %v5181, %v5189
  %v5201 = vunpack.c.l.b16 %v5172
  %v5202 = vunpack.c.h.b16 %v5172
  %v5203 = vunpack.c.l.b16 %v5173
  %v5204 = vunpack.c.h.b16 %v5173
  %v5205 = vunpack.c.l.b16 %v5174
  %v5206 = vunpack.c.h.b16 %v5174
  %v5207 = vunpack.c.l.b16 %v5175
  %v5208 = vunpack.c.h.b16 %v5175
  %v5209 = vunpack.c.l.b16 %v5176
  %v5210 = vunpack.c.h.b16 %v5176
  %v5211 = vunpack.c.l.b16 %v5177
  %v5212 = vunpack.c.h.b16 %v5177
  %v5213 = vunpack.c.l.b16 %v5178
  %v5214 = vunpack.c.h.b16 %v5178
  %v5215 = vunpack.c.l.b16 %v5179
  %v5216 = vunpack.c.h.b16 %v5179
  %v5217 = vpack.c.b16 %v5203, %v5201
  %v5218 = vpack.c.b16 %v5204, %v5202
  %v5219 = vpack.c.b16 %v5207, %v5205
  %v5220 = vpack.c.b16 %v5208, %v5206
  %v5221 = vpack.c.b16 %v5211, %v5209
  %v5222 = vpack.c.b16 %v5212, %v5210
  %v5223 = vpack.c.b16 %v5215, %v5213
  %v5224 = vpack.c.b16 %v5216, %v5214
  %v5234 = vsel %vm79, %v5163, 0
  %v5237 = vsel %vm79, %v5164, 0
  %v5240 = vsel %vm79, %v5165, 0
  %v5243 = vsel %vm79, %v5166, 0
  %v5246 = vsel %vm79, %v5167, 0
  %v5249 = vsel %vm79, %v5168, 0
  %v5252 = vsel %vm79, %v5169, 0
  %v5255 = vsel %vm79, %v5170, 0
  %5257 = vmatprep.subr.bf16.mxu0 %v5218
  %5258 = vmatpush1.bf16.msra.mxu0 %v5217
  %5259 = vmatprep.subr.bf16.mxu0 %v5220
  %5260 = vmatpush1.bf16.msra.mxu0 %v5219
  %5261 = vmatprep.subr.bf16.mxu0 %v5222
  %5262 = vmatpush1.bf16.msra.mxu0 %v5221
  %5263 = vmatprep.subr.bf16.mxu0 %v5224
  %5264 = vmatpush1.bf16.msra.mxu0 %v5223
  %5265 = vmatprep.subr.bf16.mxu0 0
  %5266 = vmatpush1.bf16.msra.mxu0 0
  %5267 = vmatprep.subr.bf16.mxu0 0
  %5268 = vmatpush1.bf16.msra.mxu0 0
  %5269 = vmatprep.subr.bf16.mxu0 0
  %5270 = vmatpush1.bf16.msra.mxu0 0
  %5271 = vmatprep.subr.bf16.mxu0 0
  %5272 = vmatpush1.bf16.msra.mxu0 0
  %5273 = vmatprep.subr.bf16.mxu0 0
  %5274 = vmatpush1.bf16.msra.mxu0 0
  %5275 = vmatprep.subr.bf16.mxu0 0
  %5276 = vmatpush1.bf16.msra.mxu0 0
  %5277 = vmatprep.subr.bf16.mxu0 0
  %5278 = vmatpush1.bf16.msra.mxu0 0
  %5279 = vmatprep.subr.bf16.mxu0 0
  %5280 = vmatpush1.bf16.msra.mxu0 0
  %5281 = vmatprep.subr.bf16.mxu0 0
  %5282 = vmatpush1.bf16.msra.mxu0 0
  %5283 = vmatprep.subr.bf16.mxu0 0
  %5284 = vmatpush1.bf16.msra.mxu0 0
  %5285 = vmatprep.subr.bf16.mxu0 0
  %5286 = vmatpush1.bf16.msra.mxu0 0
  %5287 = vmatprep.subr.bf16.mxu0 0
  %5288 = vmatpush1.bf16.msra.mxu0 0
  %5289 = vmatprep.mubr.bf16.mxu0 0
  %5290 = vmatmul.mubr.bf16.gmra.mrb[0].mxu0 %v5234
  %v5291 = vpop.f32.mrb[0].mxu0
  %v5292 = vadd.f32 %v5186, %v5291
  %v5293 = vpop.f32.mrb[0].mxu0
  %v5294 = vadd.f32 %v5190, %v5293
  %v5295 = vpop.f32.mrb[0].mxu0
  %v5296 = vadd.f32 %v5186, %v5295
  %v5297 = vpop.f32.mrb[0].mxu0
  %v5298 = vadd.f32 %v5190, %v5297
  %5299 = vmatprep.mubr.bf16.mxu0 0
  %5300 = vmatmul.mubr.bf16.gmra.mrb[0].mxu0 %v5237
  %v5301 = vpop.f32.mrb[0].mxu0
  %v5302 = vadd.f32 %v5186, %v5301
  %v5303 = vpop.f32.mrb[0].mxu0
  %v5304 = vadd.f32 %v5190, %v5303
  %v5305 = vpop.f32.mrb[0].mxu0
  %v5306 = vadd.f32 %v5186, %v5305
  %v5307 = vpop.f32.mrb[0].mxu0
  %v5308 = vadd.f32 %v5190, %v5307
  %5309 = vmatprep.mubr.bf16.mxu0 0
  %5310 = vmatmul.mubr.bf16.gmra.mrb[0].mxu0 %v5240
  %v5311 = vpop.f32.mrb[0].mxu0
  %v5312 = vadd.f32 %v5186, %v5311
  %v5313 = vpop.f32.mrb[0].mxu0
  %v5314 = vadd.f32 %v5190, %v5313
  %v5315 = vpop.f32.mrb[0].mxu0
  %v5316 = vadd.f32 %v5186, %v5315
  %v5317 = vpop.f32.mrb[0].mxu0
  %v5318 = vadd.f32 %v5190, %v5317
  %5319 = vmatprep.mubr.bf16.mxu0 0
  %5320 = vmatmul.mubr.bf16.gmra.mrb[0].mxu0 %v5243
  %v5321 = vpop.f32.mrb[0].mxu0
  %v5322 = vadd.f32 %v5186, %v5321
  %v5323 = vpop.f32.mrb[0].mxu0
  %v5324 = vadd.f32 %v5190, %v5323
  %v5325 = vpop.f32.mrb[0].mxu0
  %v5326 = vadd.f32 %v5186, %v5325
  %v5327 = vpop.f32.mrb[0].mxu0
  %v5328 = vadd.f32 %v5190, %v5327
  %5329 = vmatprep.mubr.bf16.mxu0 0
  %5330 = vmatmul.mubr.bf16.gmra.mrb[0].mxu0 %v5246
  %v5331 = vpop.f32.mrb[0].mxu0
  %v5332 = vadd.f32 %v5186, %v5331
  %v5333 = vpop.f32.mrb[0].mxu0
  %v5334 = vadd.f32 %v5190, %v5333
  %v5335 = vpop.f32.mrb[0].mxu0
  %v5336 = vadd.f32 %v5186, %v5335
  %v5337 = vpop.f32.mrb[0].mxu0
  %v5338 = vadd.f32 %v5190, %v5337
  %5339 = vmatprep.mubr.bf16.mxu0 0
  %5340 = vmatmul.mubr.bf16.gmra.mrb[0].mxu0 %v5249
  %v5341 = vpop.f32.mrb[0].mxu0
  %v5342 = vadd.f32 %v5186, %v5341
  %v5343 = vpop.f32.mrb[0].mxu0
  %v5344 = vadd.f32 %v5190, %v5343
  %v5345 = vpop.f32.mrb[0].mxu0
  %v5346 = vadd.f32 %v5186, %v5345
  %v5347 = vpop.f32.mrb[0].mxu0
  %v5348 = vadd.f32 %v5190, %v5347
  %5349 = vmatprep.mubr.bf16.mxu0 0
  %5350 = vmatmul.mubr.bf16.gmra.mrb[0].mxu0 %v5252
  %v5351 = vpop.f32.mrb[0].mxu0
  %v5352 = vadd.f32 %v5186, %v5351
  %v5353 = vpop.f32.mrb[0].mxu0
  %v5354 = vadd.f32 %v5190, %v5353
  %v5355 = vpop.f32.mrb[0].mxu0
  %v5356 = vadd.f32 %v5186, %v5355
  %v5357 = vpop.f32.mrb[0].mxu0
  %v5358 = vadd.f32 %v5190, %v5357
  %5359 = vmatprep.mubr.bf16.mxu0 0
  %5360 = vmatmul.mubr.bf16.gmra.mrb[0].mxu0 %v5255
  %v5361 = vpop.f32.mrb[0].mxu0
  %v5362 = vadd.f32 %v5186, %v5361
  %v5363 = vpop.f32.mrb[0].mxu0
  %v5364 = vadd.f32 %v5190, %v5363
  %v5365 = vpop.f32.mrb[0].mxu0
  %v5366 = vadd.f32 %v5186, %v5365
  %v5367 = vpop.f32.mrb[0].mxu0
  %v5368 = vadd.f32 %v5190, %v5367
  %5369 = vdwg.mxu0
  %v5370 = vmul.f32 %v5292, 0.5
  %v5371 = vmul.f32 %v5294, 0.5
  %v5372 = vmul.f32 %v5296, 0.5
  %v5373 = vmul.f32 %v5298, 0.5
  %v5374 = vmul.f32 %v5302, 0.5
  %v5375 = vmul.f32 %v5304, 0.5
  %v5376 = vmul.f32 %v5306, 0.5
  %v5377 = vmul.f32 %v5308, 0.5
  %v5378 = vmul.f32 %v5312, 0.5
  %v5379 = vmul.f32 %v5314, 0.5
  %v5380 = vmul.f32 %v5316, 0.5
  %v5381 = vmul.f32 %v5318, 0.5
  %v5382 = vmul.f32 %v5322, 0.5
  %v5383 = vmul.f32 %v5324, 0.5
  %v5384 = vmul.f32 %v5326, 0.5
  %v5385 = vmul.f32 %v5328, 0.5
  %v5386 = vmul.f32 %v5332, 0.5
  %v5387 = vmul.f32 %v5334, 0.5
  %v5388 = vmul.f32 %v5336, 0.5
  %v5389 = vmul.f32 %v5338, 0.5
  %v5390 = vmul.f32 %v5342, 0.5
  %v5391 = vmul.f32 %v5344, 0.5
  %v5392 = vmul.f32 %v5346, 0.5
  %v5393 = vmul.f32 %v5348, 0.5
  %v5394 = vmul.f32 %v5352, 0.5
  %v5395 = vmul.f32 %v5354, 0.5
  %v5396 = vmul.f32 %v5356, 0.5
  %v5397 = vmul.f32 %v5358, 0.5
  %v5398 = vmul.f32 %v5362, 0.5
  %v5399 = vmul.f32 %v5364, 0.5
  %v5400 = vmul.f32 %v5366, 0.5
  %v5401 = vmul.f32 %v5368, 0.5
  %v5402 = vmul.f32 %v5292, 0.044715
  %v5403 = vmul.f32 %v5294, 0.044715
  %v5404 = vmul.f32 %v5296, 0.044715
  %v5405 = vmul.f32 %v5298, 0.044715
  %v5406 = vmul.f32 %v5302, 0.044715
  %v5407 = vmul.f32 %v5304, 0.044715
  %v5408 = vmul.f32 %v5306, 0.044715
  %v5409 = vmul.f32 %v5308, 0.044715
  %v5410 = vmul.f32 %v5312, 0.044715
  %v5411 = vmul.f32 %v5314, 0.044715
  %v5412 = vmul.f32 %v5316, 0.044715
  %v5413 = vmul.f32 %v5318, 0.044715
  %v5414 = vmul.f32 %v5322, 0.044715
  %v5415 = vmul.f32 %v5324, 0.044715
  %v5416 = vmul.f32 %v5326, 0.044715
  %v5417 = vmul.f32 %v5328, 0.044715
  %v5418 = vmul.f32 %v5332, 0.044715
  %v5419 = vmul.f32 %v5334, 0.044715
  %v5420 = vmul.f32 %v5336, 0.044715
  %v5421 = vmul.f32 %v5338, 0.044715
  %v5422 = vmul.f32 %v5342, 0.044715
  %v5423 = vmul.f32 %v5344, 0.044715
  %v5424 = vmul.f32 %v5346, 0.044715
  %v5425 = vmul.f32 %v5348, 0.044715
  %v5426 = vmul.f32 %v5352, 0.044715
  %v5427 = vmul.f32 %v5354, 0.044715
  %v5428 = vmul.f32 %v5356, 0.044715
  %v5429 = vmul.f32 %v5358, 0.044715
  %v5430 = vmul.f32 %v5362, 0.044715
  %v5431 = vmul.f32 %v5364, 0.044715
  %v5432 = vmul.f32 %v5366, 0.044715
  %v5433 = vmul.f32 %v5368, 0.044715
  %v5434 = vmul.f32 %v5402, %v5292
  %v5435 = vmul.f32 %v5403, %v5294
  %v5436 = vmul.f32 %v5404, %v5296
  %v5437 = vmul.f32 %v5405, %v5298
  %v5438 = vmul.f32 %v5406, %v5302
  %v5439 = vmul.f32 %v5407, %v5304
  %v5440 = vmul.f32 %v5408, %v5306
  %v5441 = vmul.f32 %v5409, %v5308
  %v5442 = vmul.f32 %v5410, %v5312
  %v5443 = vmul.f32 %v5411, %v5314
  %v5444 = vmul.f32 %v5412, %v5316
  %v5445 = vmul.f32 %v5413, %v5318
  %v5446 = vmul.f32 %v5414, %v5322
  %v5447 = vmul.f32 %v5415, %v5324
  %v5448 = vmul.f32 %v5416, %v5326
  %v5449 = vmul.f32 %v5417, %v5328
  %v5450 = vmul.f32 %v5418, %v5332
  %v5451 = vmul.f32 %v5419, %v5334
  %v5452 = vmul.f32 %v5420, %v5336
  %v5453 = vmul.f32 %v5421, %v5338
  %v5454 = vmul.f32 %v5422, %v5342
  %v5455 = vmul.f32 %v5423, %v5344
  %v5456 = vmul.f32 %v5424, %v5346
  %v5457 = vmul.f32 %v5425, %v5348
  %v5458 = vmul.f32 %v5426, %v5352
  %v5459 = vmul.f32 %v5427, %v5354
  %v5460 = vmul.f32 %v5428, %v5356
  %v5461 = vmul.f32 %v5429, %v5358
  %v5462 = vmul.f32 %v5430, %v5362
  %v5463 = vmul.f32 %v5431, %v5364
  %v5464 = vmul.f32 %v5432, %v5366
  %v5465 = vmul.f32 %v5433, %v5368
  %v5466 = vmul.f32 %v5434, %v5292
  %v5467 = vmul.f32 %v5435, %v5294
  %v5468 = vmul.f32 %v5436, %v5296
  %v5469 = vmul.f32 %v5437, %v5298
  %v5470 = vmul.f32 %v5438, %v5302
  %v5471 = vmul.f32 %v5439, %v5304
  %v5472 = vmul.f32 %v5440, %v5306
  %v5473 = vmul.f32 %v5441, %v5308
  %v5474 = vmul.f32 %v5442, %v5312
  %v5475 = vmul.f32 %v5443, %v5314
  %v5476 = vmul.f32 %v5444, %v5316
  %v5477 = vmul.f32 %v5445, %v5318
  %v5478 = vmul.f32 %v5446, %v5322
  %v5479 = vmul.f32 %v5447, %v5324
  %v5480 = vmul.f32 %v5448, %v5326
  %v5481 = vmul.f32 %v5449, %v5328
  %v5482 = vmul.f32 %v5450, %v5332
  %v5483 = vmul.f32 %v5451, %v5334
  %v5484 = vmul.f32 %v5452, %v5336
  %v5485 = vmul.f32 %v5453, %v5338
  %v5486 = vmul.f32 %v5454, %v5342
  %v5487 = vmul.f32 %v5455, %v5344
  %v5488 = vmul.f32 %v5456, %v5346
  %v5489 = vmul.f32 %v5457, %v5348
  %v5490 = vmul.f32 %v5458, %v5352
  %v5491 = vmul.f32 %v5459, %v5354
  %v5492 = vmul.f32 %v5460, %v5356
  %v5493 = vmul.f32 %v5461, %v5358
  %v5494 = vmul.f32 %v5462, %v5362
  %v5495 = vmul.f32 %v5463, %v5364
  %v5496 = vmul.f32 %v5464, %v5366
  %v5497 = vmul.f32 %v5465, %v5368
  %v5498 = vadd.f32 %v5292, %v5466
  %v5499 = vadd.f32 %v5294, %v5467
  %v5500 = vadd.f32 %v5296, %v5468
  %v5501 = vadd.f32 %v5298, %v5469
  %v5502 = vadd.f32 %v5302, %v5470
  %v5503 = vadd.f32 %v5304, %v5471
  %v5504 = vadd.f32 %v5306, %v5472
  %v5505 = vadd.f32 %v5308, %v5473
  %v5506 = vadd.f32 %v5312, %v5474
  %v5507 = vadd.f32 %v5314, %v5475
  %v5508 = vadd.f32 %v5316, %v5476
  %v5509 = vadd.f32 %v5318, %v5477
  %v5510 = vadd.f32 %v5322, %v5478
  %v5511 = vadd.f32 %v5324, %v5479
  %v5512 = vadd.f32 %v5326, %v5480
  %v5513 = vadd.f32 %v5328, %v5481
  %v5514 = vadd.f32 %v5332, %v5482
  %v5515 = vadd.f32 %v5334, %v5483
  %v5516 = vadd.f32 %v5336, %v5484
  %v5517 = vadd.f32 %v5338, %v5485
  %v5518 = vadd.f32 %v5342, %v5486
  %v5519 = vadd.f32 %v5344, %v5487
  %v5520 = vadd.f32 %v5346, %v5488
  %v5521 = vadd.f32 %v5348, %v5489
  %v5522 = vadd.f32 %v5352, %v5490
  %v5523 = vadd.f32 %v5354, %v5491
  %v5524 = vadd.f32 %v5356, %v5492
  %v5525 = vadd.f32 %v5358, %v5493
  %v5526 = vadd.f32 %v5362, %v5494
  %v5527 = vadd.f32 %v5364, %v5495
  %v5528 = vadd.f32 %v5366, %v5496
  %v5529 = vadd.f32 %v5368, %v5497
  %v5530 = vmul.f32 %v5498, 0.7978846
  %v5531 = vmul.f32 %v5499, 0.7978846
  %v5532 = vmul.f32 %v5500, 0.7978846
  %v5533 = vmul.f32 %v5501, 0.7978846
  %v5534 = vmul.f32 %v5502, 0.7978846
  %v5535 = vmul.f32 %v5503, 0.7978846
  %v5536 = vmul.f32 %v5504, 0.7978846
  %v5537 = vmul.f32 %v5505, 0.7978846
  %v5538 = vmul.f32 %v5506, 0.7978846
  %v5539 = vmul.f32 %v5507, 0.7978846
  %v5540 = vmul.f32 %v5508, 0.7978846
  %v5541 = vmul.f32 %v5509, 0.7978846
  %v5542 = vmul.f32 %v5510, 0.7978846
  %v5543 = vmul.f32 %v5511, 0.7978846
  %v5544 = vmul.f32 %v5512, 0.7978846
  %v5545 = vmul.f32 %v5513, 0.7978846
  %v5546 = vmul.f32 %v5514, 0.7978846
  %v5547 = vmul.f32 %v5515, 0.7978846
  %v5548 = vmul.f32 %v5516, 0.7978846
  %v5549 = vmul.f32 %v5517, 0.7978846
  %v5550 = vmul.f32 %v5518, 0.7978846
  %v5551 = vmul.f32 %v5519, 0.7978846
  %v5552 = vmul.f32 %v5520, 0.7978846
  %v5553 = vmul.f32 %v5521, 0.7978846
  %v5554 = vmul.f32 %v5522, 0.7978846
  %v5555 = vmul.f32 %v5523, 0.7978846
  %v5556 = vmul.f32 %v5524, 0.7978846
  %v5557 = vmul.f32 %v5525, 0.7978846
  %v5558 = vmul.f32 %v5526, 0.7978846
  %v5559 = vmul.f32 %v5527, 0.7978846
  %v5560 = vmul.f32 %v5528, 0.7978846
  %v5561 = vmul.f32 %v5529, 0.7978846
  %v5562 = vtanh.pop %v5530
  %v5563 = vtanh.pop %v5531
  %v5564 = vtanh.pop %v5532
  %v5565 = vtanh.pop %v5533
  %v5566 = vtanh.pop %v5534
  %v5567 = vtanh.pop %v5535
  %v5568 = vtanh.pop %v5536
  %v5569 = vtanh.pop %v5537
  %v5570 = vtanh.pop %v5538
  %v5571 = vtanh.pop %v5539
  %v5572 = vtanh.pop %v5540
  %v5573 = vtanh.pop %v5541
  %v5574 = vtanh.pop %v5542
  %v5575 = vtanh.pop %v5543
  %v5576 = vtanh.pop %v5544
  %v5577 = vtanh.pop %v5545
  %v5578 = vtanh.pop %v5546
  %v5579 = vtanh.pop %v5547
  %v5580 = vtanh.pop %v5548
  %v5581 = vtanh.pop %v5549
  %v5582 = vtanh.pop %v5550
  %v5583 = vtanh.pop %v5551
  %v5584 = vtanh.pop %v5552
  %v5585 = vtanh.pop %v5553
  %v5586 = vtanh.pop %v5554
  %v5587 = vtanh.pop %v5555
  %v5588 = vtanh.pop %v5556
  %v5589 = vtanh.pop %v5557
  %v5590 = vtanh.pop %v5558
  %v5591 = vtanh.pop %v5559
  %v5592 = vtanh.pop %v5560
  %v5593 = vtanh.pop %v5561
  %v5594 = vadd.f32 %v5562, 1.0
  %v5595 = vadd.f32 %v5563, 1.0
  %v5596 = vadd.f32 %v5564, 1.0
  %v5597 = vadd.f32 %v5565, 1.0
  %v5598 = vadd.f32 %v5566, 1.0
  %v5599 = vadd.f32 %v5567, 1.0
  %v5600 = vadd.f32 %v5568, 1.0
  %v5601 = vadd.f32 %v5569, 1.0
  %v5602 = vadd.f32 %v5570, 1.0
  %v5603 = vadd.f32 %v5571, 1.0
  %v5604 = vadd.f32 %v5572, 1.0
  %v5605 = vadd.f32 %v5573, 1.0
  %v5606 = vadd.f32 %v5574, 1.0
  %v5607 = vadd.f32 %v5575, 1.0
  %v5608 = vadd.f32 %v5576, 1.0
  %v5609 = vadd.f32 %v5577, 1.0
  %v5610 = vadd.f32 %v5578, 1.0
  %v5611 = vadd.f32 %v5579, 1.0
  %v5612 = vadd.f32 %v5580, 1.0
  %v5613 = vadd.f32 %v5581, 1.0
  %v5614 = vadd.f32 %v5582, 1.0
  %v5615 = vadd.f32 %v5583, 1.0
  %v5616 = vadd.f32 %v5584, 1.0
  %v5617 = vadd.f32 %v5585, 1.0
  %v5618 = vadd.f32 %v5586, 1.0
  %v5619 = vadd.f32 %v5587, 1.0
  %v5620 = vadd.f32 %v5588, 1.0
  %v5621 = vadd.f32 %v5589, 1.0
  %v5622 = vadd.f32 %v5590, 1.0
  %v5623 = vadd.f32 %v5591, 1.0
  %v5624 = vadd.f32 %v5592, 1.0
  %v5625 = vadd.f32 %v5593, 1.0
  %v5626 = vmul.f32 %v5370, %v5594
  %v5627 = vmul.f32 %v5371, %v5595
  %v5628 = vmul.f32 %v5372, %v5596
  %v5629 = vmul.f32 %v5373, %v5597
  %v5630 = vmul.f32 %v5374, %v5598
  %v5631 = vmul.f32 %v5375, %v5599
  %v5632 = vmul.f32 %v5376, %v5600
  %v5633 = vmul.f32 %v5377, %v5601
  %v5634 = vmul.f32 %v5378, %v5602
  %v5635 = vmul.f32 %v5379, %v5603
  %v5636 = vmul.f32 %v5380, %v5604
  %v5637 = vmul.f32 %v5381, %v5605
  %v5638 = vmul.f32 %v5382, %v5606
  %v5639 = vmul.f32 %v5383, %v5607
  %v5640 = vmul.f32 %v5384, %v5608
  %v5641 = vmul.f32 %v5385, %v5609
  %v5642 = vmul.f32 %v5386, %v5610
  %v5643 = vmul.f32 %v5387, %v5611
  %v5644 = vmul.f32 %v5388, %v5612
  %v5645 = vmul.f32 %v5389, %v5613
  %v5646 = vmul.f32 %v5390, %v5614
  %v5647 = vmul.f32 %v5391, %v5615
  %v5648 = vmul.f32 %v5392, %v5616
  %v5649 = vmul.f32 %v5393, %v5617
  %v5650 = vmul.f32 %v5394, %v5618
  %v5651 = vmul.f32 %v5395, %v5619
  %v5652 = vmul.f32 %v5396, %v5620
  %v5653 = vmul.f32 %v5397, %v5621
  %v5654 = vmul.f32 %v5398, %v5622
  %v5655 = vmul.f32 %v5399, %v5623
  %v5656 = vmul.f32 %v5400, %v5624
  %v5657 = vmul.f32 %v5401, %v5625
  %v5658 = vpack.c.bf16 %v5628, %v5626
  %v5659 = vpack.c.bf16 %v5629, %v5627
  %v5660 = vpack.c.bf16 %v5632, %v5630
  %v5661 = vpack.c.bf16 %v5633, %v5631
  %v5662 = vpack.c.bf16 %v5636, %v5634
  %v5663 = vpack.c.bf16 %v5637, %v5635
  %v5664 = vpack.c.bf16 %v5640, %v5638
  %v5665 = vpack.c.bf16 %v5641, %v5639
  %v5666 = vpack.c.bf16 %v5644, %v5642
  %v5667 = vpack.c.bf16 %v5645, %v5643
  %v5668 = vpack.c.bf16 %v5648, %v5646
  %v5669 = vpack.c.bf16 %v5649, %v5647
  %v5670 = vpack.c.bf16 %v5652, %v5650
  %v5671 = vpack.c.bf16 %v5653, %v5651
  %v5672 = vpack.c.bf16 %v5656, %v5654
  %v5673 = vpack.c.bf16 %v5657, %v5655
  %s5674 = scalar_lea.vmem %s15, 128
  %v5675 = vld [vmem:[%s5674] sm:$0xf]
  %v5676 = vld [vmem:[%s5674 + $0x4] sm:$0xf]
  %v5677 = vld [vmem:[%s5674 + $0x8] sm:$0xf]
  %v5678 = vld [vmem:[%s5674 + $0xc] sm:$0xf]
  %v5679 = vld [vmem:[%s5674 + $0x10] sm:$0xf]
  %v5680 = vld [vmem:[%s5674 + $0x14] sm:$0xf]
  %v5681 = vld [vmem:[%s5674 + $0x18] sm:$0xf]
  %v5682 = vld [vmem:[%s5674 + $0x1c] sm:$0xf]
  %v5683 = vld [vmem:[%s5674 + $0x20] sm:$0xf]
  %v5684 = vld [vmem:[%s5674 + $0x24] sm:$0xf]
  %v5685 = vld [vmem:[%s5674 + $0x28] sm:$0xf]
  %v5686 = vld [vmem:[%s5674 + $0x2c] sm:$0xf]
  %v5687 = vld [vmem:[%s5674 + $0x30] sm:$0xf]
  %v5688 = vld [vmem:[%s5674 + $0x34] sm:$0xf]
  %v5689 = vld [vmem:[%s5674 + $0x38] sm:$0xf]
  %v5690 = vld [vmem:[%s5674 + $0x3c] sm:$0xf]
  %v5691 = vld [vmem:[%s5674 + $0x40] sm:$0xf]
  %v5692 = vld [vmem:[%s5674 + $0x44] sm:$0xf]
  %v5693 = vld [vmem:[%s5674 + $0x48] sm:$0xf]
  %v5694 = vld [vmem:[%s5674 + $0x4c] sm:$0xf]
  %v5695 = vld [vmem:[%s5674 + $0x50] sm:$0xf]
  %v5696 = vld [vmem:[%s5674 + $0x54] sm:$0xf]
  %v5697 = vld [vmem:[%s5674 + $0x58] sm:$0xf]
  %v5698 = vld [vmem:[%s5674 + $0x5c] sm:$0xf]
  %v5699 = vld [vmem:[%s5674 + $0x60] sm:$0xf]
  %v5700 = vld [vmem:[%s5674 + $0x64] sm:$0xf]
  %v5701 = vld [vmem:[%s5674 + $0x68] sm:$0xf]
  %v5702 = vld [vmem:[%s5674 + $0x6c] sm:$0xf]
  %v5703 = vld [vmem:[%s5674 + $0x70] sm:$0xf]
  %v5704 = vld [vmem:[%s5674 + $0x74] sm:$0xf]
  %v5705 = vld [vmem:[%s5674 + $0x78] sm:$0xf]
  %v5706 = vld [vmem:[%s5674 + $0x7c] sm:$0xf]
  %s5707 = scalar_lea.vmem %s16, 1
  %v5708 = vld [vmem:[%s5707] sm:$0x1]
  %v5710 = vlaneseq
  %v5711 = vshrl.u32 %v5710, 7
  %v5712 = vsub.s32 0, %v5711
  %v5713 = vrot.slane %v5708, %v5712
  %v5747 = vunpack.c.l.b16 %v5675
  %v5748 = vunpack.c.l.b16 %v5676
  %v5749 = vunpack.c.l.b16 %v5677
  %v5750 = vunpack.c.l.b16 %v5678
  %v5751 = vunpack.c.l.b16 %v5679
  %v5752 = vunpack.c.l.b16 %v5680
  %v5753 = vunpack.c.l.b16 %v5681
  %v5754 = vunpack.c.l.b16 %v5682
  %v5755 = vunpack.c.l.b16 %v5683
  %v5756 = vunpack.c.l.b16 %v5684
  %v5757 = vunpack.c.l.b16 %v5685
  %v5758 = vunpack.c.l.b16 %v5686
  %v5759 = vunpack.c.l.b16 %v5687
  %v5760 = vunpack.c.l.b16 %v5688
  %v5761 = vunpack.c.l.b16 %v5689
  %v5762 = vunpack.c.l.b16 %v5690
  %v5763 = vunpack.c.l.b16 %v5691
  %v5764 = vunpack.c.l.b16 %v5692
  %v5765 = vunpack.c.l.b16 %v5693
  %v5766 = vunpack.c.l.b16 %v5694
  %v5767 = vunpack.c.l.b16 %v5695
  %v5768 = vunpack.c.l.b16 %v5696
  %v5769 = vunpack.c.l.b16 %v5697
  %v5770 = vunpack.c.l.b16 %v5698
  %v5771 = vunpack.c.l.b16 %v5699
  %v5772 = vunpack.c.l.b16 %v5700
  %v5773 = vunpack.c.l.b16 %v5701
  %v5774 = vunpack.c.l.b16 %v5702
  %v5775 = vunpack.c.l.b16 %v5703
  %v5776 = vunpack.c.l.b16 %v5704
  %v5777 = vunpack.c.l.b16 %v5705
  %v5778 = vunpack.c.l.b16 %v5706
  %v5779 = vpack.c.b16 %v5748, %v5747
  %v5780 = vpack.c.b16 %v5750, %v5749
  %v5781 = vpack.c.b16 %v5752, %v5751
  %v5782 = vpack.c.b16 %v5754, %v5753
  %v5783 = vpack.c.b16 %v5756, %v5755
  %v5784 = vpack.c.b16 %v5758, %v5757
  %v5785 = vpack.c.b16 %v5760, %v5759
  %v5786 = vpack.c.b16 %v5762, %v5761
  %v5787 = vpack.c.b16 %v5764, %v5763
  %v5788 = vpack.c.b16 %v5766, %v5765
  %v5789 = vpack.c.b16 %v5768, %v5767
  %v5790 = vpack.c.b16 %v5770, %v5769
  %v5791 = vpack.c.b16 %v5772, %v5771
  %v5792 = vpack.c.b16 %v5774, %v5773
  %v5793 = vpack.c.b16 %v5776, %v5775
  %v5794 = vpack.c.b16 %v5778, %v5777
  %5811 = vmatprep.subr.bf16.mxu0 0
  %5812 = vmatpush1.bf16.msra.mxu0 %v5779
  %5813 = vmatprep.subr.bf16.mxu0 0
  %5814 = vmatpush1.bf16.msra.mxu0 %v5780
  %5815 = vmatprep.subr.bf16.mxu0 0
  %5816 = vmatpush1.bf16.msra.mxu0 %v5781
  %5817 = vmatprep.subr.bf16.mxu0 0
  %5818 = vmatpush1.bf16.msra.mxu0 %v5782
  %5819 = vmatprep.subr.bf16.mxu0 0
  %5820 = vmatpush1.bf16.msra.mxu0 %v5783
  %5821 = vmatprep.subr.bf16.mxu0 0
  %5822 = vmatpush1.bf16.msra.mxu0 %v5784
  %5823 = vmatprep.subr.bf16.mxu0 0
  %5824 = vmatpush1.bf16.msra.mxu0 %v5785
  %5825 = vmatprep.subr.bf16.mxu0 0
  %5826 = vmatpush1.bf16.msra.mxu0 %v5786
  %5827 = vmatprep.subr.bf16.mxu0 0
  %5828 = vmatpush1.bf16.msra.mxu0 %v5787
  %5829 = vmatprep.subr.bf16.mxu0 0
  %5830 = vmatpush1.bf16.msra.mxu0 %v5788
  %5831 = vmatprep.subr.bf16.mxu0 0
  %5832 = vmatpush1.bf16.msra.mxu0 %v5789
  %5833 = vmatprep.subr.bf16.mxu0 0
  %5834 = vmatpush1.bf16.msra.mxu0 %v5790
  %5835 = vmatprep.subr.bf16.mxu0 0
  %5836 = vmatpush1.bf16.msra.mxu0 %v5791
  %5837 = vmatprep.subr.bf16.mxu0 0
  %5838 = vmatpush1.bf16.msra.mxu0 %v5792
  %5839 = vmatprep.subr.bf16.mxu0 0
  %5840 = vmatpush1.bf16.msra.mxu0 %v5793
  %5841 = vmatprep.subr.bf16.mxu0 0
  %5842 = vmatpush1.bf16.msra.mxu0 %v5794
  %5843 = vmatprep.mubr.bf16.mxu0 %v5659
  %5844 = vmatmul.mubr.bf16.gmra.mrb[0].mxu0 %v5658
  %v5845 = vpop.f32.mrb[0].mxu0
  %v5846 = vadd.f32 %v5713, %v5845
  %v5847 = vpop.f32.mrb[0].mxu0
  %v5848 = vpop.f32.mrb[0].mxu0
  %v5849 = vadd.f32 %v5713, %v5848
  %v5850 = vpop.f32.mrb[0].mxu0
  %5851 = vmatprep.mubr.bf16.mxu0 %v5661
  %5852 = vmatmul.mubr.bf16.gmra.mrb[0].mxu0 %v5660
  %v5853 = vpop.f32.mrb[0].mxu0
  %v5854 = vadd.f32 %v5713, %v5853
  %v5855 = vpop.f32.mrb[0].mxu0
  %v5856 = vpop.f32.mrb[0].mxu0
  %v5857 = vadd.f32 %v5713, %v5856
  %v5858 = vpop.f32.mrb[0].mxu0
  %5859 = vmatprep.mubr.bf16.mxu0 %v5663
  %5860 = vmatmul.mubr.bf16.gmra.mrb[0].mxu0 %v5662
  %v5861 = vpop.f32.mrb[0].mxu0
  %v5862 = vadd.f32 %v5713, %v5861
  %v5863 = vpop.f32.mrb[0].mxu0
  %v5864 = vpop.f32.mrb[0].mxu0
  %v5865 = vadd.f32 %v5713, %v5864
  %v5866 = vpop.f32.mrb[0].mxu0
  %5867 = vmatprep.mubr.bf16.mxu0 %v5665
  %5868 = vmatmul.mubr.bf16.gmra.mrb[0].mxu0 %v5664
  %v5869 = vpop.f32.mrb[0].mxu0
  %v5870 = vadd.f32 %v5713, %v5869
  %v5871 = vpop.f32.mrb[0].mxu0
  %v5872 = vpop.f32.mrb[0].mxu0
  %v5873 = vadd.f32 %v5713, %v5872
  %v5874 = vpop.f32.mrb[0].mxu0
  %5875 = vmatprep.mubr.bf16.mxu0 %v5667
  %5876 = vmatmul.mubr.bf16.gmra.mrb[0].mxu0 %v5666
  %v5877 = vpop.f32.mrb[0].mxu0
  %v5878 = vadd.f32 %v5713, %v5877
  %v5879 = vpop.f32.mrb[0].mxu0
  %v5880 = vpop.f32.mrb[0].mxu0
  %v5881 = vadd.f32 %v5713, %v5880
  %v5882 = vpop.f32.mrb[0].mxu0
  %5883 = vmatprep.mubr.bf16.mxu0 %v5669
  %5884 = vmatmul.mubr.bf16.gmra.mrb[0].mxu0 %v5668
  %v5885 = vpop.f32.mrb[0].mxu0
  %v5886 = vadd.f32 %v5713, %v5885
  %v5887 = vpop.f32.mrb[0].mxu0
  %v5888 = vpop.f32.mrb[0].mxu0
  %v5889 = vadd.f32 %v5713, %v5888
  %v5890 = vpop.f32.mrb[0].mxu0
  %5891 = vmatprep.mubr.bf16.mxu0 %v5671
  %5892 = vmatmul.mubr.bf16.gmra.mrb[0].mxu0 %v5670
  %v5893 = vpop.f32.mrb[0].mxu0
  %v5894 = vadd.f32 %v5713, %v5893
  %v5895 = vpop.f32.mrb[0].mxu0
  %v5896 = vpop.f32.mrb[0].mxu0
  %v5897 = vadd.f32 %v5713, %v5896
  %v5898 = vpop.f32.mrb[0].mxu0
  %5899 = vmatprep.mubr.bf16.mxu0 %v5673
  %5900 = vmatmul.mubr.bf16.gmra.mrb[0].mxu0 %v5672
  %v5901 = vpop.f32.mrb[0].mxu0
  %v5902 = vadd.f32 %v5713, %v5901
  %v5903 = vpop.f32.mrb[0].mxu0
  %v5904 = vpop.f32.mrb[0].mxu0
  %v5905 = vadd.f32 %v5713, %v5904
  %v5906 = vpop.f32.mrb[0].mxu0
  %5907 = vdwg.mxu0
  %v5908 = vlaneseq
  %v5909 = vshrl.u32 %v5908, 7
  %v5910 = vsub.s32 3, %v5909
  %v5911 = vrot.slane %v145, %v5910
  %v5912 = vmul.f32 %v5846, %v5911
  %v5913 = vmul.f32 %v5849, %v5911
  %v5914 = vmul.f32 %v5854, %v5911
  %v5915 = vmul.f32 %v5857, %v5911
  %v5916 = vmul.f32 %v5862, %v5911
  %v5917 = vmul.f32 %v5865, %v5911
  %v5918 = vmul.f32 %v5870, %v5911
  %v5919 = vmul.f32 %v5873, %v5911
  %v5920 = vlaneseq
  %v5921 = vshrl.u32 %v5920, 7
  %v5922 = vsub.s32 3, %v5921
  %v5923 = vrot.slane %v148, %v5922
  %v5924 = vmul.f32 %v5878, %v5923
  %v5925 = vmul.f32 %v5881, %v5923
  %v5926 = vmul.f32 %v5886, %v5923
  %v5927 = vmul.f32 %v5889, %v5923
  %v5928 = vmul.f32 %v5894, %v5923
  %v5929 = vmul.f32 %v5897, %v5923
  %v5930 = vmul.f32 %v5902, %v5923
  %v5931 = vmul.f32 %v5905, %v5923
  %v5932 = vadd.f32 %v4889, %v5912
  %v5933 = vadd.f32 %v4890, %v5913
  %v5934 = vadd.f32 %v4891, %v5914
  %v5935 = vadd.f32 %v4892, %v5915
  %v5936 = vadd.f32 %v4893, %v5916
  %v5937 = vadd.f32 %v4894, %v5917
  %v5938 = vadd.f32 %v4895, %v5918
  %v5939 = vadd.f32 %v4896, %v5919
  %v5940 = vadd.f32 %v4897, %v5924
  %v5941 = vadd.f32 %v4898, %v5925
  %v5942 = vadd.f32 %v4899, %v5926
  %v5943 = vadd.f32 %v4900, %v5927
  %v5944 = vadd.f32 %v4901, %v5928
  %v5945 = vadd.f32 %v4902, %v5929
  %v5946 = vadd.f32 %v4903, %v5930
  %v5947 = vadd.f32 %v4904, %v5931
  %v5948 = vsel %vm79, %v5932, 0.0
  %5949 = vadd.xlane.f32.xlu0 %v5948
  %v5950 = vpop.xlane.xlu0 %5949
  %v5951 = vsel %vm79, %v5933, 0.0
  %5952 = vadd.xlane.f32.xlu0 %v5951
  %v5953 = vpop.xlane.xlu0 %5952
  %v5954 = vsel %vm79, %v5934, 0.0
  %5955 = vadd.xlane.f32.xlu0 %v5954
  %v5956 = vpop.xlane.xlu0 %5955
  %v5957 = vsel %vm79, %v5935, 0.0
  %5958 = vadd.xlane.f32.xlu0 %v5957
  %v5959 = vpop.xlane.xlu0 %5958
  %v5960 = vsel %vm79, %v5936, 0.0
  %5961 = vadd.xlane.f32.xlu0 %v5960
  %v5962 = vpop.xlane.xlu0 %5961
  %v5963 = vsel %vm79, %v5937, 0.0
  %5964 = vadd.xlane.f32.xlu0 %v5963
  %v5965 = vpop.xlane.xlu0 %5964
  %v5966 = vsel %vm79, %v5938, 0.0
  %5967 = vadd.xlane.f32.xlu0 %v5966
  %v5968 = vpop.xlane.xlu0 %5967
  %v5969 = vsel %vm79, %v5939, 0.0
  %5970 = vadd.xlane.f32.xlu0 %v5969
  %v5971 = vpop.xlane.xlu0 %5970
  %v5972 = vsel %vm79, %v5940, 0.0
  %5973 = vadd.xlane.f32.xlu0 %v5972
  %v5974 = vpop.xlane.xlu0 %5973
  %v5975 = vsel %vm79, %v5941, 0.0
  %5976 = vadd.xlane.f32.xlu0 %v5975
  %v5977 = vpop.xlane.xlu0 %5976
  %v5978 = vsel %vm79, %v5942, 0.0
  %5979 = vadd.xlane.f32.xlu0 %v5978
  %v5980 = vpop.xlane.xlu0 %5979
  %v5981 = vsel %vm79, %v5943, 0.0
  %5982 = vadd.xlane.f32.xlu0 %v5981
  %v5983 = vpop.xlane.xlu0 %5982
  %v5984 = vsel %vm79, %v5944, 0.0
  %5985 = vadd.xlane.f32.xlu0 %v5984
  %v5986 = vpop.xlane.xlu0 %5985
  %v5987 = vsel %vm79, %v5945, 0.0
  %5988 = vadd.xlane.f32.xlu0 %v5987
  %v5989 = vpop.xlane.xlu0 %5988
  %v5990 = vsel %vm79, %v5946, 0.0
  %5991 = vadd.xlane.f32.xlu0 %v5990
  %v5992 = vpop.xlane.xlu0 %5991
  %v5993 = vsel %vm79, %v5947, 0.0
  %5994 = vadd.xlane.f32.xlu0 %v5993
  %v5995 = vpop.xlane.xlu0 %5994
  %v5996 = vmul.f32 %v5950, %v367
  %v5997 = vmul.f32 %v5953, %v367
  %v5998 = vmul.f32 %v5956, %v367
  %v5999 = vmul.f32 %v5959, %v367
  %v6000 = vmul.f32 %v5962, %v367
  %v6001 = vmul.f32 %v5965, %v367
  %v6002 = vmul.f32 %v5968, %v367
  %v6003 = vmul.f32 %v5971, %v367
  %v6004 = vmul.f32 %v5974, %v367
  %v6005 = vmul.f32 %v5977, %v367
  %v6006 = vmul.f32 %v5980, %v367
  %v6007 = vmul.f32 %v5983, %v367
  %v6008 = vmul.f32 %v5986, %v367
  %v6009 = vmul.f32 %v5989, %v367
  %v6010 = vmul.f32 %v5992, %v367
  %v6011 = vmul.f32 %v5995, %v367
  %v6012 = vsub.f32 %v5932, %v5996
  %v6013 = vsub.f32 %v5933, %v5997
  %v6014 = vsub.f32 %v5934, %v5998
  %v6015 = vsub.f32 %v5935, %v5999
  %v6016 = vsub.f32 %v5936, %v6000
  %v6017 = vsub.f32 %v5937, %v6001
  %v6018 = vsub.f32 %v5938, %v6002
  %v6019 = vsub.f32 %v5939, %v6003
  %v6020 = vsub.f32 %v5940, %v6004
  %v6021 = vsub.f32 %v5941, %v6005
  %v6022 = vsub.f32 %v5942, %v6006
  %v6023 = vsub.f32 %v5943, %v6007
  %v6024 = vsub.f32 %v5944, %v6008
  %v6025 = vsub.f32 %v5945, %v6009
  %v6026 = vsub.f32 %v5946, %v6010
  %v6027 = vsub.f32 %v5947, %v6011
  %v6028 = vmul.f32 %v6012, %v6012
  %v6029 = vmul.f32 %v6013, %v6013
  %v6030 = vmul.f32 %v6014, %v6014
  %v6031 = vmul.f32 %v6015, %v6015
  %v6032 = vmul.f32 %v6016, %v6016
  %v6033 = vmul.f32 %v6017, %v6017
  %v6034 = vmul.f32 %v6018, %v6018
  %v6035 = vmul.f32 %v6019, %v6019
  %v6036 = vmul.f32 %v6020, %v6020
  %v6037 = vmul.f32 %v6021, %v6021
  %v6038 = vmul.f32 %v6022, %v6022
  %v6039 = vmul.f32 %v6023, %v6023
  %v6040 = vmul.f32 %v6024, %v6024
  %v6041 = vmul.f32 %v6025, %v6025
  %v6042 = vmul.f32 %v6026, %v6026
  %v6043 = vmul.f32 %v6027, %v6027
  %v6044 = vsel %vm79, %v6028, 0.0
  %6045 = vadd.xlane.f32.xlu0 %v6044
  %v6046 = vpop.xlane.xlu0 %6045
  %v6047 = vsel %vm79, %v6029, 0.0
  %6048 = vadd.xlane.f32.xlu0 %v6047
  %v6049 = vpop.xlane.xlu0 %6048
  %v6050 = vsel %vm79, %v6030, 0.0
  %6051 = vadd.xlane.f32.xlu0 %v6050
  %v6052 = vpop.xlane.xlu0 %6051
  %v6053 = vsel %vm79, %v6031, 0.0
  %6054 = vadd.xlane.f32.xlu0 %v6053
  %v6055 = vpop.xlane.xlu0 %6054
  %v6056 = vsel %vm79, %v6032, 0.0
  %6057 = vadd.xlane.f32.xlu0 %v6056
  %v6058 = vpop.xlane.xlu0 %6057
  %v6059 = vsel %vm79, %v6033, 0.0
  %6060 = vadd.xlane.f32.xlu0 %v6059
  %v6061 = vpop.xlane.xlu0 %6060
  %v6062 = vsel %vm79, %v6034, 0.0
  %6063 = vadd.xlane.f32.xlu0 %v6062
  %v6064 = vpop.xlane.xlu0 %6063
  %v6065 = vsel %vm79, %v6035, 0.0
  %6066 = vadd.xlane.f32.xlu0 %v6065
  %v6067 = vpop.xlane.xlu0 %6066
  %v6068 = vsel %vm79, %v6036, 0.0
  %6069 = vadd.xlane.f32.xlu0 %v6068
  %v6070 = vpop.xlane.xlu0 %6069
  %v6071 = vsel %vm79, %v6037, 0.0
  %6072 = vadd.xlane.f32.xlu0 %v6071
  %v6073 = vpop.xlane.xlu0 %6072
  %v6074 = vsel %vm79, %v6038, 0.0
  %6075 = vadd.xlane.f32.xlu0 %v6074
  %v6076 = vpop.xlane.xlu0 %6075
  %v6077 = vsel %vm79, %v6039, 0.0
  %6078 = vadd.xlane.f32.xlu0 %v6077
  %v6079 = vpop.xlane.xlu0 %6078
  %v6080 = vsel %vm79, %v6040, 0.0
  %6081 = vadd.xlane.f32.xlu0 %v6080
  %v6082 = vpop.xlane.xlu0 %6081
  %v6083 = vsel %vm79, %v6041, 0.0
  %6084 = vadd.xlane.f32.xlu0 %v6083
  %v6085 = vpop.xlane.xlu0 %6084
  %v6086 = vsel %vm79, %v6042, 0.0
  %6087 = vadd.xlane.f32.xlu0 %v6086
  %v6088 = vpop.xlane.xlu0 %6087
  %v6089 = vsel %vm79, %v6043, 0.0
  %6090 = vadd.xlane.f32.xlu0 %v6089
  %v6091 = vpop.xlane.xlu0 %6090
  %v6092 = vmul.f32 %v6046, %v367
  %v6093 = vmul.f32 %v6049, %v367
  %v6094 = vmul.f32 %v6052, %v367
  %v6095 = vmul.f32 %v6055, %v367
  %v6096 = vmul.f32 %v6058, %v367
  %v6097 = vmul.f32 %v6061, %v367
  %v6098 = vmul.f32 %v6064, %v367
  %v6099 = vmul.f32 %v6067, %v367
  %v6100 = vmul.f32 %v6070, %v367
  %v6101 = vmul.f32 %v6073, %v367
  %v6102 = vmul.f32 %v6076, %v367
  %v6103 = vmul.f32 %v6079, %v367
  %v6104 = vmul.f32 %v6082, %v367
  %v6105 = vmul.f32 %v6085, %v367
  %v6106 = vmul.f32 %v6088, %v367
  %v6107 = vmul.f32 %v6091, %v367
  %v6108 = vadd.f32 %v6092, 1e-06
  %v6109 = vadd.f32 %v6093, 1e-06
  %v6110 = vadd.f32 %v6094, 1e-06
  %v6111 = vadd.f32 %v6095, 1e-06
  %v6112 = vadd.f32 %v6096, 1e-06
  %v6113 = vadd.f32 %v6097, 1e-06
  %v6114 = vadd.f32 %v6098, 1e-06
  %v6115 = vadd.f32 %v6099, 1e-06
  %v6116 = vadd.f32 %v6100, 1e-06
  %v6117 = vadd.f32 %v6101, 1e-06
  %v6118 = vadd.f32 %v6102, 1e-06
  %v6119 = vadd.f32 %v6103, 1e-06
  %v6120 = vadd.f32 %v6104, 1e-06
  %v6121 = vadd.f32 %v6105, 1e-06
  %v6122 = vadd.f32 %v6106, 1e-06
  %v6123 = vadd.f32 %v6107, 1e-06
  %v6124 = vrsqrt.pop %v6108
  %v6125 = vrsqrt.pop %v6109
  %v6126 = vrsqrt.pop %v6110
  %v6127 = vrsqrt.pop %v6111
  %v6128 = vrsqrt.pop %v6112
  %v6129 = vrsqrt.pop %v6113
  %v6130 = vrsqrt.pop %v6114
  %v6131 = vrsqrt.pop %v6115
  %v6132 = vrsqrt.pop %v6116
  %v6133 = vrsqrt.pop %v6117
  %v6134 = vrsqrt.pop %v6118
  %v6135 = vrsqrt.pop %v6119
  %v6136 = vrsqrt.pop %v6120
  %v6137 = vrsqrt.pop %v6121
  %v6138 = vrsqrt.pop %v6122
  %v6139 = vrsqrt.pop %v6123
  %v6140 = vmul.f32 %v6012, %v6124
  %v6141 = vmul.f32 %v6013, %v6125
  %v6142 = vmul.f32 %v6014, %v6126
  %v6143 = vmul.f32 %v6015, %v6127
  %v6144 = vmul.f32 %v6016, %v6128
  %v6145 = vmul.f32 %v6017, %v6129
  %v6146 = vmul.f32 %v6018, %v6130
  %v6147 = vmul.f32 %v6019, %v6131
  %v6148 = vmul.f32 %v6020, %v6132
  %v6149 = vmul.f32 %v6021, %v6133
  %v6150 = vmul.f32 %v6022, %v6134
  %v6151 = vmul.f32 %v6023, %v6135
  %v6152 = vmul.f32 %v6024, %v6136
  %v6153 = vmul.f32 %v6025, %v6137
  %v6154 = vmul.f32 %v6026, %v6138
  %v6155 = vmul.f32 %v6027, %v6139
  %v6156 = vlaneseq
  %v6157 = vshrl.u32 %v6156, 7
  %v6158 = vsub.s32 5, %v6157
  %v6159 = vrot.slane %v5113, %v6158
  %v6160 = vmul.f32 %v6140, %v6159
  %v6161 = vmul.f32 %v6141, %v6159
  %v6162 = vmul.f32 %v6142, %v6159
  %v6163 = vmul.f32 %v6143, %v6159
  %v6164 = vmul.f32 %v6144, %v6159
  %v6165 = vmul.f32 %v6145, %v6159
  %v6166 = vmul.f32 %v6146, %v6159
  %v6167 = vmul.f32 %v6147, %v6159
  %v6168 = vlaneseq
  %v6169 = vshrl.u32 %v6168, 7
  %v6170 = vsub.s32 4, %v6169
  %v6171 = vrot.slane %v145, %v6170
  %v6172 = vadd.f32 %v6160, %v6171
  %v6173 = vadd.f32 %v6161, %v6171
  %v6174 = vadd.f32 %v6162, %v6171
  %v6175 = vadd.f32 %v6163, %v6171
  %v6176 = vadd.f32 %v6164, %v6171
  %v6177 = vadd.f32 %v6165, %v6171
  %v6178 = vadd.f32 %v6166, %v6171
  %v6179 = vadd.f32 %v6167, %v6171
  %v6180 = vlaneseq
  %v6181 = vshrl.u32 %v6180, 7
  %v6182 = vsub.s32 5, %v6181
  %v6183 = vrot.slane %v5138, %v6182
  %v6184 = vmul.f32 %v6148, %v6183
  %v6185 = vmul.f32 %v6149, %v6183
  %v6186 = vmul.f32 %v6150, %v6183
  %v6187 = vmul.f32 %v6151, %v6183
  %v6188 = vmul.f32 %v6152, %v6183
  %v6189 = vmul.f32 %v6153, %v6183
  %v6190 = vmul.f32 %v6154, %v6183
  %v6191 = vmul.f32 %v6155, %v6183
  %v6192 = vlaneseq
  %v6193 = vshrl.u32 %v6192, 7
  %v6194 = vsub.s32 4, %v6193
  %v6195 = vrot.slane %v148, %v6194
  %v6196 = vadd.f32 %v6184, %v6195
  %v6197 = vadd.f32 %v6185, %v6195
  %v6198 = vadd.f32 %v6186, %v6195
  %v6199 = vadd.f32 %v6187, %v6195
  %v6200 = vadd.f32 %v6188, %v6195
  %v6201 = vadd.f32 %v6189, %v6195
  %v6202 = vadd.f32 %v6190, %v6195
  %v6203 = vadd.f32 %v6191, %v6195
  %v6204 = vpack.c.bf16 %v6173, %v6172
  %v6205 = vpack.c.bf16 %v6175, %v6174
  %v6206 = vpack.c.bf16 %v6177, %v6176
  %v6207 = vpack.c.bf16 %v6179, %v6178
  %v6208 = vpack.c.bf16 %v6197, %v6196
  %v6209 = vpack.c.bf16 %v6199, %v6198
  %v6210 = vpack.c.bf16 %v6201, %v6200
  %v6211 = vpack.c.bf16 %v6203, %v6202
  %v6212 = vld [vmem:[%s17] sm:$0xf]
  %v6213 = vld [vmem:[%s17 + $0x4] sm:$0xf]
  %v6214 = vld [vmem:[%s17 + $0x8] sm:$0xf]
  %v6215 = vld [vmem:[%s17 + $0xc] sm:$0xf]
  %v6216 = vld [vmem:[%s17 + $0x10] sm:$0xf]
  %v6217 = vld [vmem:[%s17 + $0x14] sm:$0xf]
  %v6218 = vld [vmem:[%s17 + $0x18] sm:$0xf]
  %v6219 = vld [vmem:[%s17 + $0x1c] sm:$0xf]
  %v6220 = vld [vmem:[%s18] sm:$0x1]
  %v6222 = vlaneseq
  %v6223 = vshrl.u32 %v6222, 7
  %v6224 = vsub.s32 0, %v6223
  %v6225 = vrot.slane %v6220, %v6224
  %v6235 = vunpack.c.l.b16 %v6212
  %v6236 = vunpack.c.l.b16 %v6213
  %v6237 = vunpack.c.l.b16 %v6214
  %v6238 = vunpack.c.l.b16 %v6215
  %v6239 = vunpack.c.l.b16 %v6216
  %v6240 = vunpack.c.l.b16 %v6217
  %v6241 = vunpack.c.l.b16 %v6218
  %v6242 = vunpack.c.l.b16 %v6219
  %v6243 = vpack.c.b16 %v6236, %v6235
  %v6244 = vpack.c.b16 %v6238, %v6237
  %v6245 = vpack.c.b16 %v6240, %v6239
  %v6246 = vpack.c.b16 %v6242, %v6241
  %v6252 = vsel %vm79, %v6204, 0
  %v6255 = vsel %vm79, %v6205, 0
  %v6258 = vsel %vm79, %v6206, 0
  %v6261 = vsel %vm79, %v6207, 0
  %v6264 = vsel %vm79, %v6208, 0
  %v6267 = vsel %vm79, %v6209, 0
  %v6270 = vsel %vm79, %v6210, 0
  %v6273 = vsel %vm79, %v6211, 0
  %6275 = vmatprep.subr.bf16.mxu0 0
  %6276 = vmatpush1.bf16.msra.mxu0 %v6243
  %6277 = vmatprep.subr.bf16.mxu0 0
  %6278 = vmatpush1.bf16.msra.mxu0 %v6244
  %6279 = vmatprep.subr.bf16.mxu0 0
  %6280 = vmatpush1.bf16.msra.mxu0 %v6245
  %6281 = vmatprep.subr.bf16.mxu0 0
  %6282 = vmatpush1.bf16.msra.mxu0 %v6246
  %6283 = vmatprep.subr.bf16.mxu0 0
  %6284 = vmatpush1.bf16.msra.mxu0 0
  %6285 = vmatprep.subr.bf16.mxu0 0
  %6286 = vmatpush1.bf16.msra.mxu0 0
  %6287 = vmatprep.subr.bf16.mxu0 0
  %6288 = vmatpush1.bf16.msra.mxu0 0
  %6289 = vmatprep.subr.bf16.mxu0 0
  %6290 = vmatpush1.bf16.msra.mxu0 0
  %6291 = vmatprep.subr.bf16.mxu0 0
  %6292 = vmatpush1.bf16.msra.mxu0 0
  %6293 = vmatprep.subr.bf16.mxu0 0
  %6294 = vmatpush1.bf16.msra.mxu0 0
  %6295 = vmatprep.subr.bf16.mxu0 0
  %6296 = vmatpush1.bf16.msra.mxu0 0
  %6297 = vmatprep.subr.bf16.mxu0 0
  %6298 = vmatpush1.bf16.msra.mxu0 0
  %6299 = vmatprep.subr.bf16.mxu0 0
  %6300 = vmatpush1.bf16.msra.mxu0 0
  %6301 = vmatprep.subr.bf16.mxu0 0
  %6302 = vmatpush1.bf16.msra.mxu0 0
  %6303 = vmatprep.subr.bf16.mxu0 0
  %6304 = vmatpush1.bf16.msra.mxu0 0
  %6305 = vmatprep.subr.bf16.mxu0 0
  %6306 = vmatpush1.bf16.msra.mxu0 0
  %6307 = vmatprep.mubr.bf16.mxu0 0
  %6308 = vmatmul.mubr.bf16.gmra.mrb[0].mxu0 %v6252
  %v6309 = vpop.f32.mrb[0].mxu0
  %v6310 = vadd.f32 %v6225, %v6309
  %v6311 = vpop.f32.mrb[0].mxu0
  %v6312 = vpop.f32.mrb[0].mxu0
  %v6313 = vadd.f32 %v6225, %v6312
  %v6314 = vpop.f32.mrb[0].mxu0
  %6315 = vmatprep.mubr.bf16.mxu0 0
  %6316 = vmatmul.mubr.bf16.gmra.mrb[0].mxu0 %v6255
  %v6317 = vpop.f32.mrb[0].mxu0
  %v6318 = vadd.f32 %v6225, %v6317
  %v6319 = vpop.f32.mrb[0].mxu0
  %v6320 = vpop.f32.mrb[0].mxu0
  %v6321 = vadd.f32 %v6225, %v6320
  %v6322 = vpop.f32.mrb[0].mxu0
  %6323 = vmatprep.mubr.bf16.mxu0 0
  %6324 = vmatmul.mubr.bf16.gmra.mrb[0].mxu0 %v6258
  %v6325 = vpop.f32.mrb[0].mxu0
  %v6326 = vadd.f32 %v6225, %v6325
  %v6327 = vpop.f32.mrb[0].mxu0
  %v6328 = vpop.f32.mrb[0].mxu0
  %v6329 = vadd.f32 %v6225, %v6328
  %v6330 = vpop.f32.mrb[0].mxu0
  %6331 = vmatprep.mubr.bf16.mxu0 0
  %6332 = vmatmul.mubr.bf16.gmra.mrb[0].mxu0 %v6261
  %v6333 = vpop.f32.mrb[0].mxu0
  %v6334 = vadd.f32 %v6225, %v6333
  %v6335 = vpop.f32.mrb[0].mxu0
  %v6336 = vpop.f32.mrb[0].mxu0
  %v6337 = vadd.f32 %v6225, %v6336
  %v6338 = vpop.f32.mrb[0].mxu0
  %6339 = vmatprep.mubr.bf16.mxu0 0
  %6340 = vmatmul.mubr.bf16.gmra.mrb[0].mxu0 %v6264
  %v6341 = vpop.f32.mrb[0].mxu0
  %v6342 = vadd.f32 %v6225, %v6341
  %v6343 = vpop.f32.mrb[0].mxu0
  %v6344 = vpop.f32.mrb[0].mxu0
  %v6345 = vadd.f32 %v6225, %v6344
  %v6346 = vpop.f32.mrb[0].mxu0
  %6347 = vmatprep.mubr.bf16.mxu0 0
  %6348 = vmatmul.mubr.bf16.gmra.mrb[0].mxu0 %v6267
  %v6349 = vpop.f32.mrb[0].mxu0
  %v6350 = vadd.f32 %v6225, %v6349
  %v6351 = vpop.f32.mrb[0].mxu0
  %v6352 = vpop.f32.mrb[0].mxu0
  %v6353 = vadd.f32 %v6225, %v6352
  %v6354 = vpop.f32.mrb[0].mxu0
  %6355 = vmatprep.mubr.bf16.mxu0 0
  %6356 = vmatmul.mubr.bf16.gmra.mrb[0].mxu0 %v6270
  %v6357 = vpop.f32.mrb[0].mxu0
  %v6358 = vadd.f32 %v6225, %v6357
  %v6359 = vpop.f32.mrb[0].mxu0
  %v6360 = vpop.f32.mrb[0].mxu0
  %v6361 = vadd.f32 %v6225, %v6360
  %v6362 = vpop.f32.mrb[0].mxu0
  %6363 = vmatprep.mubr.bf16.mxu0 0
  %6364 = vmatmul.mubr.bf16.gmra.mrb[0].mxu0 %v6273
  %v6365 = vpop.f32.mrb[0].mxu0
  %v6366 = vadd.f32 %v6225, %v6365
  %v6367 = vpop.f32.mrb[0].mxu0
  %v6368 = vpop.f32.mrb[0].mxu0
  %v6369 = vadd.f32 %v6225, %v6368
  %v6370 = vpop.f32.mrb[0].mxu0
  %6371 = vdwg.mxu0
  %6372 = vst [vmem:[%s19] sm:$0xff] %v6310
  %6373 = vst [vmem:[%s19 + $0x8] sm:$0xff] %v6313
  %6374 = vst [vmem:[%s19 + $0x10] sm:$0xff] %v6318
  %6375 = vst [vmem:[%s19 + $0x18] sm:$0xff] %v6321
  %6376 = vst [vmem:[%s19 + $0x20] sm:$0xff] %v6326
  %6377 = vst [vmem:[%s19 + $0x28] sm:$0xff] %v6329
  %6378 = vst [vmem:[%s19 + $0x30] sm:$0xff] %v6334
  %6379 = vst [vmem:[%s19 + $0x38] sm:$0xff] %v6337
  %6380 = vst [vmem:[%s19 + $0x40] sm:$0xff] %v6342
  %6381 = vst [vmem:[%s19 + $0x48] sm:$0xff] %v6345
  %6382 = vst [vmem:[%s19 + $0x50] sm:$0xff] %v6350
  %6383 = vst [vmem:[%s19 + $0x58] sm:$0xff] %v6353
  %6384 = vst [vmem:[%s19 + $0x60] sm:$0xff] %v6358
  %6385 = vst [vmem:[%s19 + $0x68] sm:$0xff] %v6361
  %6386 = vst [vmem:[%s19 + $0x70] sm:$0xff] %v6366
  %6387 = vst [vmem:[%s19 + $0x78] sm:$0xff] %v6369
  // Predicated region
  $region78: #{dit_forward_pallas.1} parent=0 // pred_check
    _
  $region79: #{dit_forward_pallas.1} parent=0 // pred_check_branch
    %6389 = sbr.rel (0) target = $region81
  $region80: #{dit_forward_pallas.1} parent=0 // pred_region
    _
  $region81: #{dit_forward_pallas.1} parent=0 // pred_fallthru
    _
  // Predicated region
  $region82: #{dit_forward_pallas.1} parent=0 // pred_check
    _
  $region83: #{dit_forward_pallas.1} parent=0 // pred_check_branch
    %6391 = sbr.rel (0) target = $region85
  $region84: #{dit_forward_pallas.1} parent=0 // pred_region
    _
  $region85: #{dit_forward_pallas.1} parent=0 // pred_fallthru
    _

</llo_original>
